<compile_context>
chip_gen: v7x
topology: tpu7x:2x2x1
jax: 0.10.0
libtpu: 0.0.40
codegen_flags: <defaults>
</compile_context>

<pallas_src>
import jax
import jax.numpy as jnp
from jax.experimental import pallas as pl
from jax.experimental.pallas import tpu as pltpu


# ----------------------------------------------------------------------------
# Pallas kernels
# ----------------------------------------------------------------------------

def _frame_encode_kernel(x_ref, wt_ref, bc_ref, wp_ref, bp_ref, o_ref):
    """Fused conv-as-GEMM + ReLU + frame projector for a tile of frames.

    x    : (tile, C*H*W)   f32   flattened (unpadded) NCHW frames
    wt   : (C*H*W, 512)    bf16  lowered conv weight (zero-padding folded in,
                                 columns in NCHW-flatten order)
    bc   : (1, 512)        f32   conv bias broadcast over spatial positions
    wp   : (512, V)        bf16  frame projector weight
    bp   : (1, V)          f32
    o    : (tile, V)       f32
    """
    x = x_ref[...].astype(jnp.bfloat16)
    feats = jnp.dot(x, wt_ref[...], preferred_element_type=jnp.float32) + bc_ref[...]
    feats = jnp.maximum(feats, 0.0)                      # ReLU in f32
    o_ref[...] = (jnp.dot(feats.astype(jnp.bfloat16), wp_ref[...],
                          preferred_element_type=jnp.float32) + bp_ref[...])


def frame_encode_pallas(x, w_conv, b_conv, w_proj, b_proj):
    """x: (N, K) -> (N, V).  Grid over frames, marked parallel (v7x megacore)."""
    N, K = x.shape
    F = w_conv.shape[1]
    V = w_proj.shape[1]
    if N % 8 == 0 and N >= 16:
        tile_m = max(t for t in (8, 16, 32, 64, 128, 256)
                     if N % t == 0 and N // t >= 2)
    else:
        tile_m = N
    grid = (N // tile_m,)
    return pl.pallas_call(
        _frame_encode_kernel,
        out_shape=jax.ShapeDtypeStruct((N, V), jnp.float32),
        grid=grid,
        in_specs=[
            pl.BlockSpec((tile_m, K), lambda i: (i, 0)),
            pl.BlockSpec((K, F), lambda i: (0, 0)),
            pl.BlockSpec((1, F), lambda i: (0, 0)),
            pl.BlockSpec((F, V), lambda i: (0, 0)),
            pl.BlockSpec((1, V), lambda i: (0, 0)),
        ],
        out_specs=pl.BlockSpec((tile_m, V), lambda i: (i, 0)),
        compiler_params=pltpu.CompilerParams(dimension_semantics=("parallel",)),
    )(x, w_conv, b_conv, w_proj, b_proj)


def _lstm_step(x_t_bf16, h, c, wih, whh, b):
    """One LSTM step.  Gates as four lane-aligned (Din, H) blocks (PyTorch i,f,g,o)."""
    h_b = h.astype(jnp.bfloat16)
    pre = [jnp.dot(x_t_bf16, wih[k], preferred_element_type=jnp.float32)
           + jnp.dot(h_b, whh[k], preferred_element_type=jnp.float32)
           + b[k]
           for k in range(4)]
    i = jax.nn.sigmoid(pre[0])
    f = jax.nn.sigmoid(pre[1])
    g = jnp.tanh(pre[2])
    o = jax.nn.sigmoid(pre[3])
    c_new = f * c + i * g                                # elementwise in f32 (v5e-safe)
    h_new = o * jnp.tanh(c_new)
    return h_new, c_new


def _fused_seq_head_kernel(vid_ref, q_ref,
                           vwih_ref, vwhh_ref, vb_ref,
                           qwih_ref, qwhh_ref, qb_ref,
                           w1v_ref, w1t_ref, b1_ref, w2_ref, b2_ref,
                           o_ref):
    """Video LSTM + question LSTM + (concat->)MLP->head, all in one invocation.

    vid  : (Tv, Bp, V)  f32   projected frame features, seq-first
    q    : (Tq, Bp, E)  f32   embedded question tokens, seq-first
    *wih : (4, Din, H)  bf16  per-gate input weights     (gate order i, f, g, o)
    *whh : (4, H, H)    bf16  per-gate recurrent weights
    *b   : (4, 1, H)    f32   fused bias (b_ih + b_hh)
    w1v  : (V, M) bf16, w1t : (Hq, M) bf16, b1 : (1, M) f32   -- concat folded in
    w2   : (M, O) bf16, b2 : (1, O) f32
    o    : (Bp, O) f32
    """
    Tv, Bp, _ = vid_ref.shape
    Tq = q_ref.shape[0]
    Hv = vwhh_ref.shape[-1]
    Hq = qwhh_ref.shape[-1]

    vwih = vwih_ref[...]
    vwhh = vwhh_ref[...]
    vb = vb_ref[...]
    qwih = qwih_ref[...]
    qwhh = qwhh_ref[...]
    qb = qb_ref[...]

    def vid_step(t, carry):
        h, c = carry
        return _lstm_step(vid_ref[t].astype(jnp.bfloat16), h, c, vwih, vwhh, vb)

    vis, _ = jax.lax.fori_loop(
        0, Tv, vid_step,
        (jnp.zeros((Bp, Hv), jnp.float32), jnp.zeros((Bp, Hv), jnp.float32)),
        unroll=True)

    def q_step(t, carry):
        h, c = carry
        return _lstm_step(q_ref[t].astype(jnp.bfloat16), h, c, qwih, qwhh, qb)

    txt, _ = jax.lax.fori_loop(
        0, Tq, q_step,
        (jnp.zeros((Bp, Hq), jnp.float32), jnp.zeros((Bp, Hq), jnp.float32)),
        unroll=True)

    h = (jnp.dot(vis.astype(jnp.bfloat16), w1v_ref[...],
                 preferred_element_type=jnp.float32)
         + jnp.dot(txt.astype(jnp.bfloat16), w1t_ref[...],
                   preferred_element_type=jnp.float32)
         + b1_ref[...])
    h = jnp.maximum(h, 0.0)
    o_ref[...] = (jnp.dot(h.astype(jnp.bfloat16), w2_ref[...],
                          preferred_element_type=jnp.float32) + b2_ref[...])


def fused_seq_head_pallas(vid_seq, q_emb, vid_wih, vid_whh, vid_b,
                          q_wih, q_whh, q_b, w1v, w1t, b1, w2, b2):
    Bp = vid_seq.shape[1]
    n_out = w2.shape[1]
    return pl.pallas_call(
        _fused_seq_head_kernel,
        out_shape=jax.ShapeDtypeStruct((Bp, n_out), jnp.float32),
    )(vid_seq, q_emb, vid_wih, vid_whh, vid_b, q_wih, q_whh, q_b,
      w1v, w1t, b1, w2, b2)


# ----------------------------------------------------------------------------
# One-time weight lowering (plain JAX, runs at init)
# ----------------------------------------------------------------------------

def conv_to_lowered_gemm(conv_w, Hs, Ws, stride=2, pad=1):
    """Lower Conv2d(k=3, s=2, p=1) weight to a dense (C_in*Hs*Ws, C_out*Ho*Wo) matrix.

    The zero-padding is folded into the matrix (rows index the UNPADDED frame), so the
    GEMM contraction dim is C_in*Hs*Ws (= 1024 here, an exact lane multiple).  Row order
    matches an NCHW-flattened frame; column order matches nn.Flatten of the NCHW conv
    output (c_out-major), so the projector weight needs no permutation.
    """
    C_out, C_in, kh, kw = conv_w.shape
    Ho = (Hs + 2 * pad - kh) // stride + 1
    Wo = (Ws + 2 * pad - kw) // stride + 1

    hi = jnp.arange(Hs)
    ho = jnp.arange(Ho)
    a = jnp.arange(kh)
    Sh = (hi[:, None, None] == stride * ho[None, :, None] + a[None, None, :] - pad
          ).astype(jnp.float32)                       # (Hs, Ho, kh)
    wi = jnp.arange(Ws)
    wo = jnp.arange(Wo)
    bb = jnp.arange(kw)
    Sw = (wi[:, None, None] == stride * wo[None, :, None] + bb[None, None, :] - pad
          ).astype(jnp.float32)                       # (Ws, Wo, kw)

    # W[c_in, hi, wi, c_out, ho, wo] = sum_{a,b} Sh[hi,ho,a] Sw[wi,wo,b] conv_w[c_out,c_in,a,b]
    W = jnp.einsum("hoa,vpb,mcab->chvmop", Sh, Sw, conv_w)
    return W.reshape(C_in * Hs * Ws, C_out * Ho * Wo), Ho, Wo


# ----------------------------------------------------------------------------
# Model
# ----------------------------------------------------------------------------

def init_params(key, *, C=4, C_out=8, Hs=16, Ws=16, V_hid=32, Q_hid=32,
                Q_emb=32, vocab=50, mlp_hid=64, out_size=4):
    ks = jax.random.split(key, 16)
    u = lambda k, shape, s: jax.random.uniform(k, shape, jnp.float32, -s, s)

    p = {}
    # frame encoder conv (lowered once to a dense GEMM weight, stored bf16 for the MXU)
    conv_w = u(ks[0], (C_out, C, 3, 3), 0.2)
    conv_b = u(ks[1], (C_out,), 0.2)
    conv_toe, Ho, Wo = conv_to_lowered_gemm(conv_w, Hs, Ws)
    frame_feat = C_out * Ho * Wo                                     # 512
    p["conv_toe_w"] = conv_toe.astype(jnp.bfloat16)                  # (C*16*16, 512)
    p["conv_toe_b"] = jnp.repeat(conv_b, Ho * Wo)[None, :]           # (1, 512) f32
    # frame projector
    p["proj_w"] = u(ks[2], (frame_feat, V_hid), 0.05).astype(jnp.bfloat16)
    p["proj_b"] = u(ks[3], (1, V_hid), 0.05)
    # video LSTM, per-gate weight blocks in PyTorch gate order (i, f, g, o)
    # NOTE: PyTorch nn.LSTM has b_ih + b_hh; a single fused bias stands in for their sum.
    p["vid_wih"] = u(ks[4], (4, V_hid, V_hid), 0.15).astype(jnp.bfloat16)
    p["vid_whh"] = u(ks[5], (4, V_hid, V_hid), 0.15).astype(jnp.bfloat16)
    p["vid_b"] = u(ks[6], (4, 1, V_hid), 0.15)
    # question encoder: embedding + LSTM
    # TODO(synk): question_encoder architecture comes from config; Embedding+LSTM assumed.
    p["q_emb"] = u(ks[7], (vocab, Q_emb), 0.3)
    p["q_wih"] = u(ks[8], (4, Q_emb, Q_hid), 0.15).astype(jnp.bfloat16)
    p["q_whh"] = u(ks[9], (4, Q_hid, Q_hid), 0.15).astype(jnp.bfloat16)
    p["q_b"] = u(ks[10], (4, 1, Q_hid), 0.15)
    # MLP + head; mlp_w split into (vis-rows, txt-rows) so the concat is fused away
    p["mlp_w_vis"] = u(ks[11], (V_hid, mlp_hid), 0.1).astype(jnp.bfloat16)
    p["mlp_w_txt"] = u(ks[12], (Q_hid, mlp_hid), 0.1).astype(jnp.bfloat16)
    p["mlp_b"] = u(ks[13], (1, mlp_hid), 0.1)
    p["head_w"] = u(ks[14], (mlp_hid, out_size), 0.1).astype(jnp.bfloat16)
    p["head_b"] = u(ks[15], (1, out_size), 0.1)
    return p


def lrcn_forward(params, simulations, questions):
    # ---------------- process_simulation ----------------
    # simulations: (B, C, D, H, W) -> (D, B, C, H, W): frames in seq-first order so the
    # encoder output is already laid out as (D, B, V) for the video LSTM.
    sims = jnp.transpose(simulations, (2, 0, 1, 3, 4))
    D, B, C, Hs, Ws = sims.shape
    N = D * B
    frames_flat = sims.reshape(N, C * Hs * Ws)                       # (N, 1024) f32

    # fused conv-GEMM + ReLU + frame projector (Pallas, parallel over frames)
    proj = frame_encode_pallas(frames_flat, params["conv_toe_w"], params["conv_toe_b"],
                               params["proj_w"], params["proj_b"])   # (N, V_hid) f32

    V_hid = proj.shape[-1]
    Bp = ((B + 7) // 8) * 8                                          # pad batch to 8 sublanes
    vid_seq = proj.reshape(D, B, V_hid)                              # free reshape
    vid_seq = jnp.pad(vid_seq, ((0, 0), (0, Bp - B), (0, 0)))

    # ---------------- process_question (embedding gather stays XLA glue) --------------
    q_pad = jnp.pad(questions, ((0, 0), (0, Bp - B)))                # (S, Bp) token ids
    emb = jnp.take(params["q_emb"], q_pad, axis=0)                   # (S, Bp, E)

    # ---------------- both LSTMs + (cat ->) MLP -> linear, single fused kernel --------
    out = fused_seq_head_pallas(vid_seq, emb,
                                params["vid_wih"], params["vid_whh"], params["vid_b"],
                                params["q_wih"], params["q_whh"], params["q_b"],
                                params["mlp_w_vis"], params["mlp_w_txt"], params["mlp_b"],
                                params["head_w"], params["head_b"])  # (Bp, out)
    return out[:B]


# ----------------------------------------------------------------------------
# main
# ----------------------------------------------------------------------------

if __name__ == "__main__":
    key = jax.random.PRNGKey(0)
    k_param, k_sim, k_q = jax.random.split(key, 3)

    B, C, D, Hs, Ws = 2, 4, 8, 16, 16
    S, vocab = 6, 50

    params = init_params(k_param, C=C, Hs=Hs, Ws=Ws, vocab=vocab)

    simulations = jax.random.normal(k_sim, (B, C, D, Hs, Ws), jnp.float32)
    questions = jax.random.randint(k_q, (S, B), 0, vocab, jnp.int32)

    fwd = jax.jit(lrcn_forward)
    out = fwd(params, simulations, questions)
    out = jax.block_until_ready(out)

    assert out.shape == (B, 4), out.shape
    assert jnp.all(jnp.isfinite(out))
    print("KERNEL_OK")
</pallas_src>

<mosaic_0001>
module attributes {stable_mosaic.version = 11 : i64} {
  func.func @_frame_encode_kernel(%arg0: i32, %arg1: memref<8x1024xf32, #tpu.memory_space<vmem>>, %arg2: memref<1024x512xbf16, #tpu.memory_space<vmem>>, %arg3: memref<1x512xf32, #tpu.memory_space<vmem>>, %arg4: memref<512x32xbf16, #tpu.memory_space<vmem>>, %arg5: memref<1x32xf32, #tpu.memory_space<vmem>>, %arg6: memref<8x32xf32, #tpu.memory_space<vmem>>) attributes {dimension_semantics = [#tpu.dimension_semantics<parallel>], iteration_bounds = array<i64: 2>, scalar_prefetch = 0 : i64, scratch_operands = 0 : i64, tpu.core_type = #tpu.core_type<tc>, window_params = [{transform_indices = @transform_0, window_bounds = array<i64: 8, 1024>}, {pipeline_mode = #tpu.pipeline_mode<synchronous>, transform_indices = @transform_1, window_bounds = array<i64: 1024, 512>}, {pipeline_mode = #tpu.pipeline_mode<synchronous>, transform_indices = @transform_2, window_bounds = array<i64: 1, 512>}, {pipeline_mode = #tpu.pipeline_mode<synchronous>, transform_indices = @transform_3, window_bounds = array<i64: 512, 32>}, {pipeline_mode = #tpu.pipeline_mode<synchronous>, transform_indices = @transform_4, window_bounds = array<i64: 1, 32>}, {transform_indices = @transform_5, window_bounds = array<i64: 8, 32>}]} {
    %c0 = arith.constant 0 : index
    %c0_0 = arith.constant 0 : index
    %0 = vector.load %arg1[%c0, %c0_0] : memref<8x1024xf32, #tpu.memory_space<vmem>>, vector<8x1024xf32>
    %1 = arith.truncf %0 : vector<8x1024xf32> to vector<8x1024xbf16>
    %c0_1 = arith.constant 0 : index
    %c0_2 = arith.constant 0 : index
    %2 = vector.load %arg2[%c0_1, %c0_2] : memref<1024x512xbf16, #tpu.memory_space<vmem>>, vector<1024x512xbf16>
    %cst = arith.constant dense<0.000000e+00> : vector<8x512xf32>
    %3 = tpu.matmul %1, %2, %cst {dimension_numbers = #tpu.dot_dimension_numbers<[1], [0], [0], [1], [0, 0, 1, 1], [], []>} : vector<8x1024xbf16>, vector<1024x512xbf16>, vector<8x512xf32> -> vector<8x512xf32>
    %c0_3 = arith.constant 0 : index
    %c0_4 = arith.constant 0 : index
    %4 = vector.load %arg3[%c0_3, %c0_4] : memref<1x512xf32, #tpu.memory_space<vmem>>, vector<1x512xf32>
    %5 = vector.broadcast %4 : vector<1x512xf32> to vector<8x512xf32>
    %6 = arith.addf %3, %5 : vector<8x512xf32>
    %cst_5 = arith.constant 0.000000e+00 : f32
    %7 = vector.broadcast %cst_5 : f32 to vector<8x512xf32>
    %8 = arith.maximumf %6, %7 : vector<8x512xf32>
    %9 = arith.truncf %8 : vector<8x512xf32> to vector<8x512xbf16>
    %c0_6 = arith.constant 0 : index
    %c0_7 = arith.constant 0 : index
    %10 = vector.load %arg4[%c0_6, %c0_7] : memref<512x32xbf16, #tpu.memory_space<vmem>>, vector<512x32xbf16>
    %cst_8 = arith.constant dense<0.000000e+00> : vector<8x32xf32>
    %11 = tpu.matmul %9, %10, %cst_8 {dimension_numbers = #tpu.dot_dimension_numbers<[1], [0], [0], [1], [0, 0, 1, 1], [], []>} : vector<8x512xbf16>, vector<512x32xbf16>, vector<8x32xf32> -> vector<8x32xf32>
    %c0_9 = arith.constant 0 : index
    %c0_10 = arith.constant 0 : index
    %12 = vector.load %arg5[%c0_9, %c0_10] : memref<1x32xf32, #tpu.memory_space<vmem>>, vector<1x32xf32>
    %13 = vector.broadcast %12 : vector<1x32xf32> to vector<8x32xf32>
    %14 = arith.addf %11, %13 : vector<8x32xf32>
    %c0_11 = arith.constant 0 : index
    %c0_12 = arith.constant 0 : index
    %15 = vector.load %arg6[%c0_11, %c0_12] : memref<8x32xf32, #tpu.memory_space<vmem>>, vector<8x32xf32>
    tpu.vector_store %arg6[%c0_11, %c0_12], %14 {strides = array<i32>} : memref<8x32xf32, #tpu.memory_space<vmem>>, vector<8x32xf32>,
    return
  }
  func.func @transform_0(%arg0: i32) -> (i32, i32) {
    %c0_i32 = arith.constant 0 : i32
    %c0_i32_0 = arith.constant 0 : i32
    return %arg0, %c0_i32 : i32, i32
  }
  func.func @transform_1(%arg0: i32) -> (i32, i32) {
    %c0_i32 = arith.constant 0 : i32
    %c0_i32_0 = arith.constant 0 : i32
    %c0_i32_1 = arith.constant 0 : i32
    return %c0_i32, %c0_i32_0 : i32, i32
  }
  func.func @transform_2(%arg0: i32) -> (i32, i32) {
    %c0_i32 = arith.constant 0 : i32
    %c0_i32_0 = arith.constant 0 : i32
    %c0_i32_1 = arith.constant 0 : i32
    return %c0_i32, %c0_i32_0 : i32, i32
  }
  func.func @transform_3(%arg0: i32) -> (i32, i32) {
    %c0_i32 = arith.constant 0 : i32
    %c0_i32_0 = arith.constant 0 : i32
    %c0_i32_1 = arith.constant 0 : i32
    return %c0_i32, %c0_i32_0 : i32, i32
  }
  func.func @transform_4(%arg0: i32) -> (i32, i32) {
    %c0_i32 = arith.constant 0 : i32
    %c0_i32_0 = arith.constant 0 : i32
    %c0_i32_1 = arith.constant 0 : i32
    return %c0_i32, %c0_i32_0 : i32, i32
  }
  func.func @transform_5(%arg0: i32) -> (i32, i32) {
    %c0_i32 = arith.constant 0 : i32
    %c0_i32_0 = arith.constant 0 : i32
    return %arg0, %c0_i32 : i32, i32
  }
}

module attributes {stable_mosaic.version = 11 : i64} {
  func.func @_fused_seq_head_kernel(%arg0: memref<8x8x32xf32, #tpu.memory_space<vmem>>, %arg1: memref<6x8x32xf32, #tpu.memory_space<vmem>>, %arg2: memref<4x32x32xbf16, #tpu.memory_space<vmem>>, %arg3: memref<4x32x32xbf16, #tpu.memory_space<vmem>>, %arg4: memref<4x1x32xf32, #tpu.memory_space<vmem>>, %arg5: memref<4x32x32xbf16, #tpu.memory_space<vmem>>, %arg6: memref<4x32x32xbf16, #tpu.memory_space<vmem>>, %arg7: memref<4x1x32xf32, #tpu.memory_space<vmem>>, %arg8: memref<32x64xbf16, #tpu.memory_space<vmem>>, %arg9: memref<32x64xbf16, #tpu.memory_space<vmem>>, %arg10: memref<1x64xf32, #tpu.memory_space<vmem>>, %arg11: memref<64x4xbf16, #tpu.memory_space<vmem>>, %arg12: memref<1x4xf32, #tpu.memory_space<vmem>>, %arg13: memref<8x4xf32, #tpu.memory_space<vmem>>) attributes {dimension_semantics = [], scalar_prefetch = 0 : i64, scratch_operands = 0 : i64, tpu.core_type = #tpu.core_type<tc>} {
    %c0 = arith.constant 0 : index
    %c0_0 = arith.constant 0 : index
    %c0_1 = arith.constant 0 : index
    %0 = vector.load %arg2[%c0, %c0_0, %c0_1] : memref<4x32x32xbf16, #tpu.memory_space<vmem>>, vector<4x32x32xbf16>
    %c0_2 = arith.constant 0 : index
    %c0_3 = arith.constant 0 : index
    %c0_4 = arith.constant 0 : index
    %1 = vector.load %arg3[%c0_2, %c0_3, %c0_4] : memref<4x32x32xbf16, #tpu.memory_space<vmem>>, vector<4x32x32xbf16>
    %c0_5 = arith.constant 0 : index
    %c0_6 = arith.constant 0 : index
    %c0_7 = arith.constant 0 : index
    %2 = vector.load %arg4[%c0_5, %c0_6, %c0_7] : memref<4x1x32xf32, #tpu.memory_space<vmem>>, vector<4x1x32xf32>
    %c0_8 = arith.constant 0 : index
    %c0_9 = arith.constant 0 : index
    %c0_10 = arith.constant 0 : index
    %3 = vector.load %arg5[%c0_8, %c0_9, %c0_10] : memref<4x32x32xbf16, #tpu.memory_space<vmem>>, vector<4x32x32xbf16>
    %c0_11 = arith.constant 0 : index
    %c0_12 = arith.constant 0 : index
    %c0_13 = arith.constant 0 : index
    %4 = vector.load %arg6[%c0_11, %c0_12, %c0_13] : memref<4x32x32xbf16, #tpu.memory_space<vmem>>, vector<4x32x32xbf16>
    %c0_14 = arith.constant 0 : index
    %c0_15 = arith.constant 0 : index
    %c0_16 = arith.constant 0 : index
    %5 = vector.load %arg7[%c0_14, %c0_15, %c0_16] : memref<4x1x32xf32, #tpu.memory_space<vmem>>, vector<4x1x32xf32>
    %cst = arith.constant 0.000000e+00 : f32
    %6 = vector.broadcast %cst : f32 to vector<8x32xf32>
    %cst_17 = arith.constant 0.000000e+00 : f32
    %7 = vector.broadcast %cst_17 : f32 to vector<8x32xf32>
    %c0_i32 = arith.constant 0 : i32
    %8 = arith.index_cast %c0_i32 : i32 to index
    %c0_18 = arith.constant 0 : index
    %c0_19 = arith.constant 0 : index
    %9 = vector.load %arg0[%8, %c0_18, %c0_19] : memref<8x8x32xf32, #tpu.memory_space<vmem>>, vector<1x8x32xf32>
    %10 = vector.shape_cast %9 : vector<1x8x32xf32> to vector<8x32xf32>
    %11 = arith.truncf %10 : vector<8x32xf32> to vector<8x32xbf16>
    %12 = arith.truncf %6 : vector<8x32xf32> to vector<8x32xbf16>
    %13 = vector.extract_strided_slice %0 {offsets = [0, 0, 0], sizes = [1, 32, 32], strides = [1, 1, 1]} : vector<4x32x32xbf16> to vector<1x32x32xbf16>
    %14 = vector.shape_cast %13 : vector<1x32x32xbf16> to vector<32x32xbf16>
    %cst_20 = arith.constant dense<0.000000e+00> : vector<8x32xf32>
    %15 = tpu.matmul %11, %14, %cst_20 {dimension_numbers = #tpu.dot_dimension_numbers<[1], [0], [0], [1], [0, 0, 1, 1], [], []>} : vector<8x32xbf16>, vector<32x32xbf16>, vector<8x32xf32> -> vector<8x32xf32>
    %16 = vector.extract_strided_slice %1 {offsets = [0, 0, 0], sizes = [1, 32, 32], strides = [1, 1, 1]} : vector<4x32x32xbf16> to vector<1x32x32xbf16>
    %17 = vector.shape_cast %16 : vector<1x32x32xbf16> to vector<32x32xbf16>
    %cst_21 = arith.constant dense<0.000000e+00> : vector<8x32xf32>
    %18 = tpu.matmul %12, %17, %cst_21 {dimension_numbers = #tpu.dot_dimension_numbers<[1], [0], [0], [1], [0, 0, 1, 1], [], []>} : vector<8x32xbf16>, vector<32x32xbf16>, vector<8x32xf32> -> vector<8x32xf32>
    %19 = arith.addf %15, %18 : vector<8x32xf32>
    %20 = vector.extract_strided_slice %2 {offsets = [0, 0, 0], sizes = [1, 1, 32], strides = [1, 1, 1]} : vector<4x1x32xf32> to vector<1x1x32xf32>
    %21 = vector.shape_cast %20 : vector<1x1x32xf32> to vector<1x32xf32>
    %22 = vector.broadcast %21 : vector<1x32xf32> to vector<8x32xf32>
    %23 = arith.addf %19, %22 : vector<8x32xf32>
    %24 = vector.extract_strided_slice %0 {offsets = [1, 0, 0], sizes = [1, 32, 32], strides = [1, 1, 1]} : vector<4x32x32xbf16> to vector<1x32x32xbf16>
    %25 = vector.shape_cast %24 : vector<1x32x32xbf16> to vector<32x32xbf16>
    %cst_22 = arith.constant dense<0.000000e+00> : vector<8x32xf32>
    %26 = tpu.matmul %11, %25, %cst_22 {dimension_numbers = #tpu.dot_dimension_numbers<[1], [0], [0], [1], [0, 0, 1, 1], [], []>} : vector<8x32xbf16>, vector<32x32xbf16>, vector<8x32xf32> -> vector<8x32xf32>
    %27 = vector.extract_strided_slice %1 {offsets = [1, 0, 0], sizes = [1, 32, 32], strides = [1, 1, 1]} : vector<4x32x32xbf16> to vector<1x32x32xbf16>
    %28 = vector.shape_cast %27 : vector<1x32x32xbf16> to vector<32x32xbf16>
    %cst_23 = arith.constant dense<0.000000e+00> : vector<8x32xf32>
    %29 = tpu.matmul %12, %28, %cst_23 {dimension_numbers = #tpu.dot_dimension_numbers<[1], [0], [0], [1], [0, 0, 1, 1], [], []>} : vector<8x32xbf16>, vector<32x32xbf16>, vector<8x32xf32> -> vector<8x32xf32>
    %30 = arith.addf %26, %29 : vector<8x32xf32>
    %31 = vector.extract_strided_slice %2 {offsets = [1, 0, 0], sizes = [1, 1, 32], strides = [1, 1, 1]} : vector<4x1x32xf32> to vector<1x1x32xf32>
    %32 = vector.shape_cast %31 : vector<1x1x32xf32> to vector<1x32xf32>
    %33 = vector.broadcast %32 : vector<1x32xf32> to vector<8x32xf32>
    %34 = arith.addf %30, %33 : vector<8x32xf32>
    %35 = vector.extract_strided_slice %0 {offsets = [2, 0, 0], sizes = [1, 32, 32], strides = [1, 1, 1]} : vector<4x32x32xbf16> to vector<1x32x32xbf16>
    %36 = vector.shape_cast %35 : vector<1x32x32xbf16> to vector<32x32xbf16>
    %cst_24 = arith.constant dense<0.000000e+00> : vector<8x32xf32>
    %37 = tpu.matmul %11, %36, %cst_24 {dimension_numbers = #tpu.dot_dimension_numbers<[1], [0], [0], [1], [0, 0, 1, 1], [], []>} : vector<8x32xbf16>, vector<32x32xbf16>, vector<8x32xf32> -> vector<8x32xf32>
    %38 = vector.extract_strided_slice %1 {offsets = [2, 0, 0], sizes = [1, 32, 32], strides = [1, 1, 1]} : vector<4x32x32xbf16> to vector<1x32x32xbf16>
    %39 = vector.shape_cast %38 : vector<1x32x32xbf16> to vector<32x32xbf16>
    %cst_25 = arith.constant dense<0.000000e+00> : vector<8x32xf32>
    %40 = tpu.matmul %12, %39, %cst_25 {dimension_numbers = #tpu.dot_dimension_numbers<[1], [0], [0], [1], [0, 0, 1, 1], [], []>} : vector<8x32xbf16>, vector<32x32xbf16>, vector<8x32xf32> -> vector<8x32xf32>
    %41 = arith.addf %37, %40 : vector<8x32xf32>
    %42 = vector.extract_strided_slice %2 {offsets = [2, 0, 0], sizes = [1, 1, 32], strides = [1, 1, 1]} : vector<4x1x32xf32> to vector<1x1x32xf32>
    %43 = vector.shape_cast %42 : vector<1x1x32xf32> to vector<1x32xf32>
    %44 = vector.broadcast %43 : vector<1x32xf32> to vector<8x32xf32>
    %45 = arith.addf %41, %44 : vector<8x32xf32>
    %46 = vector.extract_strided_slice %0 {offsets = [3, 0, 0], sizes = [1, 32, 32], strides = [1, 1, 1]} : vector<4x32x32xbf16> to vector<1x32x32xbf16>
    %47 = vector.shape_cast %46 : vector<1x32x32xbf16> to vector<32x32xbf16>
    %cst_26 = arith.constant dense<0.000000e+00> : vector<8x32xf32>
    %48 = tpu.matmul %11, %47, %cst_26 {dimension_numbers = #tpu.dot_dimension_numbers<[1], [0], [0], [1], [0, 0, 1, 1], [], []>} : vector<8x32xbf16>, vector<32x32xbf16>, vector<8x32xf32> -> vector<8x32xf32>
    %49 = vector.extract_strided_slice %1 {offsets = [3, 0, 0], sizes = [1, 32, 32], strides = [1, 1, 1]} : vector<4x32x32xbf16> to vector<1x32x32xbf16>
    %50 = vector.shape_cast %49 : vector<1x32x32xbf16> to vector<32x32xbf16>
    %cst_27 = arith.constant dense<0.000000e+00> : vector<8x32xf32>
    %51 = tpu.matmul %12, %50, %cst_27 {dimension_numbers = #tpu.dot_dimension_numbers<[1], [0], [0], [1], [0, 0, 1, 1], [], []>} : vector<8x32xbf16>, vector<32x32xbf16>, vector<8x32xf32> -> vector<8x32xf32>
    %52 = arith.addf %48, %51 : vector<8x32xf32>
    %53 = vector.extract_strided_slice %2 {offsets = [3, 0, 0], sizes = [1, 1, 32], strides = [1, 1, 1]} : vector<4x1x32xf32> to vector<1x1x32xf32>
    %54 = vector.shape_cast %53 : vector<1x1x32xf32> to vector<1x32xf32>
    %55 = vector.broadcast %54 : vector<1x32xf32> to vector<8x32xf32>
    %56 = arith.addf %52, %55 : vector<8x32xf32>
    %57 = arith.negf %23 : vector<8x32xf32>
    %58 = math.exp %57 : vector<8x32xf32>
    %cst_28 = arith.constant 1.000000e+00 : f32
    %59 = vector.broadcast %cst_28 : f32 to vector<8x32xf32>
    %60 = arith.addf %59, %58 : vector<8x32xf32>
    %61 = arith.divf %59, %60 : vector<8x32xf32>
    %62 = arith.negf %34 : vector<8x32xf32>
    %63 = math.exp %62 : vector<8x32xf32>
    %cst_29 = arith.constant 1.000000e+00 : f32
    %64 = vector.broadcast %cst_29 : f32 to vector<8x32xf32>
    %65 = arith.addf %64, %63 : vector<8x32xf32>
    %66 = arith.divf %64, %65 : vector<8x32xf32>
    %67 = math.tanh %45 : vector<8x32xf32>
    %68 = arith.negf %56 : vector<8x32xf32>
    %69 = math.exp %68 : vector<8x32xf32>
    %cst_30 = arith.constant 1.000000e+00 : f32
    %70 = vector.broadcast %cst_30 : f32 to vector<8x32xf32>
    %71 = arith.addf %70, %69 : vector<8x32xf32>
    %72 = arith.divf %70, %71 : vector<8x32xf32>
    %73 = arith.mulf %66, %7 : vector<8x32xf32>
    %74 = arith.mulf %61, %67 : vector<8x32xf32>
    %75 = arith.addf %73, %74 : vector<8x32xf32>
    %76 = math.tanh %75 : vector<8x32xf32>
    %77 = arith.mulf %72, %76 : vector<8x32xf32>
    %c1_i32 = arith.constant 1 : i32
    %78 = arith.index_cast %c1_i32 : i32 to index
    %c0_31 = arith.constant 0 : index
    %c0_32 = arith.constant 0 : index
    %79 = vector.load %arg0[%78, %c0_31, %c0_32] : memref<8x8x32xf32, #tpu.memory_space<vmem>>, vector<1x8x32xf32>
    %80 = vector.shape_cast %79 : vector<1x8x32xf32> to vector<8x32xf32>
    %81 = arith.truncf %80 : vector<8x32xf32> to vector<8x32xbf16>
    %82 = arith.truncf %77 : vector<8x32xf32> to vector<8x32xbf16>
    %83 = vector.extract_strided_slice %0 {offsets = [0, 0, 0], sizes = [1, 32, 32], strides = [1, 1, 1]} : vector<4x32x32xbf16> to vector<1x32x32xbf16>
    %84 = vector.shape_cast %83 : vector<1x32x32xbf16> to vector<32x32xbf16>
    %cst_33 = arith.constant dense<0.000000e+00> : vector<8x32xf32>
    %85 = tpu.matmul %81, %84, %cst_33 {dimension_numbers = #tpu.dot_dimension_numbers<[1], [0], [0], [1], [0, 0, 1, 1], [], []>} : vector<8x32xbf16>, vector<32x32xbf16>, vector<8x32xf32> -> vector<8x32xf32>
    %86 = vector.extract_strided_slice %1 {offsets = [0, 0, 0], sizes = [1, 32, 32], strides = [1, 1, 1]} : vector<4x32x32xbf16> to vector<1x32x32xbf16>
    %87 = vector.shape_cast %86 : vector<1x32x32xbf16> to vector<32x32xbf16>
    %cst_34 = arith.constant dense<0.000000e+00> : vector<8x32xf32>
    %88 = tpu.matmul %82, %87, %cst_34 {dimension_numbers = #tpu.dot_dimension_numbers<[1], [0], [0], [1], [0, 0, 1, 1], [], []>} : vector<8x32xbf16>, vector<32x32xbf16>, vector<8x32xf32> -> vector<8x32xf32>
    %89 = arith.addf %85, %88 : vector<8x32xf32>
    %90 = vector.extract_strided_slice %2 {offsets = [0, 0, 0], sizes = [1, 1, 32], strides = [1, 1, 1]} : vector<4x1x32xf32> to vector<1x1x32xf32>
    %91 = vector.shape_cast %90 : vector<1x1x32xf32> to vector<1x32xf32>
    %92 = vector.broadcast %91 : vector<1x32xf32> to vector<8x32xf32>
    %93 = arith.addf %89, %92 : vector<8x32xf32>
    %94 = vector.extract_strided_slice %0 {offsets = [1, 0, 0], sizes = [1, 32, 32], strides = [1, 1, 1]} : vector<4x32x32xbf16> to vector<1x32x32xbf16>
    %95 = vector.shape_cast %94 : vector<1x32x32xbf16> to vector<32x32xbf16>
    %cst_35 = arith.constant dense<0.000000e+00> : vector<8x32xf32>
    %96 = tpu.matmul %81, %95, %cst_35 {dimension_numbers = #tpu.dot_dimension_numbers<[1], [0], [0], [1], [0, 0, 1, 1], [], []>} : vector<8x32xbf16>, vector<32x32xbf16>, vector<8x32xf32> -> vector<8x32xf32>
    %97 = vector.extract_strided_slice %1 {offsets = [1, 0, 0], sizes = [1, 32, 32], strides = [1, 1, 1]} : vector<4x32x32xbf16> to vector<1x32x32xbf16>
    %98 = vector.shape_cast %97 : vector<1x32x32xbf16> to vector<32x32xbf16>
    %cst_36 = arith.constant dense<0.000000e+00> : vector<8x32xf32>
    %99 = tpu.matmul %82, %98, %cst_36 {dimension_numbers = #tpu.dot_dimension_numbers<[1], [0], [0], [1], [0, 0, 1, 1], [], []>} : vector<8x32xbf16>, vector<32x32xbf16>, vector<8x32xf32> -> vector<8x32xf32>
    %100 = arith.addf %96, %99 : vector<8x32xf32>
    %101 = vector.extract_strided_slice %2 {offsets = [1, 0, 0], sizes = [1, 1, 32], strides = [1, 1, 1]} : vector<4x1x32xf32> to vector<1x1x32xf32>
    %102 = vector.shape_cast %101 : vector<1x1x32xf32> to vector<1x32xf32>
    %103 = vector.broadcast %102 : vector<1x32xf32> to vector<8x32xf32>
    %104 = arith.addf %100, %103 : vector<8x32xf32>
    %105 = vector.extract_strided_slice %0 {offsets = [2, 0, 0], sizes = [1, 32, 32], strides = [1, 1, 1]} : vector<4x32x32xbf16> to vector<1x32x32xbf16>
    %106 = vector.shape_cast %105 : vector<1x32x32xbf16> to vector<32x32xbf16>
    %cst_37 = arith.constant dense<0.000000e+00> : vector<8x32xf32>
    %107 = tpu.matmul %81, %106, %cst_37 {dimension_numbers = #tpu.dot_dimension_numbers<[1], [0], [0], [1], [0, 0, 1, 1], [], []>} : vector<8x32xbf16>, vector<32x32xbf16>, vector<8x32xf32> -> vector<8x32xf32>
    %108 = vector.extract_strided_slice %1 {offsets = [2, 0, 0], sizes = [1, 32, 32], strides = [1, 1, 1]} : vector<4x32x32xbf16> to vector<1x32x32xbf16>
    %109 = vector.shape_cast %108 : vector<1x32x32xbf16> to vector<32x32xbf16>
    %cst_38 = arith.constant dense<0.000000e+00> : vector<8x32xf32>
    %110 = tpu.matmul %82, %109, %cst_38 {dimension_numbers = #tpu.dot_dimension_numbers<[1], [0], [0], [1], [0, 0, 1, 1], [], []>} : vector<8x32xbf16>, vector<32x32xbf16>, vector<8x32xf32> -> vector<8x32xf32>
    %111 = arith.addf %107, %110 : vector<8x32xf32>
    %112 = vector.extract_strided_slice %2 {offsets = [2, 0, 0], sizes = [1, 1, 32], strides = [1, 1, 1]} : vector<4x1x32xf32> to vector<1x1x32xf32>
    %113 = vector.shape_cast %112 : vector<1x1x32xf32> to vector<1x32xf32>
    %114 = vector.broadcast %113 : vector<1x32xf32> to vector<8x32xf32>
    %115 = arith.addf %111, %114 : vector<8x32xf32>
    %116 = vector.extract_strided_slice %0 {offsets = [3, 0, 0], sizes = [1, 32, 32], strides = [1, 1, 1]} : vector<4x32x32xbf16> to vector<1x32x32xbf16>
    %117 = vector.shape_cast %116 : vector<1x32x32xbf16> to vector<32x32xbf16>
    %cst_39 = arith.constant dense<0.000000e+00> : vector<8x32xf32>
    %118 = tpu.matmul %81, %117, %cst_39 {dimension_numbers = #tpu.dot_dimension_numbers<[1], [0], [0], [1], [0, 0, 1, 1], [], []>} : vector<8x32xbf16>, vector<32x32xbf16>, vector<8x32xf32> -> vector<8x32xf32>
    %119 = vector.extract_strided_slice %1 {offsets = [3, 0, 0], sizes = [1, 32, 32], strides = [1, 1, 1]} : vector<4x32x32xbf16> to vector<1x32x32xbf16>
    %120 = vector.shape_cast %119 : vector<1x32x32xbf16> to vector<32x32xbf16>
    %cst_40 = arith.constant dense<0.000000e+00> : vector<8x32xf32>
    %121 = tpu.matmul %82, %120, %cst_40 {dimension_numbers = #tpu.dot_dimension_numbers<[1], [0], [0], [1], [0, 0, 1, 1], [], []>} : vector<8x32xbf16>, vector<32x32xbf16>, vector<8x32xf32> -> vector<8x32xf32>
    %122 = arith.addf %118, %121 : vector<8x32xf32>
    %123 = vector.extract_strided_slice %2 {offsets = [3, 0, 0], sizes = [1, 1, 32], strides = [1, 1, 1]} : vector<4x1x32xf32> to vector<1x1x32xf32>
    %124 = vector.shape_cast %123 : vector<1x1x32xf32> to vector<1x32xf32>
    %125 = vector.broadcast %124 : vector<1x32xf32> to vector<8x32xf32>
    %126 = arith.addf %122, %125 : vector<8x32xf32>
    %127 = arith.negf %93 : vector<8x32xf32>
    %128 = math.exp %127 : vector<8x32xf32>
    %cst_41 = arith.constant 1.000000e+00 : f32
    %129 = vector.broadcast %cst_41 : f32 to vector<8x32xf32>
    %130 = arith.addf %129, %128 : vector<8x32xf32>
    %131 = arith.divf %129, %130 : vector<8x32xf32>
    %132 = arith.negf %104 : vector<8x32xf32>
    %133 = math.exp %132 : vector<8x32xf32>
    %cst_42 = arith.constant 1.000000e+00 : f32
    %134 = vector.broadcast %cst_42 : f32 to vector<8x32xf32>
    %135 = arith.addf %134, %133 : vector<8x32xf32>
    %136 = arith.divf %134, %135 : vector<8x32xf32>
    %137 = math.tanh %115 : vector<8x32xf32>
    %138 = arith.negf %126 : vector<8x32xf32>
    %139 = math.exp %138 : vector<8x32xf32>
    %cst_43 = arith.constant 1.000000e+00 : f32
    %140 = vector.broadcast %cst_43 : f32 to vector<8x32xf32>
    %141 = arith.addf %140, %139 : vector<8x32xf32>
    %142 = arith.divf %140, %141 : vector<8x32xf32>
    %143 = arith.mulf %136, %75 : vector<8x32xf32>
    %144 = arith.mulf %131, %137 : vector<8x32xf32>
    %145 = arith.addf %143, %144 : vector<8x32xf32>
    %146 = math.tanh %145 : vector<8x32xf32>
    %147 = arith.mulf %142, %146 : vector<8x32xf32>
    %c2_i32 = arith.constant 2 : i32
    %148 = arith.index_cast %c2_i32 : i32 to index
    %c0_44 = arith.constant 0 : index
    %c0_45 = arith.constant 0 : index
    %149 = vector.load %arg0[%148, %c0_44, %c0_45] : memref<8x8x32xf32, #tpu.memory_space<vmem>>, vector<1x8x32xf32>
    %150 = vector.shape_cast %149 : vector<1x8x32xf32> to vector<8x32xf32>
    %151 = arith.truncf %150 : vector<8x32xf32> to vector<8x32xbf16>
    %152 = arith.truncf %147 : vector<8x32xf32> to vector<8x32xbf16>
    %153 = vector.extract_strided_slice %0 {offsets = [0, 0, 0], sizes = [1, 32, 32], strides = [1, 1, 1]} : vector<4x32x32xbf16> to vector<1x32x32xbf16>
    %154 = vector.shape_cast %153 : vector<1x32x32xbf16> to vector<32x32xbf16>
    %cst_46 = arith.constant dense<0.000000e+00> : vector<8x32xf32>
    %155 = tpu.matmul %151, %154, %cst_46 {dimension_numbers = #tpu.dot_dimension_numbers<[1], [0], [0], [1], [0, 0, 1, 1], [], []>} : vector<8x32xbf16>, vector<32x32xbf16>, vector<8x32xf32> -> vector<8x32xf32>
    %156 = vector.extract_strided_slice %1 {offsets = [0, 0, 0], sizes = [1, 32, 32], strides = [1, 1, 1]} : vector<4x32x32xbf16> to vector<1x32x32xbf16>
    %157 = vector.shape_cast %156 : vector<1x32x32xbf16> to vector<32x32xbf16>
    %cst_47 = arith.constant dense<0.000000e+00> : vector<8x32xf32>
    %158 = tpu.matmul %152, %157, %cst_47 {dimension_numbers = #tpu.dot_dimension_numbers<[1], [0], [0], [1], [0, 0, 1, 1], [], []>} : vector<8x32xbf16>, vector<32x32xbf16>, vector<8x32xf32> -> vector<8x32xf32>
    %159 = arith.addf %155, %158 : vector<8x32xf32>
    %160 = vector.extract_strided_slice %2 {offsets = [0, 0, 0], sizes = [1, 1, 32], strides = [1, 1, 1]} : vector<4x1x32xf32> to vector<1x1x32xf32>
    %161 = vector.shape_cast %160 : vector<1x1x32xf32> to vector<1x32xf32>
    %162 = vector.broadcast %161 : vector<1x32xf32> to vector<8x32xf32>
    %163 = arith.addf %159, %162 : vector<8x32xf32>
    %164 = vector.extract_strided_slice %0 {offsets = [1, 0, 0], sizes = [1, 32, 32], strides = [1, 1, 1]} : vector<4x32x32xbf16> to vector<1x32x32xbf16>
    %165 = vector.shape_cast %164 : vector<1x32x32xbf16> to vector<32x32xbf16>
    %cst_48 = arith.constant dense<0.000000e+00> : vector<8x32xf32>
    %166 = tpu.matmul %151, %165, %cst_48 {dimension_numbers = #tpu.dot_dimension_numbers<[1], [0], [0], [1], [0, 0, 1, 1], [], []>} : vector<8x32xbf16>, vector<32x32xbf16>, vector<8x32xf32> -> vector<8x32xf32>
    %167 = vector.extract_strided_slice %1 {offsets = [1, 0, 0], sizes = [1, 32, 32], strides = [1, 1, 1]} : vector<4x32x32xbf16> to vector<1x32x32xbf16>
    %168 = vector.shape_cast %167 : vector<1x32x32xbf16> to vector<32x32xbf16>
    %cst_49 = arith.constant dense<0.000000e+00> : vector<8x32xf32>
    %169 = tpu.matmul %152, %168, %cst_49 {dimension_numbers = #tpu.dot_dimension_numbers<[1], [0], [0], [1], [0, 0, 1, 1], [], []>} : vector<8x32xbf16>, vector<32x32xbf16>, vector<8x32xf32> -> vector<8x32xf32>
    %170 = arith.addf %166, %169 : vector<8x32xf32>
    %171 = vector.extract_strided_slice %2 {offsets = [1, 0, 0], sizes = [1, 1, 32], strides = [1, 1, 1]} : vector<4x1x32xf32> to vector<1x1x32xf32>
    %172 = vector.shape_cast %171 : vector<1x1x32xf32> to vector<1x32xf32>
    %173 = vector.broadcast %172 : vector<1x32xf32> to vector<8x32xf32>
    %174 = arith.addf %170, %173 : vector<8x32xf32>
    %175 = vector.extract_strided_slice %0 {offsets = [2, 0, 0], sizes = [1, 32, 32], strides = [1, 1, 1]} : vector<4x32x32xbf16> to vector<1x32x32xbf16>
    %176 = vector.shape_cast %175 : vector<1x32x32xbf16> to vector<32x32xbf16>
    %cst_50 = arith.constant dense<0.000000e+00> : vector<8x32xf32>
    %177 = tpu.matmul %151, %176, %cst_50 {dimension_numbers = #tpu.dot_dimension_numbers<[1], [0], [0], [1], [0, 0, 1, 1], [], []>} : vector<8x32xbf16>, vector<32x32xbf16>, vector<8x32xf32> -> vector<8x32xf32>
    %178 = vector.extract_strided_slice %1 {offsets = [2, 0, 0], sizes = [1, 32, 32], strides = [1, 1, 1]} : vector<4x32x32xbf16> to vector<1x32x32xbf16>
    %179 = vector.shape_cast %178 : vector<1x32x32xbf16> to vector<32x32xbf16>
    %cst_51 = arith.constant dense<0.000000e+00> : vector<8x32xf32>
    %180 = tpu.matmul %152, %179, %cst_51 {dimension_numbers = #tpu.dot_dimension_numbers<[1], [0], [0], [1], [0, 0, 1, 1], [], []>} : vector<8x32xbf16>, vector<32x32xbf16>, vector<8x32xf32> -> vector<8x32xf32>
    %181 = arith.addf %177, %180 : vector<8x32xf32>
    %182 = vector.extract_strided_slice %2 {offsets = [2, 0, 0], sizes = [1, 1, 32], strides = [1, 1, 1]} : vector<4x1x32xf32> to vector<1x1x32xf32>
    %183 = vector.shape_cast %182 : vector<1x1x32xf32> to vector<1x32xf32>
    %184 = vector.broadcast %183 : vector<1x32xf32> to vector<8x32xf32>
    %185 = arith.addf %181, %184 : vector<8x32xf32>
    %186 = vector.extract_strided_slice %0 {offsets = [3, 0, 0], sizes = [1, 32, 32], strides = [1, 1, 1]} : vector<4x32x32xbf16> to vector<1x32x32xbf16>
    %187 = vector.shape_cast %186 : vector<1x32x32xbf16> to vector<32x32xbf16>
    %cst_52 = arith.constant dense<0.000000e+00> : vector<8x32xf32>
    %188 = tpu.matmul %151, %187, %cst_52 {dimension_numbers = #tpu.dot_dimension_numbers<[1], [0], [0], [1], [0, 0, 1, 1], [], []>} : vector<8x32xbf16>, vector<32x32xbf16>, vector<8x32xf32> -> vector<8x32xf32>
    %189 = vector.extract_strided_slice %1 {offsets = [3, 0, 0], sizes = [1, 32, 32], strides = [1, 1, 1]} : vector<4x32x32xbf16> to vector<1x32x32xbf16>
    %190 = vector.shape_cast %189 : vector<1x32x32xbf16> to vector<32x32xbf16>
    %cst_53 = arith.constant dense<0.000000e+00> : vector<8x32xf32>
    %191 = tpu.matmul %152, %190, %cst_53 {dimension_numbers = #tpu.dot_dimension_numbers<[1], [0], [0], [1], [0, 0, 1, 1], [], []>} : vector<8x32xbf16>, vector<32x32xbf16>, vector<8x32xf32> -> vector<8x32xf32>
    %192 = arith.addf %188, %191 : vector<8x32xf32>
    %193 = vector.extract_strided_slice %2 {offsets = [3, 0, 0], sizes = [1, 1, 32], strides = [1, 1, 1]} : vector<4x1x32xf32> to vector<1x1x32xf32>
    %194 = vector.shape_cast %193 : vector<1x1x32xf32> to vector<1x32xf32>
    %195 = vector.broadcast %194 : vector<1x32xf32> to vector<8x32xf32>
    %196 = arith.addf %192, %195 : vector<8x32xf32>
    %197 = arith.negf %163 : vector<8x32xf32>
    %198 = math.exp %197 : vector<8x32xf32>
    %cst_54 = arith.constant 1.000000e+00 : f32
    %199 = vector.broadcast %cst_54 : f32 to vector<8x32xf32>
    %200 = arith.addf %199, %198 : vector<8x32xf32>
    %201 = arith.divf %199, %200 : vector<8x32xf32>
    %202 = arith.negf %174 : vector<8x32xf32>
    %203 = math.exp %202 : vector<8x32xf32>
    %cst_55 = arith.constant 1.000000e+00 : f32
    %204 = vector.broadcast %cst_55 : f32 to vector<8x32xf32>
    %205 = arith.addf %204, %203 : vector<8x32xf32>
    %206 = arith.divf %204, %205 : vector<8x32xf32>
    %207 = math.tanh %185 : vector<8x32xf32>
    %208 = arith.negf %196 : vector<8x32xf32>
    %209 = math.exp %208 : vector<8x32xf32>
    %cst_56 = arith.constant 1.000000e+00 : f32
    %210 = vector.broadcast %cst_56 : f32 to vector<8x32xf32>
    %211 = arith.addf %210, %209 : vector<8x32xf32>
    %212 = arith.divf %210, %211 : vector<8x32xf32>
    %213 = arith.mulf %206, %145 : vector<8x32xf32>
    %214 = arith.mulf %201, %207 : vector<8x32xf32>
    %215 = arith.addf %213, %214 : vector<8x32xf32>
    %216 = math.tanh %215 : vector<8x32xf32>
    %217 = arith.mulf %212, %216 : vector<8x32xf32>
    %c3_i32 = arith.constant 3 : i32
    %218 = arith.index_cast %c3_i32 : i32 to index
    %c0_57 = arith.constant 0 : index
    %c0_58 = arith.constant 0 : index
    %219 = vector.load %arg0[%218, %c0_57, %c0_58] : memref<8x8x32xf32, #tpu.memory_space<vmem>>, vector<1x8x32xf32>
    %220 = vector.shape_cast %219 : vector<1x8x32xf32> to vector<8x32xf32>
    %221 = arith.truncf %220 : vector<8x32xf32> to vector<8x32xbf16>
    %222 = arith.truncf %217 : vector<8x32xf32> to vector<8x32xbf16>
    %223 = vector.extract_strided_slice %0 {offsets = [0, 0, 0], sizes = [1, 32, 32], strides = [1, 1, 1]} : vector<4x32x32xbf16> to vector<1x32x32xbf16>
    %224 = vector.shape_cast %223 : vector<1x32x32xbf16> to vector<32x32xbf16>
    %cst_59 = arith.constant dense<0.000000e+00> : vector<8x32xf32>
    %225 = tpu.matmul %221, %224, %cst_59 {dimension_numbers = #tpu.dot_dimension_numbers<[1], [0], [0], [1], [0, 0, 1, 1], [], []>} : vector<8x32xbf16>, vector<32x32xbf16>, vector<8x32xf32> -> vector<8x32xf32>
    %226 = vector.extract_strided_slice %1 {offsets = [0, 0, 0], sizes = [1, 32, 32], strides = [1, 1, 1]} : vector<4x32x32xbf16> to vector<1x32x32xbf16>
    %227 = vector.shape_cast %226 : vector<1x32x32xbf16> to vector<32x32xbf16>
    %cst_60 = arith.constant dense<0.000000e+00> : vector<8x32xf32>
    %228 = tpu.matmul %222, %227, %cst_60 {dimension_numbers = #tpu.dot_dimension_numbers<[1], [0], [0], [1], [0, 0, 1, 1], [], []>} : vector<8x32xbf16>, vector<32x32xbf16>, vector<8x32xf32> -> vector<8x32xf32>
    %229 = arith.addf %225, %228 : vector<8x32xf32>
    %230 = vector.extract_strided_slice %2 {offsets = [0, 0, 0], sizes = [1, 1, 32], strides = [1, 1, 1]} : vector<4x1x32xf32> to vector<1x1x32xf32>
    %231 = vector.shape_cast %230 : vector<1x1x32xf32> to vector<1x32xf32>
    %232 = vector.broadcast %231 : vector<1x32xf32> to vector<8x32xf32>
    %233 = arith.addf %229, %232 : vector<8x32xf32>
    %234 = vector.extract_strided_slice %0 {offsets = [1, 0, 0], sizes = [1, 32, 32], strides = [1, 1, 1]} : vector<4x32x32xbf16> to vector<1x32x32xbf16>
    %235 = vector.shape_cast %234 : vector<1x32x32xbf16> to vector<32x32xbf16>
    %cst_61 = arith.constant dense<0.000000e+00> : vector<8x32xf32>
    %236 = tpu.matmul %221, %235, %cst_61 {dimension_numbers = #tpu.dot_dimension_numbers<[1], [0], [0], [1], [0, 0, 1, 1], [], []>} : vector<8x32xbf16>, vector<32x32xbf16>, vector<8x32xf32> -> vector<8x32xf32>
    %237 = vector.extract_strided_slice %1 {offsets = [1, 0, 0], sizes = [1, 32, 32], strides = [1, 1, 1]} : vector<4x32x32xbf16> to vector<1x32x32xbf16>
    %238 = vector.shape_cast %237 : vector<1x32x32xbf16> to vector<32x32xbf16>
    %cst_62 = arith.constant dense<0.000000e+00> : vector<8x32xf32>
    %239 = tpu.matmul %222, %238, %cst_62 {dimension_numbers = #tpu.dot_dimension_numbers<[1], [0], [0], [1], [0, 0, 1, 1], [], []>} : vector<8x32xbf16>, vector<32x32xbf16>, vector<8x32xf32> -> vector<8x32xf32>
    %240 = arith.addf %236, %239 : vector<8x32xf32>
    %241 = vector.extract_strided_slice %2 {offsets = [1, 0, 0], sizes = [1, 1, 32], strides = [1, 1, 1]} : vector<4x1x32xf32> to vector<1x1x32xf32>
    %242 = vector.shape_cast %241 : vector<1x1x32xf32> to vector<1x32xf32>
    %243 = vector.broadcast %242 : vector<1x32xf32> to vector<8x32xf32>
    %244 = arith.addf %240, %243 : vector<8x32xf32>
    %245 = vector.extract_strided_slice %0 {offsets = [2, 0, 0], sizes = [1, 32, 32], strides = [1, 1, 1]} : vector<4x32x32xbf16> to vector<1x32x32xbf16>
    %246 = vector.shape_cast %245 : vector<1x32x32xbf16> to vector<32x32xbf16>
    %cst_63 = arith.constant dense<0.000000e+00> : vector<8x32xf32>
    %247 = tpu.matmul %221, %246, %cst_63 {dimension_numbers = #tpu.dot_dimension_numbers<[1], [0], [0], [1], [0, 0, 1, 1], [], []>} : vector<8x32xbf16>, vector<32x32xbf16>, vector<8x32xf32> -> vector<8x32xf32>
    %248 = vector.extract_strided_slice %1 {offsets = [2, 0, 0], sizes = [1, 32, 32], strides = [1, 1, 1]} : vector<4x32x32xbf16> to vector<1x32x32xbf16>
    %249 = vector.shape_cast %248 : vector<1x32x32xbf16> to vector<32x32xbf16>
    %cst_64 = arith.constant dense<0.000000e+00> : vector<8x32xf32>
    %250 = tpu.matmul %222, %249, %cst_64 {dimension_numbers = #tpu.dot_dimension_numbers<[1], [0], [0], [1], [0, 0, 1, 1], [], []>} : vector<8x32xbf16>, vector<32x32xbf16>, vector<8x32xf32> -> vector<8x32xf32>
    %251 = arith.addf %247, %250 : vector<8x32xf32>
    %252 = vector.extract_strided_slice %2 {offsets = [2, 0, 0], sizes = [1, 1, 32], strides = [1, 1, 1]} : vector<4x1x32xf32> to vector<1x1x32xf32>
    %253 = vector.shape_cast %252 : vector<1x1x32xf32> to vector<1x32xf32>
    %254 = vector.broadcast %253 : vector<1x32xf32> to vector<8x32xf32>
    %255 = arith.addf %251, %254 : vector<8x32xf32>
    %256 = vector.extract_strided_slice %0 {offsets = [3, 0, 0], sizes = [1, 32, 32], strides = [1, 1, 1]} : vector<4x32x32xbf16> to vector<1x32x32xbf16>
    %257 = vector.shape_cast %256 : vector<1x32x32xbf16> to vector<32x32xbf16>
    %cst_65 = arith.constant dense<0.000000e+00> : vector<8x32xf32>
    %258 = tpu.matmul %221, %257, %cst_65 {dimension_numbers = #tpu.dot_dimension_numbers<[1], [0], [0], [1], [0, 0, 1, 1], [], []>} : vector<8x32xbf16>, vector<32x32xbf16>, vector<8x32xf32> -> vector<8x32xf32>
    %259 = vector.extract_strided_slice %1 {offsets = [3, 0, 0], sizes = [1, 32, 32], strides = [1, 1, 1]} : vector<4x32x32xbf16> to vector<1x32x32xbf16>
    %260 = vector.shape_cast %259 : vector<1x32x32xbf16> to vector<32x32xbf16>
    %cst_66 = arith.constant dense<0.000000e+00> : vector<8x32xf32>
    %261 = tpu.matmul %222, %260, %cst_66 {dimension_numbers = #tpu.dot_dimension_numbers<[1], [0], [0], [1], [0, 0, 1, 1], [], []>} : vector<8x32xbf16>, vector<32x32xbf16>, vector<8x32xf32> -> vector<8x32xf32>
    %262 = arith.addf %258, %261 : vector<8x32xf32>
    %263 = vector.extract_strided_slice %2 {offsets = [3, 0, 0], sizes = [1, 1, 32], strides = [1, 1, 1]} : vector<4x1x32xf32> to vector<1x1x32xf32>
    %264 = vector.shape_cast %263 : vector<1x1x32xf32> to vector<1x32xf32>
    %265 = vector.broadcast %264 : vector<1x32xf32> to vector<8x32xf32>
    %266 = arith.addf %262, %265 : vector<8x32xf32>
    %267 = arith.negf %233 : vector<8x32xf32>
    %268 = math.exp %267 : vector<8x32xf32>
    %cst_67 = arith.constant 1.000000e+00 : f32
    %269 = vector.broadcast %cst_67 : f32 to vector<8x32xf32>
    %270 = arith.addf %269, %268 : vector<8x32xf32>
    %271 = arith.divf %269, %270 : vector<8x32xf32>
    %272 = arith.negf %244 : vector<8x32xf32>
    %273 = math.exp %272 : vector<8x32xf32>
    %cst_68 = arith.constant 1.000000e+00 : f32
    %274 = vector.broadcast %cst_68 : f32 to vector<8x32xf32>
    %275 = arith.addf %274, %273 : vector<8x32xf32>
    %276 = arith.divf %274, %275 : vector<8x32xf32>
    %277 = math.tanh %255 : vector<8x32xf32>
    %278 = arith.negf %266 : vector<8x32xf32>
    %279 = math.exp %278 : vector<8x32xf32>
    %cst_69 = arith.constant 1.000000e+00 : f32
    %280 = vector.broadcast %cst_69 : f32 to vector<8x32xf32>
    %281 = arith.addf %280, %279 : vector<8x32xf32>
    %282 = arith.divf %280, %281 : vector<8x32xf32>
    %283 = arith.mulf %276, %215 : vector<8x32xf32>
    %284 = arith.mulf %271, %277 : vector<8x32xf32>
    %285 = arith.addf %283, %284 : vector<8x32xf32>
    %286 = math.tanh %285 : vector<8x32xf32>
    %287 = arith.mulf %282, %286 : vector<8x32xf32>
    %c4_i32 = arith.constant 4 : i32
    %288 = arith.index_cast %c4_i32 : i32 to index
    %c0_70 = arith.constant 0 : index
    %c0_71 = arith.constant 0 : index
    %289 = vector.load %arg0[%288, %c0_70, %c0_71] : memref<8x8x32xf32, #tpu.memory_space<vmem>>, vector<1x8x32xf32>
    %290 = vector.shape_cast %289 : vector<1x8x32xf32> to vector<8x32xf32>
    %291 = arith.truncf %290 : vector<8x32xf32> to vector<8x32xbf16>
    %292 = arith.truncf %287 : vector<8x32xf32> to vector<8x32xbf16>
    %293 = vector.extract_strided_slice %0 {offsets = [0, 0, 0], sizes = [1, 32, 32], strides = [1, 1, 1]} : vector<4x32x32xbf16> to vector<1x32x32xbf16>
    %294 = vector.shape_cast %293 : vector<1x32x32xbf16> to vector<32x32xbf16>
    %cst_72 = arith.constant dense<0.000000e+00> : vector<8x32xf32>
    %295 = tpu.matmul %291, %294, %cst_72 {dimension_numbers = #tpu.dot_dimension_numbers<[1], [0], [0], [1], [0, 0, 1, 1], [], []>} : vector<8x32xbf16>, vector<32x32xbf16>, vector<8x32xf32> -> vector<8x32xf32>
    %296 = vector.extract_strided_slice %1 {offsets = [0, 0, 0], sizes = [1, 32, 32], strides = [1, 1, 1]} : vector<4x32x32xbf16> to vector<1x32x32xbf16>
    %297 = vector.shape_cast %296 : vector<1x32x32xbf16> to vector<32x32xbf16>
    %cst_73 = arith.constant dense<0.000000e+00> : vector<8x32xf32>
    %298 = tpu.matmul %292, %297, %cst_73 {dimension_numbers = #tpu.dot_dimension_numbers<[1], [0], [0], [1], [0, 0, 1, 1], [], []>} : vector<8x32xbf16>, vector<32x32xbf16>, vector<8x32xf32> -> vector<8x32xf32>
    %299 = arith.addf %295, %298 : vector<8x32xf32>
    %300 = vector.extract_strided_slice %2 {offsets = [0, 0, 0], sizes = [1, 1, 32], strides = [1, 1, 1]} : vector<4x1x32xf32> to vector<1x1x32xf32>
    %301 = vector.shape_cast %300 : vector<1x1x32xf32> to vector<1x32xf32>
    %302 = vector.broadcast %301 : vector<1x32xf32> to vector<8x32xf32>
    %303 = arith.addf %299, %302 : vector<8x32xf32>
    %304 = vector.extract_strided_slice %0 {offsets = [1, 0, 0], sizes = [1, 32, 32], strides = [1, 1, 1]} : vector<4x32x32xbf16> to vector<1x32x32xbf16>
    %305 = vector.shape_cast %304 : vector<1x32x32xbf16> to vector<32x32xbf16>
    %cst_74 = arith.constant dense<0.000000e+00> : vector<8x32xf32>
    %306 = tpu.matmul %291, %305, %cst_74 {dimension_numbers = #tpu.dot_dimension_numbers<[1], [0], [0], [1], [0, 0, 1, 1], [], []>} : vector<8x32xbf16>, vector<32x32xbf16>, vector<8x32xf32> -> vector<8x32xf32>
    %307 = vector.extract_strided_slice %1 {offsets = [1, 0, 0], sizes = [1, 32, 32], strides = [1, 1, 1]} : vector<4x32x32xbf16> to vector<1x32x32xbf16>
    %308 = vector.shape_cast %307 : vector<1x32x32xbf16> to vector<32x32xbf16>
    %cst_75 = arith.constant dense<0.000000e+00> : vector<8x32xf32>
    %309 = tpu.matmul %292, %308, %cst_75 {dimension_numbers = #tpu.dot_dimension_numbers<[1], [0], [0], [1], [0, 0, 1, 1], [], []>} : vector<8x32xbf16>, vector<32x32xbf16>, vector<8x32xf32> -> vector<8x32xf32>
    %310 = arith.addf %306, %309 : vector<8x32xf32>
    %311 = vector.extract_strided_slice %2 {offsets = [1, 0, 0], sizes = [1, 1, 32], strides = [1, 1, 1]} : vector<4x1x32xf32> to vector<1x1x32xf32>
    %312 = vector.shape_cast %311 : vector<1x1x32xf32> to vector<1x32xf32>
    %313 = vector.broadcast %312 : vector<1x32xf32> to vector<8x32xf32>
    %314 = arith.addf %310, %313 : vector<8x32xf32>
    %315 = vector.extract_strided_slice %0 {offsets = [2, 0, 0], sizes = [1, 32, 32], strides = [1, 1, 1]} : vector<4x32x32xbf16> to vector<1x32x32xbf16>
    %316 = vector.shape_cast %315 : vector<1x32x32xbf16> to vector<32x32xbf16>
    %cst_76 = arith.constant dense<0.000000e+00> : vector<8x32xf32>
    %317 = tpu.matmul %291, %316, %cst_76 {dimension_numbers = #tpu.dot_dimension_numbers<[1], [0], [0], [1], [0, 0, 1, 1], [], []>} : vector<8x32xbf16>, vector<32x32xbf16>, vector<8x32xf32> -> vector<8x32xf32>
    %318 = vector.extract_strided_slice %1 {offsets = [2, 0, 0], sizes = [1, 32, 32], strides = [1, 1, 1]} : vector<4x32x32xbf16> to vector<1x32x32xbf16>
    %319 = vector.shape_cast %318 : vector<1x32x32xbf16> to vector<32x32xbf16>
    %cst_77 = arith.constant dense<0.000000e+00> : vector<8x32xf32>
    %320 = tpu.matmul %292, %319, %cst_77 {dimension_numbers = #tpu.dot_dimension_numbers<[1], [0], [0], [1], [0, 0, 1, 1], [], []>} : vector<8x32xbf16>, vector<32x32xbf16>, vector<8x32xf32> -> vector<8x32xf32>
    %321 = arith.addf %317, %320 : vector<8x32xf32>
    %322 = vector.extract_strided_slice %2 {offsets = [2, 0, 0], sizes = [1, 1, 32], strides = [1, 1, 1]} : vector<4x1x32xf32> to vector<1x1x32xf32>
    %323 = vector.shape_cast %322 : vector<1x1x32xf32> to vector<1x32xf32>
    %324 = vector.broadcast %323 : vector<1x32xf32> to vector<8x32xf32>
    %325 = arith.addf %321, %324 : vector<8x32xf32>
    %326 = vector.extract_strided_slice %0 {offsets = [3, 0, 0], sizes = [1, 32, 32], strides = [1, 1, 1]} : vector<4x32x32xbf16> to vector<1x32x32xbf16>
    %327 = vector.shape_cast %326 : vector<1x32x32xbf16> to vector<32x32xbf16>
    %cst_78 = arith.constant dense<0.000000e+00> : vector<8x32xf32>
    %328 = tpu.matmul %291, %327, %cst_78 {dimension_numbers = #tpu.dot_dimension_numbers<[1], [0], [0], [1], [0, 0, 1, 1], [], []>} : vector<8x32xbf16>, vector<32x32xbf16>, vector<8x32xf32> -> vector<8x32xf32>
    %329 = vector.extract_strided_slice %1 {offsets = [3, 0, 0], sizes = [1, 32, 32], strides = [1, 1, 1]} : vector<4x32x32xbf16> to vector<1x32x32xbf16>
    %330 = vector.shape_cast %329 : vector<1x32x32xbf16> to vector<32x32xbf16>
    %cst_79 = arith.constant dense<0.000000e+00> : vector<8x32xf32>
    %331 = tpu.matmul %292, %330, %cst_79 {dimension_numbers = #tpu.dot_dimension_numbers<[1], [0], [0], [1], [0, 0, 1, 1], [], []>} : vector<8x32xbf16>, vector<32x32xbf16>, vector<8x32xf32> -> vector<8x32xf32>
    %332 = arith.addf %328, %331 : vector<8x32xf32>
    %333 = vector.extract_strided_slice %2 {offsets = [3, 0, 0], sizes = [1, 1, 32], strides = [1, 1, 1]} : vector<4x1x32xf32> to vector<1x1x32xf32>
    %334 = vector.shape_cast %333 : vector<1x1x32xf32> to vector<1x32xf32>
    %335 = vector.broadcast %334 : vector<1x32xf32> to vector<8x32xf32>
    %336 = arith.addf %332, %335 : vector<8x32xf32>
    %337 = arith.negf %303 : vector<8x32xf32>
    %338 = math.exp %337 : vector<8x32xf32>
    %cst_80 = arith.constant 1.000000e+00 : f32
    %339 = vector.broadcast %cst_80 : f32 to vector<8x32xf32>
    %340 = arith.addf %339, %338 : vector<8x32xf32>
    %341 = arith.divf %339, %340 : vector<8x32xf32>
    %342 = arith.negf %314 : vector<8x32xf32>
    %343 = math.exp %342 : vector<8x32xf32>
    %cst_81 = arith.constant 1.000000e+00 : f32
    %344 = vector.broadcast %cst_81 : f32 to vector<8x32xf32>
    %345 = arith.addf %344, %343 : vector<8x32xf32>
    %346 = arith.divf %344, %345 : vector<8x32xf32>
    %347 = math.tanh %325 : vector<8x32xf32>
    %348 = arith.negf %336 : vector<8x32xf32>
    %349 = math.exp %348 : vector<8x32xf32>
    %cst_82 = arith.constant 1.000000e+00 : f32
    %350 = vector.broadcast %cst_82 : f32 to vector<8x32xf32>
    %351 = arith.addf %350, %349 : vector<8x32xf32>
    %352 = arith.divf %350, %351 : vector<8x32xf32>
    %353 = arith.mulf %346, %285 : vector<8x32xf32>
    %354 = arith.mulf %341, %347 : vector<8x32xf32>
    %355 = arith.addf %353, %354 : vector<8x32xf32>
    %356 = math.tanh %355 : vector<8x32xf32>
    %357 = arith.mulf %352, %356 : vector<8x32xf32>
    %c5_i32 = arith.constant 5 : i32
    %358 = arith.index_cast %c5_i32 : i32 to index
    %c0_83 = arith.constant 0 : index
    %c0_84 = arith.constant 0 : index
    %359 = vector.load %arg0[%358, %c0_83, %c0_84] : memref<8x8x32xf32, #tpu.memory_space<vmem>>, vector<1x8x32xf32>
    %360 = vector.shape_cast %359 : vector<1x8x32xf32> to vector<8x32xf32>
    %361 = arith.truncf %360 : vector<8x32xf32> to vector<8x32xbf16>
    %362 = arith.truncf %357 : vector<8x32xf32> to vector<8x32xbf16>
    %363 = vector.extract_strided_slice %0 {offsets = [0, 0, 0], sizes = [1, 32, 32], strides = [1, 1, 1]} : vector<4x32x32xbf16> to vector<1x32x32xbf16>
    %364 = vector.shape_cast %363 : vector<1x32x32xbf16> to vector<32x32xbf16>
    %cst_85 = arith.constant dense<0.000000e+00> : vector<8x32xf32>
    %365 = tpu.matmul %361, %364, %cst_85 {dimension_numbers = #tpu.dot_dimension_numbers<[1], [0], [0], [1], [0, 0, 1, 1], [], []>} : vector<8x32xbf16>, vector<32x32xbf16>, vector<8x32xf32> -> vector<8x32xf32>
    %366 = vector.extract_strided_slice %1 {offsets = [0, 0, 0], sizes = [1, 32, 32], strides = [1, 1, 1]} : vector<4x32x32xbf16> to vector<1x32x32xbf16>
    %367 = vector.shape_cast %366 : vector<1x32x32xbf16> to vector<32x32xbf16>
    %cst_86 = arith.constant dense<0.000000e+00> : vector<8x32xf32>
    %368 = tpu.matmul %362, %367, %cst_86 {dimension_numbers = #tpu.dot_dimension_numbers<[1], [0], [0], [1], [0, 0, 1, 1], [], []>} : vector<8x32xbf16>, vector<32x32xbf16>, vector<8x32xf32> -> vector<8x32xf32>
    %369 = arith.addf %365, %368 : vector<8x32xf32>
    %370 = vector.extract_strided_slice %2 {offsets = [0, 0, 0], sizes = [1, 1, 32], strides = [1, 1, 1]} : vector<4x1x32xf32> to vector<1x1x32xf32>
    %371 = vector.shape_cast %370 : vector<1x1x32xf32> to vector<1x32xf32>
    %372 = vector.broadcast %371 : vector<1x32xf32> to vector<8x32xf32>
    %373 = arith.addf %369, %372 : vector<8x32xf32>
    %374 = vector.extract_strided_slice %0 {offsets = [1, 0, 0], sizes = [1, 32, 32], strides = [1, 1, 1]} : vector<4x32x32xbf16> to vector<1x32x32xbf16>
    %375 = vector.shape_cast %374 : vector<1x32x32xbf16> to vector<32x32xbf16>
    %cst_87 = arith.constant dense<0.000000e+00> : vector<8x32xf32>
    %376 = tpu.matmul %361, %375, %cst_87 {dimension_numbers = #tpu.dot_dimension_numbers<[1], [0], [0], [1], [0, 0, 1, 1], [], []>} : vector<8x32xbf16>, vector<32x32xbf16>, vector<8x32xf32> -> vector<8x32xf32>
    %377 = vector.extract_strided_slice %1 {offsets = [1, 0, 0], sizes = [1, 32, 32], strides = [1, 1, 1]} : vector<4x32x32xbf16> to vector<1x32x32xbf16>
    %378 = vector.shape_cast %377 : vector<1x32x32xbf16> to vector<32x32xbf16>
    %cst_88 = arith.constant dense<0.000000e+00> : vector<8x32xf32>
    %379 = tpu.matmul %362, %378, %cst_88 {dimension_numbers = #tpu.dot_dimension_numbers<[1], [0], [0], [1], [0, 0, 1, 1], [], []>} : vector<8x32xbf16>, vector<32x32xbf16>, vector<8x32xf32> -> vector<8x32xf32>
    %380 = arith.addf %376, %379 : vector<8x32xf32>
    %381 = vector.extract_strided_slice %2 {offsets = [1, 0, 0], sizes = [1, 1, 32], strides = [1, 1, 1]} : vector<4x1x32xf32> to vector<1x1x32xf32>
    %382 = vector.shape_cast %381 : vector<1x1x32xf32> to vector<1x32xf32>
    %383 = vector.broadcast %382 : vector<1x32xf32> to vector<8x32xf32>
    %384 = arith.addf %380, %383 : vector<8x32xf32>
    %385 = vector.extract_strided_slice %0 {offsets = [2, 0, 0], sizes = [1, 32, 32], strides = [1, 1, 1]} : vector<4x32x32xbf16> to vector<1x32x32xbf16>
    %386 = vector.shape_cast %385 : vector<1x32x32xbf16> to vector<32x32xbf16>
    %cst_89 = arith.constant dense<0.000000e+00> : vector<8x32xf32>
    %387 = tpu.matmul %361, %386, %cst_89 {dimension_numbers = #tpu.dot_dimension_numbers<[1], [0], [0], [1], [0, 0, 1, 1], [], []>} : vector<8x32xbf16>, vector<32x32xbf16>, vector<8x32xf32> -> vector<8x32xf32>
    %388 = vector.extract_strided_slice %1 {offsets = [2, 0, 0], sizes = [1, 32, 32], strides = [1, 1, 1]} : vector<4x32x32xbf16> to vector<1x32x32xbf16>
    %389 = vector.shape_cast %388 : vector<1x32x32xbf16> to vector<32x32xbf16>
    %cst_90 = arith.constant dense<0.000000e+00> : vector<8x32xf32>
    %390 = tpu.matmul %362, %389, %cst_90 {dimension_numbers = #tpu.dot_dimension_numbers<[1], [0], [0], [1], [0, 0, 1, 1], [], []>} : vector<8x32xbf16>, vector<32x32xbf16>, vector<8x32xf32> -> vector<8x32xf32>
    %391 = arith.addf %387, %390 : vector<8x32xf32>
    %392 = vector.extract_strided_slice %2 {offsets = [2, 0, 0], sizes = [1, 1, 32], strides = [1, 1, 1]} : vector<4x1x32xf32> to vector<1x1x32xf32>
    %393 = vector.shape_cast %392 : vector<1x1x32xf32> to vector<1x32xf32>
    %394 = vector.broadcast %393 : vector<1x32xf32> to vector<8x32xf32>
    %395 = arith.addf %391, %394 : vector<8x32xf32>
    %396 = vector.extract_strided_slice %0 {offsets = [3, 0, 0], sizes = [1, 32, 32], strides = [1, 1, 1]} : vector<4x32x32xbf16> to vector<1x32x32xbf16>
    %397 = vector.shape_cast %396 : vector<1x32x32xbf16> to vector<32x32xbf16>
    %cst_91 = arith.constant dense<0.000000e+00> : vector<8x32xf32>
    %398 = tpu.matmul %361, %397, %cst_91 {dimension_numbers = #tpu.dot_dimension_numbers<[1], [0], [0], [1], [0, 0, 1, 1], [], []>} : vector<8x32xbf16>, vector<32x32xbf16>, vector<8x32xf32> -> vector<8x32xf32>
    %399 = vector.extract_strided_slice %1 {offsets = [3, 0, 0], sizes = [1, 32, 32], strides = [1, 1, 1]} : vector<4x32x32xbf16> to vector<1x32x32xbf16>
    %400 = vector.shape_cast %399 : vector<1x32x32xbf16> to vector<32x32xbf16>
    %cst_92 = arith.constant dense<0.000000e+00> : vector<8x32xf32>
    %401 = tpu.matmul %362, %400, %cst_92 {dimension_numbers = #tpu.dot_dimension_numbers<[1], [0], [0], [1], [0, 0, 1, 1], [], []>} : vector<8x32xbf16>, vector<32x32xbf16>, vector<8x32xf32> -> vector<8x32xf32>
    %402 = arith.addf %398, %401 : vector<8x32xf32>
    %403 = vector.extract_strided_slice %2 {offsets = [3, 0, 0], sizes = [1, 1, 32], strides = [1, 1, 1]} : vector<4x1x32xf32> to vector<1x1x32xf32>
    %404 = vector.shape_cast %403 : vector<1x1x32xf32> to vector<1x32xf32>
    %405 = vector.broadcast %404 : vector<1x32xf32> to vector<8x32xf32>
    %406 = arith.addf %402, %405 : vector<8x32xf32>
    %407 = arith.negf %373 : vector<8x32xf32>
    %408 = math.exp %407 : vector<8x32xf32>
    %cst_93 = arith.constant 1.000000e+00 : f32
    %409 = vector.broadcast %cst_93 : f32 to vector<8x32xf32>
    %410 = arith.addf %409, %408 : vector<8x32xf32>
    %411 = arith.divf %409, %410 : vector<8x32xf32>
    %412 = arith.negf %384 : vector<8x32xf32>
    %413 = math.exp %412 : vector<8x32xf32>
    %cst_94 = arith.constant 1.000000e+00 : f32
    %414 = vector.broadcast %cst_94 : f32 to vector<8x32xf32>
    %415 = arith.addf %414, %413 : vector<8x32xf32>
    %416 = arith.divf %414, %415 : vector<8x32xf32>
    %417 = math.tanh %395 : vector<8x32xf32>
    %418 = arith.negf %406 : vector<8x32xf32>
    %419 = math.exp %418 : vector<8x32xf32>
    %cst_95 = arith.constant 1.000000e+00 : f32
    %420 = vector.broadcast %cst_95 : f32 to vector<8x32xf32>
    %421 = arith.addf %420, %419 : vector<8x32xf32>
    %422 = arith.divf %420, %421 : vector<8x32xf32>
    %423 = arith.mulf %416, %355 : vector<8x32xf32>
    %424 = arith.mulf %411, %417 : vector<8x32xf32>
    %425 = arith.addf %423, %424 : vector<8x32xf32>
    %426 = math.tanh %425 : vector<8x32xf32>
    %427 = arith.mulf %422, %426 : vector<8x32xf32>
    %c6_i32 = arith.constant 6 : i32
    %428 = arith.index_cast %c6_i32 : i32 to index
    %c0_96 = arith.constant 0 : index
    %c0_97 = arith.constant 0 : index
    %429 = vector.load %arg0[%428, %c0_96, %c0_97] : memref<8x8x32xf32, #tpu.memory_space<vmem>>, vector<1x8x32xf32>
    %430 = vector.shape_cast %429 : vector<1x8x32xf32> to vector<8x32xf32>
    %431 = arith.truncf %430 : vector<8x32xf32> to vector<8x32xbf16>
    %432 = arith.truncf %427 : vector<8x32xf32> to vector<8x32xbf16>
    %433 = vector.extract_strided_slice %0 {offsets = [0, 0, 0], sizes = [1, 32, 32], strides = [1, 1, 1]} : vector<4x32x32xbf16> to vector<1x32x32xbf16>
    %434 = vector.shape_cast %433 : vector<1x32x32xbf16> to vector<32x32xbf16>
    %cst_98 = arith.constant dense<0.000000e+00> : vector<8x32xf32>
    %435 = tpu.matmul %431, %434, %cst_98 {dimension_numbers = #tpu.dot_dimension_numbers<[1], [0], [0], [1], [0, 0, 1, 1], [], []>} : vector<8x32xbf16>, vector<32x32xbf16>, vector<8x32xf32> -> vector<8x32xf32>
    %436 = vector.extract_strided_slice %1 {offsets = [0, 0, 0], sizes = [1, 32, 32], strides = [1, 1, 1]} : vector<4x32x32xbf16> to vector<1x32x32xbf16>
    %437 = vector.shape_cast %436 : vector<1x32x32xbf16> to vector<32x32xbf16>
    %cst_99 = arith.constant dense<0.000000e+00> : vector<8x32xf32>
    %438 = tpu.matmul %432, %437, %cst_99 {dimension_numbers = #tpu.dot_dimension_numbers<[1], [0], [0], [1], [0, 0, 1, 1], [], []>} : vector<8x32xbf16>, vector<32x32xbf16>, vector<8x32xf32> -> vector<8x32xf32>
    %439 = arith.addf %435, %438 : vector<8x32xf32>
    %440 = vector.extract_strided_slice %2 {offsets = [0, 0, 0], sizes = [1, 1, 32], strides = [1, 1, 1]} : vector<4x1x32xf32> to vector<1x1x32xf32>
    %441 = vector.shape_cast %440 : vector<1x1x32xf32> to vector<1x32xf32>
    %442 = vector.broadcast %441 : vector<1x32xf32> to vector<8x32xf32>
    %443 = arith.addf %439, %442 : vector<8x32xf32>
    %444 = vector.extract_strided_slice %0 {offsets = [1, 0, 0], sizes = [1, 32, 32], strides = [1, 1, 1]} : vector<4x32x32xbf16> to vector<1x32x32xbf16>
    %445 = vector.shape_cast %444 : vector<1x32x32xbf16> to vector<32x32xbf16>
    %cst_100 = arith.constant dense<0.000000e+00> : vector<8x32xf32>
    %446 = tpu.matmul %431, %445, %cst_100 {dimension_numbers = #tpu.dot_dimension_numbers<[1], [0], [0], [1], [0, 0, 1, 1], [], []>} : vector<8x32xbf16>, vector<32x32xbf16>, vector<8x32xf32> -> vector<8x32xf32>
    %447 = vector.extract_strided_slice %1 {offsets = [1, 0, 0], sizes = [1, 32, 32], strides = [1, 1, 1]} : vector<4x32x32xbf16> to vector<1x32x32xbf16>
    %448 = vector.shape_cast %447 : vector<1x32x32xbf16> to vector<32x32xbf16>
    %cst_101 = arith.constant dense<0.000000e+00> : vector<8x32xf32>
    %449 = tpu.matmul %432, %448, %cst_101 {dimension_numbers = #tpu.dot_dimension_numbers<[1], [0], [0], [1], [0, 0, 1, 1], [], []>} : vector<8x32xbf16>, vector<32x32xbf16>, vector<8x32xf32> -> vector<8x32xf32>
    %450 = arith.addf %446, %449 : vector<8x32xf32>
    %451 = vector.extract_strided_slice %2 {offsets = [1, 0, 0], sizes = [1, 1, 32], strides = [1, 1, 1]} : vector<4x1x32xf32> to vector<1x1x32xf32>
    %452 = vector.shape_cast %451 : vector<1x1x32xf32> to vector<1x32xf32>
    %453 = vector.broadcast %452 : vector<1x32xf32> to vector<8x32xf32>
    %454 = arith.addf %450, %453 : vector<8x32xf32>
    %455 = vector.extract_strided_slice %0 {offsets = [2, 0, 0], sizes = [1, 32, 32], strides = [1, 1, 1]} : vector<4x32x32xbf16> to vector<1x32x32xbf16>
    %456 = vector.shape_cast %455 : vector<1x32x32xbf16> to vector<32x32xbf16>
    %cst_102 = arith.constant dense<0.000000e+00> : vector<8x32xf32>
    %457 = tpu.matmul %431, %456, %cst_102 {dimension_numbers = #tpu.dot_dimension_numbers<[1], [0], [0], [1], [0, 0, 1, 1], [], []>} : vector<8x32xbf16>, vector<32x32xbf16>, vector<8x32xf32> -> vector<8x32xf32>
    %458 = vector.extract_strided_slice %1 {offsets = [2, 0, 0], sizes = [1, 32, 32], strides = [1, 1, 1]} : vector<4x32x32xbf16> to vector<1x32x32xbf16>
    %459 = vector.shape_cast %458 : vector<1x32x32xbf16> to vector<32x32xbf16>
    %cst_103 = arith.constant dense<0.000000e+00> : vector<8x32xf32>
    %460 = tpu.matmul %432, %459, %cst_103 {dimension_numbers = #tpu.dot_dimension_numbers<[1], [0], [0], [1], [0, 0, 1, 1], [], []>} : vector<8x32xbf16>, vector<32x32xbf16>, vector<8x32xf32> -> vector<8x32xf32>
    %461 = arith.addf %457, %460 : vector<8x32xf32>
    %462 = vector.extract_strided_slice %2 {offsets = [2, 0, 0], sizes = [1, 1, 32], strides = [1, 1, 1]} : vector<4x1x32xf32> to vector<1x1x32xf32>
    %463 = vector.shape_cast %462 : vector<1x1x32xf32> to vector<1x32xf32>
    %464 = vector.broadcast %463 : vector<1x32xf32> to vector<8x32xf32>
    %465 = arith.addf %461, %464 : vector<8x32xf32>
    %466 = vector.extract_strided_slice %0 {offsets = [3, 0, 0], sizes = [1, 32, 32], strides = [1, 1, 1]} : vector<4x32x32xbf16> to vector<1x32x32xbf16>
    %467 = vector.shape_cast %466 : vector<1x32x32xbf16> to vector<32x32xbf16>
    %cst_104 = arith.constant dense<0.000000e+00> : vector<8x32xf32>
    %468 = tpu.matmul %431, %467, %cst_104 {dimension_numbers = #tpu.dot_dimension_numbers<[1], [0], [0], [1], [0, 0, 1, 1], [], []>} : vector<8x32xbf16>, vector<32x32xbf16>, vector<8x32xf32> -> vector<8x32xf32>
    %469 = vector.extract_strided_slice %1 {offsets = [3, 0, 0], sizes = [1, 32, 32], strides = [1, 1, 1]} : vector<4x32x32xbf16> to vector<1x32x32xbf16>
    %470 = vector.shape_cast %469 : vector<1x32x32xbf16> to vector<32x32xbf16>
    %cst_105 = arith.constant dense<0.000000e+00> : vector<8x32xf32>
    %471 = tpu.matmul %432, %470, %cst_105 {dimension_numbers = #tpu.dot_dimension_numbers<[1], [0], [0], [1], [0, 0, 1, 1], [], []>} : vector<8x32xbf16>, vector<32x32xbf16>, vector<8x32xf32> -> vector<8x32xf32>
    %472 = arith.addf %468, %471 : vector<8x32xf32>
    %473 = vector.extract_strided_slice %2 {offsets = [3, 0, 0], sizes = [1, 1, 32], strides = [1, 1, 1]} : vector<4x1x32xf32> to vector<1x1x32xf32>
    %474 = vector.shape_cast %473 : vector<1x1x32xf32> to vector<1x32xf32>
    %475 = vector.broadcast %474 : vector<1x32xf32> to vector<8x32xf32>
    %476 = arith.addf %472, %475 : vector<8x32xf32>
    %477 = arith.negf %443 : vector<8x32xf32>
    %478 = math.exp %477 : vector<8x32xf32>
    %cst_106 = arith.constant 1.000000e+00 : f32
    %479 = vector.broadcast %cst_106 : f32 to vector<8x32xf32>
    %480 = arith.addf %479, %478 : vector<8x32xf32>
    %481 = arith.divf %479, %480 : vector<8x32xf32>
    %482 = arith.negf %454 : vector<8x32xf32>
    %483 = math.exp %482 : vector<8x32xf32>
    %cst_107 = arith.constant 1.000000e+00 : f32
    %484 = vector.broadcast %cst_107 : f32 to vector<8x32xf32>
    %485 = arith.addf %484, %483 : vector<8x32xf32>
    %486 = arith.divf %484, %485 : vector<8x32xf32>
    %487 = math.tanh %465 : vector<8x32xf32>
    %488 = arith.negf %476 : vector<8x32xf32>
    %489 = math.exp %488 : vector<8x32xf32>
    %cst_108 = arith.constant 1.000000e+00 : f32
    %490 = vector.broadcast %cst_108 : f32 to vector<8x32xf32>
    %491 = arith.addf %490, %489 : vector<8x32xf32>
    %492 = arith.divf %490, %491 : vector<8x32xf32>
    %493 = arith.mulf %486, %425 : vector<8x32xf32>
    %494 = arith.mulf %481, %487 : vector<8x32xf32>
    %495 = arith.addf %493, %494 : vector<8x32xf32>
    %496 = math.tanh %495 : vector<8x32xf32>
    %497 = arith.mulf %492, %496 : vector<8x32xf32>
    %c7_i32 = arith.constant 7 : i32
    %498 = arith.index_cast %c7_i32 : i32 to index
    %c0_109 = arith.constant 0 : index
    %c0_110 = arith.constant 0 : index
    %499 = vector.load %arg0[%498, %c0_109, %c0_110] : memref<8x8x32xf32, #tpu.memory_space<vmem>>, vector<1x8x32xf32>
    %500 = vector.shape_cast %499 : vector<1x8x32xf32> to vector<8x32xf32>
    %501 = arith.truncf %500 : vector<8x32xf32> to vector<8x32xbf16>
    %502 = arith.truncf %497 : vector<8x32xf32> to vector<8x32xbf16>
    %503 = vector.extract_strided_slice %0 {offsets = [0, 0, 0], sizes = [1, 32, 32], strides = [1, 1, 1]} : vector<4x32x32xbf16> to vector<1x32x32xbf16>
    %504 = vector.shape_cast %503 : vector<1x32x32xbf16> to vector<32x32xbf16>
    %cst_111 = arith.constant dense<0.000000e+00> : vector<8x32xf32>
    %505 = tpu.matmul %501, %504, %cst_111 {dimension_numbers = #tpu.dot_dimension_numbers<[1], [0], [0], [1], [0, 0, 1, 1], [], []>} : vector<8x32xbf16>, vector<32x32xbf16>, vector<8x32xf32> -> vector<8x32xf32>
    %506 = vector.extract_strided_slice %1 {offsets = [0, 0, 0], sizes = [1, 32, 32], strides = [1, 1, 1]} : vector<4x32x32xbf16> to vector<1x32x32xbf16>
    %507 = vector.shape_cast %506 : vector<1x32x32xbf16> to vector<32x32xbf16>
    %cst_112 = arith.constant dense<0.000000e+00> : vector<8x32xf32>
    %508 = tpu.matmul %502, %507, %cst_112 {dimension_numbers = #tpu.dot_dimension_numbers<[1], [0], [0], [1], [0, 0, 1, 1], [], []>} : vector<8x32xbf16>, vector<32x32xbf16>, vector<8x32xf32> -> vector<8x32xf32>
    %509 = arith.addf %505, %508 : vector<8x32xf32>
    %510 = vector.extract_strided_slice %2 {offsets = [0, 0, 0], sizes = [1, 1, 32], strides = [1, 1, 1]} : vector<4x1x32xf32> to vector<1x1x32xf32>
    %511 = vector.shape_cast %510 : vector<1x1x32xf32> to vector<1x32xf32>
    %512 = vector.broadcast %511 : vector<1x32xf32> to vector<8x32xf32>
    %513 = arith.addf %509, %512 : vector<8x32xf32>
    %514 = vector.extract_strided_slice %0 {offsets = [1, 0, 0], sizes = [1, 32, 32], strides = [1, 1, 1]} : vector<4x32x32xbf16> to vector<1x32x32xbf16>
    %515 = vector.shape_cast %514 : vector<1x32x32xbf16> to vector<32x32xbf16>
    %cst_113 = arith.constant dense<0.000000e+00> : vector<8x32xf32>
    %516 = tpu.matmul %501, %515, %cst_113 {dimension_numbers = #tpu.dot_dimension_numbers<[1], [0], [0], [1], [0, 0, 1, 1], [], []>} : vector<8x32xbf16>, vector<32x32xbf16>, vector<8x32xf32> -> vector<8x32xf32>
    %517 = vector.extract_strided_slice %1 {offsets = [1, 0, 0], sizes = [1, 32, 32], strides = [1, 1, 1]} : vector<4x32x32xbf16> to vector<1x32x32xbf16>
    %518 = vector.shape_cast %517 : vector<1x32x32xbf16> to vector<32x32xbf16>
    %cst_114 = arith.constant dense<0.000000e+00> : vector<8x32xf32>
    %519 = tpu.matmul %502, %518, %cst_114 {dimension_numbers = #tpu.dot_dimension_numbers<[1], [0], [0], [1], [0, 0, 1, 1], [], []>} : vector<8x32xbf16>, vector<32x32xbf16>, vector<8x32xf32> -> vector<8x32xf32>
    %520 = arith.addf %516, %519 : vector<8x32xf32>
    %521 = vector.extract_strided_slice %2 {offsets = [1, 0, 0], sizes = [1, 1, 32], strides = [1, 1, 1]} : vector<4x1x32xf32> to vector<1x1x32xf32>
    %522 = vector.shape_cast %521 : vector<1x1x32xf32> to vector<1x32xf32>
    %523 = vector.broadcast %522 : vector<1x32xf32> to vector<8x32xf32>
    %524 = arith.addf %520, %523 : vector<8x32xf32>
    %525 = vector.extract_strided_slice %0 {offsets = [2, 0, 0], sizes = [1, 32, 32], strides = [1, 1, 1]} : vector<4x32x32xbf16> to vector<1x32x32xbf16>
    %526 = vector.shape_cast %525 : vector<1x32x32xbf16> to vector<32x32xbf16>
    %cst_115 = arith.constant dense<0.000000e+00> : vector<8x32xf32>
    %527 = tpu.matmul %501, %526, %cst_115 {dimension_numbers = #tpu.dot_dimension_numbers<[1], [0], [0], [1], [0, 0, 1, 1], [], []>} : vector<8x32xbf16>, vector<32x32xbf16>, vector<8x32xf32> -> vector<8x32xf32>
    %528 = vector.extract_strided_slice %1 {offsets = [2, 0, 0], sizes = [1, 32, 32], strides = [1, 1, 1]} : vector<4x32x32xbf16> to vector<1x32x32xbf16>
    %529 = vector.shape_cast %528 : vector<1x32x32xbf16> to vector<32x32xbf16>
    %cst_116 = arith.constant dense<0.000000e+00> : vector<8x32xf32>
    %530 = tpu.matmul %502, %529, %cst_116 {dimension_numbers = #tpu.dot_dimension_numbers<[1], [0], [0], [1], [0, 0, 1, 1], [], []>} : vector<8x32xbf16>, vector<32x32xbf16>, vector<8x32xf32> -> vector<8x32xf32>
    %531 = arith.addf %527, %530 : vector<8x32xf32>
    %532 = vector.extract_strided_slice %2 {offsets = [2, 0, 0], sizes = [1, 1, 32], strides = [1, 1, 1]} : vector<4x1x32xf32> to vector<1x1x32xf32>
    %533 = vector.shape_cast %532 : vector<1x1x32xf32> to vector<1x32xf32>
    %534 = vector.broadcast %533 : vector<1x32xf32> to vector<8x32xf32>
    %535 = arith.addf %531, %534 : vector<8x32xf32>
    %536 = vector.extract_strided_slice %0 {offsets = [3, 0, 0], sizes = [1, 32, 32], strides = [1, 1, 1]} : vector<4x32x32xbf16> to vector<1x32x32xbf16>
    %537 = vector.shape_cast %536 : vector<1x32x32xbf16> to vector<32x32xbf16>
    %cst_117 = arith.constant dense<0.000000e+00> : vector<8x32xf32>
    %538 = tpu.matmul %501, %537, %cst_117 {dimension_numbers = #tpu.dot_dimension_numbers<[1], [0], [0], [1], [0, 0, 1, 1], [], []>} : vector<8x32xbf16>, vector<32x32xbf16>, vector<8x32xf32> -> vector<8x32xf32>
    %539 = vector.extract_strided_slice %1 {offsets = [3, 0, 0], sizes = [1, 32, 32], strides = [1, 1, 1]} : vector<4x32x32xbf16> to vector<1x32x32xbf16>
    %540 = vector.shape_cast %539 : vector<1x32x32xbf16> to vector<32x32xbf16>
    %cst_118 = arith.constant dense<0.000000e+00> : vector<8x32xf32>
    %541 = tpu.matmul %502, %540, %cst_118 {dimension_numbers = #tpu.dot_dimension_numbers<[1], [0], [0], [1], [0, 0, 1, 1], [], []>} : vector<8x32xbf16>, vector<32x32xbf16>, vector<8x32xf32> -> vector<8x32xf32>
    %542 = arith.addf %538, %541 : vector<8x32xf32>
    %543 = vector.extract_strided_slice %2 {offsets = [3, 0, 0], sizes = [1, 1, 32], strides = [1, 1, 1]} : vector<4x1x32xf32> to vector<1x1x32xf32>
    %544 = vector.shape_cast %543 : vector<1x1x32xf32> to vector<1x32xf32>
    %545 = vector.broadcast %544 : vector<1x32xf32> to vector<8x32xf32>
    %546 = arith.addf %542, %545 : vector<8x32xf32>
    %547 = arith.negf %513 : vector<8x32xf32>
    %548 = math.exp %547 : vector<8x32xf32>
    %cst_119 = arith.constant 1.000000e+00 : f32
    %549 = vector.broadcast %cst_119 : f32 to vector<8x32xf32>
    %550 = arith.addf %549, %548 : vector<8x32xf32>
    %551 = arith.divf %549, %550 : vector<8x32xf32>
    %552 = arith.negf %524 : vector<8x32xf32>
    %553 = math.exp %552 : vector<8x32xf32>
    %cst_120 = arith.constant 1.000000e+00 : f32
    %554 = vector.broadcast %cst_120 : f32 to vector<8x32xf32>
    %555 = arith.addf %554, %553 : vector<8x32xf32>
    %556 = arith.divf %554, %555 : vector<8x32xf32>
    %557 = math.tanh %535 : vector<8x32xf32>
    %558 = arith.negf %546 : vector<8x32xf32>
    %559 = math.exp %558 : vector<8x32xf32>
    %cst_121 = arith.constant 1.000000e+00 : f32
    %560 = vector.broadcast %cst_121 : f32 to vector<8x32xf32>
    %561 = arith.addf %560, %559 : vector<8x32xf32>
    %562 = arith.divf %560, %561 : vector<8x32xf32>
    %563 = arith.mulf %556, %495 : vector<8x32xf32>
    %564 = arith.mulf %551, %557 : vector<8x32xf32>
    %565 = arith.addf %563, %564 : vector<8x32xf32>
    %566 = math.tanh %565 : vector<8x32xf32>
    %567 = arith.mulf %562, %566 : vector<8x32xf32>
    %c8_i32 = arith.constant 8 : i32
    %cst_122 = arith.constant 0.000000e+00 : f32
    %568 = vector.broadcast %cst_122 : f32 to vector<8x32xf32>
    %cst_123 = arith.constant 0.000000e+00 : f32
    %569 = vector.broadcast %cst_123 : f32 to vector<8x32xf32>
    %c0_i32_124 = arith.constant 0 : i32
    %570 = arith.index_cast %c0_i32_124 : i32 to index
    %c0_125 = arith.constant 0 : index
    %c0_126 = arith.constant 0 : index
    %571 = vector.load %arg1[%570, %c0_125, %c0_126] : memref<6x8x32xf32, #tpu.memory_space<vmem>>, vector<1x8x32xf32>
    %572 = vector.shape_cast %571 : vector<1x8x32xf32> to vector<8x32xf32>
    %573 = arith.truncf %572 : vector<8x32xf32> to vector<8x32xbf16>
    %574 = arith.truncf %568 : vector<8x32xf32> to vector<8x32xbf16>
    %575 = vector.extract_strided_slice %3 {offsets = [0, 0, 0], sizes = [1, 32, 32], strides = [1, 1, 1]} : vector<4x32x32xbf16> to vector<1x32x32xbf16>
    %576 = vector.shape_cast %575 : vector<1x32x32xbf16> to vector<32x32xbf16>
    %cst_127 = arith.constant dense<0.000000e+00> : vector<8x32xf32>
    %577 = tpu.matmul %573, %576, %cst_127 {dimension_numbers = #tpu.dot_dimension_numbers<[1], [0], [0], [1], [0, 0, 1, 1], [], []>} : vector<8x32xbf16>, vector<32x32xbf16>, vector<8x32xf32> -> vector<8x32xf32>
    %578 = vector.extract_strided_slice %4 {offsets = [0, 0, 0], sizes = [1, 32, 32], strides = [1, 1, 1]} : vector<4x32x32xbf16> to vector<1x32x32xbf16>
    %579 = vector.shape_cast %578 : vector<1x32x32xbf16> to vector<32x32xbf16>
    %cst_128 = arith.constant dense<0.000000e+00> : vector<8x32xf32>
    %580 = tpu.matmul %574, %579, %cst_128 {dimension_numbers = #tpu.dot_dimension_numbers<[1], [0], [0], [1], [0, 0, 1, 1], [], []>} : vector<8x32xbf16>, vector<32x32xbf16>, vector<8x32xf32> -> vector<8x32xf32>
    %581 = arith.addf %577, %580 : vector<8x32xf32>
    %582 = vector.extract_strided_slice %5 {offsets = [0, 0, 0], sizes = [1, 1, 32], strides = [1, 1, 1]} : vector<4x1x32xf32> to vector<1x1x32xf32>
    %583 = vector.shape_cast %582 : vector<1x1x32xf32> to vector<1x32xf32>
    %584 = vector.broadcast %583 : vector<1x32xf32> to vector<8x32xf32>
    %585 = arith.addf %581, %584 : vector<8x32xf32>
    %586 = vector.extract_strided_slice %3 {offsets = [1, 0, 0], sizes = [1, 32, 32], strides = [1, 1, 1]} : vector<4x32x32xbf16> to vector<1x32x32xbf16>
    %587 = vector.shape_cast %586 : vector<1x32x32xbf16> to vector<32x32xbf16>
    %cst_129 = arith.constant dense<0.000000e+00> : vector<8x32xf32>
    %588 = tpu.matmul %573, %587, %cst_129 {dimension_numbers = #tpu.dot_dimension_numbers<[1], [0], [0], [1], [0, 0, 1, 1], [], []>} : vector<8x32xbf16>, vector<32x32xbf16>, vector<8x32xf32> -> vector<8x32xf32>
    %589 = vector.extract_strided_slice %4 {offsets = [1, 0, 0], sizes = [1, 32, 32], strides = [1, 1, 1]} : vector<4x32x32xbf16> to vector<1x32x32xbf16>
    %590 = vector.shape_cast %589 : vector<1x32x32xbf16> to vector<32x32xbf16>
    %cst_130 = arith.constant dense<0.000000e+00> : vector<8x32xf32>
    %591 = tpu.matmul %574, %590, %cst_130 {dimension_numbers = #tpu.dot_dimension_numbers<[1], [0], [0], [1], [0, 0, 1, 1], [], []>} : vector<8x32xbf16>, vector<32x32xbf16>, vector<8x32xf32> -> vector<8x32xf32>
    %592 = arith.addf %588, %591 : vector<8x32xf32>
    %593 = vector.extract_strided_slice %5 {offsets = [1, 0, 0], sizes = [1, 1, 32], strides = [1, 1, 1]} : vector<4x1x32xf32> to vector<1x1x32xf32>
    %594 = vector.shape_cast %593 : vector<1x1x32xf32> to vector<1x32xf32>
    %595 = vector.broadcast %594 : vector<1x32xf32> to vector<8x32xf32>
    %596 = arith.addf %592, %595 : vector<8x32xf32>
    %597 = vector.extract_strided_slice %3 {offsets = [2, 0, 0], sizes = [1, 32, 32], strides = [1, 1, 1]} : vector<4x32x32xbf16> to vector<1x32x32xbf16>
    %598 = vector.shape_cast %597 : vector<1x32x32xbf16> to vector<32x32xbf16>
    %cst_131 = arith.constant dense<0.000000e+00> : vector<8x32xf32>
    %599 = tpu.matmul %573, %598, %cst_131 {dimension_numbers = #tpu.dot_dimension_numbers<[1], [0], [0], [1], [0, 0, 1, 1], [], []>} : vector<8x32xbf16>, vector<32x32xbf16>, vector<8x32xf32> -> vector<8x32xf32>
    %600 = vector.extract_strided_slice %4 {offsets = [2, 0, 0], sizes = [1, 32, 32], strides = [1, 1, 1]} : vector<4x32x32xbf16> to vector<1x32x32xbf16>
    %601 = vector.shape_cast %600 : vector<1x32x32xbf16> to vector<32x32xbf16>
    %cst_132 = arith.constant dense<0.000000e+00> : vector<8x32xf32>
    %602 = tpu.matmul %574, %601, %cst_132 {dimension_numbers = #tpu.dot_dimension_numbers<[1], [0], [0], [1], [0, 0, 1, 1], [], []>} : vector<8x32xbf16>, vector<32x32xbf16>, vector<8x32xf32> -> vector<8x32xf32>
    %603 = arith.addf %599, %602 : vector<8x32xf32>
    %604 = vector.extract_strided_slice %5 {offsets = [2, 0, 0], sizes = [1, 1, 32], strides = [1, 1, 1]} : vector<4x1x32xf32> to vector<1x1x32xf32>
    %605 = vector.shape_cast %604 : vector<1x1x32xf32> to vector<1x32xf32>
    %606 = vector.broadcast %605 : vector<1x32xf32> to vector<8x32xf32>
    %607 = arith.addf %603, %606 : vector<8x32xf32>
    %608 = vector.extract_strided_slice %3 {offsets = [3, 0, 0], sizes = [1, 32, 32], strides = [1, 1, 1]} : vector<4x32x32xbf16> to vector<1x32x32xbf16>
    %609 = vector.shape_cast %608 : vector<1x32x32xbf16> to vector<32x32xbf16>
    %cst_133 = arith.constant dense<0.000000e+00> : vector<8x32xf32>
    %610 = tpu.matmul %573, %609, %cst_133 {dimension_numbers = #tpu.dot_dimension_numbers<[1], [0], [0], [1], [0, 0, 1, 1], [], []>} : vector<8x32xbf16>, vector<32x32xbf16>, vector<8x32xf32> -> vector<8x32xf32>
    %611 = vector.extract_strided_slice %4 {offsets = [3, 0, 0], sizes = [1, 32, 32], strides = [1, 1, 1]} : vector<4x32x32xbf16> to vector<1x32x32xbf16>
    %612 = vector.shape_cast %611 : vector<1x32x32xbf16> to vector<32x32xbf16>
    %cst_134 = arith.constant dense<0.000000e+00> : vector<8x32xf32>
    %613 = tpu.matmul %574, %612, %cst_134 {dimension_numbers = #tpu.dot_dimension_numbers<[1], [0], [0], [1], [0, 0, 1, 1], [], []>} : vector<8x32xbf16>, vector<32x32xbf16>, vector<8x32xf32> -> vector<8x32xf32>
    %614 = arith.addf %610, %613 : vector<8x32xf32>
    %615 = vector.extract_strided_slice %5 {offsets = [3, 0, 0], sizes = [1, 1, 32], strides = [1, 1, 1]} : vector<4x1x32xf32> to vector<1x1x32xf32>
    %616 = vector.shape_cast %615 : vector<1x1x32xf32> to vector<1x32xf32>
    %617 = vector.broadcast %616 : vector<1x32xf32> to vector<8x32xf32>
    %618 = arith.addf %614, %617 : vector<8x32xf32>
    %619 = arith.negf %585 : vector<8x32xf32>
    %620 = math.exp %619 : vector<8x32xf32>
    %cst_135 = arith.constant 1.000000e+00 : f32
    %621 = vector.broadcast %cst_135 : f32 to vector<8x32xf32>
    %622 = arith.addf %621, %620 : vector<8x32xf32>
    %623 = arith.divf %621, %622 : vector<8x32xf32>
    %624 = arith.negf %596 : vector<8x32xf32>
    %625 = math.exp %624 : vector<8x32xf32>
    %cst_136 = arith.constant 1.000000e+00 : f32
    %626 = vector.broadcast %cst_136 : f32 to vector<8x32xf32>
    %627 = arith.addf %626, %625 : vector<8x32xf32>
    %628 = arith.divf %626, %627 : vector<8x32xf32>
    %629 = math.tanh %607 : vector<8x32xf32>
    %630 = arith.negf %618 : vector<8x32xf32>
    %631 = math.exp %630 : vector<8x32xf32>
    %cst_137 = arith.constant 1.000000e+00 : f32
    %632 = vector.broadcast %cst_137 : f32 to vector<8x32xf32>
    %633 = arith.addf %632, %631 : vector<8x32xf32>
    %634 = arith.divf %632, %633 : vector<8x32xf32>
    %635 = arith.mulf %628, %569 : vector<8x32xf32>
    %636 = arith.mulf %623, %629 : vector<8x32xf32>
    %637 = arith.addf %635, %636 : vector<8x32xf32>
    %638 = math.tanh %637 : vector<8x32xf32>
    %639 = arith.mulf %634, %638 : vector<8x32xf32>
    %c1_i32_138 = arith.constant 1 : i32
    %640 = arith.index_cast %c1_i32_138 : i32 to index
    %c0_139 = arith.constant 0 : index
    %c0_140 = arith.constant 0 : index
    %641 = vector.load %arg1[%640, %c0_139, %c0_140] : memref<6x8x32xf32, #tpu.memory_space<vmem>>, vector<1x8x32xf32>
    %642 = vector.shape_cast %641 : vector<1x8x32xf32> to vector<8x32xf32>
    %643 = arith.truncf %642 : vector<8x32xf32> to vector<8x32xbf16>
    %644 = arith.truncf %639 : vector<8x32xf32> to vector<8x32xbf16>
    %645 = vector.extract_strided_slice %3 {offsets = [0, 0, 0], sizes = [1, 32, 32], strides = [1, 1, 1]} : vector<4x32x32xbf16> to vector<1x32x32xbf16>
    %646 = vector.shape_cast %645 : vector<1x32x32xbf16> to vector<32x32xbf16>
    %cst_141 = arith.constant dense<0.000000e+00> : vector<8x32xf32>
    %647 = tpu.matmul %643, %646, %cst_141 {dimension_numbers = #tpu.dot_dimension_numbers<[1], [0], [0], [1], [0, 0, 1, 1], [], []>} : vector<8x32xbf16>, vector<32x32xbf16>, vector<8x32xf32> -> vector<8x32xf32>
    %648 = vector.extract_strided_slice %4 {offsets = [0, 0, 0], sizes = [1, 32, 32], strides = [1, 1, 1]} : vector<4x32x32xbf16> to vector<1x32x32xbf16>
    %649 = vector.shape_cast %648 : vector<1x32x32xbf16> to vector<32x32xbf16>
    %cst_142 = arith.constant dense<0.000000e+00> : vector<8x32xf32>
    %650 = tpu.matmul %644, %649, %cst_142 {dimension_numbers = #tpu.dot_dimension_numbers<[1], [0], [0], [1], [0, 0, 1, 1], [], []>} : vector<8x32xbf16>, vector<32x32xbf16>, vector<8x32xf32> -> vector<8x32xf32>
    %651 = arith.addf %647, %650 : vector<8x32xf32>
    %652 = vector.extract_strided_slice %5 {offsets = [0, 0, 0], sizes = [1, 1, 32], strides = [1, 1, 1]} : vector<4x1x32xf32> to vector<1x1x32xf32>
    %653 = vector.shape_cast %652 : vector<1x1x32xf32> to vector<1x32xf32>
    %654 = vector.broadcast %653 : vector<1x32xf32> to vector<8x32xf32>
    %655 = arith.addf %651, %654 : vector<8x32xf32>
    %656 = vector.extract_strided_slice %3 {offsets = [1, 0, 0], sizes = [1, 32, 32], strides = [1, 1, 1]} : vector<4x32x32xbf16> to vector<1x32x32xbf16>
    %657 = vector.shape_cast %656 : vector<1x32x32xbf16> to vector<32x32xbf16>
    %cst_143 = arith.constant dense<0.000000e+00> : vector<8x32xf32>
    %658 = tpu.matmul %643, %657, %cst_143 {dimension_numbers = #tpu.dot_dimension_numbers<[1], [0], [0], [1], [0, 0, 1, 1], [], []>} : vector<8x32xbf16>, vector<32x32xbf16>, vector<8x32xf32> -> vector<8x32xf32>
    %659 = vector.extract_strided_slice %4 {offsets = [1, 0, 0], sizes = [1, 32, 32], strides = [1, 1, 1]} : vector<4x32x32xbf16> to vector<1x32x32xbf16>
    %660 = vector.shape_cast %659 : vector<1x32x32xbf16> to vector<32x32xbf16>
    %cst_144 = arith.constant dense<0.000000e+00> : vector<8x32xf32>
    %661 = tpu.matmul %644, %660, %cst_144 {dimension_numbers = #tpu.dot_dimension_numbers<[1], [0], [0], [1], [0, 0, 1, 1], [], []>} : vector<8x32xbf16>, vector<32x32xbf16>, vector<8x32xf32> -> vector<8x32xf32>
    %662 = arith.addf %658, %661 : vector<8x32xf32>
    %663 = vector.extract_strided_slice %5 {offsets = [1, 0, 0], sizes = [1, 1, 32], strides = [1, 1, 1]} : vector<4x1x32xf32> to vector<1x1x32xf32>
    %664 = vector.shape_cast %663 : vector<1x1x32xf32> to vector<1x32xf32>
    %665 = vector.broadcast %664 : vector<1x32xf32> to vector<8x32xf32>
    %666 = arith.addf %662, %665 : vector<8x32xf32>
    %667 = vector.extract_strided_slice %3 {offsets = [2, 0, 0], sizes = [1, 32, 32], strides = [1, 1, 1]} : vector<4x32x32xbf16> to vector<1x32x32xbf16>
    %668 = vector.shape_cast %667 : vector<1x32x32xbf16> to vector<32x32xbf16>
    %cst_145 = arith.constant dense<0.000000e+00> : vector<8x32xf32>
    %669 = tpu.matmul %643, %668, %cst_145 {dimension_numbers = #tpu.dot_dimension_numbers<[1], [0], [0], [1], [0, 0, 1, 1], [], []>} : vector<8x32xbf16>, vector<32x32xbf16>, vector<8x32xf32> -> vector<8x32xf32>
    %670 = vector.extract_strided_slice %4 {offsets = [2, 0, 0], sizes = [1, 32, 32], strides = [1, 1, 1]} : vector<4x32x32xbf16> to vector<1x32x32xbf16>
    %671 = vector.shape_cast %670 : vector<1x32x32xbf16> to vector<32x32xbf16>
    %cst_146 = arith.constant dense<0.000000e+00> : vector<8x32xf32>
    %672 = tpu.matmul %644, %671, %cst_146 {dimension_numbers = #tpu.dot_dimension_numbers<[1], [0], [0], [1], [0, 0, 1, 1], [], []>} : vector<8x32xbf16>, vector<32x32xbf16>, vector<8x32xf32> -> vector<8x32xf32>
    %673 = arith.addf %669, %672 : vector<8x32xf32>
    %674 = vector.extract_strided_slice %5 {offsets = [2, 0, 0], sizes = [1, 1, 32], strides = [1, 1, 1]} : vector<4x1x32xf32> to vector<1x1x32xf32>
    %675 = vector.shape_cast %674 : vector<1x1x32xf32> to vector<1x32xf32>
    %676 = vector.broadcast %675 : vector<1x32xf32> to vector<8x32xf32>
    %677 = arith.addf %673, %676 : vector<8x32xf32>
    %678 = vector.extract_strided_slice %3 {offsets = [3, 0, 0], sizes = [1, 32, 32], strides = [1, 1, 1]} : vector<4x32x32xbf16> to vector<1x32x32xbf16>
    %679 = vector.shape_cast %678 : vector<1x32x32xbf16> to vector<32x32xbf16>
    %cst_147 = arith.constant dense<0.000000e+00> : vector<8x32xf32>
    %680 = tpu.matmul %643, %679, %cst_147 {dimension_numbers = #tpu.dot_dimension_numbers<[1], [0], [0], [1], [0, 0, 1, 1], [], []>} : vector<8x32xbf16>, vector<32x32xbf16>, vector<8x32xf32> -> vector<8x32xf32>
    %681 = vector.extract_strided_slice %4 {offsets = [3, 0, 0], sizes = [1, 32, 32], strides = [1, 1, 1]} : vector<4x32x32xbf16> to vector<1x32x32xbf16>
    %682 = vector.shape_cast %681 : vector<1x32x32xbf16> to vector<32x32xbf16>
    %cst_148 = arith.constant dense<0.000000e+00> : vector<8x32xf32>
    %683 = tpu.matmul %644, %682, %cst_148 {dimension_numbers = #tpu.dot_dimension_numbers<[1], [0], [0], [1], [0, 0, 1, 1], [], []>} : vector<8x32xbf16>, vector<32x32xbf16>, vector<8x32xf32> -> vector<8x32xf32>
    %684 = arith.addf %680, %683 : vector<8x32xf32>
    %685 = vector.extract_strided_slice %5 {offsets = [3, 0, 0], sizes = [1, 1, 32], strides = [1, 1, 1]} : vector<4x1x32xf32> to vector<1x1x32xf32>
    %686 = vector.shape_cast %685 : vector<1x1x32xf32> to vector<1x32xf32>
    %687 = vector.broadcast %686 : vector<1x32xf32> to vector<8x32xf32>
    %688 = arith.addf %684, %687 : vector<8x32xf32>
    %689 = arith.negf %655 : vector<8x32xf32>
    %690 = math.exp %689 : vector<8x32xf32>
    %cst_149 = arith.constant 1.000000e+00 : f32
    %691 = vector.broadcast %cst_149 : f32 to vector<8x32xf32>
    %692 = arith.addf %691, %690 : vector<8x32xf32>
    %693 = arith.divf %691, %692 : vector<8x32xf32>
    %694 = arith.negf %666 : vector<8x32xf32>
    %695 = math.exp %694 : vector<8x32xf32>
    %cst_150 = arith.constant 1.000000e+00 : f32
    %696 = vector.broadcast %cst_150 : f32 to vector<8x32xf32>
    %697 = arith.addf %696, %695 : vector<8x32xf32>
    %698 = arith.divf %696, %697 : vector<8x32xf32>
    %699 = math.tanh %677 : vector<8x32xf32>
    %700 = arith.negf %688 : vector<8x32xf32>
    %701 = math.exp %700 : vector<8x32xf32>
    %cst_151 = arith.constant 1.000000e+00 : f32
    %702 = vector.broadcast %cst_151 : f32 to vector<8x32xf32>
    %703 = arith.addf %702, %701 : vector<8x32xf32>
    %704 = arith.divf %702, %703 : vector<8x32xf32>
    %705 = arith.mulf %698, %637 : vector<8x32xf32>
    %706 = arith.mulf %693, %699 : vector<8x32xf32>
    %707 = arith.addf %705, %706 : vector<8x32xf32>
    %708 = math.tanh %707 : vector<8x32xf32>
    %709 = arith.mulf %704, %708 : vector<8x32xf32>
    %c2_i32_152 = arith.constant 2 : i32
    %710 = arith.index_cast %c2_i32_152 : i32 to index
    %c0_153 = arith.constant 0 : index
    %c0_154 = arith.constant 0 : index
    %711 = vector.load %arg1[%710, %c0_153, %c0_154] : memref<6x8x32xf32, #tpu.memory_space<vmem>>, vector<1x8x32xf32>
    %712 = vector.shape_cast %711 : vector<1x8x32xf32> to vector<8x32xf32>
    %713 = arith.truncf %712 : vector<8x32xf32> to vector<8x32xbf16>
    %714 = arith.truncf %709 : vector<8x32xf32> to vector<8x32xbf16>
    %715 = vector.extract_strided_slice %3 {offsets = [0, 0, 0], sizes = [1, 32, 32], strides = [1, 1, 1]} : vector<4x32x32xbf16> to vector<1x32x32xbf16>
    %716 = vector.shape_cast %715 : vector<1x32x32xbf16> to vector<32x32xbf16>
    %cst_155 = arith.constant dense<0.000000e+00> : vector<8x32xf32>
    %717 = tpu.matmul %713, %716, %cst_155 {dimension_numbers = #tpu.dot_dimension_numbers<[1], [0], [0], [1], [0, 0, 1, 1], [], []>} : vector<8x32xbf16>, vector<32x32xbf16>, vector<8x32xf32> -> vector<8x32xf32>
    %718 = vector.extract_strided_slice %4 {offsets = [0, 0, 0], sizes = [1, 32, 32], strides = [1, 1, 1]} : vector<4x32x32xbf16> to vector<1x32x32xbf16>
    %719 = vector.shape_cast %718 : vector<1x32x32xbf16> to vector<32x32xbf16>
    %cst_156 = arith.constant dense<0.000000e+00> : vector<8x32xf32>
    %720 = tpu.matmul %714, %719, %cst_156 {dimension_numbers = #tpu.dot_dimension_numbers<[1], [0], [0], [1], [0, 0, 1, 1], [], []>} : vector<8x32xbf16>, vector<32x32xbf16>, vector<8x32xf32> -> vector<8x32xf32>
    %721 = arith.addf %717, %720 : vector<8x32xf32>
    %722 = vector.extract_strided_slice %5 {offsets = [0, 0, 0], sizes = [1, 1, 32], strides = [1, 1, 1]} : vector<4x1x32xf32> to vector<1x1x32xf32>
    %723 = vector.shape_cast %722 : vector<1x1x32xf32> to vector<1x32xf32>
    %724 = vector.broadcast %723 : vector<1x32xf32> to vector<8x32xf32>
    %725 = arith.addf %721, %724 : vector<8x32xf32>
    %726 = vector.extract_strided_slice %3 {offsets = [1, 0, 0], sizes = [1, 32, 32], strides = [1, 1, 1]} : vector<4x32x32xbf16> to vector<1x32x32xbf16>
    %727 = vector.shape_cast %726 : vector<1x32x32xbf16> to vector<32x32xbf16>
    %cst_157 = arith.constant dense<0.000000e+00> : vector<8x32xf32>
    %728 = tpu.matmul %713, %727, %cst_157 {dimension_numbers = #tpu.dot_dimension_numbers<[1], [0], [0], [1], [0, 0, 1, 1], [], []>} : vector<8x32xbf16>, vector<32x32xbf16>, vector<8x32xf32> -> vector<8x32xf32>
    %729 = vector.extract_strided_slice %4 {offsets = [1, 0, 0], sizes = [1, 32, 32], strides = [1, 1, 1]} : vector<4x32x32xbf16> to vector<1x32x32xbf16>
    %730 = vector.shape_cast %729 : vector<1x32x32xbf16> to vector<32x32xbf16>
    %cst_158 = arith.constant dense<0.000000e+00> : vector<8x32xf32>
    %731 = tpu.matmul %714, %730, %cst_158 {dimension_numbers = #tpu.dot_dimension_numbers<[1], [0], [0], [1], [0, 0, 1, 1], [], []>} : vector<8x32xbf16>, vector<32x32xbf16>, vector<8x32xf32> -> vector<8x32xf32>
    %732 = arith.addf %728, %731 : vector<8x32xf32>
    %733 = vector.extract_strided_slice %5 {offsets = [1, 0, 0], sizes = [1, 1, 32], strides = [1, 1, 1]} : vector<4x1x32xf32> to vector<1x1x32xf32>
    %734 = vector.shape_cast %733 : vector<1x1x32xf32> to vector<1x32xf32>
    %735 = vector.broadcast %734 : vector<1x32xf32> to vector<8x32xf32>
    %736 = arith.addf %732, %735 : vector<8x32xf32>
    %737 = vector.extract_strided_slice %3 {offsets = [2, 0, 0], sizes = [1, 32, 32], strides = [1, 1, 1]} : vector<4x32x32xbf16> to vector<1x32x32xbf16>
    %738 = vector.shape_cast %737 : vector<1x32x32xbf16> to vector<32x32xbf16>
    %cst_159 = arith.constant dense<0.000000e+00> : vector<8x32xf32>
    %739 = tpu.matmul %713, %738, %cst_159 {dimension_numbers = #tpu.dot_dimension_numbers<[1], [0], [0], [1], [0, 0, 1, 1], [], []>} : vector<8x32xbf16>, vector<32x32xbf16>, vector<8x32xf32> -> vector<8x32xf32>
    %740 = vector.extract_strided_slice %4 {offsets = [2, 0, 0], sizes = [1, 32, 32], strides = [1, 1, 1]} : vector<4x32x32xbf16> to vector<1x32x32xbf16>
    %741 = vector.shape_cast %740 : vector<1x32x32xbf16> to vector<32x32xbf16>
    %cst_160 = arith.constant dense<0.000000e+00> : vector<8x32xf32>
    %742 = tpu.matmul %714, %741, %cst_160 {dimension_numbers = #tpu.dot_dimension_numbers<[1], [0], [0], [1], [0, 0, 1, 1], [], []>} : vector<8x32xbf16>, vector<32x32xbf16>, vector<8x32xf32> -> vector<8x32xf32>
    %743 = arith.addf %739, %742 : vector<8x32xf32>
    %744 = vector.extract_strided_slice %5 {offsets = [2, 0, 0], sizes = [1, 1, 32], strides = [1, 1, 1]} : vector<4x1x32xf32> to vector<1x1x32xf32>
    %745 = vector.shape_cast %744 : vector<1x1x32xf32> to vector<1x32xf32>
    %746 = vector.broadcast %745 : vector<1x32xf32> to vector<8x32xf32>
    %747 = arith.addf %743, %746 : vector<8x32xf32>
    %748 = vector.extract_strided_slice %3 {offsets = [3, 0, 0], sizes = [1, 32, 32], strides = [1, 1, 1]} : vector<4x32x32xbf16> to vector<1x32x32xbf16>
    %749 = vector.shape_cast %748 : vector<1x32x32xbf16> to vector<32x32xbf16>
    %cst_161 = arith.constant dense<0.000000e+00> : vector<8x32xf32>
    %750 = tpu.matmul %713, %749, %cst_161 {dimension_numbers = #tpu.dot_dimension_numbers<[1], [0], [0], [1], [0, 0, 1, 1], [], []>} : vector<8x32xbf16>, vector<32x32xbf16>, vector<8x32xf32> -> vector<8x32xf32>
    %751 = vector.extract_strided_slice %4 {offsets = [3, 0, 0], sizes = [1, 32, 32], strides = [1, 1, 1]} : vector<4x32x32xbf16> to vector<1x32x32xbf16>
    %752 = vector.shape_cast %751 : vector<1x32x32xbf16> to vector<32x32xbf16>
    %cst_162 = arith.constant dense<0.000000e+00> : vector<8x32xf32>
    %753 = tpu.matmul %714, %752, %cst_162 {dimension_numbers = #tpu.dot_dimension_numbers<[1], [0], [0], [1], [0, 0, 1, 1], [], []>} : vector<8x32xbf16>, vector<32x32xbf16>, vector<8x32xf32> -> vector<8x32xf32>
    %754 = arith.addf %750, %753 : vector<8x32xf32>
    %755 = vector.extract_strided_slice %5 {offsets = [3, 0, 0], sizes = [1, 1, 32], strides = [1, 1, 1]} : vector<4x1x32xf32> to vector<1x1x32xf32>
    %756 = vector.shape_cast %755 : vector<1x1x32xf32> to vector<1x32xf32>
    %757 = vector.broadcast %756 : vector<1x32xf32> to vector<8x32xf32>
    %758 = arith.addf %754, %757 : vector<8x32xf32>
    %759 = arith.negf %725 : vector<8x32xf32>
    %760 = math.exp %759 : vector<8x32xf32>
    %cst_163 = arith.constant 1.000000e+00 : f32
    %761 = vector.broadcast %cst_163 : f32 to vector<8x32xf32>
    %762 = arith.addf %761, %760 : vector<8x32xf32>
    %763 = arith.divf %761, %762 : vector<8x32xf32>
    %764 = arith.negf %736 : vector<8x32xf32>
    %765 = math.exp %764 : vector<8x32xf32>
    %cst_164 = arith.constant 1.000000e+00 : f32
    %766 = vector.broadcast %cst_164 : f32 to vector<8x32xf32>
    %767 = arith.addf %766, %765 : vector<8x32xf32>
    %768 = arith.divf %766, %767 : vector<8x32xf32>
    %769 = math.tanh %747 : vector<8x32xf32>
    %770 = arith.negf %758 : vector<8x32xf32>
    %771 = math.exp %770 : vector<8x32xf32>
    %cst_165 = arith.constant 1.000000e+00 : f32
    %772 = vector.broadcast %cst_165 : f32 to vector<8x32xf32>
    %773 = arith.addf %772, %771 : vector<8x32xf32>
    %774 = arith.divf %772, %773 : vector<8x32xf32>
    %775 = arith.mulf %768, %707 : vector<8x32xf32>
    %776 = arith.mulf %763, %769 : vector<8x32xf32>
    %777 = arith.addf %775, %776 : vector<8x32xf32>
    %778 = math.tanh %777 : vector<8x32xf32>
    %779 = arith.mulf %774, %778 : vector<8x32xf32>
    %c3_i32_166 = arith.constant 3 : i32
    %780 = arith.index_cast %c3_i32_166 : i32 to index
    %c0_167 = arith.constant 0 : index
    %c0_168 = arith.constant 0 : index
    %781 = vector.load %arg1[%780, %c0_167, %c0_168] : memref<6x8x32xf32, #tpu.memory_space<vmem>>, vector<1x8x32xf32>
    %782 = vector.shape_cast %781 : vector<1x8x32xf32> to vector<8x32xf32>
    %783 = arith.truncf %782 : vector<8x32xf32> to vector<8x32xbf16>
    %784 = arith.truncf %779 : vector<8x32xf32> to vector<8x32xbf16>
    %785 = vector.extract_strided_slice %3 {offsets = [0, 0, 0], sizes = [1, 32, 32], strides = [1, 1, 1]} : vector<4x32x32xbf16> to vector<1x32x32xbf16>
    %786 = vector.shape_cast %785 : vector<1x32x32xbf16> to vector<32x32xbf16>
    %cst_169 = arith.constant dense<0.000000e+00> : vector<8x32xf32>
    %787 = tpu.matmul %783, %786, %cst_169 {dimension_numbers = #tpu.dot_dimension_numbers<[1], [0], [0], [1], [0, 0, 1, 1], [], []>} : vector<8x32xbf16>, vector<32x32xbf16>, vector<8x32xf32> -> vector<8x32xf32>
    %788 = vector.extract_strided_slice %4 {offsets = [0, 0, 0], sizes = [1, 32, 32], strides = [1, 1, 1]} : vector<4x32x32xbf16> to vector<1x32x32xbf16>
    %789 = vector.shape_cast %788 : vector<1x32x32xbf16> to vector<32x32xbf16>
    %cst_170 = arith.constant dense<0.000000e+00> : vector<8x32xf32>
    %790 = tpu.matmul %784, %789, %cst_170 {dimension_numbers = #tpu.dot_dimension_numbers<[1], [0], [0], [1], [0, 0, 1, 1], [], []>} : vector<8x32xbf16>, vector<32x32xbf16>, vector<8x32xf32> -> vector<8x32xf32>
    %791 = arith.addf %787, %790 : vector<8x32xf32>
    %792 = vector.extract_strided_slice %5 {offsets = [0, 0, 0], sizes = [1, 1, 32], strides = [1, 1, 1]} : vector<4x1x32xf32> to vector<1x1x32xf32>
    %793 = vector.shape_cast %792 : vector<1x1x32xf32> to vector<1x32xf32>
    %794 = vector.broadcast %793 : vector<1x32xf32> to vector<8x32xf32>
    %795 = arith.addf %791, %794 : vector<8x32xf32>
    %796 = vector.extract_strided_slice %3 {offsets = [1, 0, 0], sizes = [1, 32, 32], strides = [1, 1, 1]} : vector<4x32x32xbf16> to vector<1x32x32xbf16>
    %797 = vector.shape_cast %796 : vector<1x32x32xbf16> to vector<32x32xbf16>
    %cst_171 = arith.constant dense<0.000000e+00> : vector<8x32xf32>
    %798 = tpu.matmul %783, %797, %cst_171 {dimension_numbers = #tpu.dot_dimension_numbers<[1], [0], [0], [1], [0, 0, 1, 1], [], []>} : vector<8x32xbf16>, vector<32x32xbf16>, vector<8x32xf32> -> vector<8x32xf32>
    %799 = vector.extract_strided_slice %4 {offsets = [1, 0, 0], sizes = [1, 32, 32], strides = [1, 1, 1]} : vector<4x32x32xbf16> to vector<1x32x32xbf16>
    %800 = vector.shape_cast %799 : vector<1x32x32xbf16> to vector<32x32xbf16>
    %cst_172 = arith.constant dense<0.000000e+00> : vector<8x32xf32>
    %801 = tpu.matmul %784, %800, %cst_172 {dimension_numbers = #tpu.dot_dimension_numbers<[1], [0], [0], [1], [0, 0, 1, 1], [], []>} : vector<8x32xbf16>, vector<32x32xbf16>, vector<8x32xf32> -> vector<8x32xf32>
    %802 = arith.addf %798, %801 : vector<8x32xf32>
    %803 = vector.extract_strided_slice %5 {offsets = [1, 0, 0], sizes = [1, 1, 32], strides = [1, 1, 1]} : vector<4x1x32xf32> to vector<1x1x32xf32>
    %804 = vector.shape_cast %803 : vector<1x1x32xf32> to vector<1x32xf32>
    %805 = vector.broadcast %804 : vector<1x32xf32> to vector<8x32xf32>
    %806 = arith.addf %802, %805 : vector<8x32xf32>
    %807 = vector.extract_strided_slice %3 {offsets = [2, 0, 0], sizes = [1, 32, 32], strides = [1, 1, 1]} : vector<4x32x32xbf16> to vector<1x32x32xbf16>
    %808 = vector.shape_cast %807 : vector<1x32x32xbf16> to vector<32x32xbf16>
    %cst_173 = arith.constant dense<0.000000e+00> : vector<8x32xf32>
    %809 = tpu.matmul %783, %808, %cst_173 {dimension_numbers = #tpu.dot_dimension_numbers<[1], [0], [0], [1], [0, 0, 1, 1], [], []>} : vector<8x32xbf16>, vector<32x32xbf16>, vector<8x32xf32> -> vector<8x32xf32>
    %810 = vector.extract_strided_slice %4 {offsets = [2, 0, 0], sizes = [1, 32, 32], strides = [1, 1, 1]} : vector<4x32x32xbf16> to vector<1x32x32xbf16>
    %811 = vector.shape_cast %810 : vector<1x32x32xbf16> to vector<32x32xbf16>
    %cst_174 = arith.constant dense<0.000000e+00> : vector<8x32xf32>
    %812 = tpu.matmul %784, %811, %cst_174 {dimension_numbers = #tpu.dot_dimension_numbers<[1], [0], [0], [1], [0, 0, 1, 1], [], []>} : vector<8x32xbf16>, vector<32x32xbf16>, vector<8x32xf32> -> vector<8x32xf32>
    %813 = arith.addf %809, %812 : vector<8x32xf32>
    %814 = vector.extract_strided_slice %5 {offsets = [2, 0, 0], sizes = [1, 1, 32], strides = [1, 1, 1]} : vector<4x1x32xf32> to vector<1x1x32xf32>
    %815 = vector.shape_cast %814 : vector<1x1x32xf32> to vector<1x32xf32>
    %816 = vector.broadcast %815 : vector<1x32xf32> to vector<8x32xf32>
    %817 = arith.addf %813, %816 : vector<8x32xf32>
    %818 = vector.extract_strided_slice %3 {offsets = [3, 0, 0], sizes = [1, 32, 32], strides = [1, 1, 1]} : vector<4x32x32xbf16> to vector<1x32x32xbf16>
    %819 = vector.shape_cast %818 : vector<1x32x32xbf16> to vector<32x32xbf16>
    %cst_175 = arith.constant dense<0.000000e+00> : vector<8x32xf32>
    %820 = tpu.matmul %783, %819, %cst_175 {dimension_numbers = #tpu.dot_dimension_numbers<[1], [0], [0], [1], [0, 0, 1, 1], [], []>} : vector<8x32xbf16>, vector<32x32xbf16>, vector<8x32xf32> -> vector<8x32xf32>
    %821 = vector.extract_strided_slice %4 {offsets = [3, 0, 0], sizes = [1, 32, 32], strides = [1, 1, 1]} : vector<4x32x32xbf16> to vector<1x32x32xbf16>
    %822 = vector.shape_cast %821 : vector<1x32x32xbf16> to vector<32x32xbf16>
    %cst_176 = arith.constant dense<0.000000e+00> : vector<8x32xf32>
    %823 = tpu.matmul %784, %822, %cst_176 {dimension_numbers = #tpu.dot_dimension_numbers<[1], [0], [0], [1], [0, 0, 1, 1], [], []>} : vector<8x32xbf16>, vector<32x32xbf16>, vector<8x32xf32> -> vector<8x32xf32>
    %824 = arith.addf %820, %823 : vector<8x32xf32>
    %825 = vector.extract_strided_slice %5 {offsets = [3, 0, 0], sizes = [1, 1, 32], strides = [1, 1, 1]} : vector<4x1x32xf32> to vector<1x1x32xf32>
    %826 = vector.shape_cast %825 : vector<1x1x32xf32> to vector<1x32xf32>
    %827 = vector.broadcast %826 : vector<1x32xf32> to vector<8x32xf32>
    %828 = arith.addf %824, %827 : vector<8x32xf32>
    %829 = arith.negf %795 : vector<8x32xf32>
    %830 = math.exp %829 : vector<8x32xf32>
    %cst_177 = arith.constant 1.000000e+00 : f32
    %831 = vector.broadcast %cst_177 : f32 to vector<8x32xf32>
    %832 = arith.addf %831, %830 : vector<8x32xf32>
    %833 = arith.divf %831, %832 : vector<8x32xf32>
    %834 = arith.negf %806 : vector<8x32xf32>
    %835 = math.exp %834 : vector<8x32xf32>
    %cst_178 = arith.constant 1.000000e+00 : f32
    %836 = vector.broadcast %cst_178 : f32 to vector<8x32xf32>
    %837 = arith.addf %836, %835 : vector<8x32xf32>
    %838 = arith.divf %836, %837 : vector<8x32xf32>
    %839 = math.tanh %817 : vector<8x32xf32>
    %840 = arith.negf %828 : vector<8x32xf32>
    %841 = math.exp %840 : vector<8x32xf32>
    %cst_179 = arith.constant 1.000000e+00 : f32
    %842 = vector.broadcast %cst_179 : f32 to vector<8x32xf32>
    %843 = arith.addf %842, %841 : vector<8x32xf32>
    %844 = arith.divf %842, %843 : vector<8x32xf32>
    %845 = arith.mulf %838, %777 : vector<8x32xf32>
    %846 = arith.mulf %833, %839 : vector<8x32xf32>
    %847 = arith.addf %845, %846 : vector<8x32xf32>
    %848 = math.tanh %847 : vector<8x32xf32>
    %849 = arith.mulf %844, %848 : vector<8x32xf32>
    %c4_i32_180 = arith.constant 4 : i32
    %850 = arith.index_cast %c4_i32_180 : i32 to index
    %c0_181 = arith.constant 0 : index
    %c0_182 = arith.constant 0 : index
    %851 = vector.load %arg1[%850, %c0_181, %c0_182] : memref<6x8x32xf32, #tpu.memory_space<vmem>>, vector<1x8x32xf32>
    %852 = vector.shape_cast %851 : vector<1x8x32xf32> to vector<8x32xf32>
    %853 = arith.truncf %852 : vector<8x32xf32> to vector<8x32xbf16>
    %854 = arith.truncf %849 : vector<8x32xf32> to vector<8x32xbf16>
    %855 = vector.extract_strided_slice %3 {offsets = [0, 0, 0], sizes = [1, 32, 32], strides = [1, 1, 1]} : vector<4x32x32xbf16> to vector<1x32x32xbf16>
    %856 = vector.shape_cast %855 : vector<1x32x32xbf16> to vector<32x32xbf16>
    %cst_183 = arith.constant dense<0.000000e+00> : vector<8x32xf32>
    %857 = tpu.matmul %853, %856, %cst_183 {dimension_numbers = #tpu.dot_dimension_numbers<[1], [0], [0], [1], [0, 0, 1, 1], [], []>} : vector<8x32xbf16>, vector<32x32xbf16>, vector<8x32xf32> -> vector<8x32xf32>
    %858 = vector.extract_strided_slice %4 {offsets = [0, 0, 0], sizes = [1, 32, 32], strides = [1, 1, 1]} : vector<4x32x32xbf16> to vector<1x32x32xbf16>
    %859 = vector.shape_cast %858 : vector<1x32x32xbf16> to vector<32x32xbf16>
    %cst_184 = arith.constant dense<0.000000e+00> : vector<8x32xf32>
    %860 = tpu.matmul %854, %859, %cst_184 {dimension_numbers = #tpu.dot_dimension_numbers<[1], [0], [0], [1], [0, 0, 1, 1], [], []>} : vector<8x32xbf16>, vector<32x32xbf16>, vector<8x32xf32> -> vector<8x32xf32>
    %861 = arith.addf %857, %860 : vector<8x32xf32>
    %862 = vector.extract_strided_slice %5 {offsets = [0, 0, 0], sizes = [1, 1, 32], strides = [1, 1, 1]} : vector<4x1x32xf32> to vector<1x1x32xf32>
    %863 = vector.shape_cast %862 : vector<1x1x32xf32> to vector<1x32xf32>
    %864 = vector.broadcast %863 : vector<1x32xf32> to vector<8x32xf32>
    %865 = arith.addf %861, %864 : vector<8x32xf32>
    %866 = vector.extract_strided_slice %3 {offsets = [1, 0, 0], sizes = [1, 32, 32], strides = [1, 1, 1]} : vector<4x32x32xbf16> to vector<1x32x32xbf16>
    %867 = vector.shape_cast %866 : vector<1x32x32xbf16> to vector<32x32xbf16>
    %cst_185 = arith.constant dense<0.000000e+00> : vector<8x32xf32>
    %868 = tpu.matmul %853, %867, %cst_185 {dimension_numbers = #tpu.dot_dimension_numbers<[1], [0], [0], [1], [0, 0, 1, 1], [], []>} : vector<8x32xbf16>, vector<32x32xbf16>, vector<8x32xf32> -> vector<8x32xf32>
    %869 = vector.extract_strided_slice %4 {offsets = [1, 0, 0], sizes = [1, 32, 32], strides = [1, 1, 1]} : vector<4x32x32xbf16> to vector<1x32x32xbf16>
    %870 = vector.shape_cast %869 : vector<1x32x32xbf16> to vector<32x32xbf16>
    %cst_186 = arith.constant dense<0.000000e+00> : vector<8x32xf32>
    %871 = tpu.matmul %854, %870, %cst_186 {dimension_numbers = #tpu.dot_dimension_numbers<[1], [0], [0], [1], [0, 0, 1, 1], [], []>} : vector<8x32xbf16>, vector<32x32xbf16>, vector<8x32xf32> -> vector<8x32xf32>
    %872 = arith.addf %868, %871 : vector<8x32xf32>
    %873 = vector.extract_strided_slice %5 {offsets = [1, 0, 0], sizes = [1, 1, 32], strides = [1, 1, 1]} : vector<4x1x32xf32> to vector<1x1x32xf32>
    %874 = vector.shape_cast %873 : vector<1x1x32xf32> to vector<1x32xf32>
    %875 = vector.broadcast %874 : vector<1x32xf32> to vector<8x32xf32>
    %876 = arith.addf %872, %875 : vector<8x32xf32>
    %877 = vector.extract_strided_slice %3 {offsets = [2, 0, 0], sizes = [1, 32, 32], strides = [1, 1, 1]} : vector<4x32x32xbf16> to vector<1x32x32xbf16>
    %878 = vector.shape_cast %877 : vector<1x32x32xbf16> to vector<32x32xbf16>
    %cst_187 = arith.constant dense<0.000000e+00> : vector<8x32xf32>
    %879 = tpu.matmul %853, %878, %cst_187 {dimension_numbers = #tpu.dot_dimension_numbers<[1], [0], [0], [1], [0, 0, 1, 1], [], []>} : vector<8x32xbf16>, vector<32x32xbf16>, vector<8x32xf32> -> vector<8x32xf32>
    %880 = vector.extract_strided_slice %4 {offsets = [2, 0, 0], sizes = [1, 32, 32], strides = [1, 1, 1]} : vector<4x32x32xbf16> to vector<1x32x32xbf16>
    %881 = vector.shape_cast %880 : vector<1x32x32xbf16> to vector<32x32xbf16>
    %cst_188 = arith.constant dense<0.000000e+00> : vector<8x32xf32>
    %882 = tpu.matmul %854, %881, %cst_188 {dimension_numbers = #tpu.dot_dimension_numbers<[1], [0], [0], [1], [0, 0, 1, 1], [], []>} : vector<8x32xbf16>, vector<32x32xbf16>, vector<8x32xf32> -> vector<8x32xf32>
    %883 = arith.addf %879, %882 : vector<8x32xf32>
    %884 = vector.extract_strided_slice %5 {offsets = [2, 0, 0], sizes = [1, 1, 32], strides = [1, 1, 1]} : vector<4x1x32xf32> to vector<1x1x32xf32>
    %885 = vector.shape_cast %884 : vector<1x1x32xf32> to vector<1x32xf32>
    %886 = vector.broadcast %885 : vector<1x32xf32> to vector<8x32xf32>
    %887 = arith.addf %883, %886 : vector<8x32xf32>
    %888 = vector.extract_strided_slice %3 {offsets = [3, 0, 0], sizes = [1, 32, 32], strides = [1, 1, 1]} : vector<4x32x32xbf16> to vector<1x32x32xbf16>
    %889 = vector.shape_cast %888 : vector<1x32x32xbf16> to vector<32x32xbf16>
    %cst_189 = arith.constant dense<0.000000e+00> : vector<8x32xf32>
    %890 = tpu.matmul %853, %889, %cst_189 {dimension_numbers = #tpu.dot_dimension_numbers<[1], [0], [0], [1], [0, 0, 1, 1], [], []>} : vector<8x32xbf16>, vector<32x32xbf16>, vector<8x32xf32> -> vector<8x32xf32>
    %891 = vector.extract_strided_slice %4 {offsets = [3, 0, 0], sizes = [1, 32, 32], strides = [1, 1, 1]} : vector<4x32x32xbf16> to vector<1x32x32xbf16>
    %892 = vector.shape_cast %891 : vector<1x32x32xbf16> to vector<32x32xbf16>
    %cst_190 = arith.constant dense<0.000000e+00> : vector<8x32xf32>
    %893 = tpu.matmul %854, %892, %cst_190 {dimension_numbers = #tpu.dot_dimension_numbers<[1], [0], [0], [1], [0, 0, 1, 1], [], []>} : vector<8x32xbf16>, vector<32x32xbf16>, vector<8x32xf32> -> vector<8x32xf32>
    %894 = arith.addf %890, %893 : vector<8x32xf32>
    %895 = vector.extract_strided_slice %5 {offsets = [3, 0, 0], sizes = [1, 1, 32], strides = [1, 1, 1]} : vector<4x1x32xf32> to vector<1x1x32xf32>
    %896 = vector.shape_cast %895 : vector<1x1x32xf32> to vector<1x32xf32>
    %897 = vector.broadcast %896 : vector<1x32xf32> to vector<8x32xf32>
    %898 = arith.addf %894, %897 : vector<8x32xf32>
    %899 = arith.negf %865 : vector<8x32xf32>
    %900 = math.exp %899 : vector<8x32xf32>
    %cst_191 = arith.constant 1.000000e+00 : f32
    %901 = vector.broadcast %cst_191 : f32 to vector<8x32xf32>
    %902 = arith.addf %901, %900 : vector<8x32xf32>
    %903 = arith.divf %901, %902 : vector<8x32xf32>
    %904 = arith.negf %876 : vector<8x32xf32>
    %905 = math.exp %904 : vector<8x32xf32>
    %cst_192 = arith.constant 1.000000e+00 : f32
    %906 = vector.broadcast %cst_192 : f32 to vector<8x32xf32>
    %907 = arith.addf %906, %905 : vector<8x32xf32>
    %908 = arith.divf %906, %907 : vector<8x32xf32>
    %909 = math.tanh %887 : vector<8x32xf32>
    %910 = arith.negf %898 : vector<8x32xf32>
    %911 = math.exp %910 : vector<8x32xf32>
    %cst_193 = arith.constant 1.000000e+00 : f32
    %912 = vector.broadcast %cst_193 : f32 to vector<8x32xf32>
    %913 = arith.addf %912, %911 : vector<8x32xf32>
    %914 = arith.divf %912, %913 : vector<8x32xf32>
    %915 = arith.mulf %908, %847 : vector<8x32xf32>
    %916 = arith.mulf %903, %909 : vector<8x32xf32>
    %917 = arith.addf %915, %916 : vector<8x32xf32>
    %918 = math.tanh %917 : vector<8x32xf32>
    %919 = arith.mulf %914, %918 : vector<8x32xf32>
    %c5_i32_194 = arith.constant 5 : i32
    %920 = arith.index_cast %c5_i32_194 : i32 to index
    %c0_195 = arith.constant 0 : index
    %c0_196 = arith.constant 0 : index
    %921 = vector.load %arg1[%920, %c0_195, %c0_196] : memref<6x8x32xf32, #tpu.memory_space<vmem>>, vector<1x8x32xf32>
    %922 = vector.shape_cast %921 : vector<1x8x32xf32> to vector<8x32xf32>
    %923 = arith.truncf %922 : vector<8x32xf32> to vector<8x32xbf16>
    %924 = arith.truncf %919 : vector<8x32xf32> to vector<8x32xbf16>
    %925 = vector.extract_strided_slice %3 {offsets = [0, 0, 0], sizes = [1, 32, 32], strides = [1, 1, 1]} : vector<4x32x32xbf16> to vector<1x32x32xbf16>
    %926 = vector.shape_cast %925 : vector<1x32x32xbf16> to vector<32x32xbf16>
    %cst_197 = arith.constant dense<0.000000e+00> : vector<8x32xf32>
    %927 = tpu.matmul %923, %926, %cst_197 {dimension_numbers = #tpu.dot_dimension_numbers<[1], [0], [0], [1], [0, 0, 1, 1], [], []>} : vector<8x32xbf16>, vector<32x32xbf16>, vector<8x32xf32> -> vector<8x32xf32>
    %928 = vector.extract_strided_slice %4 {offsets = [0, 0, 0], sizes = [1, 32, 32], strides = [1, 1, 1]} : vector<4x32x32xbf16> to vector<1x32x32xbf16>
    %929 = vector.shape_cast %928 : vector<1x32x32xbf16> to vector<32x32xbf16>
    %cst_198 = arith.constant dense<0.000000e+00> : vector<8x32xf32>
    %930 = tpu.matmul %924, %929, %cst_198 {dimension_numbers = #tpu.dot_dimension_numbers<[1], [0], [0], [1], [0, 0, 1, 1], [], []>} : vector<8x32xbf16>, vector<32x32xbf16>, vector<8x32xf32> -> vector<8x32xf32>
    %931 = arith.addf %927, %930 : vector<8x32xf32>
    %932 = vector.extract_strided_slice %5 {offsets = [0, 0, 0], sizes = [1, 1, 32], strides = [1, 1, 1]} : vector<4x1x32xf32> to vector<1x1x32xf32>
    %933 = vector.shape_cast %932 : vector<1x1x32xf32> to vector<1x32xf32>
    %934 = vector.broadcast %933 : vector<1x32xf32> to vector<8x32xf32>
    %935 = arith.addf %931, %934 : vector<8x32xf32>
    %936 = vector.extract_strided_slice %3 {offsets = [1, 0, 0], sizes = [1, 32, 32], strides = [1, 1, 1]} : vector<4x32x32xbf16> to vector<1x32x32xbf16>
    %937 = vector.shape_cast %936 : vector<1x32x32xbf16> to vector<32x32xbf16>
    %cst_199 = arith.constant dense<0.000000e+00> : vector<8x32xf32>
    %938 = tpu.matmul %923, %937, %cst_199 {dimension_numbers = #tpu.dot_dimension_numbers<[1], [0], [0], [1], [0, 0, 1, 1], [], []>} : vector<8x32xbf16>, vector<32x32xbf16>, vector<8x32xf32> -> vector<8x32xf32>
    %939 = vector.extract_strided_slice %4 {offsets = [1, 0, 0], sizes = [1, 32, 32], strides = [1, 1, 1]} : vector<4x32x32xbf16> to vector<1x32x32xbf16>
    %940 = vector.shape_cast %939 : vector<1x32x32xbf16> to vector<32x32xbf16>
    %cst_200 = arith.constant dense<0.000000e+00> : vector<8x32xf32>
    %941 = tpu.matmul %924, %940, %cst_200 {dimension_numbers = #tpu.dot_dimension_numbers<[1], [0], [0], [1], [0, 0, 1, 1], [], []>} : vector<8x32xbf16>, vector<32x32xbf16>, vector<8x32xf32> -> vector<8x32xf32>
    %942 = arith.addf %938, %941 : vector<8x32xf32>
    %943 = vector.extract_strided_slice %5 {offsets = [1, 0, 0], sizes = [1, 1, 32], strides = [1, 1, 1]} : vector<4x1x32xf32> to vector<1x1x32xf32>
    %944 = vector.shape_cast %943 : vector<1x1x32xf32> to vector<1x32xf32>
    %945 = vector.broadcast %944 : vector<1x32xf32> to vector<8x32xf32>
    %946 = arith.addf %942, %945 : vector<8x32xf32>
    %947 = vector.extract_strided_slice %3 {offsets = [2, 0, 0], sizes = [1, 32, 32], strides = [1, 1, 1]} : vector<4x32x32xbf16> to vector<1x32x32xbf16>
    %948 = vector.shape_cast %947 : vector<1x32x32xbf16> to vector<32x32xbf16>
    %cst_201 = arith.constant dense<0.000000e+00> : vector<8x32xf32>
    %949 = tpu.matmul %923, %948, %cst_201 {dimension_numbers = #tpu.dot_dimension_numbers<[1], [0], [0], [1], [0, 0, 1, 1], [], []>} : vector<8x32xbf16>, vector<32x32xbf16>, vector<8x32xf32> -> vector<8x32xf32>
    %950 = vector.extract_strided_slice %4 {offsets = [2, 0, 0], sizes = [1, 32, 32], strides = [1, 1, 1]} : vector<4x32x32xbf16> to vector<1x32x32xbf16>
    %951 = vector.shape_cast %950 : vector<1x32x32xbf16> to vector<32x32xbf16>
    %cst_202 = arith.constant dense<0.000000e+00> : vector<8x32xf32>
    %952 = tpu.matmul %924, %951, %cst_202 {dimension_numbers = #tpu.dot_dimension_numbers<[1], [0], [0], [1], [0, 0, 1, 1], [], []>} : vector<8x32xbf16>, vector<32x32xbf16>, vector<8x32xf32> -> vector<8x32xf32>
    %953 = arith.addf %949, %952 : vector<8x32xf32>
    %954 = vector.extract_strided_slice %5 {offsets = [2, 0, 0], sizes = [1, 1, 32], strides = [1, 1, 1]} : vector<4x1x32xf32> to vector<1x1x32xf32>
    %955 = vector.shape_cast %954 : vector<1x1x32xf32> to vector<1x32xf32>
    %956 = vector.broadcast %955 : vector<1x32xf32> to vector<8x32xf32>
    %957 = arith.addf %953, %956 : vector<8x32xf32>
    %958 = vector.extract_strided_slice %3 {offsets = [3, 0, 0], sizes = [1, 32, 32], strides = [1, 1, 1]} : vector<4x32x32xbf16> to vector<1x32x32xbf16>
    %959 = vector.shape_cast %958 : vector<1x32x32xbf16> to vector<32x32xbf16>
    %cst_203 = arith.constant dense<0.000000e+00> : vector<8x32xf32>
    %960 = tpu.matmul %923, %959, %cst_203 {dimension_numbers = #tpu.dot_dimension_numbers<[1], [0], [0], [1], [0, 0, 1, 1], [], []>} : vector<8x32xbf16>, vector<32x32xbf16>, vector<8x32xf32> -> vector<8x32xf32>
    %961 = vector.extract_strided_slice %4 {offsets = [3, 0, 0], sizes = [1, 32, 32], strides = [1, 1, 1]} : vector<4x32x32xbf16> to vector<1x32x32xbf16>
    %962 = vector.shape_cast %961 : vector<1x32x32xbf16> to vector<32x32xbf16>
    %cst_204 = arith.constant dense<0.000000e+00> : vector<8x32xf32>
    %963 = tpu.matmul %924, %962, %cst_204 {dimension_numbers = #tpu.dot_dimension_numbers<[1], [0], [0], [1], [0, 0, 1, 1], [], []>} : vector<8x32xbf16>, vector<32x32xbf16>, vector<8x32xf32> -> vector<8x32xf32>
    %964 = arith.addf %960, %963 : vector<8x32xf32>
    %965 = vector.extract_strided_slice %5 {offsets = [3, 0, 0], sizes = [1, 1, 32], strides = [1, 1, 1]} : vector<4x1x32xf32> to vector<1x1x32xf32>
    %966 = vector.shape_cast %965 : vector<1x1x32xf32> to vector<1x32xf32>
    %967 = vector.broadcast %966 : vector<1x32xf32> to vector<8x32xf32>
    %968 = arith.addf %964, %967 : vector<8x32xf32>
    %969 = arith.negf %935 : vector<8x32xf32>
    %970 = math.exp %969 : vector<8x32xf32>
    %cst_205 = arith.constant 1.000000e+00 : f32
    %971 = vector.broadcast %cst_205 : f32 to vector<8x32xf32>
    %972 = arith.addf %971, %970 : vector<8x32xf32>
    %973 = arith.divf %971, %972 : vector<8x32xf32>
    %974 = arith.negf %946 : vector<8x32xf32>
    %975 = math.exp %974 : vector<8x32xf32>
    %cst_206 = arith.constant 1.000000e+00 : f32
    %976 = vector.broadcast %cst_206 : f32 to vector<8x32xf32>
    %977 = arith.addf %976, %975 : vector<8x32xf32>
    %978 = arith.divf %976, %977 : vector<8x32xf32>
    %979 = math.tanh %957 : vector<8x32xf32>
    %980 = arith.negf %968 : vector<8x32xf32>
    %981 = math.exp %980 : vector<8x32xf32>
    %cst_207 = arith.constant 1.000000e+00 : f32
    %982 = vector.broadcast %cst_207 : f32 to vector<8x32xf32>
    %983 = arith.addf %982, %981 : vector<8x32xf32>
    %984 = arith.divf %982, %983 : vector<8x32xf32>
    %985 = arith.mulf %978, %917 : vector<8x32xf32>
    %986 = arith.mulf %973, %979 : vector<8x32xf32>
    %987 = arith.addf %985, %986 : vector<8x32xf32>
    %988 = math.tanh %987 : vector<8x32xf32>
    %989 = arith.mulf %984, %988 : vector<8x32xf32>
    %c6_i32_208 = arith.constant 6 : i32
    %990 = arith.truncf %567 : vector<8x32xf32> to vector<8x32xbf16>
    %c0_209 = arith.constant 0 : index
    %c0_210 = arith.constant 0 : index
    %991 = vector.load %arg8[%c0_209, %c0_210] : memref<32x64xbf16, #tpu.memory_space<vmem>>, vector<32x64xbf16>
    %cst_211 = arith.constant dense<0.000000e+00> : vector<8x64xf32>
    %992 = tpu.matmul %990, %991, %cst_211 {dimension_numbers = #tpu.dot_dimension_numbers<[1], [0], [0], [1], [0, 0, 1, 1], [], []>} : vector<8x32xbf16>, vector<32x64xbf16>, vector<8x64xf32> -> vector<8x64xf32>
    %993 = arith.truncf %989 : vector<8x32xf32> to vector<8x32xbf16>
    %c0_212 = arith.constant 0 : index
    %c0_213 = arith.constant 0 : index
    %994 = vector.load %arg9[%c0_212, %c0_213] : memref<32x64xbf16, #tpu.memory_space<vmem>>, vector<32x64xbf16>
    %cst_214 = arith.constant dense<0.000000e+00> : vector<8x64xf32>
    %995 = tpu.matmul %993, %994, %cst_214 {dimension_numbers = #tpu.dot_dimension_numbers<[1], [0], [0], [1], [0, 0, 1, 1], [], []>} : vector<8x32xbf16>, vector<32x64xbf16>, vector<8x64xf32> -> vector<8x64xf32>
    %996 = arith.addf %992, %995 : vector<8x64xf32>
    %c0_215 = arith.constant 0 : index
    %c0_216 = arith.constant 0 : index
    %997 = vector.load %arg10[%c0_215, %c0_216] : memref<1x64xf32, #tpu.memory_space<vmem>>, vector<1x64xf32>
    %998 = vector.broadcast %997 : vector<1x64xf32> to vector<8x64xf32>
    %999 = arith.addf %996, %998 : vector<8x64xf32>
    %cst_217 = arith.constant 0.000000e+00 : f32
    %1000 = vector.broadcast %cst_217 : f32 to vector<8x64xf32>
    %1001 = arith.maximumf %999, %1000 : vector<8x64xf32>
    %1002 = arith.truncf %1001 : vector<8x64xf32> to vector<8x64xbf16>
    %c0_218 = arith.constant 0 : index
    %c0_219 = arith.constant 0 : index
    %1003 = vector.load %arg11[%c0_218, %c0_219] : memref<64x4xbf16, #tpu.memory_space<vmem>>, vector<64x4xbf16>
    %cst_220 = arith.constant dense<0.000000e+00> : vector<8x4xf32>
    %1004 = tpu.matmul %1002, %1003, %cst_220 {dimension_numbers = #tpu.dot_dimension_numbers<[1], [0], [0], [1], [0, 0, 1, 1], [], []>} : vector<8x64xbf16>, vector<64x4xbf16>, vector<8x4xf32> -> vector<8x4xf32>
    %c0_221 = arith.constant 0 : index
    %c0_222 = arith.constant 0 : index
    %1005 = vector.load %arg12[%c0_221, %c0_222] : memref<1x4xf32, #tpu.memory_space<vmem>>, vector<1x4xf32>
    %1006 = vector.broadcast %1005 : vector<1x4xf32> to vector<8x4xf32>
    %1007 = arith.addf %1004, %1006 : vector<8x4xf32>
    %c0_223 = arith.constant 0 : index
    %c0_224 = arith.constant 0 : index
    %1008 = vector.load %arg13[%c0_223, %c0_224] : memref<8x4xf32, #tpu.memory_space<vmem>>, vector<8x4xf32>
    tpu.vector_store %arg13[%c0_223, %c0_224], %1007 {strides = array<i32>} : memref<8x4xf32, #tpu.memory_space<vmem>>, vector<8x4xf32>,
    return
  }
}

</mosaic_0001>

<llo_original>
// kernel: lrcn_forward.2
$region0: #{lrcn_forward.2}
  #allocation0 [shape = 'u32[]', space=smem, size = 0x4, offset = 0x4, fixed_abs, tag = 'smem constant byte address 0x4 - core index']
  #allocation1 [shape = 'u32[144,128]{1,0:T(1,128)}', space=vmem, size = 0x12000, scoped, tag = 'internal scratch']
  %s0 = inlined_call_operand.vmem [shape: f32[16,1024], index: 0, kind: input, shape index: {}]
  %s1 = inlined_call_operand.vmem [shape: bf16[1024,512], index: 1, kind: input, shape index: {}]
  %s2 = inlined_call_operand.vmem [shape: f32[1,512], index: 2, kind: input, shape index: {}]
  %s3 = inlined_call_operand.vmem [shape: bf16[512,32], index: 3, kind: input, shape index: {}]
  %s4 = inlined_call_operand.vmem [shape: f32[1,32], index: 4, kind: input, shape index: {}]
  %s5 = inlined_call_operand.vmem [shape: f32[16,32], index: 5, kind: output, shape index: {}]
  %s6 = sld [smem:[#allocation0]]
  $region53: #{lrcn_forward.2} parent=0
    _
  %s8 = ssub.s32 1, %s6
  %s9 = scalar_select 0, %s8, %s6
  loop: start=0, step=1, limit=4
  $region2: #{lrcn_forward.2} parent=0 // loop_pre_header
    _
  $region3: #{lrcn_forward.2} parent=0 // loop_header
    %s11 = sphi 0, %s15
    %p12 = scmp.ge.s32.totalorder %s11, 4
    %s21 = sphi 0, %s23
    %s24 = sphi 0, %s21
    %s25 = sphi 0, %s24
    %s41 = sphi 0, %s25
    %s45 = sphi 0, %s45
    %s47 = sphi 0, %s45
    %s48 = sphi 0, %s47
    %s62 = sphi 0, %s48
    %s66 = sphi 0, %s66
    %s68 = sphi 0, %s66
    %s69 = sphi 0, %s68
    %s83 = sphi 0, %s69
    %s87 = sphi 0, %s87
    %s89 = sphi 0, %s87
    %s90 = sphi 0, %s89
    %s104 = sphi 0, %s90
    %s108 = sphi 0, %s108
    %s110 = sphi 0, %s108
    %s111 = sphi 0, %s110
    %s125 = sphi 0, %s111
    %s131 = sphi 0, %s133
    %s134 = sphi 0, %s131
    %s135 = sphi 0, %s134
    %s151 = sphi 0, %s135
  $region4: #{lrcn_forward.2} parent=0 // loop_header_branch
    %14 = sbr.rel (%p12) target = $region8
  $region5: #{lrcn_forward.2} parent=0 // loop_body
    %s16 = ssub.s32 %s11, 1
    %s17 = ssub.s32 %s11, 2
    %s18 = sadd.s32 %s11, 1
    %s19 = ssub.s32 %s11, %s18
    %p20 = scmp.eq.s32.totalorder %s19, 0
    %s22 = sadd.s32 %s21, 1
    %s23 = scalar_select %p20, %s21, %s22
    %p26 = pneg %p20
    %p27 = scmp.eq.s32.totalorder %s11, 1
    %p28 = por %p26, %p27
    %p29 = scmp.ne.s32.totalorder %s21, %s24
    %p30 = scmp.eq.s32.totalorder %s11, 0
    %p31 = por %p29, %p30
    %p32 = scmp.ne.s32.totalorder %s21, %s24
    %p33 = scmp.eq.s32.totalorder %s16, 1
    %p34 = por %p32, %p33
    %p35 = scmp.ne.s32.totalorder %s24, %s25
    %p36 = scmp.eq.s32.totalorder %s16, 0
    %p37 = por %p35, %p36
    %p38 = scmp.ne.s32.totalorder %s24, %s25
    %p39 = scmp.eq.s32.totalorder %s17, 1
    %p40 = por %p38, %p39
    %p42 = scmp.ne.s32.totalorder %s25, %s41
    %p43 = scmp.eq.s32.totalorder %s17, 0
    %p44 = por %p42, %p43
    %s46 = sadd.s32 %s45, 1
    %p49 = scmp.eq.s32.totalorder %s11, 1
    %p50 = scmp.ne.s32.totalorder %s45, %s47
    %p51 = scmp.eq.s32.totalorder %s11, 0
    %p52 = por %p50, %p51
    %p53 = scmp.ne.s32.totalorder %s45, %s47
    %p54 = scmp.eq.s32.totalorder %s16, 1
    %p55 = por %p53, %p54
    %p56 = scmp.ne.s32.totalorder %s47, %s48
    %p57 = scmp.eq.s32.totalorder %s16, 0
    %p58 = por %p56, %p57
    %p59 = scmp.ne.s32.totalorder %s47, %s48
    %p60 = scmp.eq.s32.totalorder %s17, 1
    %p61 = por %p59, %p60
    %p63 = scmp.ne.s32.totalorder %s48, %s62
    %p64 = scmp.eq.s32.totalorder %s17, 0
    %p65 = por %p63, %p64
    %s67 = sadd.s32 %s66, 1
    %p70 = scmp.eq.s32.totalorder %s11, 1
    %p71 = scmp.ne.s32.totalorder %s66, %s68
    %p72 = scmp.eq.s32.totalorder %s11, 0
    %p73 = por %p71, %p72
    %p74 = scmp.ne.s32.totalorder %s66, %s68
    %p75 = scmp.eq.s32.totalorder %s16, 1
    %p76 = por %p74, %p75
    %p77 = scmp.ne.s32.totalorder %s68, %s69
    %p78 = scmp.eq.s32.totalorder %s16, 0
    %p79 = por %p77, %p78
    %p80 = scmp.ne.s32.totalorder %s68, %s69
    %p81 = scmp.eq.s32.totalorder %s17, 1
    %p82 = por %p80, %p81
    %p84 = scmp.ne.s32.totalorder %s69, %s83
    %p85 = scmp.eq.s32.totalorder %s17, 0
    %p86 = por %p84, %p85
    %s88 = sadd.s32 %s87, 1
    %p91 = scmp.eq.s32.totalorder %s11, 1
    %p92 = scmp.ne.s32.totalorder %s87, %s89
    %p93 = scmp.eq.s32.totalorder %s11, 0
    %p94 = por %p92, %p93
    %p95 = scmp.ne.s32.totalorder %s87, %s89
    %p96 = scmp.eq.s32.totalorder %s16, 1
    %p97 = por %p95, %p96
    %p98 = scmp.ne.s32.totalorder %s89, %s90
    %p99 = scmp.eq.s32.totalorder %s16, 0
    %p100 = por %p98, %p99
    %p101 = scmp.ne.s32.totalorder %s89, %s90
    %p102 = scmp.eq.s32.totalorder %s17, 1
    %p103 = por %p101, %p102
    %p105 = scmp.ne.s32.totalorder %s90, %s104
    %p106 = scmp.eq.s32.totalorder %s17, 0
    %p107 = por %p105, %p106
    %s109 = sadd.s32 %s108, 1
    %p112 = scmp.eq.s32.totalorder %s11, 1
    %p113 = scmp.ne.s32.totalorder %s108, %s110
    %p114 = scmp.eq.s32.totalorder %s11, 0
    %p115 = por %p113, %p114
    %p116 = scmp.ne.s32.totalorder %s108, %s110
    %p117 = scmp.eq.s32.totalorder %s16, 1
    %p118 = por %p116, %p117
    %p119 = scmp.ne.s32.totalorder %s110, %s111
    %p120 = scmp.eq.s32.totalorder %s16, 0
    %p121 = por %p119, %p120
    %p122 = scmp.ne.s32.totalorder %s110, %s111
    %p123 = scmp.eq.s32.totalorder %s17, 1
    %p124 = por %p122, %p123
    %p126 = scmp.ne.s32.totalorder %s111, %s125
    %p127 = scmp.eq.s32.totalorder %s17, 0
    %p128 = por %p126, %p127
    %s129 = ssub.s32 %s11, %s18
    %p130 = scmp.eq.s32.totalorder %s129, 0
    %s132 = sadd.s32 %s131, 1
    %s133 = scalar_select %p130, %s131, %s132
    %p136 = pneg %p130
    %p137 = scmp.eq.s32.totalorder %s11, 1
    %p138 = por %p136, %p137
    %p139 = scmp.ne.s32.totalorder %s131, %s134
    %p140 = scmp.eq.s32.totalorder %s11, 0
    %p141 = por %p139, %p140
    %p142 = scmp.ne.s32.totalorder %s131, %s134
    %p143 = scmp.eq.s32.totalorder %s16, 1
    %p144 = por %p142, %p143
    %p145 = scmp.ne.s32.totalorder %s134, %s135
    %p146 = scmp.eq.s32.totalorder %s16, 0
    %p147 = por %p145, %p146
    %p148 = scmp.ne.s32.totalorder %s134, %s135
    %p149 = scmp.eq.s32.totalorder %s17, 1
    %p150 = por %p148, %p149
    %p152 = scmp.ne.s32.totalorder %s135, %s151
    %p153 = scmp.eq.s32.totalorder %s17, 0
    %p154 = por %p152, %p153
    %p155 = scmp.le.s32.totalorder 1, %s11
    %p156 = scmp.lt.s32.totalorder %s11, 3
    %p157 = pnand %p155, %p156
    %p158 = pneg %p157
    // Predicated region
    $region9: #{lrcn_forward.2} parent=5 // pred_check
      _
    $region10: #{lrcn_forward.2} parent=5 // pred_check_branch
      %160 = sbr.rel (%p157) target = $region12
    $region11: #{lrcn_forward.2} parent=5 // pred_region
      %s161 = ssub.s32 %s11, 1
      // Predicated region
      $region13: #{lrcn_forward.2} parent=11 // pred_check
        %p162 = pneg %p58
      $region14: #{lrcn_forward.2} parent=11 // pred_check_branch
        %164 = sbr.rel (%p162) target = $region16
      $region15: #{lrcn_forward.2} parent=11 // pred_region
        _
      $region16: #{lrcn_forward.2} parent=11 // pred_fallthru
        _
      // Predicated region
      $region17: #{lrcn_forward.2} parent=11 // pred_check
        %p165 = pneg %p79
      $region18: #{lrcn_forward.2} parent=11 // pred_check_branch
        %167 = sbr.rel (%p165) target = $region20
      $region19: #{lrcn_forward.2} parent=11 // pred_region
        _
      $region20: #{lrcn_forward.2} parent=11 // pred_fallthru
        _
      // Predicated region
      $region21: #{lrcn_forward.2} parent=11 // pred_check
        %p168 = pneg %p100
      $region22: #{lrcn_forward.2} parent=11 // pred_check_branch
        %170 = sbr.rel (%p168) target = $region24
      $region23: #{lrcn_forward.2} parent=11 // pred_region
        _
      $region24: #{lrcn_forward.2} parent=11 // pred_fallthru
        _
      // Predicated region
      $region25: #{lrcn_forward.2} parent=11 // pred_check
        %p171 = pneg %p121
      $region26: #{lrcn_forward.2} parent=11 // pred_check_branch
        %173 = sbr.rel (%p171) target = $region28
      $region27: #{lrcn_forward.2} parent=11 // pred_region
        _
      $region28: #{lrcn_forward.2} parent=11 // pred_fallthru
        _
    $region12: #{lrcn_forward.2} parent=5 // pred_fallthru
      _
    %p174 = scmp.lt.s32.totalorder %s11, 2
    // Predicated region
    $region29: #{lrcn_forward.2} parent=5 // pred_check
      %p175 = pneg %p174
    $region30: #{lrcn_forward.2} parent=5 // pred_check_branch
      %177 = sbr.rel (%p175) target = $region32
    $region31: #{lrcn_forward.2} parent=5 // pred_region
      // Predicated region
      $region33: #{lrcn_forward.2} parent=31 // pred_check
        %p178 = pneg %p31
      $region34: #{lrcn_forward.2} parent=31 // pred_check_branch
        %180 = sbr.rel (%p178) target = $region36
      $region35: #{lrcn_forward.2} parent=31 // pred_region
        %p181 = scmp.lt.s32.totalorder %s11, 1
        %s182 = scalar_select %p181, %s11, 1
        %s183 = smul.addr %s182, 8
        %s184 = smul.addr %s183, 8
        %s185 = scalar_lea.vmem %s0, %s184
      $region36: #{lrcn_forward.2} parent=31 // pred_fallthru
        _
    $region32: #{lrcn_forward.2} parent=5 // pred_fallthru
      _
    %p186 = scmp.le.s32.totalorder 1, %s11
    %p187 = scmp.lt.s32.totalorder %s11, 3
    %p188 = pnand %p186, %p187
    %p189 = pneg %p188
    // Predicated region
    $region37: #{lrcn_forward.2} parent=5 // pred_check
      _
    $region38: #{lrcn_forward.2} parent=5 // pred_check_branch
      %191 = sbr.rel (%p188) target = $region40
    $region39: #{lrcn_forward.2} parent=5 // pred_region
      %s192 = ssub.s32 %s11, 1
      %p193 = scmp.lt.s32.totalorder %s16, 1
      %s194 = scalar_select %p193, %s16, 1
      %s195 = smul.addr %s194, 8
      %s196 = smul.addr %s195, 8
      %s197 = scalar_lea.vmem %s0, %s196
      %p198 = pneg %p37
      %p199 = pneg %p34
      %p200 = pneg %p58
      %p201 = pneg %p55
      %p202 = pneg %p79
      %p203 = pneg %p76
      %p204 = pneg %p100
      %p205 = pneg %p97
      %p206 = pneg %p121
      %p207 = pneg %p118
      %p208 = pneg %p147
      %p209 = pneg %p144
      %p210 = scmp.lt.s32.totalorder %s16, 1
      %s211 = scalar_select %p210, %s16, 1
      %s212 = smul.addr %s211, 8
      %s213 = scalar_lea.vmem %s5, %s212
      %p214 = scmp.lt.s32.totalorder %s16, 1
      %s215 = scalar_select %p214, %s16, 1
      %s216 = smul.addr %s215, 8
      %s217 = smul.addr %s216, 8
      %s218 = scalar_lea.vmem %s0, %s217
      %p219 = scmp.lt.s32.totalorder %s16, 1
      %s220 = scalar_select %p219, %s16, 1
      %s221 = smul.addr %s220, 8
      %s222 = scalar_lea.vmem %s5, %s221
      %v224 = vld [vmem:[%s218] sm:$0xff]
      %v225 = vld [vmem:[%s218 + $0x8] sm:$0xff]
      %v226 = vld [vmem:[%s218 + $0x10] sm:$0xff]
      %v227 = vld [vmem:[%s218 + $0x18] sm:$0xff]
      %v228 = vld [vmem:[%s218 + $0x20] sm:$0xff]
      %v229 = vld [vmem:[%s218 + $0x28] sm:$0xff]
      %v230 = vld [vmem:[%s218 + $0x30] sm:$0xff]
      %v231 = vld [vmem:[%s218 + $0x38] sm:$0xff]
      %v232 = vpack.c.bf16 %v224, %v224
      %v233 = vpack.c.bf16 %v225, %v225
      %v234 = vpack.c.bf16 %v226, %v226
      %v235 = vpack.c.bf16 %v227, %v227
      %v236 = vpack.c.bf16 %v228, %v228
      %v237 = vpack.c.bf16 %v229, %v229
      %v238 = vpack.c.bf16 %v230, %v230
      %v239 = vpack.c.bf16 %v231, %v231
      %v240 = vld [vmem:[%s1] sm:$0xff]
      %v241 = vld [vmem:[%s1 + $0x8] sm:$0xff]
      %v242 = vld [vmem:[%s1 + $0x10] sm:$0xff]
      %v243 = vld [vmem:[%s1 + $0x18] sm:$0xff]
      %v244 = vld [vmem:[%s1 + $0x20] sm:$0xff]
      %v245 = vld [vmem:[%s1 + $0x28] sm:$0xff]
      %v246 = vld [vmem:[%s1 + $0x30] sm:$0xff]
      %v247 = vld [vmem:[%s1 + $0x38] sm:$0xff]
      %v248 = vld [vmem:[%s1 + $0x40] sm:$0xff]
      %v249 = vld [vmem:[%s1 + $0x48] sm:$0xff]
      %v250 = vld [vmem:[%s1 + $0x50] sm:$0xff]
      %v251 = vld [vmem:[%s1 + $0x58] sm:$0xff]
      %v252 = vld [vmem:[%s1 + $0x60] sm:$0xff]
      %v253 = vld [vmem:[%s1 + $0x68] sm:$0xff]
      %v254 = vld [vmem:[%s1 + $0x70] sm:$0xff]
      %v255 = vld [vmem:[%s1 + $0x78] sm:$0xff]
      %v256 = vld [vmem:[%s1 + $0x80] sm:$0xff]
      %v257 = vld [vmem:[%s1 + $0x88] sm:$0xff]
      %v258 = vld [vmem:[%s1 + $0x90] sm:$0xff]
      %v259 = vld [vmem:[%s1 + $0x98] sm:$0xff]
      %v260 = vld [vmem:[%s1 + $0xa0] sm:$0xff]
      %v261 = vld [vmem:[%s1 + $0xa8] sm:$0xff]
      %v262 = vld [vmem:[%s1 + $0xb0] sm:$0xff]
      %v263 = vld [vmem:[%s1 + $0xb8] sm:$0xff]
      %v264 = vld [vmem:[%s1 + $0xc0] sm:$0xff]
      %v265 = vld [vmem:[%s1 + $0xc8] sm:$0xff]
      %v266 = vld [vmem:[%s1 + $0xd0] sm:$0xff]
      %v267 = vld [vmem:[%s1 + $0xd8] sm:$0xff]
      %v268 = vld [vmem:[%s1 + $0xe0] sm:$0xff]
      %v269 = vld [vmem:[%s1 + $0xe8] sm:$0xff]
      %v270 = vld [vmem:[%s1 + $0xf0] sm:$0xff]
      %v271 = vld [vmem:[%s1 + $0xf8] sm:$0xff]
      %v272 = vld [vmem:[%s1 + $0x100] sm:$0xff]
      %v273 = vld [vmem:[%s1 + $0x108] sm:$0xff]
      %v274 = vld [vmem:[%s1 + $0x110] sm:$0xff]
      %v275 = vld [vmem:[%s1 + $0x118] sm:$0xff]
      %v276 = vld [vmem:[%s1 + $0x120] sm:$0xff]
      %v277 = vld [vmem:[%s1 + $0x128] sm:$0xff]
      %v278 = vld [vmem:[%s1 + $0x130] sm:$0xff]
      %v279 = vld [vmem:[%s1 + $0x138] sm:$0xff]
      %v280 = vld [vmem:[%s1 + $0x140] sm:$0xff]
      %v281 = vld [vmem:[%s1 + $0x148] sm:$0xff]
      %v282 = vld [vmem:[%s1 + $0x150] sm:$0xff]
      %v283 = vld [vmem:[%s1 + $0x158] sm:$0xff]
      %v284 = vld [vmem:[%s1 + $0x160] sm:$0xff]
      %v285 = vld [vmem:[%s1 + $0x168] sm:$0xff]
      %v286 = vld [vmem:[%s1 + $0x170] sm:$0xff]
      %v287 = vld [vmem:[%s1 + $0x178] sm:$0xff]
      %v288 = vld [vmem:[%s1 + $0x180] sm:$0xff]
      %v289 = vld [vmem:[%s1 + $0x188] sm:$0xff]
      %v290 = vld [vmem:[%s1 + $0x190] sm:$0xff]
      %v291 = vld [vmem:[%s1 + $0x198] sm:$0xff]
      %v292 = vld [vmem:[%s1 + $0x1a0] sm:$0xff]
      %v293 = vld [vmem:[%s1 + $0x1a8] sm:$0xff]
      %v294 = vld [vmem:[%s1 + $0x1b0] sm:$0xff]
      %v295 = vld [vmem:[%s1 + $0x1b8] sm:$0xff]
      %v296 = vld [vmem:[%s1 + $0x1c0] sm:$0xff]
      %v297 = vld [vmem:[%s1 + $0x1c8] sm:$0xff]
      %v298 = vld [vmem:[%s1 + $0x1d0] sm:$0xff]
      %v299 = vld [vmem:[%s1 + $0x1d8] sm:$0xff]
      %v300 = vld [vmem:[%s1 + $0x1e0] sm:$0xff]
      %v301 = vld [vmem:[%s1 + $0x1e8] sm:$0xff]
      %v302 = vld [vmem:[%s1 + $0x1f0] sm:$0xff]
      %v303 = vld [vmem:[%s1 + $0x1f8] sm:$0xff]
      %v304 = vld [vmem:[%s1 + $0x200] sm:$0xff]
      %v305 = vld [vmem:[%s1 + $0x208] sm:$0xff]
      %v306 = vld [vmem:[%s1 + $0x210] sm:$0xff]
      %v307 = vld [vmem:[%s1 + $0x218] sm:$0xff]
      %v308 = vld [vmem:[%s1 + $0x220] sm:$0xff]
      %v309 = vld [vmem:[%s1 + $0x228] sm:$0xff]
      %v310 = vld [vmem:[%s1 + $0x230] sm:$0xff]
      %v311 = vld [vmem:[%s1 + $0x238] sm:$0xff]
      %v312 = vld [vmem:[%s1 + $0x240] sm:$0xff]
      %v313 = vld [vmem:[%s1 + $0x248] sm:$0xff]
      %v314 = vld [vmem:[%s1 + $0x250] sm:$0xff]
      %v315 = vld [vmem:[%s1 + $0x258] sm:$0xff]
      %v316 = vld [vmem:[%s1 + $0x260] sm:$0xff]
      %v317 = vld [vmem:[%s1 + $0x268] sm:$0xff]
      %v318 = vld [vmem:[%s1 + $0x270] sm:$0xff]
      %v319 = vld [vmem:[%s1 + $0x278] sm:$0xff]
      %v320 = vld [vmem:[%s1 + $0x280] sm:$0xff]
      %v321 = vld [vmem:[%s1 + $0x288] sm:$0xff]
      %v322 = vld [vmem:[%s1 + $0x290] sm:$0xff]
      %v323 = vld [vmem:[%s1 + $0x298] sm:$0xff]
      %v324 = vld [vmem:[%s1 + $0x2a0] sm:$0xff]
      %v325 = vld [vmem:[%s1 + $0x2a8] sm:$0xff]
      %v326 = vld [vmem:[%s1 + $0x2b0] sm:$0xff]
      %v327 = vld [vmem:[%s1 + $0x2b8] sm:$0xff]
      %v328 = vld [vmem:[%s1 + $0x2c0] sm:$0xff]
      %v329 = vld [vmem:[%s1 + $0x2c8] sm:$0xff]
      %v330 = vld [vmem:[%s1 + $0x2d0] sm:$0xff]
      %v331 = vld [vmem:[%s1 + $0x2d8] sm:$0xff]
      %v332 = vld [vmem:[%s1 + $0x2e0] sm:$0xff]
      %v333 = vld [vmem:[%s1 + $0x2e8] sm:$0xff]
      %v334 = vld [vmem:[%s1 + $0x2f0] sm:$0xff]
      %v335 = vld [vmem:[%s1 + $0x2f8] sm:$0xff]
      %v336 = vld [vmem:[%s1 + $0x300] sm:$0xff]
      %v337 = vld [vmem:[%s1 + $0x308] sm:$0xff]
      %v338 = vld [vmem:[%s1 + $0x310] sm:$0xff]
      %v339 = vld [vmem:[%s1 + $0x318] sm:$0xff]
      %v340 = vld [vmem:[%s1 + $0x320] sm:$0xff]
      %v341 = vld [vmem:[%s1 + $0x328] sm:$0xff]
      %v342 = vld [vmem:[%s1 + $0x330] sm:$0xff]
      %v343 = vld [vmem:[%s1 + $0x338] sm:$0xff]
      %v344 = vld [vmem:[%s1 + $0x340] sm:$0xff]
      %v345 = vld [vmem:[%s1 + $0x348] sm:$0xff]
      %v346 = vld [vmem:[%s1 + $0x350] sm:$0xff]
      %v347 = vld [vmem:[%s1 + $0x358] sm:$0xff]
      %v348 = vld [vmem:[%s1 + $0x360] sm:$0xff]
      %v349 = vld [vmem:[%s1 + $0x368] sm:$0xff]
      %v350 = vld [vmem:[%s1 + $0x370] sm:$0xff]
      %v351 = vld [vmem:[%s1 + $0x378] sm:$0xff]
      %v352 = vld [vmem:[%s1 + $0x380] sm:$0xff]
      %v353 = vld [vmem:[%s1 + $0x388] sm:$0xff]
      %v354 = vld [vmem:[%s1 + $0x390] sm:$0xff]
      %v355 = vld [vmem:[%s1 + $0x398] sm:$0xff]
      %v356 = vld [vmem:[%s1 + $0x3a0] sm:$0xff]
      %v357 = vld [vmem:[%s1 + $0x3a8] sm:$0xff]
      %v358 = vld [vmem:[%s1 + $0x3b0] sm:$0xff]
      %v359 = vld [vmem:[%s1 + $0x3b8] sm:$0xff]
      %v360 = vld [vmem:[%s1 + $0x3c0] sm:$0xff]
      %v361 = vld [vmem:[%s1 + $0x3c8] sm:$0xff]
      %v362 = vld [vmem:[%s1 + $0x3d0] sm:$0xff]
      %v363 = vld [vmem:[%s1 + $0x3d8] sm:$0xff]
      %v364 = vld [vmem:[%s1 + $0x3e0] sm:$0xff]
      %v365 = vld [vmem:[%s1 + $0x3e8] sm:$0xff]
      %v366 = vld [vmem:[%s1 + $0x3f0] sm:$0xff]
      %v367 = vld [vmem:[%s1 + $0x3f8] sm:$0xff]
      %v368 = vld [vmem:[%s1 + $0x400] sm:$0xff]
      %v369 = vld [vmem:[%s1 + $0x408] sm:$0xff]
      %v370 = vld [vmem:[%s1 + $0x410] sm:$0xff]
      %v371 = vld [vmem:[%s1 + $0x418] sm:$0xff]
      %v372 = vld [vmem:[%s1 + $0x420] sm:$0xff]
      %v373 = vld [vmem:[%s1 + $0x428] sm:$0xff]
      %v374 = vld [vmem:[%s1 + $0x430] sm:$0xff]
      %v375 = vld [vmem:[%s1 + $0x438] sm:$0xff]
      %v376 = vld [vmem:[%s1 + $0x440] sm:$0xff]
      %v377 = vld [vmem:[%s1 + $0x448] sm:$0xff]
      %v378 = vld [vmem:[%s1 + $0x450] sm:$0xff]
      %v379 = vld [vmem:[%s1 + $0x458] sm:$0xff]
      %v380 = vld [vmem:[%s1 + $0x460] sm:$0xff]
      %v381 = vld [vmem:[%s1 + $0x468] sm:$0xff]
      %v382 = vld [vmem:[%s1 + $0x470] sm:$0xff]
      %v383 = vld [vmem:[%s1 + $0x478] sm:$0xff]
      %v384 = vld [vmem:[%s1 + $0x480] sm:$0xff]
      %v385 = vld [vmem:[%s1 + $0x488] sm:$0xff]
      %v386 = vld [vmem:[%s1 + $0x490] sm:$0xff]
      %v387 = vld [vmem:[%s1 + $0x498] sm:$0xff]
      %v388 = vld [vmem:[%s1 + $0x4a0] sm:$0xff]
      %v389 = vld [vmem:[%s1 + $0x4a8] sm:$0xff]
      %v390 = vld [vmem:[%s1 + $0x4b0] sm:$0xff]
      %v391 = vld [vmem:[%s1 + $0x4b8] sm:$0xff]
      %v392 = vld [vmem:[%s1 + $0x4c0] sm:$0xff]
      %v393 = vld [vmem:[%s1 + $0x4c8] sm:$0xff]
      %v394 = vld [vmem:[%s1 + $0x4d0] sm:$0xff]
      %v395 = vld [vmem:[%s1 + $0x4d8] sm:$0xff]
      %v396 = vld [vmem:[%s1 + $0x4e0] sm:$0xff]
      %v397 = vld [vmem:[%s1 + $0x4e8] sm:$0xff]
      %v398 = vld [vmem:[%s1 + $0x4f0] sm:$0xff]
      %v399 = vld [vmem:[%s1 + $0x4f8] sm:$0xff]
      %v400 = vld [vmem:[%s1 + $0x500] sm:$0xff]
      %v401 = vld [vmem:[%s1 + $0x508] sm:$0xff]
      %v402 = vld [vmem:[%s1 + $0x510] sm:$0xff]
      %v403 = vld [vmem:[%s1 + $0x518] sm:$0xff]
      %v404 = vld [vmem:[%s1 + $0x520] sm:$0xff]
      %v405 = vld [vmem:[%s1 + $0x528] sm:$0xff]
      %v406 = vld [vmem:[%s1 + $0x530] sm:$0xff]
      %v407 = vld [vmem:[%s1 + $0x538] sm:$0xff]
      %v408 = vld [vmem:[%s1 + $0x540] sm:$0xff]
      %v409 = vld [vmem:[%s1 + $0x548] sm:$0xff]
      %v410 = vld [vmem:[%s1 + $0x550] sm:$0xff]
      %v411 = vld [vmem:[%s1 + $0x558] sm:$0xff]
      %v412 = vld [vmem:[%s1 + $0x560] sm:$0xff]
      %v413 = vld [vmem:[%s1 + $0x568] sm:$0xff]
      %v414 = vld [vmem:[%s1 + $0x570] sm:$0xff]
      %v415 = vld [vmem:[%s1 + $0x578] sm:$0xff]
      %v416 = vld [vmem:[%s1 + $0x580] sm:$0xff]
      %v417 = vld [vmem:[%s1 + $0x588] sm:$0xff]
      %v418 = vld [vmem:[%s1 + $0x590] sm:$0xff]
      %v419 = vld [vmem:[%s1 + $0x598] sm:$0xff]
      %v420 = vld [vmem:[%s1 + $0x5a0] sm:$0xff]
      %v421 = vld [vmem:[%s1 + $0x5a8] sm:$0xff]
      %v422 = vld [vmem:[%s1 + $0x5b0] sm:$0xff]
      %v423 = vld [vmem:[%s1 + $0x5b8] sm:$0xff]
      %v424 = vld [vmem:[%s1 + $0x5c0] sm:$0xff]
      %v425 = vld [vmem:[%s1 + $0x5c8] sm:$0xff]
      %v426 = vld [vmem:[%s1 + $0x5d0] sm:$0xff]
      %v427 = vld [vmem:[%s1 + $0x5d8] sm:$0xff]
      %v428 = vld [vmem:[%s1 + $0x5e0] sm:$0xff]
      %v429 = vld [vmem:[%s1 + $0x5e8] sm:$0xff]
      %v430 = vld [vmem:[%s1 + $0x5f0] sm:$0xff]
      %v431 = vld [vmem:[%s1 + $0x5f8] sm:$0xff]
      %v432 = vld [vmem:[%s1 + $0x600] sm:$0xff]
      %v433 = vld [vmem:[%s1 + $0x608] sm:$0xff]
      %v434 = vld [vmem:[%s1 + $0x610] sm:$0xff]
      %v435 = vld [vmem:[%s1 + $0x618] sm:$0xff]
      %v436 = vld [vmem:[%s1 + $0x620] sm:$0xff]
      %v437 = vld [vmem:[%s1 + $0x628] sm:$0xff]
      %v438 = vld [vmem:[%s1 + $0x630] sm:$0xff]
      %v439 = vld [vmem:[%s1 + $0x638] sm:$0xff]
      %v440 = vld [vmem:[%s1 + $0x640] sm:$0xff]
      %v441 = vld [vmem:[%s1 + $0x648] sm:$0xff]
      %v442 = vld [vmem:[%s1 + $0x650] sm:$0xff]
      %v443 = vld [vmem:[%s1 + $0x658] sm:$0xff]
      %v444 = vld [vmem:[%s1 + $0x660] sm:$0xff]
      %v445 = vld [vmem:[%s1 + $0x668] sm:$0xff]
      %v446 = vld [vmem:[%s1 + $0x670] sm:$0xff]
      %v447 = vld [vmem:[%s1 + $0x678] sm:$0xff]
      %v448 = vld [vmem:[%s1 + $0x680] sm:$0xff]
      %v449 = vld [vmem:[%s1 + $0x688] sm:$0xff]
      %v450 = vld [vmem:[%s1 + $0x690] sm:$0xff]
      %v451 = vld [vmem:[%s1 + $0x698] sm:$0xff]
      %v452 = vld [vmem:[%s1 + $0x6a0] sm:$0xff]
      %v453 = vld [vmem:[%s1 + $0x6a8] sm:$0xff]
      %v454 = vld [vmem:[%s1 + $0x6b0] sm:$0xff]
      %v455 = vld [vmem:[%s1 + $0x6b8] sm:$0xff]
      %v456 = vld [vmem:[%s1 + $0x6c0] sm:$0xff]
      %v457 = vld [vmem:[%s1 + $0x6c8] sm:$0xff]
      %v458 = vld [vmem:[%s1 + $0x6d0] sm:$0xff]
      %v459 = vld [vmem:[%s1 + $0x6d8] sm:$0xff]
      %v460 = vld [vmem:[%s1 + $0x6e0] sm:$0xff]
      %v461 = vld [vmem:[%s1 + $0x6e8] sm:$0xff]
      %v462 = vld [vmem:[%s1 + $0x6f0] sm:$0xff]
      %v463 = vld [vmem:[%s1 + $0x6f8] sm:$0xff]
      %v464 = vld [vmem:[%s1 + $0x700] sm:$0xff]
      %v465 = vld [vmem:[%s1 + $0x708] sm:$0xff]
      %v466 = vld [vmem:[%s1 + $0x710] sm:$0xff]
      %v467 = vld [vmem:[%s1 + $0x718] sm:$0xff]
      %v468 = vld [vmem:[%s1 + $0x720] sm:$0xff]
      %v469 = vld [vmem:[%s1 + $0x728] sm:$0xff]
      %v470 = vld [vmem:[%s1 + $0x730] sm:$0xff]
      %v471 = vld [vmem:[%s1 + $0x738] sm:$0xff]
      %v472 = vld [vmem:[%s1 + $0x740] sm:$0xff]
      %v473 = vld [vmem:[%s1 + $0x748] sm:$0xff]
      %v474 = vld [vmem:[%s1 + $0x750] sm:$0xff]
      %v475 = vld [vmem:[%s1 + $0x758] sm:$0xff]
      %v476 = vld [vmem:[%s1 + $0x760] sm:$0xff]
      %v477 = vld [vmem:[%s1 + $0x768] sm:$0xff]
      %v478 = vld [vmem:[%s1 + $0x770] sm:$0xff]
      %v479 = vld [vmem:[%s1 + $0x778] sm:$0xff]
      %v480 = vld [vmem:[%s1 + $0x780] sm:$0xff]
      %v481 = vld [vmem:[%s1 + $0x788] sm:$0xff]
      %v482 = vld [vmem:[%s1 + $0x790] sm:$0xff]
      %v483 = vld [vmem:[%s1 + $0x798] sm:$0xff]
      %v484 = vld [vmem:[%s1 + $0x7a0] sm:$0xff]
      %v485 = vld [vmem:[%s1 + $0x7a8] sm:$0xff]
      %v486 = vld [vmem:[%s1 + $0x7b0] sm:$0xff]
      %v487 = vld [vmem:[%s1 + $0x7b8] sm:$0xff]
      %v488 = vld [vmem:[%s1 + $0x7c0] sm:$0xff]
      %v489 = vld [vmem:[%s1 + $0x7c8] sm:$0xff]
      %v490 = vld [vmem:[%s1 + $0x7d0] sm:$0xff]
      %v491 = vld [vmem:[%s1 + $0x7d8] sm:$0xff]
      %v492 = vld [vmem:[%s1 + $0x7e0] sm:$0xff]
      %v493 = vld [vmem:[%s1 + $0x7e8] sm:$0xff]
      %v494 = vld [vmem:[%s1 + $0x7f0] sm:$0xff]
      %v495 = vld [vmem:[%s1 + $0x7f8] sm:$0xff]
      %v496 = vld [vmem:[%s2] sm:$0xf]
      %v498 = vlaneseq
      %v499 = vshrl.u32 %v498, 7
      %v500 = vsub.s32 0, %v499
      %v501 = vrot.slane %v496, %v500
      %v502 = vlaneseq
      %v503 = vshrl.u32 %v502, 7
      %v504 = vsub.s32 1, %v503
      %v505 = vrot.slane %v496, %v504
      %v506 = vlaneseq
      %v507 = vshrl.u32 %v506, 7
      %v508 = vsub.s32 2, %v507
      %v509 = vrot.slane %v496, %v508
      %v510 = vlaneseq
      %v511 = vshrl.u32 %v510, 7
      %v512 = vsub.s32 3, %v511
      %v513 = vrot.slane %v496, %v512
      %v774 = vunpack.c.l.b16 %v240
      %v775 = vunpack.c.h.b16 %v240
      %v776 = vunpack.c.l.b16 %v241
      %v777 = vunpack.c.h.b16 %v241
      %v778 = vunpack.c.l.b16 %v242
      %v779 = vunpack.c.h.b16 %v242
      %v780 = vunpack.c.l.b16 %v243
      %v781 = vunpack.c.h.b16 %v243
      %v782 = vunpack.c.l.b16 %v244
      %v783 = vunpack.c.h.b16 %v244
      %v784 = vunpack.c.l.b16 %v245
      %v785 = vunpack.c.h.b16 %v245
      %v786 = vunpack.c.l.b16 %v246
      %v787 = vunpack.c.h.b16 %v246
      %v788 = vunpack.c.l.b16 %v247
      %v789 = vunpack.c.h.b16 %v247
      %v790 = vunpack.c.l.b16 %v248
      %v791 = vunpack.c.h.b16 %v248
      %v792 = vunpack.c.l.b16 %v249
      %v793 = vunpack.c.h.b16 %v249
      %v794 = vunpack.c.l.b16 %v250
      %v795 = vunpack.c.h.b16 %v250
      %v796 = vunpack.c.l.b16 %v251
      %v797 = vunpack.c.h.b16 %v251
      %v798 = vunpack.c.l.b16 %v252
      %v799 = vunpack.c.h.b16 %v252
      %v800 = vunpack.c.l.b16 %v253
      %v801 = vunpack.c.h.b16 %v253
      %v802 = vunpack.c.l.b16 %v254
      %v803 = vunpack.c.h.b16 %v254
      %v804 = vunpack.c.l.b16 %v255
      %v805 = vunpack.c.h.b16 %v255
      %v806 = vunpack.c.l.b16 %v256
      %v807 = vunpack.c.h.b16 %v256
      %v808 = vunpack.c.l.b16 %v257
      %v809 = vunpack.c.h.b16 %v257
      %v810 = vunpack.c.l.b16 %v258
      %v811 = vunpack.c.h.b16 %v258
      %v812 = vunpack.c.l.b16 %v259
      %v813 = vunpack.c.h.b16 %v259
      %v814 = vunpack.c.l.b16 %v260
      %v815 = vunpack.c.h.b16 %v260
      %v816 = vunpack.c.l.b16 %v261
      %v817 = vunpack.c.h.b16 %v261
      %v818 = vunpack.c.l.b16 %v262
      %v819 = vunpack.c.h.b16 %v262
      %v820 = vunpack.c.l.b16 %v263
      %v821 = vunpack.c.h.b16 %v263
      %v822 = vunpack.c.l.b16 %v264
      %v823 = vunpack.c.h.b16 %v264
      %v824 = vunpack.c.l.b16 %v265
      %v825 = vunpack.c.h.b16 %v265
      %v826 = vunpack.c.l.b16 %v266
      %v827 = vunpack.c.h.b16 %v266
      %v828 = vunpack.c.l.b16 %v267
      %v829 = vunpack.c.h.b16 %v267
      %v830 = vunpack.c.l.b16 %v268
      %v831 = vunpack.c.h.b16 %v268
      %v832 = vunpack.c.l.b16 %v269
      %v833 = vunpack.c.h.b16 %v269
      %v834 = vunpack.c.l.b16 %v270
      %v835 = vunpack.c.h.b16 %v270
      %v836 = vunpack.c.l.b16 %v271
      %v837 = vunpack.c.h.b16 %v271
      %v838 = vunpack.c.l.b16 %v272
      %v839 = vunpack.c.h.b16 %v272
      %v840 = vunpack.c.l.b16 %v273
      %v841 = vunpack.c.h.b16 %v273
      %v842 = vunpack.c.l.b16 %v274
      %v843 = vunpack.c.h.b16 %v274
      %v844 = vunpack.c.l.b16 %v275
      %v845 = vunpack.c.h.b16 %v275
      %v846 = vunpack.c.l.b16 %v276
      %v847 = vunpack.c.h.b16 %v276
      %v848 = vunpack.c.l.b16 %v277
      %v849 = vunpack.c.h.b16 %v277
      %v850 = vunpack.c.l.b16 %v278
      %v851 = vunpack.c.h.b16 %v278
      %v852 = vunpack.c.l.b16 %v279
      %v853 = vunpack.c.h.b16 %v279
      %v854 = vunpack.c.l.b16 %v280
      %v855 = vunpack.c.h.b16 %v280
      %v856 = vunpack.c.l.b16 %v281
      %v857 = vunpack.c.h.b16 %v281
      %v858 = vunpack.c.l.b16 %v282
      %v859 = vunpack.c.h.b16 %v282
      %v860 = vunpack.c.l.b16 %v283
      %v861 = vunpack.c.h.b16 %v283
      %v862 = vunpack.c.l.b16 %v284
      %v863 = vunpack.c.h.b16 %v284
      %v864 = vunpack.c.l.b16 %v285
      %v865 = vunpack.c.h.b16 %v285
      %v866 = vunpack.c.l.b16 %v286
      %v867 = vunpack.c.h.b16 %v286
      %v868 = vunpack.c.l.b16 %v287
      %v869 = vunpack.c.h.b16 %v287
      %v870 = vunpack.c.l.b16 %v288
      %v871 = vunpack.c.h.b16 %v288
      %v872 = vunpack.c.l.b16 %v289
      %v873 = vunpack.c.h.b16 %v289
      %v874 = vunpack.c.l.b16 %v290
      %v875 = vunpack.c.h.b16 %v290
      %v876 = vunpack.c.l.b16 %v291
      %v877 = vunpack.c.h.b16 %v291
      %v878 = vunpack.c.l.b16 %v292
      %v879 = vunpack.c.h.b16 %v292
      %v880 = vunpack.c.l.b16 %v293
      %v881 = vunpack.c.h.b16 %v293
      %v882 = vunpack.c.l.b16 %v294
      %v883 = vunpack.c.h.b16 %v294
      %v884 = vunpack.c.l.b16 %v295
      %v885 = vunpack.c.h.b16 %v295
      %v886 = vunpack.c.l.b16 %v296
      %v887 = vunpack.c.h.b16 %v296
      %v888 = vunpack.c.l.b16 %v297
      %v889 = vunpack.c.h.b16 %v297
      %v890 = vunpack.c.l.b16 %v298
      %v891 = vunpack.c.h.b16 %v298
      %v892 = vunpack.c.l.b16 %v299
      %v893 = vunpack.c.h.b16 %v299
      %v894 = vunpack.c.l.b16 %v300
      %v895 = vunpack.c.h.b16 %v300
      %v896 = vunpack.c.l.b16 %v301
      %v897 = vunpack.c.h.b16 %v301
      %v898 = vunpack.c.l.b16 %v302
      %v899 = vunpack.c.h.b16 %v302
      %v900 = vunpack.c.l.b16 %v303
      %v901 = vunpack.c.h.b16 %v303
      %v902 = vunpack.c.l.b16 %v304
      %v903 = vunpack.c.h.b16 %v304
      %v904 = vunpack.c.l.b16 %v305
      %v905 = vunpack.c.h.b16 %v305
      %v906 = vunpack.c.l.b16 %v306
      %v907 = vunpack.c.h.b16 %v306
      %v908 = vunpack.c.l.b16 %v307
      %v909 = vunpack.c.h.b16 %v307
      %v910 = vunpack.c.l.b16 %v308
      %v911 = vunpack.c.h.b16 %v308
      %v912 = vunpack.c.l.b16 %v309
      %v913 = vunpack.c.h.b16 %v309
      %v914 = vunpack.c.l.b16 %v310
      %v915 = vunpack.c.h.b16 %v310
      %v916 = vunpack.c.l.b16 %v311
      %v917 = vunpack.c.h.b16 %v311
      %v918 = vunpack.c.l.b16 %v312
      %v919 = vunpack.c.h.b16 %v312
      %v920 = vunpack.c.l.b16 %v313
      %v921 = vunpack.c.h.b16 %v313
      %v922 = vunpack.c.l.b16 %v314
      %v923 = vunpack.c.h.b16 %v314
      %v924 = vunpack.c.l.b16 %v315
      %v925 = vunpack.c.h.b16 %v315
      %v926 = vunpack.c.l.b16 %v316
      %v927 = vunpack.c.h.b16 %v316
      %v928 = vunpack.c.l.b16 %v317
      %v929 = vunpack.c.h.b16 %v317
      %v930 = vunpack.c.l.b16 %v318
      %v931 = vunpack.c.h.b16 %v318
      %v932 = vunpack.c.l.b16 %v319
      %v933 = vunpack.c.h.b16 %v319
      %v934 = vunpack.c.l.b16 %v320
      %v935 = vunpack.c.h.b16 %v320
      %v936 = vunpack.c.l.b16 %v321
      %v937 = vunpack.c.h.b16 %v321
      %v938 = vunpack.c.l.b16 %v322
      %v939 = vunpack.c.h.b16 %v322
      %v940 = vunpack.c.l.b16 %v323
      %v941 = vunpack.c.h.b16 %v323
      %v942 = vunpack.c.l.b16 %v324
      %v943 = vunpack.c.h.b16 %v324
      %v944 = vunpack.c.l.b16 %v325
      %v945 = vunpack.c.h.b16 %v325
      %v946 = vunpack.c.l.b16 %v326
      %v947 = vunpack.c.h.b16 %v326
      %v948 = vunpack.c.l.b16 %v327
      %v949 = vunpack.c.h.b16 %v327
      %v950 = vunpack.c.l.b16 %v328
      %v951 = vunpack.c.h.b16 %v328
      %v952 = vunpack.c.l.b16 %v329
      %v953 = vunpack.c.h.b16 %v329
      %v954 = vunpack.c.l.b16 %v330
      %v955 = vunpack.c.h.b16 %v330
      %v956 = vunpack.c.l.b16 %v331
      %v957 = vunpack.c.h.b16 %v331
      %v958 = vunpack.c.l.b16 %v332
      %v959 = vunpack.c.h.b16 %v332
      %v960 = vunpack.c.l.b16 %v333
      %v961 = vunpack.c.h.b16 %v333
      %v962 = vunpack.c.l.b16 %v334
      %v963 = vunpack.c.h.b16 %v334
      %v964 = vunpack.c.l.b16 %v335
      %v965 = vunpack.c.h.b16 %v335
      %v966 = vunpack.c.l.b16 %v336
      %v967 = vunpack.c.h.b16 %v336
      %v968 = vunpack.c.l.b16 %v337
      %v969 = vunpack.c.h.b16 %v337
      %v970 = vunpack.c.l.b16 %v338
      %v971 = vunpack.c.h.b16 %v338
      %v972 = vunpack.c.l.b16 %v339
      %v973 = vunpack.c.h.b16 %v339
      %v974 = vunpack.c.l.b16 %v340
      %v975 = vunpack.c.h.b16 %v340
      %v976 = vunpack.c.l.b16 %v341
      %v977 = vunpack.c.h.b16 %v341
      %v978 = vunpack.c.l.b16 %v342
      %v979 = vunpack.c.h.b16 %v342
      %v980 = vunpack.c.l.b16 %v343
      %v981 = vunpack.c.h.b16 %v343
      %v982 = vunpack.c.l.b16 %v344
      %v983 = vunpack.c.h.b16 %v344
      %v984 = vunpack.c.l.b16 %v345
      %v985 = vunpack.c.h.b16 %v345
      %v986 = vunpack.c.l.b16 %v346
      %v987 = vunpack.c.h.b16 %v346
      %v988 = vunpack.c.l.b16 %v347
      %v989 = vunpack.c.h.b16 %v347
      %v990 = vunpack.c.l.b16 %v348
      %v991 = vunpack.c.h.b16 %v348
      %v992 = vunpack.c.l.b16 %v349
      %v993 = vunpack.c.h.b16 %v349
      %v994 = vunpack.c.l.b16 %v350
      %v995 = vunpack.c.h.b16 %v350
      %v996 = vunpack.c.l.b16 %v351
      %v997 = vunpack.c.h.b16 %v351
      %v998 = vunpack.c.l.b16 %v352
      %v999 = vunpack.c.h.b16 %v352
      %v1000 = vunpack.c.l.b16 %v353
      %v1001 = vunpack.c.h.b16 %v353
      %v1002 = vunpack.c.l.b16 %v354
      %v1003 = vunpack.c.h.b16 %v354
      %v1004 = vunpack.c.l.b16 %v355
      %v1005 = vunpack.c.h.b16 %v355
      %v1006 = vunpack.c.l.b16 %v356
      %v1007 = vunpack.c.h.b16 %v356
      %v1008 = vunpack.c.l.b16 %v357
      %v1009 = vunpack.c.h.b16 %v357
      %v1010 = vunpack.c.l.b16 %v358
      %v1011 = vunpack.c.h.b16 %v358
      %v1012 = vunpack.c.l.b16 %v359
      %v1013 = vunpack.c.h.b16 %v359
      %v1014 = vunpack.c.l.b16 %v360
      %v1015 = vunpack.c.h.b16 %v360
      %v1016 = vunpack.c.l.b16 %v361
      %v1017 = vunpack.c.h.b16 %v361
      %v1018 = vunpack.c.l.b16 %v362
      %v1019 = vunpack.c.h.b16 %v362
      %v1020 = vunpack.c.l.b16 %v363
      %v1021 = vunpack.c.h.b16 %v363
      %v1022 = vunpack.c.l.b16 %v364
      %v1023 = vunpack.c.h.b16 %v364
      %v1024 = vunpack.c.l.b16 %v365
      %v1025 = vunpack.c.h.b16 %v365
      %v1026 = vunpack.c.l.b16 %v366
      %v1027 = vunpack.c.h.b16 %v366
      %v1028 = vunpack.c.l.b16 %v367
      %v1029 = vunpack.c.h.b16 %v367
      %v1030 = vunpack.c.l.b16 %v368
      %v1031 = vunpack.c.h.b16 %v368
      %v1032 = vunpack.c.l.b16 %v369
      %v1033 = vunpack.c.h.b16 %v369
      %v1034 = vunpack.c.l.b16 %v370
      %v1035 = vunpack.c.h.b16 %v370
      %v1036 = vunpack.c.l.b16 %v371
      %v1037 = vunpack.c.h.b16 %v371
      %v1038 = vunpack.c.l.b16 %v372
      %v1039 = vunpack.c.h.b16 %v372
      %v1040 = vunpack.c.l.b16 %v373
      %v1041 = vunpack.c.h.b16 %v373
      %v1042 = vunpack.c.l.b16 %v374
      %v1043 = vunpack.c.h.b16 %v374
      %v1044 = vunpack.c.l.b16 %v375
      %v1045 = vunpack.c.h.b16 %v375
      %v1046 = vunpack.c.l.b16 %v376
      %v1047 = vunpack.c.h.b16 %v376
      %v1048 = vunpack.c.l.b16 %v377
      %v1049 = vunpack.c.h.b16 %v377
      %v1050 = vunpack.c.l.b16 %v378
      %v1051 = vunpack.c.h.b16 %v378
      %v1052 = vunpack.c.l.b16 %v379
      %v1053 = vunpack.c.h.b16 %v379
      %v1054 = vunpack.c.l.b16 %v380
      %v1055 = vunpack.c.h.b16 %v380
      %v1056 = vunpack.c.l.b16 %v381
      %v1057 = vunpack.c.h.b16 %v381
      %v1058 = vunpack.c.l.b16 %v382
      %v1059 = vunpack.c.h.b16 %v382
      %v1060 = vunpack.c.l.b16 %v383
      %v1061 = vunpack.c.h.b16 %v383
      %v1062 = vunpack.c.l.b16 %v384
      %v1063 = vunpack.c.h.b16 %v384
      %v1064 = vunpack.c.l.b16 %v385
      %v1065 = vunpack.c.h.b16 %v385
      %v1066 = vunpack.c.l.b16 %v386
      %v1067 = vunpack.c.h.b16 %v386
      %v1068 = vunpack.c.l.b16 %v387
      %v1069 = vunpack.c.h.b16 %v387
      %v1070 = vunpack.c.l.b16 %v388
      %v1071 = vunpack.c.h.b16 %v388
      %v1072 = vunpack.c.l.b16 %v389
      %v1073 = vunpack.c.h.b16 %v389
      %v1074 = vunpack.c.l.b16 %v390
      %v1075 = vunpack.c.h.b16 %v390
      %v1076 = vunpack.c.l.b16 %v391
      %v1077 = vunpack.c.h.b16 %v391
      %v1078 = vunpack.c.l.b16 %v392
      %v1079 = vunpack.c.h.b16 %v392
      %v1080 = vunpack.c.l.b16 %v393
      %v1081 = vunpack.c.h.b16 %v393
      %v1082 = vunpack.c.l.b16 %v394
      %v1083 = vunpack.c.h.b16 %v394
      %v1084 = vunpack.c.l.b16 %v395
      %v1085 = vunpack.c.h.b16 %v395
      %v1086 = vunpack.c.l.b16 %v396
      %v1087 = vunpack.c.h.b16 %v396
      %v1088 = vunpack.c.l.b16 %v397
      %v1089 = vunpack.c.h.b16 %v397
      %v1090 = vunpack.c.l.b16 %v398
      %v1091 = vunpack.c.h.b16 %v398
      %v1092 = vunpack.c.l.b16 %v399
      %v1093 = vunpack.c.h.b16 %v399
      %v1094 = vunpack.c.l.b16 %v400
      %v1095 = vunpack.c.h.b16 %v400
      %v1096 = vunpack.c.l.b16 %v401
      %v1097 = vunpack.c.h.b16 %v401
      %v1098 = vunpack.c.l.b16 %v402
      %v1099 = vunpack.c.h.b16 %v402
      %v1100 = vunpack.c.l.b16 %v403
      %v1101 = vunpack.c.h.b16 %v403
      %v1102 = vunpack.c.l.b16 %v404
      %v1103 = vunpack.c.h.b16 %v404
      %v1104 = vunpack.c.l.b16 %v405
      %v1105 = vunpack.c.h.b16 %v405
      %v1106 = vunpack.c.l.b16 %v406
      %v1107 = vunpack.c.h.b16 %v406
      %v1108 = vunpack.c.l.b16 %v407
      %v1109 = vunpack.c.h.b16 %v407
      %v1110 = vunpack.c.l.b16 %v408
      %v1111 = vunpack.c.h.b16 %v408
      %v1112 = vunpack.c.l.b16 %v409
      %v1113 = vunpack.c.h.b16 %v409
      %v1114 = vunpack.c.l.b16 %v410
      %v1115 = vunpack.c.h.b16 %v410
      %v1116 = vunpack.c.l.b16 %v411
      %v1117 = vunpack.c.h.b16 %v411
      %v1118 = vunpack.c.l.b16 %v412
      %v1119 = vunpack.c.h.b16 %v412
      %v1120 = vunpack.c.l.b16 %v413
      %v1121 = vunpack.c.h.b16 %v413
      %v1122 = vunpack.c.l.b16 %v414
      %v1123 = vunpack.c.h.b16 %v414
      %v1124 = vunpack.c.l.b16 %v415
      %v1125 = vunpack.c.h.b16 %v415
      %v1126 = vunpack.c.l.b16 %v416
      %v1127 = vunpack.c.h.b16 %v416
      %v1128 = vunpack.c.l.b16 %v417
      %v1129 = vunpack.c.h.b16 %v417
      %v1130 = vunpack.c.l.b16 %v418
      %v1131 = vunpack.c.h.b16 %v418
      %v1132 = vunpack.c.l.b16 %v419
      %v1133 = vunpack.c.h.b16 %v419
      %v1134 = vunpack.c.l.b16 %v420
      %v1135 = vunpack.c.h.b16 %v420
      %v1136 = vunpack.c.l.b16 %v421
      %v1137 = vunpack.c.h.b16 %v421
      %v1138 = vunpack.c.l.b16 %v422
      %v1139 = vunpack.c.h.b16 %v422
      %v1140 = vunpack.c.l.b16 %v423
      %v1141 = vunpack.c.h.b16 %v423
      %v1142 = vunpack.c.l.b16 %v424
      %v1143 = vunpack.c.h.b16 %v424
      %v1144 = vunpack.c.l.b16 %v425
      %v1145 = vunpack.c.h.b16 %v425
      %v1146 = vunpack.c.l.b16 %v426
      %v1147 = vunpack.c.h.b16 %v426
      %v1148 = vunpack.c.l.b16 %v427
      %v1149 = vunpack.c.h.b16 %v427
      %v1150 = vunpack.c.l.b16 %v428
      %v1151 = vunpack.c.h.b16 %v428
      %v1152 = vunpack.c.l.b16 %v429
      %v1153 = vunpack.c.h.b16 %v429
      %v1154 = vunpack.c.l.b16 %v430
      %v1155 = vunpack.c.h.b16 %v430
      %v1156 = vunpack.c.l.b16 %v431
      %v1157 = vunpack.c.h.b16 %v431
      %v1158 = vunpack.c.l.b16 %v432
      %v1159 = vunpack.c.h.b16 %v432
      %v1160 = vunpack.c.l.b16 %v433
      %v1161 = vunpack.c.h.b16 %v433
      %v1162 = vunpack.c.l.b16 %v434
      %v1163 = vunpack.c.h.b16 %v434
      %v1164 = vunpack.c.l.b16 %v435
      %v1165 = vunpack.c.h.b16 %v435
      %v1166 = vunpack.c.l.b16 %v436
      %v1167 = vunpack.c.h.b16 %v436
      %v1168 = vunpack.c.l.b16 %v437
      %v1169 = vunpack.c.h.b16 %v437
      %v1170 = vunpack.c.l.b16 %v438
      %v1171 = vunpack.c.h.b16 %v438
      %v1172 = vunpack.c.l.b16 %v439
      %v1173 = vunpack.c.h.b16 %v439
      %v1174 = vunpack.c.l.b16 %v440
      %v1175 = vunpack.c.h.b16 %v440
      %v1176 = vunpack.c.l.b16 %v441
      %v1177 = vunpack.c.h.b16 %v441
      %v1178 = vunpack.c.l.b16 %v442
      %v1179 = vunpack.c.h.b16 %v442
      %v1180 = vunpack.c.l.b16 %v443
      %v1181 = vunpack.c.h.b16 %v443
      %v1182 = vunpack.c.l.b16 %v444
      %v1183 = vunpack.c.h.b16 %v444
      %v1184 = vunpack.c.l.b16 %v445
      %v1185 = vunpack.c.h.b16 %v445
      %v1186 = vunpack.c.l.b16 %v446
      %v1187 = vunpack.c.h.b16 %v446
      %v1188 = vunpack.c.l.b16 %v447
      %v1189 = vunpack.c.h.b16 %v447
      %v1190 = vunpack.c.l.b16 %v448
      %v1191 = vunpack.c.h.b16 %v448
      %v1192 = vunpack.c.l.b16 %v449
      %v1193 = vunpack.c.h.b16 %v449
      %v1194 = vunpack.c.l.b16 %v450
      %v1195 = vunpack.c.h.b16 %v450
      %v1196 = vunpack.c.l.b16 %v451
      %v1197 = vunpack.c.h.b16 %v451
      %v1198 = vunpack.c.l.b16 %v452
      %v1199 = vunpack.c.h.b16 %v452
      %v1200 = vunpack.c.l.b16 %v453
      %v1201 = vunpack.c.h.b16 %v453
      %v1202 = vunpack.c.l.b16 %v454
      %v1203 = vunpack.c.h.b16 %v454
      %v1204 = vunpack.c.l.b16 %v455
      %v1205 = vunpack.c.h.b16 %v455
      %v1206 = vunpack.c.l.b16 %v456
      %v1207 = vunpack.c.h.b16 %v456
      %v1208 = vunpack.c.l.b16 %v457
      %v1209 = vunpack.c.h.b16 %v457
      %v1210 = vunpack.c.l.b16 %v458
      %v1211 = vunpack.c.h.b16 %v458
      %v1212 = vunpack.c.l.b16 %v459
      %v1213 = vunpack.c.h.b16 %v459
      %v1214 = vunpack.c.l.b16 %v460
      %v1215 = vunpack.c.h.b16 %v460
      %v1216 = vunpack.c.l.b16 %v461
      %v1217 = vunpack.c.h.b16 %v461
      %v1218 = vunpack.c.l.b16 %v462
      %v1219 = vunpack.c.h.b16 %v462
      %v1220 = vunpack.c.l.b16 %v463
      %v1221 = vunpack.c.h.b16 %v463
      %v1222 = vunpack.c.l.b16 %v464
      %v1223 = vunpack.c.h.b16 %v464
      %v1224 = vunpack.c.l.b16 %v465
      %v1225 = vunpack.c.h.b16 %v465
      %v1226 = vunpack.c.l.b16 %v466
      %v1227 = vunpack.c.h.b16 %v466
      %v1228 = vunpack.c.l.b16 %v467
      %v1229 = vunpack.c.h.b16 %v467
      %v1230 = vunpack.c.l.b16 %v468
      %v1231 = vunpack.c.h.b16 %v468
      %v1232 = vunpack.c.l.b16 %v469
      %v1233 = vunpack.c.h.b16 %v469
      %v1234 = vunpack.c.l.b16 %v470
      %v1235 = vunpack.c.h.b16 %v470
      %v1236 = vunpack.c.l.b16 %v471
      %v1237 = vunpack.c.h.b16 %v471
      %v1238 = vunpack.c.l.b16 %v472
      %v1239 = vunpack.c.h.b16 %v472
      %v1240 = vunpack.c.l.b16 %v473
      %v1241 = vunpack.c.h.b16 %v473
      %v1242 = vunpack.c.l.b16 %v474
      %v1243 = vunpack.c.h.b16 %v474
      %v1244 = vunpack.c.l.b16 %v475
      %v1245 = vunpack.c.h.b16 %v475
      %v1246 = vunpack.c.l.b16 %v476
      %v1247 = vunpack.c.h.b16 %v476
      %v1248 = vunpack.c.l.b16 %v477
      %v1249 = vunpack.c.h.b16 %v477
      %v1250 = vunpack.c.l.b16 %v478
      %v1251 = vunpack.c.h.b16 %v478
      %v1252 = vunpack.c.l.b16 %v479
      %v1253 = vunpack.c.h.b16 %v479
      %v1254 = vunpack.c.l.b16 %v480
      %v1255 = vunpack.c.h.b16 %v480
      %v1256 = vunpack.c.l.b16 %v481
      %v1257 = vunpack.c.h.b16 %v481
      %v1258 = vunpack.c.l.b16 %v482
      %v1259 = vunpack.c.h.b16 %v482
      %v1260 = vunpack.c.l.b16 %v483
      %v1261 = vunpack.c.h.b16 %v483
      %v1262 = vunpack.c.l.b16 %v484
      %v1263 = vunpack.c.h.b16 %v484
      %v1264 = vunpack.c.l.b16 %v485
      %v1265 = vunpack.c.h.b16 %v485
      %v1266 = vunpack.c.l.b16 %v486
      %v1267 = vunpack.c.h.b16 %v486
      %v1268 = vunpack.c.l.b16 %v487
      %v1269 = vunpack.c.h.b16 %v487
      %v1270 = vunpack.c.l.b16 %v488
      %v1271 = vunpack.c.h.b16 %v488
      %v1272 = vunpack.c.l.b16 %v489
      %v1273 = vunpack.c.h.b16 %v489
      %v1274 = vunpack.c.l.b16 %v490
      %v1275 = vunpack.c.h.b16 %v490
      %v1276 = vunpack.c.l.b16 %v491
      %v1277 = vunpack.c.h.b16 %v491
      %v1278 = vunpack.c.l.b16 %v492
      %v1279 = vunpack.c.h.b16 %v492
      %v1280 = vunpack.c.l.b16 %v493
      %v1281 = vunpack.c.h.b16 %v493
      %v1282 = vunpack.c.l.b16 %v494
      %v1283 = vunpack.c.h.b16 %v494
      %v1284 = vunpack.c.l.b16 %v495
      %v1285 = vunpack.c.h.b16 %v495
      %v1286 = vpack.c.b16 %v778, %v774
      %v1287 = vpack.c.b16 %v779, %v775
      %v1288 = vpack.c.b16 %v780, %v776
      %v1289 = vpack.c.b16 %v781, %v777
      %v1290 = vpack.c.b16 %v786, %v782
      %v1291 = vpack.c.b16 %v787, %v783
      %v1292 = vpack.c.b16 %v788, %v784
      %v1293 = vpack.c.b16 %v789, %v785
      %v1294 = vpack.c.b16 %v794, %v790
      %v1295 = vpack.c.b16 %v795, %v791
      %v1296 = vpack.c.b16 %v796, %v792
      %v1297 = vpack.c.b16 %v797, %v793
      %v1298 = vpack.c.b16 %v802, %v798
      %v1299 = vpack.c.b16 %v803, %v799
      %v1300 = vpack.c.b16 %v804, %v800
      %v1301 = vpack.c.b16 %v805, %v801
      %v1302 = vpack.c.b16 %v810, %v806
      %v1303 = vpack.c.b16 %v811, %v807
      %v1304 = vpack.c.b16 %v812, %v808
      %v1305 = vpack.c.b16 %v813, %v809
      %v1306 = vpack.c.b16 %v818, %v814
      %v1307 = vpack.c.b16 %v819, %v815
      %v1308 = vpack.c.b16 %v820, %v816
      %v1309 = vpack.c.b16 %v821, %v817
      %v1310 = vpack.c.b16 %v826, %v822
      %v1311 = vpack.c.b16 %v827, %v823
      %v1312 = vpack.c.b16 %v828, %v824
      %v1313 = vpack.c.b16 %v829, %v825
      %v1314 = vpack.c.b16 %v834, %v830
      %v1315 = vpack.c.b16 %v835, %v831
      %v1316 = vpack.c.b16 %v836, %v832
      %v1317 = vpack.c.b16 %v837, %v833
      %v1318 = vpack.c.b16 %v842, %v838
      %v1319 = vpack.c.b16 %v843, %v839
      %v1320 = vpack.c.b16 %v844, %v840
      %v1321 = vpack.c.b16 %v845, %v841
      %v1322 = vpack.c.b16 %v850, %v846
      %v1323 = vpack.c.b16 %v851, %v847
      %v1324 = vpack.c.b16 %v852, %v848
      %v1325 = vpack.c.b16 %v853, %v849
      %v1326 = vpack.c.b16 %v858, %v854
      %v1327 = vpack.c.b16 %v859, %v855
      %v1328 = vpack.c.b16 %v860, %v856
      %v1329 = vpack.c.b16 %v861, %v857
      %v1330 = vpack.c.b16 %v866, %v862
      %v1331 = vpack.c.b16 %v867, %v863
      %v1332 = vpack.c.b16 %v868, %v864
      %v1333 = vpack.c.b16 %v869, %v865
      %v1334 = vpack.c.b16 %v874, %v870
      %v1335 = vpack.c.b16 %v875, %v871
      %v1336 = vpack.c.b16 %v876, %v872
      %v1337 = vpack.c.b16 %v877, %v873
      %v1338 = vpack.c.b16 %v882, %v878
      %v1339 = vpack.c.b16 %v883, %v879
      %v1340 = vpack.c.b16 %v884, %v880
      %v1341 = vpack.c.b16 %v885, %v881
      %v1342 = vpack.c.b16 %v890, %v886
      %v1343 = vpack.c.b16 %v891, %v887
      %v1344 = vpack.c.b16 %v892, %v888
      %v1345 = vpack.c.b16 %v893, %v889
      %v1346 = vpack.c.b16 %v898, %v894
      %v1347 = vpack.c.b16 %v899, %v895
      %v1348 = vpack.c.b16 %v900, %v896
      %v1349 = vpack.c.b16 %v901, %v897
      %v1350 = vpack.c.b16 %v906, %v902
      %v1351 = vpack.c.b16 %v907, %v903
      %v1352 = vpack.c.b16 %v908, %v904
      %v1353 = vpack.c.b16 %v909, %v905
      %v1354 = vpack.c.b16 %v914, %v910
      %v1355 = vpack.c.b16 %v915, %v911
      %v1356 = vpack.c.b16 %v916, %v912
      %v1357 = vpack.c.b16 %v917, %v913
      %v1358 = vpack.c.b16 %v922, %v918
      %v1359 = vpack.c.b16 %v923, %v919
      %v1360 = vpack.c.b16 %v924, %v920
      %v1361 = vpack.c.b16 %v925, %v921
      %v1362 = vpack.c.b16 %v930, %v926
      %v1363 = vpack.c.b16 %v931, %v927
      %v1364 = vpack.c.b16 %v932, %v928
      %v1365 = vpack.c.b16 %v933, %v929
      %v1366 = vpack.c.b16 %v938, %v934
      %v1367 = vpack.c.b16 %v939, %v935
      %v1368 = vpack.c.b16 %v940, %v936
      %v1369 = vpack.c.b16 %v941, %v937
      %v1370 = vpack.c.b16 %v946, %v942
      %v1371 = vpack.c.b16 %v947, %v943
      %v1372 = vpack.c.b16 %v948, %v944
      %v1373 = vpack.c.b16 %v949, %v945
      %v1374 = vpack.c.b16 %v954, %v950
      %v1375 = vpack.c.b16 %v955, %v951
      %v1376 = vpack.c.b16 %v956, %v952
      %v1377 = vpack.c.b16 %v957, %v953
      %v1378 = vpack.c.b16 %v962, %v958
      %v1379 = vpack.c.b16 %v963, %v959
      %v1380 = vpack.c.b16 %v964, %v960
      %v1381 = vpack.c.b16 %v965, %v961
      %v1382 = vpack.c.b16 %v970, %v966
      %v1383 = vpack.c.b16 %v971, %v967
      %v1384 = vpack.c.b16 %v972, %v968
      %v1385 = vpack.c.b16 %v973, %v969
      %v1386 = vpack.c.b16 %v978, %v974
      %v1387 = vpack.c.b16 %v979, %v975
      %v1388 = vpack.c.b16 %v980, %v976
      %v1389 = vpack.c.b16 %v981, %v977
      %v1390 = vpack.c.b16 %v986, %v982
      %v1391 = vpack.c.b16 %v987, %v983
      %v1392 = vpack.c.b16 %v988, %v984
      %v1393 = vpack.c.b16 %v989, %v985
      %v1394 = vpack.c.b16 %v994, %v990
      %v1395 = vpack.c.b16 %v995, %v991
      %v1396 = vpack.c.b16 %v996, %v992
      %v1397 = vpack.c.b16 %v997, %v993
      %v1398 = vpack.c.b16 %v1002, %v998
      %v1399 = vpack.c.b16 %v1003, %v999
      %v1400 = vpack.c.b16 %v1004, %v1000
      %v1401 = vpack.c.b16 %v1005, %v1001
      %v1402 = vpack.c.b16 %v1010, %v1006
      %v1403 = vpack.c.b16 %v1011, %v1007
      %v1404 = vpack.c.b16 %v1012, %v1008
      %v1405 = vpack.c.b16 %v1013, %v1009
      %v1406 = vpack.c.b16 %v1018, %v1014
      %v1407 = vpack.c.b16 %v1019, %v1015
      %v1408 = vpack.c.b16 %v1020, %v1016
      %v1409 = vpack.c.b16 %v1021, %v1017
      %v1410 = vpack.c.b16 %v1026, %v1022
      %v1411 = vpack.c.b16 %v1027, %v1023
      %v1412 = vpack.c.b16 %v1028, %v1024
      %v1413 = vpack.c.b16 %v1029, %v1025
      %v1414 = vpack.c.b16 %v1034, %v1030
      %v1415 = vpack.c.b16 %v1035, %v1031
      %v1416 = vpack.c.b16 %v1036, %v1032
      %v1417 = vpack.c.b16 %v1037, %v1033
      %v1418 = vpack.c.b16 %v1042, %v1038
      %v1419 = vpack.c.b16 %v1043, %v1039
      %v1420 = vpack.c.b16 %v1044, %v1040
      %v1421 = vpack.c.b16 %v1045, %v1041
      %v1422 = vpack.c.b16 %v1050, %v1046
      %v1423 = vpack.c.b16 %v1051, %v1047
      %v1424 = vpack.c.b16 %v1052, %v1048
      %v1425 = vpack.c.b16 %v1053, %v1049
      %v1426 = vpack.c.b16 %v1058, %v1054
      %v1427 = vpack.c.b16 %v1059, %v1055
      %v1428 = vpack.c.b16 %v1060, %v1056
      %v1429 = vpack.c.b16 %v1061, %v1057
      %v1430 = vpack.c.b16 %v1066, %v1062
      %v1431 = vpack.c.b16 %v1067, %v1063
      %v1432 = vpack.c.b16 %v1068, %v1064
      %v1433 = vpack.c.b16 %v1069, %v1065
      %v1434 = vpack.c.b16 %v1074, %v1070
      %v1435 = vpack.c.b16 %v1075, %v1071
      %v1436 = vpack.c.b16 %v1076, %v1072
      %v1437 = vpack.c.b16 %v1077, %v1073
      %v1438 = vpack.c.b16 %v1082, %v1078
      %v1439 = vpack.c.b16 %v1083, %v1079
      %v1440 = vpack.c.b16 %v1084, %v1080
      %v1441 = vpack.c.b16 %v1085, %v1081
      %v1442 = vpack.c.b16 %v1090, %v1086
      %v1443 = vpack.c.b16 %v1091, %v1087
      %v1444 = vpack.c.b16 %v1092, %v1088
      %v1445 = vpack.c.b16 %v1093, %v1089
      %v1446 = vpack.c.b16 %v1098, %v1094
      %v1447 = vpack.c.b16 %v1099, %v1095
      %v1448 = vpack.c.b16 %v1100, %v1096
      %v1449 = vpack.c.b16 %v1101, %v1097
      %v1450 = vpack.c.b16 %v1106, %v1102
      %v1451 = vpack.c.b16 %v1107, %v1103
      %v1452 = vpack.c.b16 %v1108, %v1104
      %v1453 = vpack.c.b16 %v1109, %v1105
      %v1454 = vpack.c.b16 %v1114, %v1110
      %v1455 = vpack.c.b16 %v1115, %v1111
      %v1456 = vpack.c.b16 %v1116, %v1112
      %v1457 = vpack.c.b16 %v1117, %v1113
      %v1458 = vpack.c.b16 %v1122, %v1118
      %v1459 = vpack.c.b16 %v1123, %v1119
      %v1460 = vpack.c.b16 %v1124, %v1120
      %v1461 = vpack.c.b16 %v1125, %v1121
      %v1462 = vpack.c.b16 %v1130, %v1126
      %v1463 = vpack.c.b16 %v1131, %v1127
      %v1464 = vpack.c.b16 %v1132, %v1128
      %v1465 = vpack.c.b16 %v1133, %v1129
      %v1466 = vpack.c.b16 %v1138, %v1134
      %v1467 = vpack.c.b16 %v1139, %v1135
      %v1468 = vpack.c.b16 %v1140, %v1136
      %v1469 = vpack.c.b16 %v1141, %v1137
      %v1470 = vpack.c.b16 %v1146, %v1142
      %v1471 = vpack.c.b16 %v1147, %v1143
      %v1472 = vpack.c.b16 %v1148, %v1144
      %v1473 = vpack.c.b16 %v1149, %v1145
      %v1474 = vpack.c.b16 %v1154, %v1150
      %v1475 = vpack.c.b16 %v1155, %v1151
      %v1476 = vpack.c.b16 %v1156, %v1152
      %v1477 = vpack.c.b16 %v1157, %v1153
      %v1478 = vpack.c.b16 %v1162, %v1158
      %v1479 = vpack.c.b16 %v1163, %v1159
      %v1480 = vpack.c.b16 %v1164, %v1160
      %v1481 = vpack.c.b16 %v1165, %v1161
      %v1482 = vpack.c.b16 %v1170, %v1166
      %v1483 = vpack.c.b16 %v1171, %v1167
      %v1484 = vpack.c.b16 %v1172, %v1168
      %v1485 = vpack.c.b16 %v1173, %v1169
      %v1486 = vpack.c.b16 %v1178, %v1174
      %v1487 = vpack.c.b16 %v1179, %v1175
      %v1488 = vpack.c.b16 %v1180, %v1176
      %v1489 = vpack.c.b16 %v1181, %v1177
      %v1490 = vpack.c.b16 %v1186, %v1182
      %v1491 = vpack.c.b16 %v1187, %v1183
      %v1492 = vpack.c.b16 %v1188, %v1184
      %v1493 = vpack.c.b16 %v1189, %v1185
      %v1494 = vpack.c.b16 %v1194, %v1190
      %v1495 = vpack.c.b16 %v1195, %v1191
      %v1496 = vpack.c.b16 %v1196, %v1192
      %v1497 = vpack.c.b16 %v1197, %v1193
      %v1498 = vpack.c.b16 %v1202, %v1198
      %v1499 = vpack.c.b16 %v1203, %v1199
      %v1500 = vpack.c.b16 %v1204, %v1200
      %v1501 = vpack.c.b16 %v1205, %v1201
      %v1502 = vpack.c.b16 %v1210, %v1206
      %v1503 = vpack.c.b16 %v1211, %v1207
      %v1504 = vpack.c.b16 %v1212, %v1208
      %v1505 = vpack.c.b16 %v1213, %v1209
      %v1506 = vpack.c.b16 %v1218, %v1214
      %v1507 = vpack.c.b16 %v1219, %v1215
      %v1508 = vpack.c.b16 %v1220, %v1216
      %v1509 = vpack.c.b16 %v1221, %v1217
      %v1510 = vpack.c.b16 %v1226, %v1222
      %v1511 = vpack.c.b16 %v1227, %v1223
      %v1512 = vpack.c.b16 %v1228, %v1224
      %v1513 = vpack.c.b16 %v1229, %v1225
      %v1514 = vpack.c.b16 %v1234, %v1230
      %v1515 = vpack.c.b16 %v1235, %v1231
      %v1516 = vpack.c.b16 %v1236, %v1232
      %v1517 = vpack.c.b16 %v1237, %v1233
      %v1518 = vpack.c.b16 %v1242, %v1238
      %v1519 = vpack.c.b16 %v1243, %v1239
      %v1520 = vpack.c.b16 %v1244, %v1240
      %v1521 = vpack.c.b16 %v1245, %v1241
      %v1522 = vpack.c.b16 %v1250, %v1246
      %v1523 = vpack.c.b16 %v1251, %v1247
      %v1524 = vpack.c.b16 %v1252, %v1248
      %v1525 = vpack.c.b16 %v1253, %v1249
      %v1526 = vpack.c.b16 %v1258, %v1254
      %v1527 = vpack.c.b16 %v1259, %v1255
      %v1528 = vpack.c.b16 %v1260, %v1256
      %v1529 = vpack.c.b16 %v1261, %v1257
      %v1530 = vpack.c.b16 %v1266, %v1262
      %v1531 = vpack.c.b16 %v1267, %v1263
      %v1532 = vpack.c.b16 %v1268, %v1264
      %v1533 = vpack.c.b16 %v1269, %v1265
      %v1534 = vpack.c.b16 %v1274, %v1270
      %v1535 = vpack.c.b16 %v1275, %v1271
      %v1536 = vpack.c.b16 %v1276, %v1272
      %v1537 = vpack.c.b16 %v1277, %v1273
      %v1538 = vpack.c.b16 %v1282, %v1278
      %v1539 = vpack.c.b16 %v1283, %v1279
      %v1540 = vpack.c.b16 %v1284, %v1280
      %v1541 = vpack.c.b16 %v1285, %v1281
      %1798 = vmatprep.subr.bf16.mxu0 %v1287
      %1799 = vmatpush1.bf16.msra.mxu0 %v1286
      %1800 = vmatprep.subr.bf16.mxu0 %v1291
      %1801 = vmatpush1.bf16.msra.mxu0 %v1290
      %1802 = vmatprep.subr.bf16.mxu0 %v1295
      %1803 = vmatpush1.bf16.msra.mxu0 %v1294
      %1804 = vmatprep.subr.bf16.mxu0 %v1299
      %1805 = vmatpush1.bf16.msra.mxu0 %v1298
      %1806 = vmatprep.subr.bf16.mxu0 %v1303
      %1807 = vmatpush1.bf16.msra.mxu0 %v1302
      %1808 = vmatprep.subr.bf16.mxu0 %v1307
      %1809 = vmatpush1.bf16.msra.mxu0 %v1306
      %1810 = vmatprep.subr.bf16.mxu0 %v1311
      %1811 = vmatpush1.bf16.msra.mxu0 %v1310
      %1812 = vmatprep.subr.bf16.mxu0 %v1315
      %1813 = vmatpush1.bf16.msra.mxu0 %v1314
      %1814 = vmatprep.subr.bf16.mxu0 %v1319
      %1815 = vmatpush1.bf16.msra.mxu0 %v1318
      %1816 = vmatprep.subr.bf16.mxu0 %v1323
      %1817 = vmatpush1.bf16.msra.mxu0 %v1322
      %1818 = vmatprep.subr.bf16.mxu0 %v1327
      %1819 = vmatpush1.bf16.msra.mxu0 %v1326
      %1820 = vmatprep.subr.bf16.mxu0 %v1331
      %1821 = vmatpush1.bf16.msra.mxu0 %v1330
      %1822 = vmatprep.subr.bf16.mxu0 %v1335
      %1823 = vmatpush1.bf16.msra.mxu0 %v1334
      %1824 = vmatprep.subr.bf16.mxu0 %v1339
      %1825 = vmatpush1.bf16.msra.mxu0 %v1338
      %1826 = vmatprep.subr.bf16.mxu0 %v1343
      %1827 = vmatpush1.bf16.msra.mxu0 %v1342
      %1828 = vmatprep.subr.bf16.mxu0 %v1347
      %1829 = vmatpush1.bf16.msra.mxu0 %v1346
      %1830 = vmatprep.mubr.bf16.mxu0 %v233
      %1831 = vmatmul.mubr.bf16.gmra.mrb[0].mxu0 %v232
      %v1832 = vpop.f32.mrb[0].mxu0
      %v1833 = vadd.f32 %v501, %v1832
      %v1834 = vpop.f32.mrb[0].mxu0
      %v1835 = vadd.f32 %v505, %v1834
      %v1836 = vpop.f32.mrb[0].mxu0
      %v1837 = vpop.f32.mrb[0].mxu0
      %1838 = vdwg.mxu0
      %1839 = vmatprep.subr.bf16.mxu0 %v1351
      %1840 = vmatpush1.bf16.msra.mxu0 %v1350
      %1841 = vmatprep.subr.bf16.mxu0 %v1355
      %1842 = vmatpush1.bf16.msra.mxu0 %v1354
      %1843 = vmatprep.subr.bf16.mxu0 %v1359
      %1844 = vmatpush1.bf16.msra.mxu0 %v1358
      %1845 = vmatprep.subr.bf16.mxu0 %v1363
      %1846 = vmatpush1.bf16.msra.mxu0 %v1362
      %1847 = vmatprep.subr.bf16.mxu0 %v1367
      %1848 = vmatpush1.bf16.msra.mxu0 %v1366
      %1849 = vmatprep.subr.bf16.mxu0 %v1371
      %1850 = vmatpush1.bf16.msra.mxu0 %v1370
      %1851 = vmatprep.subr.bf16.mxu0 %v1375
      %1852 = vmatpush1.bf16.msra.mxu0 %v1374
      %1853 = vmatprep.subr.bf16.mxu0 %v1379
      %1854 = vmatpush1.bf16.msra.mxu0 %v1378
      %1855 = vmatprep.subr.bf16.mxu0 %v1383
      %1856 = vmatpush1.bf16.msra.mxu0 %v1382
      %1857 = vmatprep.subr.bf16.mxu0 %v1387
      %1858 = vmatpush1.bf16.msra.mxu0 %v1386
      %1859 = vmatprep.subr.bf16.mxu0 %v1391
      %1860 = vmatpush1.bf16.msra.mxu0 %v1390
      %1861 = vmatprep.subr.bf16.mxu0 %v1395
      %1862 = vmatpush1.bf16.msra.mxu0 %v1394
      %1863 = vmatprep.subr.bf16.mxu0 %v1399
      %1864 = vmatpush1.bf16.msra.mxu0 %v1398
      %1865 = vmatprep.subr.bf16.mxu0 %v1403
      %1866 = vmatpush1.bf16.msra.mxu0 %v1402
      %1867 = vmatprep.subr.bf16.mxu0 %v1407
      %1868 = vmatpush1.bf16.msra.mxu0 %v1406
      %1869 = vmatprep.subr.bf16.mxu0 %v1411
      %1870 = vmatpush1.bf16.msra.mxu0 %v1410
      %1871 = vmatprep.mubr.bf16.mxu0 %v235
      %1872 = vmatmul.mubr.bf16.gmra.mrb[0].mxu0 %v234
      %v1873 = vpop.f32.mrb[0].mxu0
      %v1874 = vadd.f32 %v1833, %v1873
      %v1875 = vpop.f32.mrb[0].mxu0
      %v1876 = vadd.f32 %v1835, %v1875
      %v1877 = vpop.f32.mrb[0].mxu0
      %v1878 = vpop.f32.mrb[0].mxu0
      %1879 = vdwg.mxu0
      %1880 = vmatprep.subr.bf16.mxu0 %v1415
      %1881 = vmatpush1.bf16.msra.mxu0 %v1414
      %1882 = vmatprep.subr.bf16.mxu0 %v1419
      %1883 = vmatpush1.bf16.msra.mxu0 %v1418
      %1884 = vmatprep.subr.bf16.mxu0 %v1423
      %1885 = vmatpush1.bf16.msra.mxu0 %v1422
      %1886 = vmatprep.subr.bf16.mxu0 %v1427
      %1887 = vmatpush1.bf16.msra.mxu0 %v1426
      %1888 = vmatprep.subr.bf16.mxu0 %v1431
      %1889 = vmatpush1.bf16.msra.mxu0 %v1430
      %1890 = vmatprep.subr.bf16.mxu0 %v1435
      %1891 = vmatpush1.bf16.msra.mxu0 %v1434
      %1892 = vmatprep.subr.bf16.mxu0 %v1439
      %1893 = vmatpush1.bf16.msra.mxu0 %v1438
      %1894 = vmatprep.subr.bf16.mxu0 %v1443
      %1895 = vmatpush1.bf16.msra.mxu0 %v1442
      %1896 = vmatprep.subr.bf16.mxu0 %v1447
      %1897 = vmatpush1.bf16.msra.mxu0 %v1446
      %1898 = vmatprep.subr.bf16.mxu0 %v1451
      %1899 = vmatpush1.bf16.msra.mxu0 %v1450
      %1900 = vmatprep.subr.bf16.mxu0 %v1455
      %1901 = vmatpush1.bf16.msra.mxu0 %v1454
      %1902 = vmatprep.subr.bf16.mxu0 %v1459
      %1903 = vmatpush1.bf16.msra.mxu0 %v1458
      %1904 = vmatprep.subr.bf16.mxu0 %v1463
      %1905 = vmatpush1.bf16.msra.mxu0 %v1462
      %1906 = vmatprep.subr.bf16.mxu0 %v1467
      %1907 = vmatpush1.bf16.msra.mxu0 %v1466
      %1908 = vmatprep.subr.bf16.mxu0 %v1471
      %1909 = vmatpush1.bf16.msra.mxu0 %v1470
      %1910 = vmatprep.subr.bf16.mxu0 %v1475
      %1911 = vmatpush1.bf16.msra.mxu0 %v1474
      %1912 = vmatprep.mubr.bf16.mxu0 %v237
      %1913 = vmatmul.mubr.bf16.gmra.mrb[0].mxu0 %v236
      %v1914 = vpop.f32.mrb[0].mxu0
      %v1915 = vadd.f32 %v1874, %v1914
      %v1916 = vpop.f32.mrb[0].mxu0
      %v1917 = vadd.f32 %v1876, %v1916
      %v1918 = vpop.f32.mrb[0].mxu0
      %v1919 = vpop.f32.mrb[0].mxu0
      %1920 = vdwg.mxu0
      %1921 = vmatprep.subr.bf16.mxu0 %v1479
      %1922 = vmatpush1.bf16.msra.mxu0 %v1478
      %1923 = vmatprep.subr.bf16.mxu0 %v1483
      %1924 = vmatpush1.bf16.msra.mxu0 %v1482
      %1925 = vmatprep.subr.bf16.mxu0 %v1487
      %1926 = vmatpush1.bf16.msra.mxu0 %v1486
      %1927 = vmatprep.subr.bf16.mxu0 %v1491
      %1928 = vmatpush1.bf16.msra.mxu0 %v1490
      %1929 = vmatprep.subr.bf16.mxu0 %v1495
      %1930 = vmatpush1.bf16.msra.mxu0 %v1494
      %1931 = vmatprep.subr.bf16.mxu0 %v1499
      %1932 = vmatpush1.bf16.msra.mxu0 %v1498
      %1933 = vmatprep.subr.bf16.mxu0 %v1503
      %1934 = vmatpush1.bf16.msra.mxu0 %v1502
      %1935 = vmatprep.subr.bf16.mxu0 %v1507
      %1936 = vmatpush1.bf16.msra.mxu0 %v1506
      %1937 = vmatprep.subr.bf16.mxu0 %v1511
      %1938 = vmatpush1.bf16.msra.mxu0 %v1510
      %1939 = vmatprep.subr.bf16.mxu0 %v1515
      %1940 = vmatpush1.bf16.msra.mxu0 %v1514
      %1941 = vmatprep.subr.bf16.mxu0 %v1519
      %1942 = vmatpush1.bf16.msra.mxu0 %v1518
      %1943 = vmatprep.subr.bf16.mxu0 %v1523
      %1944 = vmatpush1.bf16.msra.mxu0 %v1522
      %1945 = vmatprep.subr.bf16.mxu0 %v1527
      %1946 = vmatpush1.bf16.msra.mxu0 %v1526
      %1947 = vmatprep.subr.bf16.mxu0 %v1531
      %1948 = vmatpush1.bf16.msra.mxu0 %v1530
      %1949 = vmatprep.subr.bf16.mxu0 %v1535
      %1950 = vmatpush1.bf16.msra.mxu0 %v1534
      %1951 = vmatprep.subr.bf16.mxu0 %v1539
      %1952 = vmatpush1.bf16.msra.mxu0 %v1538
      %1953 = vmatprep.mubr.bf16.mxu0 %v239
      %1954 = vmatmul.mubr.bf16.gmra.mrb[0].mxu0 %v238
      %v1955 = vpop.f32.mrb[0].mxu0
      %v1956 = vadd.f32 %v1915, %v1955
      %v1957 = vpop.f32.mrb[0].mxu0
      %v1958 = vadd.f32 %v1917, %v1957
      %v1959 = vpop.f32.mrb[0].mxu0
      %v1960 = vpop.f32.mrb[0].mxu0
      %1961 = vdwg.mxu0
      %1962 = vmatprep.subr.bf16.mxu0 %v1289
      %1963 = vmatpush1.bf16.msra.mxu0 %v1288
      %1964 = vmatprep.subr.bf16.mxu0 %v1293
      %1965 = vmatpush1.bf16.msra.mxu0 %v1292
      %1966 = vmatprep.subr.bf16.mxu0 %v1297
      %1967 = vmatpush1.bf16.msra.mxu0 %v1296
      %1968 = vmatprep.subr.bf16.mxu0 %v1301
      %1969 = vmatpush1.bf16.msra.mxu0 %v1300
      %1970 = vmatprep.subr.bf16.mxu0 %v1305
      %1971 = vmatpush1.bf16.msra.mxu0 %v1304
      %1972 = vmatprep.subr.bf16.mxu0 %v1309
      %1973 = vmatpush1.bf16.msra.mxu0 %v1308
      %1974 = vmatprep.subr.bf16.mxu0 %v1313
      %1975 = vmatpush1.bf16.msra.mxu0 %v1312
      %1976 = vmatprep.subr.bf16.mxu0 %v1317
      %1977 = vmatpush1.bf16.msra.mxu0 %v1316
      %1978 = vmatprep.subr.bf16.mxu0 %v1321
      %1979 = vmatpush1.bf16.msra.mxu0 %v1320
      %1980 = vmatprep.subr.bf16.mxu0 %v1325
      %1981 = vmatpush1.bf16.msra.mxu0 %v1324
      %1982 = vmatprep.subr.bf16.mxu0 %v1329
      %1983 = vmatpush1.bf16.msra.mxu0 %v1328
      %1984 = vmatprep.subr.bf16.mxu0 %v1333
      %1985 = vmatpush1.bf16.msra.mxu0 %v1332
      %1986 = vmatprep.subr.bf16.mxu0 %v1337
      %1987 = vmatpush1.bf16.msra.mxu0 %v1336
      %1988 = vmatprep.subr.bf16.mxu0 %v1341
      %1989 = vmatpush1.bf16.msra.mxu0 %v1340
      %1990 = vmatprep.subr.bf16.mxu0 %v1345
      %1991 = vmatpush1.bf16.msra.mxu0 %v1344
      %1992 = vmatprep.subr.bf16.mxu0 %v1349
      %1993 = vmatpush1.bf16.msra.mxu0 %v1348
      %1994 = vmatprep.mubr.bf16.mxu0 %v233
      %1995 = vmatmul.mubr.bf16.gmra.mrb[0].mxu0 %v232
      %v1996 = vpop.f32.mrb[0].mxu0
      %v1997 = vadd.f32 %v509, %v1996
      %v1998 = vpop.f32.mrb[0].mxu0
      %v1999 = vadd.f32 %v513, %v1998
      %v2000 = vpop.f32.mrb[0].mxu0
      %v2001 = vpop.f32.mrb[0].mxu0
      %2002 = vdwg.mxu0
      %2003 = vmatprep.subr.bf16.mxu0 %v1353
      %2004 = vmatpush1.bf16.msra.mxu0 %v1352
      %2005 = vmatprep.subr.bf16.mxu0 %v1357
      %2006 = vmatpush1.bf16.msra.mxu0 %v1356
      %2007 = vmatprep.subr.bf16.mxu0 %v1361
      %2008 = vmatpush1.bf16.msra.mxu0 %v1360
      %2009 = vmatprep.subr.bf16.mxu0 %v1365
      %2010 = vmatpush1.bf16.msra.mxu0 %v1364
      %2011 = vmatprep.subr.bf16.mxu0 %v1369
      %2012 = vmatpush1.bf16.msra.mxu0 %v1368
      %2013 = vmatprep.subr.bf16.mxu0 %v1373
      %2014 = vmatpush1.bf16.msra.mxu0 %v1372
      %2015 = vmatprep.subr.bf16.mxu0 %v1377
      %2016 = vmatpush1.bf16.msra.mxu0 %v1376
      %2017 = vmatprep.subr.bf16.mxu0 %v1381
      %2018 = vmatpush1.bf16.msra.mxu0 %v1380
      %2019 = vmatprep.subr.bf16.mxu0 %v1385
      %2020 = vmatpush1.bf16.msra.mxu0 %v1384
      %2021 = vmatprep.subr.bf16.mxu0 %v1389
      %2022 = vmatpush1.bf16.msra.mxu0 %v1388
      %2023 = vmatprep.subr.bf16.mxu0 %v1393
      %2024 = vmatpush1.bf16.msra.mxu0 %v1392
      %2025 = vmatprep.subr.bf16.mxu0 %v1397
      %2026 = vmatpush1.bf16.msra.mxu0 %v1396
      %2027 = vmatprep.subr.bf16.mxu0 %v1401
      %2028 = vmatpush1.bf16.msra.mxu0 %v1400
      %2029 = vmatprep.subr.bf16.mxu0 %v1405
      %2030 = vmatpush1.bf16.msra.mxu0 %v1404
      %2031 = vmatprep.subr.bf16.mxu0 %v1409
      %2032 = vmatpush1.bf16.msra.mxu0 %v1408
      %2033 = vmatprep.subr.bf16.mxu0 %v1413
      %2034 = vmatpush1.bf16.msra.mxu0 %v1412
      %2035 = vmatprep.mubr.bf16.mxu0 %v235
      %2036 = vmatmul.mubr.bf16.gmra.mrb[0].mxu0 %v234
      %v2037 = vpop.f32.mrb[0].mxu0
      %v2038 = vadd.f32 %v1997, %v2037
      %v2039 = vpop.f32.mrb[0].mxu0
      %v2040 = vadd.f32 %v1999, %v2039
      %v2041 = vpop.f32.mrb[0].mxu0
      %v2042 = vpop.f32.mrb[0].mxu0
      %2043 = vdwg.mxu0
      %2044 = vmatprep.subr.bf16.mxu0 %v1417
      %2045 = vmatpush1.bf16.msra.mxu0 %v1416
      %2046 = vmatprep.subr.bf16.mxu0 %v1421
      %2047 = vmatpush1.bf16.msra.mxu0 %v1420
      %2048 = vmatprep.subr.bf16.mxu0 %v1425
      %2049 = vmatpush1.bf16.msra.mxu0 %v1424
      %2050 = vmatprep.subr.bf16.mxu0 %v1429
      %2051 = vmatpush1.bf16.msra.mxu0 %v1428
      %2052 = vmatprep.subr.bf16.mxu0 %v1433
      %2053 = vmatpush1.bf16.msra.mxu0 %v1432
      %2054 = vmatprep.subr.bf16.mxu0 %v1437
      %2055 = vmatpush1.bf16.msra.mxu0 %v1436
      %2056 = vmatprep.subr.bf16.mxu0 %v1441
      %2057 = vmatpush1.bf16.msra.mxu0 %v1440
      %2058 = vmatprep.subr.bf16.mxu0 %v1445
      %2059 = vmatpush1.bf16.msra.mxu0 %v1444
      %2060 = vmatprep.subr.bf16.mxu0 %v1449
      %2061 = vmatpush1.bf16.msra.mxu0 %v1448
      %2062 = vmatprep.subr.bf16.mxu0 %v1453
      %2063 = vmatpush1.bf16.msra.mxu0 %v1452
      %2064 = vmatprep.subr.bf16.mxu0 %v1457
      %2065 = vmatpush1.bf16.msra.mxu0 %v1456
      %2066 = vmatprep.subr.bf16.mxu0 %v1461
      %2067 = vmatpush1.bf16.msra.mxu0 %v1460
      %2068 = vmatprep.subr.bf16.mxu0 %v1465
      %2069 = vmatpush1.bf16.msra.mxu0 %v1464
      %2070 = vmatprep.subr.bf16.mxu0 %v1469
      %2071 = vmatpush1.bf16.msra.mxu0 %v1468
      %2072 = vmatprep.subr.bf16.mxu0 %v1473
      %2073 = vmatpush1.bf16.msra.mxu0 %v1472
      %2074 = vmatprep.subr.bf16.mxu0 %v1477
      %2075 = vmatpush1.bf16.msra.mxu0 %v1476
      %2076 = vmatprep.mubr.bf16.mxu0 %v237
      %2077 = vmatmul.mubr.bf16.gmra.mrb[0].mxu0 %v236
      %v2078 = vpop.f32.mrb[0].mxu0
      %v2079 = vadd.f32 %v2038, %v2078
      %v2080 = vpop.f32.mrb[0].mxu0
      %v2081 = vadd.f32 %v2040, %v2080
      %v2082 = vpop.f32.mrb[0].mxu0
      %v2083 = vpop.f32.mrb[0].mxu0
      %2084 = vdwg.mxu0
      %2085 = vmatprep.subr.bf16.mxu0 %v1481
      %2086 = vmatpush1.bf16.msra.mxu0 %v1480
      %2087 = vmatprep.subr.bf16.mxu0 %v1485
      %2088 = vmatpush1.bf16.msra.mxu0 %v1484
      %2089 = vmatprep.subr.bf16.mxu0 %v1489
      %2090 = vmatpush1.bf16.msra.mxu0 %v1488
      %2091 = vmatprep.subr.bf16.mxu0 %v1493
      %2092 = vmatpush1.bf16.msra.mxu0 %v1492
      %2093 = vmatprep.subr.bf16.mxu0 %v1497
      %2094 = vmatpush1.bf16.msra.mxu0 %v1496
      %2095 = vmatprep.subr.bf16.mxu0 %v1501
      %2096 = vmatpush1.bf16.msra.mxu0 %v1500
      %2097 = vmatprep.subr.bf16.mxu0 %v1505
      %2098 = vmatpush1.bf16.msra.mxu0 %v1504
      %2099 = vmatprep.subr.bf16.mxu0 %v1509
      %2100 = vmatpush1.bf16.msra.mxu0 %v1508
      %2101 = vmatprep.subr.bf16.mxu0 %v1513
      %2102 = vmatpush1.bf16.msra.mxu0 %v1512
      %2103 = vmatprep.subr.bf16.mxu0 %v1517
      %2104 = vmatpush1.bf16.msra.mxu0 %v1516
      %2105 = vmatprep.subr.bf16.mxu0 %v1521
      %2106 = vmatpush1.bf16.msra.mxu0 %v1520
      %2107 = vmatprep.subr.bf16.mxu0 %v1525
      %2108 = vmatpush1.bf16.msra.mxu0 %v1524
      %2109 = vmatprep.subr.bf16.mxu0 %v1529
      %2110 = vmatpush1.bf16.msra.mxu0 %v1528
      %2111 = vmatprep.subr.bf16.mxu0 %v1533
      %2112 = vmatpush1.bf16.msra.mxu0 %v1532
      %2113 = vmatprep.subr.bf16.mxu0 %v1537
      %2114 = vmatpush1.bf16.msra.mxu0 %v1536
      %2115 = vmatprep.subr.bf16.mxu0 %v1541
      %2116 = vmatpush1.bf16.msra.mxu0 %v1540
      %2117 = vmatprep.mubr.bf16.mxu0 %v239
      %2118 = vmatmul.mubr.bf16.gmra.mrb[0].mxu0 %v238
      %v2119 = vpop.f32.mrb[0].mxu0
      %v2120 = vadd.f32 %v2079, %v2119
      %v2121 = vpop.f32.mrb[0].mxu0
      %v2122 = vadd.f32 %v2081, %v2121
      %v2123 = vpop.f32.mrb[0].mxu0
      %v2124 = vpop.f32.mrb[0].mxu0
      %2125 = vdwg.mxu0
      %v2126 = vmax.f32 %v1956, 0.0
      %v2127 = vmax.f32 %v1958, 0.0
      %v2128 = vmax.f32 %v2120, 0.0
      %v2129 = vmax.f32 %v2122, 0.0
      %v2130 = vpack.c.bf16 %v2126, %v2126
      %v2131 = vpack.c.bf16 %v2127, %v2127
      %v2132 = vpack.c.bf16 %v2128, %v2128
      %v2133 = vpack.c.bf16 %v2129, %v2129
      %v2134 = vld [vmem:[%s3] sm:$0xf]
      %v2135 = vld [vmem:[%s3 + $0x4] sm:$0xf]
      %v2136 = vld [vmem:[%s3 + $0x8] sm:$0xf]
      %v2137 = vld [vmem:[%s3 + $0xc] sm:$0xf]
      %v2138 = vld [vmem:[%s3 + $0x10] sm:$0xf]
      %v2139 = vld [vmem:[%s3 + $0x14] sm:$0xf]
      %v2140 = vld [vmem:[%s3 + $0x18] sm:$0xf]
      %v2141 = vld [vmem:[%s3 + $0x1c] sm:$0xf]
      %v2142 = vld [vmem:[%s3 + $0x20] sm:$0xf]
      %v2143 = vld [vmem:[%s3 + $0x24] sm:$0xf]
      %v2144 = vld [vmem:[%s3 + $0x28] sm:$0xf]
      %v2145 = vld [vmem:[%s3 + $0x2c] sm:$0xf]
      %v2146 = vld [vmem:[%s3 + $0x30] sm:$0xf]
      %v2147 = vld [vmem:[%s3 + $0x34] sm:$0xf]
      %v2148 = vld [vmem:[%s3 + $0x38] sm:$0xf]
      %v2149 = vld [vmem:[%s3 + $0x3c] sm:$0xf]
      %v2150 = vld [vmem:[%s3 + $0x40] sm:$0xf]
      %v2151 = vld [vmem:[%s3 + $0x44] sm:$0xf]
      %v2152 = vld [vmem:[%s3 + $0x48] sm:$0xf]
      %v2153 = vld [vmem:[%s3 + $0x4c] sm:$0xf]
      %v2154 = vld [vmem:[%s3 + $0x50] sm:$0xf]
      %v2155 = vld [vmem:[%s3 + $0x54] sm:$0xf]
      %v2156 = vld [vmem:[%s3 + $0x58] sm:$0xf]
      %v2157 = vld [vmem:[%s3 + $0x5c] sm:$0xf]
      %v2158 = vld [vmem:[%s3 + $0x60] sm:$0xf]
      %v2159 = vld [vmem:[%s3 + $0x64] sm:$0xf]
      %v2160 = vld [vmem:[%s3 + $0x68] sm:$0xf]
      %v2161 = vld [vmem:[%s3 + $0x6c] sm:$0xf]
      %v2162 = vld [vmem:[%s3 + $0x70] sm:$0xf]
      %v2163 = vld [vmem:[%s3 + $0x74] sm:$0xf]
      %v2164 = vld [vmem:[%s3 + $0x78] sm:$0xf]
      %v2165 = vld [vmem:[%s3 + $0x7c] sm:$0xf]
      %v2166 = vld [vmem:[%s3 + $0x80] sm:$0xf]
      %v2167 = vld [vmem:[%s3 + $0x84] sm:$0xf]
      %v2168 = vld [vmem:[%s3 + $0x88] sm:$0xf]
      %v2169 = vld [vmem:[%s3 + $0x8c] sm:$0xf]
      %v2170 = vld [vmem:[%s3 + $0x90] sm:$0xf]
      %v2171 = vld [vmem:[%s3 + $0x94] sm:$0xf]
      %v2172 = vld [vmem:[%s3 + $0x98] sm:$0xf]
      %v2173 = vld [vmem:[%s3 + $0x9c] sm:$0xf]
      %v2174 = vld [vmem:[%s3 + $0xa0] sm:$0xf]
      %v2175 = vld [vmem:[%s3 + $0xa4] sm:$0xf]
      %v2176 = vld [vmem:[%s3 + $0xa8] sm:$0xf]
      %v2177 = vld [vmem:[%s3 + $0xac] sm:$0xf]
      %v2178 = vld [vmem:[%s3 + $0xb0] sm:$0xf]
      %v2179 = vld [vmem:[%s3 + $0xb4] sm:$0xf]
      %v2180 = vld [vmem:[%s3 + $0xb8] sm:$0xf]
      %v2181 = vld [vmem:[%s3 + $0xbc] sm:$0xf]
      %v2182 = vld [vmem:[%s3 + $0xc0] sm:$0xf]
      %v2183 = vld [vmem:[%s3 + $0xc4] sm:$0xf]
      %v2184 = vld [vmem:[%s3 + $0xc8] sm:$0xf]
      %v2185 = vld [vmem:[%s3 + $0xcc] sm:$0xf]
      %v2186 = vld [vmem:[%s3 + $0xd0] sm:$0xf]
      %v2187 = vld [vmem:[%s3 + $0xd4] sm:$0xf]
      %v2188 = vld [vmem:[%s3 + $0xd8] sm:$0xf]
      %v2189 = vld [vmem:[%s3 + $0xdc] sm:$0xf]
      %v2190 = vld [vmem:[%s3 + $0xe0] sm:$0xf]
      %v2191 = vld [vmem:[%s3 + $0xe4] sm:$0xf]
      %v2192 = vld [vmem:[%s3 + $0xe8] sm:$0xf]
      %v2193 = vld [vmem:[%s3 + $0xec] sm:$0xf]
      %v2194 = vld [vmem:[%s3 + $0xf0] sm:$0xf]
      %v2195 = vld [vmem:[%s3 + $0xf4] sm:$0xf]
      %v2196 = vld [vmem:[%s3 + $0xf8] sm:$0xf]
      %v2197 = vld [vmem:[%s3 + $0xfc] sm:$0xf]
      %v2198 = vld [vmem:[%s4] sm:$0x1]
      %v2200 = vlaneseq
      %v2201 = vshrl.u32 %v2200, 7
      %v2202 = vsub.s32 0, %v2201
      %v2203 = vrot.slane %v2198, %v2202
      %v2269 = vunpack.c.l.b16 %v2134
      %v2270 = vunpack.c.l.b16 %v2135
      %v2271 = vunpack.c.l.b16 %v2136
      %v2272 = vunpack.c.l.b16 %v2137
      %v2273 = vunpack.c.l.b16 %v2138
      %v2274 = vunpack.c.l.b16 %v2139
      %v2275 = vunpack.c.l.b16 %v2140
      %v2276 = vunpack.c.l.b16 %v2141
      %v2277 = vunpack.c.l.b16 %v2142
      %v2278 = vunpack.c.l.b16 %v2143
      %v2279 = vunpack.c.l.b16 %v2144
      %v2280 = vunpack.c.l.b16 %v2145
      %v2281 = vunpack.c.l.b16 %v2146
      %v2282 = vunpack.c.l.b16 %v2147
      %v2283 = vunpack.c.l.b16 %v2148
      %v2284 = vunpack.c.l.b16 %v2149
      %v2285 = vunpack.c.l.b16 %v2150
      %v2286 = vunpack.c.l.b16 %v2151
      %v2287 = vunpack.c.l.b16 %v2152
      %v2288 = vunpack.c.l.b16 %v2153
      %v2289 = vunpack.c.l.b16 %v2154
      %v2290 = vunpack.c.l.b16 %v2155
      %v2291 = vunpack.c.l.b16 %v2156
      %v2292 = vunpack.c.l.b16 %v2157
      %v2293 = vunpack.c.l.b16 %v2158
      %v2294 = vunpack.c.l.b16 %v2159
      %v2295 = vunpack.c.l.b16 %v2160
      %v2296 = vunpack.c.l.b16 %v2161
      %v2297 = vunpack.c.l.b16 %v2162
      %v2298 = vunpack.c.l.b16 %v2163
      %v2299 = vunpack.c.l.b16 %v2164
      %v2300 = vunpack.c.l.b16 %v2165
      %v2301 = vunpack.c.l.b16 %v2166
      %v2302 = vunpack.c.l.b16 %v2167
      %v2303 = vunpack.c.l.b16 %v2168
      %v2304 = vunpack.c.l.b16 %v2169
      %v2305 = vunpack.c.l.b16 %v2170
      %v2306 = vunpack.c.l.b16 %v2171
      %v2307 = vunpack.c.l.b16 %v2172
      %v2308 = vunpack.c.l.b16 %v2173
      %v2309 = vunpack.c.l.b16 %v2174
      %v2310 = vunpack.c.l.b16 %v2175
      %v2311 = vunpack.c.l.b16 %v2176
      %v2312 = vunpack.c.l.b16 %v2177
      %v2313 = vunpack.c.l.b16 %v2178
      %v2314 = vunpack.c.l.b16 %v2179
      %v2315 = vunpack.c.l.b16 %v2180
      %v2316 = vunpack.c.l.b16 %v2181
      %v2317 = vunpack.c.l.b16 %v2182
      %v2318 = vunpack.c.l.b16 %v2183
      %v2319 = vunpack.c.l.b16 %v2184
      %v2320 = vunpack.c.l.b16 %v2185
      %v2321 = vunpack.c.l.b16 %v2186
      %v2322 = vunpack.c.l.b16 %v2187
      %v2323 = vunpack.c.l.b16 %v2188
      %v2324 = vunpack.c.l.b16 %v2189
      %v2325 = vunpack.c.l.b16 %v2190
      %v2326 = vunpack.c.l.b16 %v2191
      %v2327 = vunpack.c.l.b16 %v2192
      %v2328 = vunpack.c.l.b16 %v2193
      %v2329 = vunpack.c.l.b16 %v2194
      %v2330 = vunpack.c.l.b16 %v2195
      %v2331 = vunpack.c.l.b16 %v2196
      %v2332 = vunpack.c.l.b16 %v2197
      %v2333 = vpack.c.b16 %v2270, %v2269
      %v2334 = vpack.c.b16 %v2272, %v2271
      %v2335 = vpack.c.b16 %v2274, %v2273
      %v2336 = vpack.c.b16 %v2276, %v2275
      %v2337 = vpack.c.b16 %v2278, %v2277
      %v2338 = vpack.c.b16 %v2280, %v2279
      %v2339 = vpack.c.b16 %v2282, %v2281
      %v2340 = vpack.c.b16 %v2284, %v2283
      %v2341 = vpack.c.b16 %v2286, %v2285
      %v2342 = vpack.c.b16 %v2288, %v2287
      %v2343 = vpack.c.b16 %v2290, %v2289
      %v2344 = vpack.c.b16 %v2292, %v2291
      %v2345 = vpack.c.b16 %v2294, %v2293
      %v2346 = vpack.c.b16 %v2296, %v2295
      %v2347 = vpack.c.b16 %v2298, %v2297
      %v2348 = vpack.c.b16 %v2300, %v2299
      %v2349 = vpack.c.b16 %v2302, %v2301
      %v2350 = vpack.c.b16 %v2304, %v2303
      %v2351 = vpack.c.b16 %v2306, %v2305
      %v2352 = vpack.c.b16 %v2308, %v2307
      %v2353 = vpack.c.b16 %v2310, %v2309
      %v2354 = vpack.c.b16 %v2312, %v2311
      %v2355 = vpack.c.b16 %v2314, %v2313
      %v2356 = vpack.c.b16 %v2316, %v2315
      %v2357 = vpack.c.b16 %v2318, %v2317
      %v2358 = vpack.c.b16 %v2320, %v2319
      %v2359 = vpack.c.b16 %v2322, %v2321
      %v2360 = vpack.c.b16 %v2324, %v2323
      %v2361 = vpack.c.b16 %v2326, %v2325
      %v2362 = vpack.c.b16 %v2328, %v2327
      %v2363 = vpack.c.b16 %v2330, %v2329
      %v2364 = vpack.c.b16 %v2332, %v2331
      %2397 = vmatprep.subr.bf16.mxu0 0
      %2398 = vmatpush1.bf16.msra.mxu0 %v2333
      %2399 = vmatprep.subr.bf16.mxu0 0
      %2400 = vmatpush1.bf16.msra.mxu0 %v2334
      %2401 = vmatprep.subr.bf16.mxu0 0
      %2402 = vmatpush1.bf16.msra.mxu0 %v2335
      %2403 = vmatprep.subr.bf16.mxu0 0
      %2404 = vmatpush1.bf16.msra.mxu0 %v2336
      %2405 = vmatprep.subr.bf16.mxu0 0
      %2406 = vmatpush1.bf16.msra.mxu0 %v2337
      %2407 = vmatprep.subr.bf16.mxu0 0
      %2408 = vmatpush1.bf16.msra.mxu0 %v2338
      %2409 = vmatprep.subr.bf16.mxu0 0
      %2410 = vmatpush1.bf16.msra.mxu0 %v2339
      %2411 = vmatprep.subr.bf16.mxu0 0
      %2412 = vmatpush1.bf16.msra.mxu0 %v2340
      %2413 = vmatprep.subr.bf16.mxu0 0
      %2414 = vmatpush1.bf16.msra.mxu0 %v2341
      %2415 = vmatprep.subr.bf16.mxu0 0
      %2416 = vmatpush1.bf16.msra.mxu0 %v2342
      %2417 = vmatprep.subr.bf16.mxu0 0
      %2418 = vmatpush1.bf16.msra.mxu0 %v2343
      %2419 = vmatprep.subr.bf16.mxu0 0
      %2420 = vmatpush1.bf16.msra.mxu0 %v2344
      %2421 = vmatprep.subr.bf16.mxu0 0
      %2422 = vmatpush1.bf16.msra.mxu0 %v2345
      %2423 = vmatprep.subr.bf16.mxu0 0
      %2424 = vmatpush1.bf16.msra.mxu0 %v2346
      %2425 = vmatprep.subr.bf16.mxu0 0
      %2426 = vmatpush1.bf16.msra.mxu0 %v2347
      %2427 = vmatprep.subr.bf16.mxu0 0
      %2428 = vmatpush1.bf16.msra.mxu0 %v2348
      %2429 = vmatprep.mubr.bf16.mxu0 %v2131
      %2430 = vmatmul.mubr.bf16.gmra.mrb[0].mxu0 %v2130
      %v2431 = vpop.f32.mrb[0].mxu0
      %v2432 = vadd.f32 %v2203, %v2431
      %v2433 = vpop.f32.mrb[0].mxu0
      %v2434 = vpop.f32.mrb[0].mxu0
      %v2435 = vpop.f32.mrb[0].mxu0
      %2436 = vdwg.mxu0
      %2437 = vmatprep.subr.bf16.mxu0 0
      %2438 = vmatpush1.bf16.msra.mxu0 %v2349
      %2439 = vmatprep.subr.bf16.mxu0 0
      %2440 = vmatpush1.bf16.msra.mxu0 %v2350
      %2441 = vmatprep.subr.bf16.mxu0 0
      %2442 = vmatpush1.bf16.msra.mxu0 %v2351
      %2443 = vmatprep.subr.bf16.mxu0 0
      %2444 = vmatpush1.bf16.msra.mxu0 %v2352
      %2445 = vmatprep.subr.bf16.mxu0 0
      %2446 = vmatpush1.bf16.msra.mxu0 %v2353
      %2447 = vmatprep.subr.bf16.mxu0 0
      %2448 = vmatpush1.bf16.msra.mxu0 %v2354
      %2449 = vmatprep.subr.bf16.mxu0 0
      %2450 = vmatpush1.bf16.msra.mxu0 %v2355
      %2451 = vmatprep.subr.bf16.mxu0 0
      %2452 = vmatpush1.bf16.msra.mxu0 %v2356
      %2453 = vmatprep.subr.bf16.mxu0 0
      %2454 = vmatpush1.bf16.msra.mxu0 %v2357
      %2455 = vmatprep.subr.bf16.mxu0 0
      %2456 = vmatpush1.bf16.msra.mxu0 %v2358
      %2457 = vmatprep.subr.bf16.mxu0 0
      %2458 = vmatpush1.bf16.msra.mxu0 %v2359
      %2459 = vmatprep.subr.bf16.mxu0 0
      %2460 = vmatpush1.bf16.msra.mxu0 %v2360
      %2461 = vmatprep.subr.bf16.mxu0 0
      %2462 = vmatpush1.bf16.msra.mxu0 %v2361
      %2463 = vmatprep.subr.bf16.mxu0 0
      %2464 = vmatpush1.bf16.msra.mxu0 %v2362
      %2465 = vmatprep.subr.bf16.mxu0 0
      %2466 = vmatpush1.bf16.msra.mxu0 %v2363
      %2467 = vmatprep.subr.bf16.mxu0 0
      %2468 = vmatpush1.bf16.msra.mxu0 %v2364
      %2469 = vmatprep.mubr.bf16.mxu0 %v2133
      %2470 = vmatmul.mubr.bf16.gmra.mrb[0].mxu0 %v2132
      %v2471 = vpop.f32.mrb[0].mxu0
      %v2472 = vadd.f32 %v2432, %v2471
      %v2473 = vpop.f32.mrb[0].mxu0
      %v2474 = vpop.f32.mrb[0].mxu0
      %v2475 = vpop.f32.mrb[0].mxu0
      %2476 = vdwg.mxu0
      %vm2477 = vcmask 261120
      %2478 = vst.msk [vmem:[%s222] sm:$0xff] %vm2477, %v2472
      %p2479 = scmp.lt.s32.totalorder %s16, 1
      %s2480 = scalar_select %p2479, %s16, 1
      %s2481 = smul.addr %s2480, 8
      %s2482 = scalar_lea.vmem %s5, %s2481
      // Predicated region
      $region41: #{lrcn_forward.2} parent=39 // pred_check
        %p2483 = pneg %p144
      $region42: #{lrcn_forward.2} parent=39 // pred_check_branch
        %2485 = sbr.rel (%p2483) target = $region44
      $region43: #{lrcn_forward.2} parent=39 // pred_region
        _
      $region44: #{lrcn_forward.2} parent=39 // pred_fallthru
        _
    $region40: #{lrcn_forward.2} parent=5 // pred_fallthru
      _
    %p2486 = scmp.le.s32.totalorder 2, %s11
    // Predicated region
    $region45: #{lrcn_forward.2} parent=5 // pred_check
      %p2487 = pneg %p2486
    $region46: #{lrcn_forward.2} parent=5 // pred_check_branch
      %2489 = sbr.rel (%p2487) target = $region48
    $region47: #{lrcn_forward.2} parent=5 // pred_region
      %s2490 = ssub.s32 %s11, 2
      // Predicated region
      $region49: #{lrcn_forward.2} parent=47 // pred_check
        %p2491 = pneg %p150
      $region50: #{lrcn_forward.2} parent=47 // pred_check_branch
        %2493 = sbr.rel (%p2491) target = $region52
      $region51: #{lrcn_forward.2} parent=47 // pred_region
        %p2494 = scmp.lt.s32.totalorder %s17, 1
        %s2495 = scalar_select %p2494, %s17, 1
        %s2496 = smul.addr %s2495, 8
        %s2497 = scalar_lea.vmem %s5, %s2496
      $region52: #{lrcn_forward.2} parent=47 // pred_fallthru
        _
    $region48: #{lrcn_forward.2} parent=5 // pred_fallthru
      _
  $region6: #{lrcn_forward.2} parent=0 // loop_footer
    %s15 = sadd.s32 1, %s11
  $region7: #{lrcn_forward.2} parent=0 // loop_footer_branch
    %10 = sbr.rel target = $region3
  $region8: #{lrcn_forward.2} parent=0 // loop_exit
    _

// kernel: lrcn_forward.3
$region0: #{lrcn_forward.3}
  #allocation0 [shape = 'u32[]', space=smem, size = 0x4, offset = 0x4, fixed_abs, tag = 'smem constant byte address 0x4 - core index']
  #allocation1 [shape = 'u32[144,128]{1,0:T(1,128)}', space=vmem, size = 0x12000, scoped, tag = 'internal scratch']
  %s0 = inlined_call_operand.vmem [shape: f32[8,8,32], index: 0, kind: input, shape index: {}]
  %s1 = inlined_call_operand.vmem [shape: f32[6,8,32], index: 1, kind: input, shape index: {}]
  %s2 = inlined_call_operand.vmem [shape: bf16[4,32,32], index: 2, kind: input, shape index: {}]
  %s3 = inlined_call_operand.vmem [shape: bf16[4,32,32], index: 3, kind: input, shape index: {}]
  %s4 = inlined_call_operand.vmem [shape: f32[4,1,32], index: 4, kind: input, shape index: {}]
  %s5 = inlined_call_operand.vmem [shape: bf16[4,32,32], index: 5, kind: input, shape index: {}]
  %s6 = inlined_call_operand.vmem [shape: bf16[4,32,32], index: 6, kind: input, shape index: {}]
  %s7 = inlined_call_operand.vmem [shape: f32[4,1,32], index: 7, kind: input, shape index: {}]
  %s8 = inlined_call_operand.vmem [shape: bf16[32,64], index: 8, kind: input, shape index: {}]
  %s9 = inlined_call_operand.vmem [shape: bf16[32,64], index: 9, kind: input, shape index: {}]
  %s10 = inlined_call_operand.vmem [shape: f32[1,64], index: 10, kind: input, shape index: {}]
  %s11 = inlined_call_operand.vmem [shape: bf16[64,4], index: 11, kind: input, shape index: {}]
  %s12 = inlined_call_operand.vmem [shape: f32[1,4], index: 12, kind: input, shape index: {}]
  %s13 = inlined_call_operand.vmem [shape: f32[8,4], index: 13, kind: output, shape index: {}]
  %s14 = sld [smem:[#allocation0]]
  $region62: #{lrcn_forward.3} parent=0
    _
  %s16 = ssub.s32 1, %s14
  %s17 = scalar_select 0, %s16, %s14
  // Predicated region
  $region2: #{lrcn_forward.3} parent=0 // pred_check
    _
  $region3: #{lrcn_forward.3} parent=0 // pred_check_branch
    %19 = sbr.rel (0) target = $region5
  $region4: #{lrcn_forward.3} parent=0 // pred_region
    _
  $region5: #{lrcn_forward.3} parent=0 // pred_fallthru
    _
  // Predicated region
  $region6: #{lrcn_forward.3} parent=0 // pred_check
    _
  $region7: #{lrcn_forward.3} parent=0 // pred_check_branch
    %21 = sbr.rel (0) target = $region9
  $region8: #{lrcn_forward.3} parent=0 // pred_region
    _
  $region9: #{lrcn_forward.3} parent=0 // pred_fallthru
    _
  // Predicated region
  $region10: #{lrcn_forward.3} parent=0 // pred_check
    _
  $region11: #{lrcn_forward.3} parent=0 // pred_check_branch
    %23 = sbr.rel (0) target = $region13
  $region12: #{lrcn_forward.3} parent=0 // pred_region
    _
  $region13: #{lrcn_forward.3} parent=0 // pred_fallthru
    _
  // Predicated region
  $region14: #{lrcn_forward.3} parent=0 // pred_check
    _
  $region15: #{lrcn_forward.3} parent=0 // pred_check_branch
    %25 = sbr.rel (0) target = $region17
  $region16: #{lrcn_forward.3} parent=0 // pred_region
    _
  $region17: #{lrcn_forward.3} parent=0 // pred_fallthru
    _
  // Predicated region
  $region18: #{lrcn_forward.3} parent=0 // pred_check
    _
  $region19: #{lrcn_forward.3} parent=0 // pred_check_branch
    %27 = sbr.rel (0) target = $region21
  $region20: #{lrcn_forward.3} parent=0 // pred_region
    _
  $region21: #{lrcn_forward.3} parent=0 // pred_fallthru
    _
  // Predicated region
  $region22: #{lrcn_forward.3} parent=0 // pred_check
    _
  $region23: #{lrcn_forward.3} parent=0 // pred_check_branch
    %29 = sbr.rel (0) target = $region25
  $region24: #{lrcn_forward.3} parent=0 // pred_region
    _
  $region25: #{lrcn_forward.3} parent=0 // pred_fallthru
    _
  // Predicated region
  $region26: #{lrcn_forward.3} parent=0 // pred_check
    _
  $region27: #{lrcn_forward.3} parent=0 // pred_check_branch
    %31 = sbr.rel (0) target = $region29
  $region28: #{lrcn_forward.3} parent=0 // pred_region
    _
  $region29: #{lrcn_forward.3} parent=0 // pred_fallthru
    _
  // Predicated region
  $region30: #{lrcn_forward.3} parent=0 // pred_check
    _
  $region31: #{lrcn_forward.3} parent=0 // pred_check_branch
    %33 = sbr.rel (0) target = $region33
  $region32: #{lrcn_forward.3} parent=0 // pred_region
    _
  $region33: #{lrcn_forward.3} parent=0 // pred_fallthru
    _
  // Predicated region
  $region34: #{lrcn_forward.3} parent=0 // pred_check
    _
  $region35: #{lrcn_forward.3} parent=0 // pred_check_branch
    %35 = sbr.rel (0) target = $region37
  $region36: #{lrcn_forward.3} parent=0 // pred_region
    _
  $region37: #{lrcn_forward.3} parent=0 // pred_fallthru
    _
  // Predicated region
  $region38: #{lrcn_forward.3} parent=0 // pred_check
    _
  $region39: #{lrcn_forward.3} parent=0 // pred_check_branch
    %37 = sbr.rel (0) target = $region41
  $region40: #{lrcn_forward.3} parent=0 // pred_region
    _
  $region41: #{lrcn_forward.3} parent=0 // pred_fallthru
    _
  // Predicated region
  $region42: #{lrcn_forward.3} parent=0 // pred_check
    _
  $region43: #{lrcn_forward.3} parent=0 // pred_check_branch
    %39 = sbr.rel (0) target = $region45
  $region44: #{lrcn_forward.3} parent=0 // pred_region
    _
  $region45: #{lrcn_forward.3} parent=0 // pred_fallthru
    _
  // Predicated region
  $region46: #{lrcn_forward.3} parent=0 // pred_check
    _
  $region47: #{lrcn_forward.3} parent=0 // pred_check_branch
    %41 = sbr.rel (0) target = $region49
  $region48: #{lrcn_forward.3} parent=0 // pred_region
    _
  $region49: #{lrcn_forward.3} parent=0 // pred_fallthru
    _
  // Predicated region
  $region50: #{lrcn_forward.3} parent=0 // pred_check
    _
  $region51: #{lrcn_forward.3} parent=0 // pred_check_branch
    %43 = sbr.rel (0) target = $region53
  $region52: #{lrcn_forward.3} parent=0 // pred_region
    _
  $region53: #{lrcn_forward.3} parent=0 // pred_fallthru
    _
  %v45 = vld [vmem:[%s2] sm:$0xf]
  %v46 = vld [vmem:[%s2 + $0x4] sm:$0xf]
  %v47 = vld [vmem:[%s2 + $0x8] sm:$0xf]
  %v48 = vld [vmem:[%s2 + $0xc] sm:$0xf]
  %v49 = vld [vmem:[%s2 + $0x10] sm:$0xf]
  %v50 = vld [vmem:[%s2 + $0x14] sm:$0xf]
  %v51 = vld [vmem:[%s2 + $0x18] sm:$0xf]
  %v52 = vld [vmem:[%s2 + $0x1c] sm:$0xf]
  %v53 = vld [vmem:[%s2 + $0x20] sm:$0xf]
  %v54 = vld [vmem:[%s2 + $0x24] sm:$0xf]
  %v55 = vld [vmem:[%s2 + $0x28] sm:$0xf]
  %v56 = vld [vmem:[%s2 + $0x2c] sm:$0xf]
  %v57 = vld [vmem:[%s2 + $0x30] sm:$0xf]
  %v58 = vld [vmem:[%s2 + $0x34] sm:$0xf]
  %v59 = vld [vmem:[%s2 + $0x38] sm:$0xf]
  %v60 = vld [vmem:[%s2 + $0x3c] sm:$0xf]
  %v61 = vld [vmem:[%s3] sm:$0xf]
  %v62 = vld [vmem:[%s3 + $0x4] sm:$0xf]
  %v63 = vld [vmem:[%s3 + $0x8] sm:$0xf]
  %v64 = vld [vmem:[%s3 + $0xc] sm:$0xf]
  %v65 = vld [vmem:[%s3 + $0x10] sm:$0xf]
  %v66 = vld [vmem:[%s3 + $0x14] sm:$0xf]
  %v67 = vld [vmem:[%s3 + $0x18] sm:$0xf]
  %v68 = vld [vmem:[%s3 + $0x1c] sm:$0xf]
  %v69 = vld [vmem:[%s3 + $0x20] sm:$0xf]
  %v70 = vld [vmem:[%s3 + $0x24] sm:$0xf]
  %v71 = vld [vmem:[%s3 + $0x28] sm:$0xf]
  %v72 = vld [vmem:[%s3 + $0x2c] sm:$0xf]
  %v73 = vld [vmem:[%s3 + $0x30] sm:$0xf]
  %v74 = vld [vmem:[%s3 + $0x34] sm:$0xf]
  %v75 = vld [vmem:[%s3 + $0x38] sm:$0xf]
  %v76 = vld [vmem:[%s3 + $0x3c] sm:$0xf]
  %v77 = vld [vmem:[%s4] sm:$0x1]
  %v78 = vld [vmem:[%s4 + $0x1] sm:$0x1]
  %v79 = vld [vmem:[%s4 + $0x2] sm:$0x1]
  %v80 = vld [vmem:[%s4 + $0x3] sm:$0x1]
  %v81 = vld [vmem:[%s5] sm:$0xf]
  %v82 = vld [vmem:[%s5 + $0x4] sm:$0xf]
  %v83 = vld [vmem:[%s5 + $0x8] sm:$0xf]
  %v84 = vld [vmem:[%s5 + $0xc] sm:$0xf]
  %v85 = vld [vmem:[%s5 + $0x10] sm:$0xf]
  %v86 = vld [vmem:[%s5 + $0x14] sm:$0xf]
  %v87 = vld [vmem:[%s5 + $0x18] sm:$0xf]
  %v88 = vld [vmem:[%s5 + $0x1c] sm:$0xf]
  %v89 = vld [vmem:[%s5 + $0x20] sm:$0xf]
  %v90 = vld [vmem:[%s5 + $0x24] sm:$0xf]
  %v91 = vld [vmem:[%s5 + $0x28] sm:$0xf]
  %v92 = vld [vmem:[%s5 + $0x2c] sm:$0xf]
  %v93 = vld [vmem:[%s5 + $0x30] sm:$0xf]
  %v94 = vld [vmem:[%s5 + $0x34] sm:$0xf]
  %v95 = vld [vmem:[%s5 + $0x38] sm:$0xf]
  %v96 = vld [vmem:[%s5 + $0x3c] sm:$0xf]
  %v97 = vld [vmem:[%s6] sm:$0xf]
  %v98 = vld [vmem:[%s6 + $0x4] sm:$0xf]
  %v99 = vld [vmem:[%s6 + $0x8] sm:$0xf]
  %v100 = vld [vmem:[%s6 + $0xc] sm:$0xf]
  %v101 = vld [vmem:[%s6 + $0x10] sm:$0xf]
  %v102 = vld [vmem:[%s6 + $0x14] sm:$0xf]
  %v103 = vld [vmem:[%s6 + $0x18] sm:$0xf]
  %v104 = vld [vmem:[%s6 + $0x1c] sm:$0xf]
  %v105 = vld [vmem:[%s6 + $0x20] sm:$0xf]
  %v106 = vld [vmem:[%s6 + $0x24] sm:$0xf]
  %v107 = vld [vmem:[%s6 + $0x28] sm:$0xf]
  %v108 = vld [vmem:[%s6 + $0x2c] sm:$0xf]
  %v109 = vld [vmem:[%s6 + $0x30] sm:$0xf]
  %v110 = vld [vmem:[%s6 + $0x34] sm:$0xf]
  %v111 = vld [vmem:[%s6 + $0x38] sm:$0xf]
  %v112 = vld [vmem:[%s6 + $0x3c] sm:$0xf]
  %v113 = vld [vmem:[%s7] sm:$0x1]
  %v114 = vld [vmem:[%s7 + $0x1] sm:$0x1]
  %v115 = vld [vmem:[%s7 + $0x2] sm:$0x1]
  %v116 = vld [vmem:[%s7 + $0x3] sm:$0x1]
  %v117 = vld [vmem:[%s0] sm:$0xff]
  %v118 = vpack.c.bf16 %v117, %v117
  %v123 = vunpack.c.l.b16 %v61
  %v124 = vunpack.c.l.b16 %v62
  %v125 = vunpack.c.l.b16 %v63
  %v126 = vunpack.c.l.b16 %v64
  %v127 = vpack.c.b16 %v124, %v123
  %v128 = vpack.c.b16 %v126, %v125
  %vm131 = vcmask 261120
  %v133 = vsel %vm131, 0, 0
  %135 = vmatprep.subr.bf16.mxu0 0
  %136 = vmatpush1.bf16.msra.mxu0 %v127
  %137 = vmatprep.subr.bf16.mxu0 0
  %138 = vmatpush1.bf16.msra.mxu0 %v128
  %139 = vmatprep.subr.bf16.mxu0 0
  %140 = vmatpush1.bf16.msra.mxu0 0
  %141 = vmatprep.subr.bf16.mxu0 0
  %142 = vmatpush1.bf16.msra.mxu0 0
  %143 = vmatprep.subr.bf16.mxu0 0
  %144 = vmatpush1.bf16.msra.mxu0 0
  %145 = vmatprep.subr.bf16.mxu0 0
  %146 = vmatpush1.bf16.msra.mxu0 0
  %147 = vmatprep.subr.bf16.mxu0 0
  %148 = vmatpush1.bf16.msra.mxu0 0
  %149 = vmatprep.subr.bf16.mxu0 0
  %150 = vmatpush1.bf16.msra.mxu0 0
  %151 = vmatprep.subr.bf16.mxu0 0
  %152 = vmatpush1.bf16.msra.mxu0 0
  %153 = vmatprep.subr.bf16.mxu0 0
  %154 = vmatpush1.bf16.msra.mxu0 0
  %155 = vmatprep.subr.bf16.mxu0 0
  %156 = vmatpush1.bf16.msra.mxu0 0
  %157 = vmatprep.subr.bf16.mxu0 0
  %158 = vmatpush1.bf16.msra.mxu0 0
  %159 = vmatprep.subr.bf16.mxu0 0
  %160 = vmatpush1.bf16.msra.mxu0 0
  %161 = vmatprep.subr.bf16.mxu0 0
  %162 = vmatpush1.bf16.msra.mxu0 0
  %163 = vmatprep.subr.bf16.mxu0 0
  %164 = vmatpush1.bf16.msra.mxu0 0
  %165 = vmatprep.subr.bf16.mxu0 0
  %166 = vmatpush1.bf16.msra.mxu0 0
  %167 = vmatprep.mubr.bf16.mxu0 0
  %168 = vmatmul.mubr.bf16.gmra.mrb[0].mxu0 %v133
  %v169 = vpop.f32.mrb[0].mxu0
  %v170 = vadd.f32 0.0, %v169
  %v171 = vpop.f32.mrb[0].mxu0
  %v172 = vpop.f32.mrb[0].mxu0
  %v173 = vpop.f32.mrb[0].mxu0
  %174 = vdwg.mxu0
  %v179 = vunpack.c.l.b16 %v45
  %v180 = vunpack.c.l.b16 %v46
  %v181 = vunpack.c.l.b16 %v47
  %v182 = vunpack.c.l.b16 %v48
  %v183 = vpack.c.b16 %v180, %v179
  %v184 = vpack.c.b16 %v182, %v181
  %v188 = vsel %vm131, %v118, 0
  %190 = vmatprep.subr.bf16.mxu0 0
  %191 = vmatpush1.bf16.msra.mxu0 %v183
  %192 = vmatprep.subr.bf16.mxu0 0
  %193 = vmatpush1.bf16.msra.mxu0 %v184
  %194 = vmatprep.subr.bf16.mxu0 0
  %195 = vmatpush1.bf16.msra.mxu0 0
  %196 = vmatprep.subr.bf16.mxu0 0
  %197 = vmatpush1.bf16.msra.mxu0 0
  %198 = vmatprep.subr.bf16.mxu0 0
  %199 = vmatpush1.bf16.msra.mxu0 0
  %200 = vmatprep.subr.bf16.mxu0 0
  %201 = vmatpush1.bf16.msra.mxu0 0
  %202 = vmatprep.subr.bf16.mxu0 0
  %203 = vmatpush1.bf16.msra.mxu0 0
  %204 = vmatprep.subr.bf16.mxu0 0
  %205 = vmatpush1.bf16.msra.mxu0 0
  %206 = vmatprep.subr.bf16.mxu0 0
  %207 = vmatpush1.bf16.msra.mxu0 0
  %208 = vmatprep.subr.bf16.mxu0 0
  %209 = vmatpush1.bf16.msra.mxu0 0
  %210 = vmatprep.subr.bf16.mxu0 0
  %211 = vmatpush1.bf16.msra.mxu0 0
  %212 = vmatprep.subr.bf16.mxu0 0
  %213 = vmatpush1.bf16.msra.mxu0 0
  %214 = vmatprep.subr.bf16.mxu0 0
  %215 = vmatpush1.bf16.msra.mxu0 0
  %216 = vmatprep.subr.bf16.mxu0 0
  %217 = vmatpush1.bf16.msra.mxu0 0
  %218 = vmatprep.subr.bf16.mxu0 0
  %219 = vmatpush1.bf16.msra.mxu0 0
  %220 = vmatprep.subr.bf16.mxu0 0
  %221 = vmatpush1.bf16.msra.mxu0 0
  %222 = vmatprep.mubr.bf16.mxu0 0
  %223 = vmatmul.mubr.bf16.gmra.mrb[0].mxu0 %v188
  %v224 = vpop.f32.mrb[0].mxu0
  %v225 = vadd.f32 %v170, %v224
  %v226 = vpop.f32.mrb[0].mxu0
  %v227 = vpop.f32.mrb[0].mxu0
  %v228 = vpop.f32.mrb[0].mxu0
  %229 = vdwg.mxu0
  %v231 = vlaneseq
  %v232 = vshrl.u32 %v231, 7
  %v233 = vsub.s32 0, %v232
  %v234 = vrot.slane %v77, %v233
  %v236 = vadd.f32 %v225, %v234
  %v241 = vunpack.c.l.b16 %v65
  %v242 = vunpack.c.l.b16 %v66
  %v243 = vunpack.c.l.b16 %v67
  %v244 = vunpack.c.l.b16 %v68
  %v245 = vpack.c.b16 %v242, %v241
  %v246 = vpack.c.b16 %v244, %v243
  %249 = vmatprep.subr.bf16.mxu0 0
  %250 = vmatpush1.bf16.msra.mxu0 %v245
  %251 = vmatprep.subr.bf16.mxu0 0
  %252 = vmatpush1.bf16.msra.mxu0 %v246
  %253 = vmatprep.subr.bf16.mxu0 0
  %254 = vmatpush1.bf16.msra.mxu0 0
  %255 = vmatprep.subr.bf16.mxu0 0
  %256 = vmatpush1.bf16.msra.mxu0 0
  %257 = vmatprep.subr.bf16.mxu0 0
  %258 = vmatpush1.bf16.msra.mxu0 0
  %259 = vmatprep.subr.bf16.mxu0 0
  %260 = vmatpush1.bf16.msra.mxu0 0
  %261 = vmatprep.subr.bf16.mxu0 0
  %262 = vmatpush1.bf16.msra.mxu0 0
  %263 = vmatprep.subr.bf16.mxu0 0
  %264 = vmatpush1.bf16.msra.mxu0 0
  %265 = vmatprep.subr.bf16.mxu0 0
  %266 = vmatpush1.bf16.msra.mxu0 0
  %267 = vmatprep.subr.bf16.mxu0 0
  %268 = vmatpush1.bf16.msra.mxu0 0
  %269 = vmatprep.subr.bf16.mxu0 0
  %270 = vmatpush1.bf16.msra.mxu0 0
  %271 = vmatprep.subr.bf16.mxu0 0
  %272 = vmatpush1.bf16.msra.mxu0 0
  %273 = vmatprep.subr.bf16.mxu0 0
  %274 = vmatpush1.bf16.msra.mxu0 0
  %275 = vmatprep.subr.bf16.mxu0 0
  %276 = vmatpush1.bf16.msra.mxu0 0
  %277 = vmatprep.subr.bf16.mxu0 0
  %278 = vmatpush1.bf16.msra.mxu0 0
  %279 = vmatprep.subr.bf16.mxu0 0
  %280 = vmatpush1.bf16.msra.mxu0 0
  %281 = vmatprep.mubr.bf16.mxu0 0
  %282 = vmatmul.mubr.bf16.gmra.mrb[0].mxu0 %v133
  %v283 = vpop.f32.mrb[0].mxu0
  %v284 = vadd.f32 0.0, %v283
  %v285 = vpop.f32.mrb[0].mxu0
  %v286 = vpop.f32.mrb[0].mxu0
  %v287 = vpop.f32.mrb[0].mxu0
  %288 = vdwg.mxu0
  %v293 = vunpack.c.l.b16 %v49
  %v294 = vunpack.c.l.b16 %v50
  %v295 = vunpack.c.l.b16 %v51
  %v296 = vunpack.c.l.b16 %v52
  %v297 = vpack.c.b16 %v294, %v293
  %v298 = vpack.c.b16 %v296, %v295
  %301 = vmatprep.subr.bf16.mxu0 0
  %302 = vmatpush1.bf16.msra.mxu0 %v297
  %303 = vmatprep.subr.bf16.mxu0 0
  %304 = vmatpush1.bf16.msra.mxu0 %v298
  %305 = vmatprep.subr.bf16.mxu0 0
  %306 = vmatpush1.bf16.msra.mxu0 0
  %307 = vmatprep.subr.bf16.mxu0 0
  %308 = vmatpush1.bf16.msra.mxu0 0
  %309 = vmatprep.subr.bf16.mxu0 0
  %310 = vmatpush1.bf16.msra.mxu0 0
  %311 = vmatprep.subr.bf16.mxu0 0
  %312 = vmatpush1.bf16.msra.mxu0 0
  %313 = vmatprep.subr.bf16.mxu0 0
  %314 = vmatpush1.bf16.msra.mxu0 0
  %315 = vmatprep.subr.bf16.mxu0 0
  %316 = vmatpush1.bf16.msra.mxu0 0
  %317 = vmatprep.subr.bf16.mxu0 0
  %318 = vmatpush1.bf16.msra.mxu0 0
  %319 = vmatprep.subr.bf16.mxu0 0
  %320 = vmatpush1.bf16.msra.mxu0 0
  %321 = vmatprep.subr.bf16.mxu0 0
  %322 = vmatpush1.bf16.msra.mxu0 0
  %323 = vmatprep.subr.bf16.mxu0 0
  %324 = vmatpush1.bf16.msra.mxu0 0
  %325 = vmatprep.subr.bf16.mxu0 0
  %326 = vmatpush1.bf16.msra.mxu0 0
  %327 = vmatprep.subr.bf16.mxu0 0
  %328 = vmatpush1.bf16.msra.mxu0 0
  %329 = vmatprep.subr.bf16.mxu0 0
  %330 = vmatpush1.bf16.msra.mxu0 0
  %331 = vmatprep.subr.bf16.mxu0 0
  %332 = vmatpush1.bf16.msra.mxu0 0
  %333 = vmatprep.mubr.bf16.mxu0 0
  %334 = vmatmul.mubr.bf16.gmra.mrb[0].mxu0 %v188
  %v335 = vpop.f32.mrb[0].mxu0
  %v336 = vadd.f32 %v284, %v335
  %v337 = vpop.f32.mrb[0].mxu0
  %v338 = vpop.f32.mrb[0].mxu0
  %v339 = vpop.f32.mrb[0].mxu0
  %340 = vdwg.mxu0
  %v342 = vlaneseq
  %v343 = vshrl.u32 %v342, 7
  %v344 = vsub.s32 0, %v343
  %v345 = vrot.slane %v78, %v344
  %v347 = vadd.f32 %v336, %v345
  %v352 = vunpack.c.l.b16 %v69
  %v353 = vunpack.c.l.b16 %v70
  %v354 = vunpack.c.l.b16 %v71
  %v355 = vunpack.c.l.b16 %v72
  %v356 = vpack.c.b16 %v353, %v352
  %v357 = vpack.c.b16 %v355, %v354
  %360 = vmatprep.subr.bf16.mxu0 0
  %361 = vmatpush1.bf16.msra.mxu0 %v356
  %362 = vmatprep.subr.bf16.mxu0 0
  %363 = vmatpush1.bf16.msra.mxu0 %v357
  %364 = vmatprep.subr.bf16.mxu0 0
  %365 = vmatpush1.bf16.msra.mxu0 0
  %366 = vmatprep.subr.bf16.mxu0 0
  %367 = vmatpush1.bf16.msra.mxu0 0
  %368 = vmatprep.subr.bf16.mxu0 0
  %369 = vmatpush1.bf16.msra.mxu0 0
  %370 = vmatprep.subr.bf16.mxu0 0
  %371 = vmatpush1.bf16.msra.mxu0 0
  %372 = vmatprep.subr.bf16.mxu0 0
  %373 = vmatpush1.bf16.msra.mxu0 0
  %374 = vmatprep.subr.bf16.mxu0 0
  %375 = vmatpush1.bf16.msra.mxu0 0
  %376 = vmatprep.subr.bf16.mxu0 0
  %377 = vmatpush1.bf16.msra.mxu0 0
  %378 = vmatprep.subr.bf16.mxu0 0
  %379 = vmatpush1.bf16.msra.mxu0 0
  %380 = vmatprep.subr.bf16.mxu0 0
  %381 = vmatpush1.bf16.msra.mxu0 0
  %382 = vmatprep.subr.bf16.mxu0 0
  %383 = vmatpush1.bf16.msra.mxu0 0
  %384 = vmatprep.subr.bf16.mxu0 0
  %385 = vmatpush1.bf16.msra.mxu0 0
  %386 = vmatprep.subr.bf16.mxu0 0
  %387 = vmatpush1.bf16.msra.mxu0 0
  %388 = vmatprep.subr.bf16.mxu0 0
  %389 = vmatpush1.bf16.msra.mxu0 0
  %390 = vmatprep.subr.bf16.mxu0 0
  %391 = vmatpush1.bf16.msra.mxu0 0
  %392 = vmatprep.mubr.bf16.mxu0 0
  %393 = vmatmul.mubr.bf16.gmra.mrb[0].mxu0 %v133
  %v394 = vpop.f32.mrb[0].mxu0
  %v395 = vadd.f32 0.0, %v394
  %v396 = vpop.f32.mrb[0].mxu0
  %v397 = vpop.f32.mrb[0].mxu0
  %v398 = vpop.f32.mrb[0].mxu0
  %399 = vdwg.mxu0
  %v404 = vunpack.c.l.b16 %v53
  %v405 = vunpack.c.l.b16 %v54
  %v406 = vunpack.c.l.b16 %v55
  %v407 = vunpack.c.l.b16 %v56
  %v408 = vpack.c.b16 %v405, %v404
  %v409 = vpack.c.b16 %v407, %v406
  %412 = vmatprep.subr.bf16.mxu0 0
  %413 = vmatpush1.bf16.msra.mxu0 %v408
  %414 = vmatprep.subr.bf16.mxu0 0
  %415 = vmatpush1.bf16.msra.mxu0 %v409
  %416 = vmatprep.subr.bf16.mxu0 0
  %417 = vmatpush1.bf16.msra.mxu0 0
  %418 = vmatprep.subr.bf16.mxu0 0
  %419 = vmatpush1.bf16.msra.mxu0 0
  %420 = vmatprep.subr.bf16.mxu0 0
  %421 = vmatpush1.bf16.msra.mxu0 0
  %422 = vmatprep.subr.bf16.mxu0 0
  %423 = vmatpush1.bf16.msra.mxu0 0
  %424 = vmatprep.subr.bf16.mxu0 0
  %425 = vmatpush1.bf16.msra.mxu0 0
  %426 = vmatprep.subr.bf16.mxu0 0
  %427 = vmatpush1.bf16.msra.mxu0 0
  %428 = vmatprep.subr.bf16.mxu0 0
  %429 = vmatpush1.bf16.msra.mxu0 0
  %430 = vmatprep.subr.bf16.mxu0 0
  %431 = vmatpush1.bf16.msra.mxu0 0
  %432 = vmatprep.subr.bf16.mxu0 0
  %433 = vmatpush1.bf16.msra.mxu0 0
  %434 = vmatprep.subr.bf16.mxu0 0
  %435 = vmatpush1.bf16.msra.mxu0 0
  %436 = vmatprep.subr.bf16.mxu0 0
  %437 = vmatpush1.bf16.msra.mxu0 0
  %438 = vmatprep.subr.bf16.mxu0 0
  %439 = vmatpush1.bf16.msra.mxu0 0
  %440 = vmatprep.subr.bf16.mxu0 0
  %441 = vmatpush1.bf16.msra.mxu0 0
  %442 = vmatprep.subr.bf16.mxu0 0
  %443 = vmatpush1.bf16.msra.mxu0 0
  %444 = vmatprep.mubr.bf16.mxu0 0
  %445 = vmatmul.mubr.bf16.gmra.mrb[0].mxu0 %v188
  %v446 = vpop.f32.mrb[0].mxu0
  %v447 = vadd.f32 %v395, %v446
  %v448 = vpop.f32.mrb[0].mxu0
  %v449 = vpop.f32.mrb[0].mxu0
  %v450 = vpop.f32.mrb[0].mxu0
  %451 = vdwg.mxu0
  %v453 = vlaneseq
  %v454 = vshrl.u32 %v453, 7
  %v455 = vsub.s32 0, %v454
  %v456 = vrot.slane %v79, %v455
  %v458 = vadd.f32 %v447, %v456
  %v463 = vunpack.c.l.b16 %v73
  %v464 = vunpack.c.l.b16 %v74
  %v465 = vunpack.c.l.b16 %v75
  %v466 = vunpack.c.l.b16 %v76
  %v467 = vpack.c.b16 %v464, %v463
  %v468 = vpack.c.b16 %v466, %v465
  %471 = vmatprep.subr.bf16.mxu0 0
  %472 = vmatpush1.bf16.msra.mxu0 %v467
  %473 = vmatprep.subr.bf16.mxu0 0
  %474 = vmatpush1.bf16.msra.mxu0 %v468
  %475 = vmatprep.subr.bf16.mxu0 0
  %476 = vmatpush1.bf16.msra.mxu0 0
  %477 = vmatprep.subr.bf16.mxu0 0
  %478 = vmatpush1.bf16.msra.mxu0 0
  %479 = vmatprep.subr.bf16.mxu0 0
  %480 = vmatpush1.bf16.msra.mxu0 0
  %481 = vmatprep.subr.bf16.mxu0 0
  %482 = vmatpush1.bf16.msra.mxu0 0
  %483 = vmatprep.subr.bf16.mxu0 0
  %484 = vmatpush1.bf16.msra.mxu0 0
  %485 = vmatprep.subr.bf16.mxu0 0
  %486 = vmatpush1.bf16.msra.mxu0 0
  %487 = vmatprep.subr.bf16.mxu0 0
  %488 = vmatpush1.bf16.msra.mxu0 0
  %489 = vmatprep.subr.bf16.mxu0 0
  %490 = vmatpush1.bf16.msra.mxu0 0
  %491 = vmatprep.subr.bf16.mxu0 0
  %492 = vmatpush1.bf16.msra.mxu0 0
  %493 = vmatprep.subr.bf16.mxu0 0
  %494 = vmatpush1.bf16.msra.mxu0 0
  %495 = vmatprep.subr.bf16.mxu0 0
  %496 = vmatpush1.bf16.msra.mxu0 0
  %497 = vmatprep.subr.bf16.mxu0 0
  %498 = vmatpush1.bf16.msra.mxu0 0
  %499 = vmatprep.subr.bf16.mxu0 0
  %500 = vmatpush1.bf16.msra.mxu0 0
  %501 = vmatprep.subr.bf16.mxu0 0
  %502 = vmatpush1.bf16.msra.mxu0 0
  %503 = vmatprep.mubr.bf16.mxu0 0
  %504 = vmatmul.mubr.bf16.gmra.mrb[0].mxu0 %v133
  %v505 = vpop.f32.mrb[0].mxu0
  %v506 = vadd.f32 0.0, %v505
  %v507 = vpop.f32.mrb[0].mxu0
  %v508 = vpop.f32.mrb[0].mxu0
  %v509 = vpop.f32.mrb[0].mxu0
  %510 = vdwg.mxu0
  %v515 = vunpack.c.l.b16 %v57
  %v516 = vunpack.c.l.b16 %v58
  %v517 = vunpack.c.l.b16 %v59
  %v518 = vunpack.c.l.b16 %v60
  %v519 = vpack.c.b16 %v516, %v515
  %v520 = vpack.c.b16 %v518, %v517
  %523 = vmatprep.subr.bf16.mxu0 0
  %524 = vmatpush1.bf16.msra.mxu0 %v519
  %525 = vmatprep.subr.bf16.mxu0 0
  %526 = vmatpush1.bf16.msra.mxu0 %v520
  %527 = vmatprep.subr.bf16.mxu0 0
  %528 = vmatpush1.bf16.msra.mxu0 0
  %529 = vmatprep.subr.bf16.mxu0 0
  %530 = vmatpush1.bf16.msra.mxu0 0
  %531 = vmatprep.subr.bf16.mxu0 0
  %532 = vmatpush1.bf16.msra.mxu0 0
  %533 = vmatprep.subr.bf16.mxu0 0
  %534 = vmatpush1.bf16.msra.mxu0 0
  %535 = vmatprep.subr.bf16.mxu0 0
  %536 = vmatpush1.bf16.msra.mxu0 0
  %537 = vmatprep.subr.bf16.mxu0 0
  %538 = vmatpush1.bf16.msra.mxu0 0
  %539 = vmatprep.subr.bf16.mxu0 0
  %540 = vmatpush1.bf16.msra.mxu0 0
  %541 = vmatprep.subr.bf16.mxu0 0
  %542 = vmatpush1.bf16.msra.mxu0 0
  %543 = vmatprep.subr.bf16.mxu0 0
  %544 = vmatpush1.bf16.msra.mxu0 0
  %545 = vmatprep.subr.bf16.mxu0 0
  %546 = vmatpush1.bf16.msra.mxu0 0
  %547 = vmatprep.subr.bf16.mxu0 0
  %548 = vmatpush1.bf16.msra.mxu0 0
  %549 = vmatprep.subr.bf16.mxu0 0
  %550 = vmatpush1.bf16.msra.mxu0 0
  %551 = vmatprep.subr.bf16.mxu0 0
  %552 = vmatpush1.bf16.msra.mxu0 0
  %553 = vmatprep.subr.bf16.mxu0 0
  %554 = vmatpush1.bf16.msra.mxu0 0
  %555 = vmatprep.mubr.bf16.mxu0 0
  %556 = vmatmul.mubr.bf16.gmra.mrb[0].mxu0 %v188
  %v557 = vpop.f32.mrb[0].mxu0
  %v558 = vadd.f32 %v506, %v557
  %v559 = vpop.f32.mrb[0].mxu0
  %v560 = vpop.f32.mrb[0].mxu0
  %v561 = vpop.f32.mrb[0].mxu0
  %562 = vdwg.mxu0
  %v564 = vlaneseq
  %v565 = vshrl.u32 %v564, 7
  %v566 = vsub.s32 0, %v565
  %v567 = vrot.slane %v80, %v566
  %v569 = vadd.f32 %v558, %v567
  %v570 = vxor.u32 %v236, 2147483648
  %v571 = vmul.f32 %v570, 1.442695
  %v572 = vpow.pop %v571
  %v573 = vadd.f32 %v572, 1.0
  %v574 = vrcp.pop %v573
  %v575 = vmul.f32 1.0, %v574
  %v576 = vxor.u32 %v347, 2147483648
  %v577 = vmul.f32 %v576, 1.442695
  %v578 = vpow.pop %v577
  %v579 = vadd.f32 %v578, 1.0
  %v580 = vrcp.pop %v579
  %v581 = vmul.f32 1.0, %v580
  %v582 = vtanh.pop %v458
  %v583 = vxor.u32 %v569, 2147483648
  %v584 = vmul.f32 %v583, 1.442695
  %v585 = vpow.pop %v584
  %v586 = vadd.f32 %v585, 1.0
  %v587 = vrcp.pop %v586
  %v588 = vmul.f32 1.0, %v587
  %v589 = vmul.f32 %v581, 0.0
  %v590 = vmul.f32 %v575, %v582
  %v591 = vadd.f32 %v589, %v590
  %v592 = vtanh.pop %v591
  %v593 = vmul.f32 %v588, %v592
  %s594 = scalar_lea.vmem %s0, 8
  %v595 = vld [vmem:[%s594] sm:$0xff]
  %v596 = vpack.c.bf16 %v595, %v595
  %v597 = vpack.c.bf16 %v593, %v593
  %v599 = vsel %vm131, %v597, 0
  %601 = vmatprep.subr.bf16.mxu0 0
  %602 = vmatpush1.bf16.msra.mxu0 %v127
  %603 = vmatprep.subr.bf16.mxu0 0
  %604 = vmatpush1.bf16.msra.mxu0 %v128
  %605 = vmatprep.subr.bf16.mxu0 0
  %606 = vmatpush1.bf16.msra.mxu0 0
  %607 = vmatprep.subr.bf16.mxu0 0
  %608 = vmatpush1.bf16.msra.mxu0 0
  %609 = vmatprep.subr.bf16.mxu0 0
  %610 = vmatpush1.bf16.msra.mxu0 0
  %611 = vmatprep.subr.bf16.mxu0 0
  %612 = vmatpush1.bf16.msra.mxu0 0
  %613 = vmatprep.subr.bf16.mxu0 0
  %614 = vmatpush1.bf16.msra.mxu0 0
  %615 = vmatprep.subr.bf16.mxu0 0
  %616 = vmatpush1.bf16.msra.mxu0 0
  %617 = vmatprep.subr.bf16.mxu0 0
  %618 = vmatpush1.bf16.msra.mxu0 0
  %619 = vmatprep.subr.bf16.mxu0 0
  %620 = vmatpush1.bf16.msra.mxu0 0
  %621 = vmatprep.subr.bf16.mxu0 0
  %622 = vmatpush1.bf16.msra.mxu0 0
  %623 = vmatprep.subr.bf16.mxu0 0
  %624 = vmatpush1.bf16.msra.mxu0 0
  %625 = vmatprep.subr.bf16.mxu0 0
  %626 = vmatpush1.bf16.msra.mxu0 0
  %627 = vmatprep.subr.bf16.mxu0 0
  %628 = vmatpush1.bf16.msra.mxu0 0
  %629 = vmatprep.subr.bf16.mxu0 0
  %630 = vmatpush1.bf16.msra.mxu0 0
  %631 = vmatprep.subr.bf16.mxu0 0
  %632 = vmatpush1.bf16.msra.mxu0 0
  %633 = vmatprep.mubr.bf16.mxu0 0
  %634 = vmatmul.mubr.bf16.gmra.mrb[0].mxu0 %v599
  %v635 = vpop.f32.mrb[0].mxu0
  %v636 = vadd.f32 0.0, %v635
  %v637 = vpop.f32.mrb[0].mxu0
  %v638 = vpop.f32.mrb[0].mxu0
  %v639 = vpop.f32.mrb[0].mxu0
  %640 = vdwg.mxu0
  %v642 = vsel %vm131, %v596, 0
  %644 = vmatprep.subr.bf16.mxu0 0
  %645 = vmatpush1.bf16.msra.mxu0 %v183
  %646 = vmatprep.subr.bf16.mxu0 0
  %647 = vmatpush1.bf16.msra.mxu0 %v184
  %648 = vmatprep.subr.bf16.mxu0 0
  %649 = vmatpush1.bf16.msra.mxu0 0
  %650 = vmatprep.subr.bf16.mxu0 0
  %651 = vmatpush1.bf16.msra.mxu0 0
  %652 = vmatprep.subr.bf16.mxu0 0
  %653 = vmatpush1.bf16.msra.mxu0 0
  %654 = vmatprep.subr.bf16.mxu0 0
  %655 = vmatpush1.bf16.msra.mxu0 0
  %656 = vmatprep.subr.bf16.mxu0 0
  %657 = vmatpush1.bf16.msra.mxu0 0
  %658 = vmatprep.subr.bf16.mxu0 0
  %659 = vmatpush1.bf16.msra.mxu0 0
  %660 = vmatprep.subr.bf16.mxu0 0
  %661 = vmatpush1.bf16.msra.mxu0 0
  %662 = vmatprep.subr.bf16.mxu0 0
  %663 = vmatpush1.bf16.msra.mxu0 0
  %664 = vmatprep.subr.bf16.mxu0 0
  %665 = vmatpush1.bf16.msra.mxu0 0
  %666 = vmatprep.subr.bf16.mxu0 0
  %667 = vmatpush1.bf16.msra.mxu0 0
  %668 = vmatprep.subr.bf16.mxu0 0
  %669 = vmatpush1.bf16.msra.mxu0 0
  %670 = vmatprep.subr.bf16.mxu0 0
  %671 = vmatpush1.bf16.msra.mxu0 0
  %672 = vmatprep.subr.bf16.mxu0 0
  %673 = vmatpush1.bf16.msra.mxu0 0
  %674 = vmatprep.subr.bf16.mxu0 0
  %675 = vmatpush1.bf16.msra.mxu0 0
  %676 = vmatprep.mubr.bf16.mxu0 0
  %677 = vmatmul.mubr.bf16.gmra.mrb[0].mxu0 %v642
  %v678 = vpop.f32.mrb[0].mxu0
  %v679 = vadd.f32 %v636, %v678
  %v680 = vpop.f32.mrb[0].mxu0
  %v681 = vpop.f32.mrb[0].mxu0
  %v682 = vpop.f32.mrb[0].mxu0
  %683 = vdwg.mxu0
  %v684 = vadd.f32 %v679, %v234
  %685 = vmatprep.subr.bf16.mxu0 0
  %686 = vmatpush1.bf16.msra.mxu0 %v245
  %687 = vmatprep.subr.bf16.mxu0 0
  %688 = vmatpush1.bf16.msra.mxu0 %v246
  %689 = vmatprep.subr.bf16.mxu0 0
  %690 = vmatpush1.bf16.msra.mxu0 0
  %691 = vmatprep.subr.bf16.mxu0 0
  %692 = vmatpush1.bf16.msra.mxu0 0
  %693 = vmatprep.subr.bf16.mxu0 0
  %694 = vmatpush1.bf16.msra.mxu0 0
  %695 = vmatprep.subr.bf16.mxu0 0
  %696 = vmatpush1.bf16.msra.mxu0 0
  %697 = vmatprep.subr.bf16.mxu0 0
  %698 = vmatpush1.bf16.msra.mxu0 0
  %699 = vmatprep.subr.bf16.mxu0 0
  %700 = vmatpush1.bf16.msra.mxu0 0
  %701 = vmatprep.subr.bf16.mxu0 0
  %702 = vmatpush1.bf16.msra.mxu0 0
  %703 = vmatprep.subr.bf16.mxu0 0
  %704 = vmatpush1.bf16.msra.mxu0 0
  %705 = vmatprep.subr.bf16.mxu0 0
  %706 = vmatpush1.bf16.msra.mxu0 0
  %707 = vmatprep.subr.bf16.mxu0 0
  %708 = vmatpush1.bf16.msra.mxu0 0
  %709 = vmatprep.subr.bf16.mxu0 0
  %710 = vmatpush1.bf16.msra.mxu0 0
  %711 = vmatprep.subr.bf16.mxu0 0
  %712 = vmatpush1.bf16.msra.mxu0 0
  %713 = vmatprep.subr.bf16.mxu0 0
  %714 = vmatpush1.bf16.msra.mxu0 0
  %715 = vmatprep.subr.bf16.mxu0 0
  %716 = vmatpush1.bf16.msra.mxu0 0
  %717 = vmatprep.mubr.bf16.mxu0 0
  %718 = vmatmul.mubr.bf16.gmra.mrb[0].mxu0 %v599
  %v719 = vpop.f32.mrb[0].mxu0
  %v720 = vadd.f32 0.0, %v719
  %v721 = vpop.f32.mrb[0].mxu0
  %v722 = vpop.f32.mrb[0].mxu0
  %v723 = vpop.f32.mrb[0].mxu0
  %724 = vdwg.mxu0
  %725 = vmatprep.subr.bf16.mxu0 0
  %726 = vmatpush1.bf16.msra.mxu0 %v297
  %727 = vmatprep.subr.bf16.mxu0 0
  %728 = vmatpush1.bf16.msra.mxu0 %v298
  %729 = vmatprep.subr.bf16.mxu0 0
  %730 = vmatpush1.bf16.msra.mxu0 0
  %731 = vmatprep.subr.bf16.mxu0 0
  %732 = vmatpush1.bf16.msra.mxu0 0
  %733 = vmatprep.subr.bf16.mxu0 0
  %734 = vmatpush1.bf16.msra.mxu0 0
  %735 = vmatprep.subr.bf16.mxu0 0
  %736 = vmatpush1.bf16.msra.mxu0 0
  %737 = vmatprep.subr.bf16.mxu0 0
  %738 = vmatpush1.bf16.msra.mxu0 0
  %739 = vmatprep.subr.bf16.mxu0 0
  %740 = vmatpush1.bf16.msra.mxu0 0
  %741 = vmatprep.subr.bf16.mxu0 0
  %742 = vmatpush1.bf16.msra.mxu0 0
  %743 = vmatprep.subr.bf16.mxu0 0
  %744 = vmatpush1.bf16.msra.mxu0 0
  %745 = vmatprep.subr.bf16.mxu0 0
  %746 = vmatpush1.bf16.msra.mxu0 0
  %747 = vmatprep.subr.bf16.mxu0 0
  %748 = vmatpush1.bf16.msra.mxu0 0
  %749 = vmatprep.subr.bf16.mxu0 0
  %750 = vmatpush1.bf16.msra.mxu0 0
  %751 = vmatprep.subr.bf16.mxu0 0
  %752 = vmatpush1.bf16.msra.mxu0 0
  %753 = vmatprep.subr.bf16.mxu0 0
  %754 = vmatpush1.bf16.msra.mxu0 0
  %755 = vmatprep.subr.bf16.mxu0 0
  %756 = vmatpush1.bf16.msra.mxu0 0
  %757 = vmatprep.mubr.bf16.mxu0 0
  %758 = vmatmul.mubr.bf16.gmra.mrb[0].mxu0 %v642
  %v759 = vpop.f32.mrb[0].mxu0
  %v760 = vadd.f32 %v720, %v759
  %v761 = vpop.f32.mrb[0].mxu0
  %v762 = vpop.f32.mrb[0].mxu0
  %v763 = vpop.f32.mrb[0].mxu0
  %764 = vdwg.mxu0
  %v765 = vadd.f32 %v760, %v345
  %766 = vmatprep.subr.bf16.mxu0 0
  %767 = vmatpush1.bf16.msra.mxu0 %v356
  %768 = vmatprep.subr.bf16.mxu0 0
  %769 = vmatpush1.bf16.msra.mxu0 %v357
  %770 = vmatprep.subr.bf16.mxu0 0
  %771 = vmatpush1.bf16.msra.mxu0 0
  %772 = vmatprep.subr.bf16.mxu0 0
  %773 = vmatpush1.bf16.msra.mxu0 0
  %774 = vmatprep.subr.bf16.mxu0 0
  %775 = vmatpush1.bf16.msra.mxu0 0
  %776 = vmatprep.subr.bf16.mxu0 0
  %777 = vmatpush1.bf16.msra.mxu0 0
  %778 = vmatprep.subr.bf16.mxu0 0
  %779 = vmatpush1.bf16.msra.mxu0 0
  %780 = vmatprep.subr.bf16.mxu0 0
  %781 = vmatpush1.bf16.msra.mxu0 0
  %782 = vmatprep.subr.bf16.mxu0 0
  %783 = vmatpush1.bf16.msra.mxu0 0
  %784 = vmatprep.subr.bf16.mxu0 0
  %785 = vmatpush1.bf16.msra.mxu0 0
  %786 = vmatprep.subr.bf16.mxu0 0
  %787 = vmatpush1.bf16.msra.mxu0 0
  %788 = vmatprep.subr.bf16.mxu0 0
  %789 = vmatpush1.bf16.msra.mxu0 0
  %790 = vmatprep.subr.bf16.mxu0 0
  %791 = vmatpush1.bf16.msra.mxu0 0
  %792 = vmatprep.subr.bf16.mxu0 0
  %793 = vmatpush1.bf16.msra.mxu0 0
  %794 = vmatprep.subr.bf16.mxu0 0
  %795 = vmatpush1.bf16.msra.mxu0 0
  %796 = vmatprep.subr.bf16.mxu0 0
  %797 = vmatpush1.bf16.msra.mxu0 0
  %798 = vmatprep.mubr.bf16.mxu0 0
  %799 = vmatmul.mubr.bf16.gmra.mrb[0].mxu0 %v599
  %v800 = vpop.f32.mrb[0].mxu0
  %v801 = vadd.f32 0.0, %v800
  %v802 = vpop.f32.mrb[0].mxu0
  %v803 = vpop.f32.mrb[0].mxu0
  %v804 = vpop.f32.mrb[0].mxu0
  %805 = vdwg.mxu0
  %806 = vmatprep.subr.bf16.mxu0 0
  %807 = vmatpush1.bf16.msra.mxu0 %v408
  %808 = vmatprep.subr.bf16.mxu0 0
  %809 = vmatpush1.bf16.msra.mxu0 %v409
  %810 = vmatprep.subr.bf16.mxu0 0
  %811 = vmatpush1.bf16.msra.mxu0 0
  %812 = vmatprep.subr.bf16.mxu0 0
  %813 = vmatpush1.bf16.msra.mxu0 0
  %814 = vmatprep.subr.bf16.mxu0 0
  %815 = vmatpush1.bf16.msra.mxu0 0
  %816 = vmatprep.subr.bf16.mxu0 0
  %817 = vmatpush1.bf16.msra.mxu0 0
  %818 = vmatprep.subr.bf16.mxu0 0
  %819 = vmatpush1.bf16.msra.mxu0 0
  %820 = vmatprep.subr.bf16.mxu0 0
  %821 = vmatpush1.bf16.msra.mxu0 0
  %822 = vmatprep.subr.bf16.mxu0 0
  %823 = vmatpush1.bf16.msra.mxu0 0
  %824 = vmatprep.subr.bf16.mxu0 0
  %825 = vmatpush1.bf16.msra.mxu0 0
  %826 = vmatprep.subr.bf16.mxu0 0
  %827 = vmatpush1.bf16.msra.mxu0 0
  %828 = vmatprep.subr.bf16.mxu0 0
  %829 = vmatpush1.bf16.msra.mxu0 0
  %830 = vmatprep.subr.bf16.mxu0 0
  %831 = vmatpush1.bf16.msra.mxu0 0
  %832 = vmatprep.subr.bf16.mxu0 0
  %833 = vmatpush1.bf16.msra.mxu0 0
  %834 = vmatprep.subr.bf16.mxu0 0
  %835 = vmatpush1.bf16.msra.mxu0 0
  %836 = vmatprep.subr.bf16.mxu0 0
  %837 = vmatpush1.bf16.msra.mxu0 0
  %838 = vmatprep.mubr.bf16.mxu0 0
  %839 = vmatmul.mubr.bf16.gmra.mrb[0].mxu0 %v642
  %v840 = vpop.f32.mrb[0].mxu0
  %v841 = vadd.f32 %v801, %v840
  %v842 = vpop.f32.mrb[0].mxu0
  %v843 = vpop.f32.mrb[0].mxu0
  %v844 = vpop.f32.mrb[0].mxu0
  %845 = vdwg.mxu0
  %v846 = vadd.f32 %v841, %v456
  %847 = vmatprep.subr.bf16.mxu0 0
  %848 = vmatpush1.bf16.msra.mxu0 %v467
  %849 = vmatprep.subr.bf16.mxu0 0
  %850 = vmatpush1.bf16.msra.mxu0 %v468
  %851 = vmatprep.subr.bf16.mxu0 0
  %852 = vmatpush1.bf16.msra.mxu0 0
  %853 = vmatprep.subr.bf16.mxu0 0
  %854 = vmatpush1.bf16.msra.mxu0 0
  %855 = vmatprep.subr.bf16.mxu0 0
  %856 = vmatpush1.bf16.msra.mxu0 0
  %857 = vmatprep.subr.bf16.mxu0 0
  %858 = vmatpush1.bf16.msra.mxu0 0
  %859 = vmatprep.subr.bf16.mxu0 0
  %860 = vmatpush1.bf16.msra.mxu0 0
  %861 = vmatprep.subr.bf16.mxu0 0
  %862 = vmatpush1.bf16.msra.mxu0 0
  %863 = vmatprep.subr.bf16.mxu0 0
  %864 = vmatpush1.bf16.msra.mxu0 0
  %865 = vmatprep.subr.bf16.mxu0 0
  %866 = vmatpush1.bf16.msra.mxu0 0
  %867 = vmatprep.subr.bf16.mxu0 0
  %868 = vmatpush1.bf16.msra.mxu0 0
  %869 = vmatprep.subr.bf16.mxu0 0
  %870 = vmatpush1.bf16.msra.mxu0 0
  %871 = vmatprep.subr.bf16.mxu0 0
  %872 = vmatpush1.bf16.msra.mxu0 0
  %873 = vmatprep.subr.bf16.mxu0 0
  %874 = vmatpush1.bf16.msra.mxu0 0
  %875 = vmatprep.subr.bf16.mxu0 0
  %876 = vmatpush1.bf16.msra.mxu0 0
  %877 = vmatprep.subr.bf16.mxu0 0
  %878 = vmatpush1.bf16.msra.mxu0 0
  %879 = vmatprep.mubr.bf16.mxu0 0
  %880 = vmatmul.mubr.bf16.gmra.mrb[0].mxu0 %v599
  %v881 = vpop.f32.mrb[0].mxu0
  %v882 = vadd.f32 0.0, %v881
  %v883 = vpop.f32.mrb[0].mxu0
  %v884 = vpop.f32.mrb[0].mxu0
  %v885 = vpop.f32.mrb[0].mxu0
  %886 = vdwg.mxu0
  %887 = vmatprep.subr.bf16.mxu0 0
  %888 = vmatpush1.bf16.msra.mxu0 %v519
  %889 = vmatprep.subr.bf16.mxu0 0
  %890 = vmatpush1.bf16.msra.mxu0 %v520
  %891 = vmatprep.subr.bf16.mxu0 0
  %892 = vmatpush1.bf16.msra.mxu0 0
  %893 = vmatprep.subr.bf16.mxu0 0
  %894 = vmatpush1.bf16.msra.mxu0 0
  %895 = vmatprep.subr.bf16.mxu0 0
  %896 = vmatpush1.bf16.msra.mxu0 0
  %897 = vmatprep.subr.bf16.mxu0 0
  %898 = vmatpush1.bf16.msra.mxu0 0
  %899 = vmatprep.subr.bf16.mxu0 0
  %900 = vmatpush1.bf16.msra.mxu0 0
  %901 = vmatprep.subr.bf16.mxu0 0
  %902 = vmatpush1.bf16.msra.mxu0 0
  %903 = vmatprep.subr.bf16.mxu0 0
  %904 = vmatpush1.bf16.msra.mxu0 0
  %905 = vmatprep.subr.bf16.mxu0 0
  %906 = vmatpush1.bf16.msra.mxu0 0
  %907 = vmatprep.subr.bf16.mxu0 0
  %908 = vmatpush1.bf16.msra.mxu0 0
  %909 = vmatprep.subr.bf16.mxu0 0
  %910 = vmatpush1.bf16.msra.mxu0 0
  %911 = vmatprep.subr.bf16.mxu0 0
  %912 = vmatpush1.bf16.msra.mxu0 0
  %913 = vmatprep.subr.bf16.mxu0 0
  %914 = vmatpush1.bf16.msra.mxu0 0
  %915 = vmatprep.subr.bf16.mxu0 0
  %916 = vmatpush1.bf16.msra.mxu0 0
  %917 = vmatprep.subr.bf16.mxu0 0
  %918 = vmatpush1.bf16.msra.mxu0 0
  %919 = vmatprep.mubr.bf16.mxu0 0
  %920 = vmatmul.mubr.bf16.gmra.mrb[0].mxu0 %v642
  %v921 = vpop.f32.mrb[0].mxu0
  %v922 = vadd.f32 %v882, %v921
  %v923 = vpop.f32.mrb[0].mxu0
  %v924 = vpop.f32.mrb[0].mxu0
  %v925 = vpop.f32.mrb[0].mxu0
  %926 = vdwg.mxu0
  %v927 = vadd.f32 %v922, %v567
  %v928 = vxor.u32 %v684, 2147483648
  %v929 = vmul.f32 %v928, 1.442695
  %v930 = vpow.pop %v929
  %v931 = vadd.f32 %v930, 1.0
  %v932 = vrcp.pop %v931
  %v933 = vmul.f32 1.0, %v932
  %v934 = vxor.u32 %v765, 2147483648
  %v935 = vmul.f32 %v934, 1.442695
  %v936 = vpow.pop %v935
  %v937 = vadd.f32 %v936, 1.0
  %v938 = vrcp.pop %v937
  %v939 = vmul.f32 1.0, %v938
  %v940 = vtanh.pop %v846
  %v941 = vxor.u32 %v927, 2147483648
  %v942 = vmul.f32 %v941, 1.442695
  %v943 = vpow.pop %v942
  %v944 = vadd.f32 %v943, 1.0
  %v945 = vrcp.pop %v944
  %v946 = vmul.f32 1.0, %v945
  %v947 = vmul.f32 %v939, %v591
  %v948 = vmul.f32 %v933, %v940
  %v949 = vadd.f32 %v947, %v948
  %v950 = vtanh.pop %v949
  %v951 = vmul.f32 %v946, %v950
  %s952 = scalar_lea.vmem %s0, 16
  %v953 = vld [vmem:[%s952] sm:$0xff]
  %v954 = vpack.c.bf16 %v953, %v953
  %v955 = vpack.c.bf16 %v951, %v951
  %v957 = vsel %vm131, %v955, 0
  %959 = vmatprep.subr.bf16.mxu0 0
  %960 = vmatpush1.bf16.msra.mxu0 %v127
  %961 = vmatprep.subr.bf16.mxu0 0
  %962 = vmatpush1.bf16.msra.mxu0 %v128
  %963 = vmatprep.subr.bf16.mxu0 0
  %964 = vmatpush1.bf16.msra.mxu0 0
  %965 = vmatprep.subr.bf16.mxu0 0
  %966 = vmatpush1.bf16.msra.mxu0 0
  %967 = vmatprep.subr.bf16.mxu0 0
  %968 = vmatpush1.bf16.msra.mxu0 0
  %969 = vmatprep.subr.bf16.mxu0 0
  %970 = vmatpush1.bf16.msra.mxu0 0
  %971 = vmatprep.subr.bf16.mxu0 0
  %972 = vmatpush1.bf16.msra.mxu0 0
  %973 = vmatprep.subr.bf16.mxu0 0
  %974 = vmatpush1.bf16.msra.mxu0 0
  %975 = vmatprep.subr.bf16.mxu0 0
  %976 = vmatpush1.bf16.msra.mxu0 0
  %977 = vmatprep.subr.bf16.mxu0 0
  %978 = vmatpush1.bf16.msra.mxu0 0
  %979 = vmatprep.subr.bf16.mxu0 0
  %980 = vmatpush1.bf16.msra.mxu0 0
  %981 = vmatprep.subr.bf16.mxu0 0
  %982 = vmatpush1.bf16.msra.mxu0 0
  %983 = vmatprep.subr.bf16.mxu0 0
  %984 = vmatpush1.bf16.msra.mxu0 0
  %985 = vmatprep.subr.bf16.mxu0 0
  %986 = vmatpush1.bf16.msra.mxu0 0
  %987 = vmatprep.subr.bf16.mxu0 0
  %988 = vmatpush1.bf16.msra.mxu0 0
  %989 = vmatprep.subr.bf16.mxu0 0
  %990 = vmatpush1.bf16.msra.mxu0 0
  %991 = vmatprep.mubr.bf16.mxu0 0
  %992 = vmatmul.mubr.bf16.gmra.mrb[0].mxu0 %v957
  %v993 = vpop.f32.mrb[0].mxu0
  %v994 = vadd.f32 0.0, %v993
  %v995 = vpop.f32.mrb[0].mxu0
  %v996 = vpop.f32.mrb[0].mxu0
  %v997 = vpop.f32.mrb[0].mxu0
  %998 = vdwg.mxu0
  %v1000 = vsel %vm131, %v954, 0
  %1002 = vmatprep.subr.bf16.mxu0 0
  %1003 = vmatpush1.bf16.msra.mxu0 %v183
  %1004 = vmatprep.subr.bf16.mxu0 0
  %1005 = vmatpush1.bf16.msra.mxu0 %v184
  %1006 = vmatprep.subr.bf16.mxu0 0
  %1007 = vmatpush1.bf16.msra.mxu0 0
  %1008 = vmatprep.subr.bf16.mxu0 0
  %1009 = vmatpush1.bf16.msra.mxu0 0
  %1010 = vmatprep.subr.bf16.mxu0 0
  %1011 = vmatpush1.bf16.msra.mxu0 0
  %1012 = vmatprep.subr.bf16.mxu0 0
  %1013 = vmatpush1.bf16.msra.mxu0 0
  %1014 = vmatprep.subr.bf16.mxu0 0
  %1015 = vmatpush1.bf16.msra.mxu0 0
  %1016 = vmatprep.subr.bf16.mxu0 0
  %1017 = vmatpush1.bf16.msra.mxu0 0
  %1018 = vmatprep.subr.bf16.mxu0 0
  %1019 = vmatpush1.bf16.msra.mxu0 0
  %1020 = vmatprep.subr.bf16.mxu0 0
  %1021 = vmatpush1.bf16.msra.mxu0 0
  %1022 = vmatprep.subr.bf16.mxu0 0
  %1023 = vmatpush1.bf16.msra.mxu0 0
  %1024 = vmatprep.subr.bf16.mxu0 0
  %1025 = vmatpush1.bf16.msra.mxu0 0
  %1026 = vmatprep.subr.bf16.mxu0 0
  %1027 = vmatpush1.bf16.msra.mxu0 0
  %1028 = vmatprep.subr.bf16.mxu0 0
  %1029 = vmatpush1.bf16.msra.mxu0 0
  %1030 = vmatprep.subr.bf16.mxu0 0
  %1031 = vmatpush1.bf16.msra.mxu0 0
  %1032 = vmatprep.subr.bf16.mxu0 0
  %1033 = vmatpush1.bf16.msra.mxu0 0
  %1034 = vmatprep.mubr.bf16.mxu0 0
  %1035 = vmatmul.mubr.bf16.gmra.mrb[0].mxu0 %v1000
  %v1036 = vpop.f32.mrb[0].mxu0
  %v1037 = vadd.f32 %v994, %v1036
  %v1038 = vpop.f32.mrb[0].mxu0
  %v1039 = vpop.f32.mrb[0].mxu0
  %v1040 = vpop.f32.mrb[0].mxu0
  %1041 = vdwg.mxu0
  %v1042 = vadd.f32 %v1037, %v234
  %1043 = vmatprep.subr.bf16.mxu0 0
  %1044 = vmatpush1.bf16.msra.mxu0 %v245
  %1045 = vmatprep.subr.bf16.mxu0 0
  %1046 = vmatpush1.bf16.msra.mxu0 %v246
  %1047 = vmatprep.subr.bf16.mxu0 0
  %1048 = vmatpush1.bf16.msra.mxu0 0
  %1049 = vmatprep.subr.bf16.mxu0 0
  %1050 = vmatpush1.bf16.msra.mxu0 0
  %1051 = vmatprep.subr.bf16.mxu0 0
  %1052 = vmatpush1.bf16.msra.mxu0 0
  %1053 = vmatprep.subr.bf16.mxu0 0
  %1054 = vmatpush1.bf16.msra.mxu0 0
  %1055 = vmatprep.subr.bf16.mxu0 0
  %1056 = vmatpush1.bf16.msra.mxu0 0
  %1057 = vmatprep.subr.bf16.mxu0 0
  %1058 = vmatpush1.bf16.msra.mxu0 0
  %1059 = vmatprep.subr.bf16.mxu0 0
  %1060 = vmatpush1.bf16.msra.mxu0 0
  %1061 = vmatprep.subr.bf16.mxu0 0
  %1062 = vmatpush1.bf16.msra.mxu0 0
  %1063 = vmatprep.subr.bf16.mxu0 0
  %1064 = vmatpush1.bf16.msra.mxu0 0
  %1065 = vmatprep.subr.bf16.mxu0 0
  %1066 = vmatpush1.bf16.msra.mxu0 0
  %1067 = vmatprep.subr.bf16.mxu0 0
  %1068 = vmatpush1.bf16.msra.mxu0 0
  %1069 = vmatprep.subr.bf16.mxu0 0
  %1070 = vmatpush1.bf16.msra.mxu0 0
  %1071 = vmatprep.subr.bf16.mxu0 0
  %1072 = vmatpush1.bf16.msra.mxu0 0
  %1073 = vmatprep.subr.bf16.mxu0 0
  %1074 = vmatpush1.bf16.msra.mxu0 0
  %1075 = vmatprep.mubr.bf16.mxu0 0
  %1076 = vmatmul.mubr.bf16.gmra.mrb[0].mxu0 %v957
  %v1077 = vpop.f32.mrb[0].mxu0
  %v1078 = vadd.f32 0.0, %v1077
  %v1079 = vpop.f32.mrb[0].mxu0
  %v1080 = vpop.f32.mrb[0].mxu0
  %v1081 = vpop.f32.mrb[0].mxu0
  %1082 = vdwg.mxu0
  %1083 = vmatprep.subr.bf16.mxu0 0
  %1084 = vmatpush1.bf16.msra.mxu0 %v297
  %1085 = vmatprep.subr.bf16.mxu0 0
  %1086 = vmatpush1.bf16.msra.mxu0 %v298
  %1087 = vmatprep.subr.bf16.mxu0 0
  %1088 = vmatpush1.bf16.msra.mxu0 0
  %1089 = vmatprep.subr.bf16.mxu0 0
  %1090 = vmatpush1.bf16.msra.mxu0 0
  %1091 = vmatprep.subr.bf16.mxu0 0
  %1092 = vmatpush1.bf16.msra.mxu0 0
  %1093 = vmatprep.subr.bf16.mxu0 0
  %1094 = vmatpush1.bf16.msra.mxu0 0
  %1095 = vmatprep.subr.bf16.mxu0 0
  %1096 = vmatpush1.bf16.msra.mxu0 0
  %1097 = vmatprep.subr.bf16.mxu0 0
  %1098 = vmatpush1.bf16.msra.mxu0 0
  %1099 = vmatprep.subr.bf16.mxu0 0
  %1100 = vmatpush1.bf16.msra.mxu0 0
  %1101 = vmatprep.subr.bf16.mxu0 0
  %1102 = vmatpush1.bf16.msra.mxu0 0
  %1103 = vmatprep.subr.bf16.mxu0 0
  %1104 = vmatpush1.bf16.msra.mxu0 0
  %1105 = vmatprep.subr.bf16.mxu0 0
  %1106 = vmatpush1.bf16.msra.mxu0 0
  %1107 = vmatprep.subr.bf16.mxu0 0
  %1108 = vmatpush1.bf16.msra.mxu0 0
  %1109 = vmatprep.subr.bf16.mxu0 0
  %1110 = vmatpush1.bf16.msra.mxu0 0
  %1111 = vmatprep.subr.bf16.mxu0 0
  %1112 = vmatpush1.bf16.msra.mxu0 0
  %1113 = vmatprep.subr.bf16.mxu0 0
  %1114 = vmatpush1.bf16.msra.mxu0 0
  %1115 = vmatprep.mubr.bf16.mxu0 0
  %1116 = vmatmul.mubr.bf16.gmra.mrb[0].mxu0 %v1000
  %v1117 = vpop.f32.mrb[0].mxu0
  %v1118 = vadd.f32 %v1078, %v1117
  %v1119 = vpop.f32.mrb[0].mxu0
  %v1120 = vpop.f32.mrb[0].mxu0
  %v1121 = vpop.f32.mrb[0].mxu0
  %1122 = vdwg.mxu0
  %v1123 = vadd.f32 %v1118, %v345
  %1124 = vmatprep.subr.bf16.mxu0 0
  %1125 = vmatpush1.bf16.msra.mxu0 %v356
  %1126 = vmatprep.subr.bf16.mxu0 0
  %1127 = vmatpush1.bf16.msra.mxu0 %v357
  %1128 = vmatprep.subr.bf16.mxu0 0
  %1129 = vmatpush1.bf16.msra.mxu0 0
  %1130 = vmatprep.subr.bf16.mxu0 0
  %1131 = vmatpush1.bf16.msra.mxu0 0
  %1132 = vmatprep.subr.bf16.mxu0 0
  %1133 = vmatpush1.bf16.msra.mxu0 0
  %1134 = vmatprep.subr.bf16.mxu0 0
  %1135 = vmatpush1.bf16.msra.mxu0 0
  %1136 = vmatprep.subr.bf16.mxu0 0
  %1137 = vmatpush1.bf16.msra.mxu0 0
  %1138 = vmatprep.subr.bf16.mxu0 0
  %1139 = vmatpush1.bf16.msra.mxu0 0
  %1140 = vmatprep.subr.bf16.mxu0 0
  %1141 = vmatpush1.bf16.msra.mxu0 0
  %1142 = vmatprep.subr.bf16.mxu0 0
  %1143 = vmatpush1.bf16.msra.mxu0 0
  %1144 = vmatprep.subr.bf16.mxu0 0
  %1145 = vmatpush1.bf16.msra.mxu0 0
  %1146 = vmatprep.subr.bf16.mxu0 0
  %1147 = vmatpush1.bf16.msra.mxu0 0
  %1148 = vmatprep.subr.bf16.mxu0 0
  %1149 = vmatpush1.bf16.msra.mxu0 0
  %1150 = vmatprep.subr.bf16.mxu0 0
  %1151 = vmatpush1.bf16.msra.mxu0 0
  %1152 = vmatprep.subr.bf16.mxu0 0
  %1153 = vmatpush1.bf16.msra.mxu0 0
  %1154 = vmatprep.subr.bf16.mxu0 0
  %1155 = vmatpush1.bf16.msra.mxu0 0
  %1156 = vmatprep.mubr.bf16.mxu0 0
  %1157 = vmatmul.mubr.bf16.gmra.mrb[0].mxu0 %v957
  %v1158 = vpop.f32.mrb[0].mxu0
  %v1159 = vadd.f32 0.0, %v1158
  %v1160 = vpop.f32.mrb[0].mxu0
  %v1161 = vpop.f32.mrb[0].mxu0
  %v1162 = vpop.f32.mrb[0].mxu0
  %1163 = vdwg.mxu0
  %1164 = vmatprep.subr.bf16.mxu0 0
  %1165 = vmatpush1.bf16.msra.mxu0 %v408
  %1166 = vmatprep.subr.bf16.mxu0 0
  %1167 = vmatpush1.bf16.msra.mxu0 %v409
  %1168 = vmatprep.subr.bf16.mxu0 0
  %1169 = vmatpush1.bf16.msra.mxu0 0
  %1170 = vmatprep.subr.bf16.mxu0 0
  %1171 = vmatpush1.bf16.msra.mxu0 0
  %1172 = vmatprep.subr.bf16.mxu0 0
  %1173 = vmatpush1.bf16.msra.mxu0 0
  %1174 = vmatprep.subr.bf16.mxu0 0
  %1175 = vmatpush1.bf16.msra.mxu0 0
  %1176 = vmatprep.subr.bf16.mxu0 0
  %1177 = vmatpush1.bf16.msra.mxu0 0
  %1178 = vmatprep.subr.bf16.mxu0 0
  %1179 = vmatpush1.bf16.msra.mxu0 0
  %1180 = vmatprep.subr.bf16.mxu0 0
  %1181 = vmatpush1.bf16.msra.mxu0 0
  %1182 = vmatprep.subr.bf16.mxu0 0
  %1183 = vmatpush1.bf16.msra.mxu0 0
  %1184 = vmatprep.subr.bf16.mxu0 0
  %1185 = vmatpush1.bf16.msra.mxu0 0
  %1186 = vmatprep.subr.bf16.mxu0 0
  %1187 = vmatpush1.bf16.msra.mxu0 0
  %1188 = vmatprep.subr.bf16.mxu0 0
  %1189 = vmatpush1.bf16.msra.mxu0 0
  %1190 = vmatprep.subr.bf16.mxu0 0
  %1191 = vmatpush1.bf16.msra.mxu0 0
  %1192 = vmatprep.subr.bf16.mxu0 0
  %1193 = vmatpush1.bf16.msra.mxu0 0
  %1194 = vmatprep.subr.bf16.mxu0 0
  %1195 = vmatpush1.bf16.msra.mxu0 0
  %1196 = vmatprep.mubr.bf16.mxu0 0
  %1197 = vmatmul.mubr.bf16.gmra.mrb[0].mxu0 %v1000
  %v1198 = vpop.f32.mrb[0].mxu0
  %v1199 = vadd.f32 %v1159, %v1198
  %v1200 = vpop.f32.mrb[0].mxu0
  %v1201 = vpop.f32.mrb[0].mxu0
  %v1202 = vpop.f32.mrb[0].mxu0
  %1203 = vdwg.mxu0
  %v1204 = vadd.f32 %v1199, %v456
  %1205 = vmatprep.subr.bf16.mxu0 0
  %1206 = vmatpush1.bf16.msra.mxu0 %v467
  %1207 = vmatprep.subr.bf16.mxu0 0
  %1208 = vmatpush1.bf16.msra.mxu0 %v468
  %1209 = vmatprep.subr.bf16.mxu0 0
  %1210 = vmatpush1.bf16.msra.mxu0 0
  %1211 = vmatprep.subr.bf16.mxu0 0
  %1212 = vmatpush1.bf16.msra.mxu0 0
  %1213 = vmatprep.subr.bf16.mxu0 0
  %1214 = vmatpush1.bf16.msra.mxu0 0
  %1215 = vmatprep.subr.bf16.mxu0 0
  %1216 = vmatpush1.bf16.msra.mxu0 0
  %1217 = vmatprep.subr.bf16.mxu0 0
  %1218 = vmatpush1.bf16.msra.mxu0 0
  %1219 = vmatprep.subr.bf16.mxu0 0
  %1220 = vmatpush1.bf16.msra.mxu0 0
  %1221 = vmatprep.subr.bf16.mxu0 0
  %1222 = vmatpush1.bf16.msra.mxu0 0
  %1223 = vmatprep.subr.bf16.mxu0 0
  %1224 = vmatpush1.bf16.msra.mxu0 0
  %1225 = vmatprep.subr.bf16.mxu0 0
  %1226 = vmatpush1.bf16.msra.mxu0 0
  %1227 = vmatprep.subr.bf16.mxu0 0
  %1228 = vmatpush1.bf16.msra.mxu0 0
  %1229 = vmatprep.subr.bf16.mxu0 0
  %1230 = vmatpush1.bf16.msra.mxu0 0
  %1231 = vmatprep.subr.bf16.mxu0 0
  %1232 = vmatpush1.bf16.msra.mxu0 0
  %1233 = vmatprep.subr.bf16.mxu0 0
  %1234 = vmatpush1.bf16.msra.mxu0 0
  %1235 = vmatprep.subr.bf16.mxu0 0
  %1236 = vmatpush1.bf16.msra.mxu0 0
  %1237 = vmatprep.mubr.bf16.mxu0 0
  %1238 = vmatmul.mubr.bf16.gmra.mrb[0].mxu0 %v957
  %v1239 = vpop.f32.mrb[0].mxu0
  %v1240 = vadd.f32 0.0, %v1239
  %v1241 = vpop.f32.mrb[0].mxu0
  %v1242 = vpop.f32.mrb[0].mxu0
  %v1243 = vpop.f32.mrb[0].mxu0
  %1244 = vdwg.mxu0
  %1245 = vmatprep.subr.bf16.mxu0 0
  %1246 = vmatpush1.bf16.msra.mxu0 %v519
  %1247 = vmatprep.subr.bf16.mxu0 0
  %1248 = vmatpush1.bf16.msra.mxu0 %v520
  %1249 = vmatprep.subr.bf16.mxu0 0
  %1250 = vmatpush1.bf16.msra.mxu0 0
  %1251 = vmatprep.subr.bf16.mxu0 0
  %1252 = vmatpush1.bf16.msra.mxu0 0
  %1253 = vmatprep.subr.bf16.mxu0 0
  %1254 = vmatpush1.bf16.msra.mxu0 0
  %1255 = vmatprep.subr.bf16.mxu0 0
  %1256 = vmatpush1.bf16.msra.mxu0 0
  %1257 = vmatprep.subr.bf16.mxu0 0
  %1258 = vmatpush1.bf16.msra.mxu0 0
  %1259 = vmatprep.subr.bf16.mxu0 0
  %1260 = vmatpush1.bf16.msra.mxu0 0
  %1261 = vmatprep.subr.bf16.mxu0 0
  %1262 = vmatpush1.bf16.msra.mxu0 0
  %1263 = vmatprep.subr.bf16.mxu0 0
  %1264 = vmatpush1.bf16.msra.mxu0 0
  %1265 = vmatprep.subr.bf16.mxu0 0
  %1266 = vmatpush1.bf16.msra.mxu0 0
  %1267 = vmatprep.subr.bf16.mxu0 0
  %1268 = vmatpush1.bf16.msra.mxu0 0
  %1269 = vmatprep.subr.bf16.mxu0 0
  %1270 = vmatpush1.bf16.msra.mxu0 0
  %1271 = vmatprep.subr.bf16.mxu0 0
  %1272 = vmatpush1.bf16.msra.mxu0 0
  %1273 = vmatprep.subr.bf16.mxu0 0
  %1274 = vmatpush1.bf16.msra.mxu0 0
  %1275 = vmatprep.subr.bf16.mxu0 0
  %1276 = vmatpush1.bf16.msra.mxu0 0
  %1277 = vmatprep.mubr.bf16.mxu0 0
  %1278 = vmatmul.mubr.bf16.gmra.mrb[0].mxu0 %v1000
  %v1279 = vpop.f32.mrb[0].mxu0
  %v1280 = vadd.f32 %v1240, %v1279
  %v1281 = vpop.f32.mrb[0].mxu0
  %v1282 = vpop.f32.mrb[0].mxu0
  %v1283 = vpop.f32.mrb[0].mxu0
  %1284 = vdwg.mxu0
  %v1285 = vadd.f32 %v1280, %v567
  %v1286 = vxor.u32 %v1042, 2147483648
  %v1287 = vmul.f32 %v1286, 1.442695
  %v1288 = vpow.pop %v1287
  %v1289 = vadd.f32 %v1288, 1.0
  %v1290 = vrcp.pop %v1289
  %v1291 = vmul.f32 1.0, %v1290
  %v1292 = vxor.u32 %v1123, 2147483648
  %v1293 = vmul.f32 %v1292, 1.442695
  %v1294 = vpow.pop %v1293
  %v1295 = vadd.f32 %v1294, 1.0
  %v1296 = vrcp.pop %v1295
  %v1297 = vmul.f32 1.0, %v1296
  %v1298 = vtanh.pop %v1204
  %v1299 = vxor.u32 %v1285, 2147483648
  %v1300 = vmul.f32 %v1299, 1.442695
  %v1301 = vpow.pop %v1300
  %v1302 = vadd.f32 %v1301, 1.0
  %v1303 = vrcp.pop %v1302
  %v1304 = vmul.f32 1.0, %v1303
  %v1305 = vmul.f32 %v1297, %v949
  %v1306 = vmul.f32 %v1291, %v1298
  %v1307 = vadd.f32 %v1305, %v1306
  %v1308 = vtanh.pop %v1307
  %v1309 = vmul.f32 %v1304, %v1308
  %s1310 = scalar_lea.vmem %s0, 24
  %v1311 = vld [vmem:[%s1310] sm:$0xff]
  %v1312 = vpack.c.bf16 %v1311, %v1311
  %v1313 = vpack.c.bf16 %v1309, %v1309
  %v1315 = vsel %vm131, %v1313, 0
  %1317 = vmatprep.subr.bf16.mxu0 0
  %1318 = vmatpush1.bf16.msra.mxu0 %v127
  %1319 = vmatprep.subr.bf16.mxu0 0
  %1320 = vmatpush1.bf16.msra.mxu0 %v128
  %1321 = vmatprep.subr.bf16.mxu0 0
  %1322 = vmatpush1.bf16.msra.mxu0 0
  %1323 = vmatprep.subr.bf16.mxu0 0
  %1324 = vmatpush1.bf16.msra.mxu0 0
  %1325 = vmatprep.subr.bf16.mxu0 0
  %1326 = vmatpush1.bf16.msra.mxu0 0
  %1327 = vmatprep.subr.bf16.mxu0 0
  %1328 = vmatpush1.bf16.msra.mxu0 0
  %1329 = vmatprep.subr.bf16.mxu0 0
  %1330 = vmatpush1.bf16.msra.mxu0 0
  %1331 = vmatprep.subr.bf16.mxu0 0
  %1332 = vmatpush1.bf16.msra.mxu0 0
  %1333 = vmatprep.subr.bf16.mxu0 0
  %1334 = vmatpush1.bf16.msra.mxu0 0
  %1335 = vmatprep.subr.bf16.mxu0 0
  %1336 = vmatpush1.bf16.msra.mxu0 0
  %1337 = vmatprep.subr.bf16.mxu0 0
  %1338 = vmatpush1.bf16.msra.mxu0 0
  %1339 = vmatprep.subr.bf16.mxu0 0
  %1340 = vmatpush1.bf16.msra.mxu0 0
  %1341 = vmatprep.subr.bf16.mxu0 0
  %1342 = vmatpush1.bf16.msra.mxu0 0
  %1343 = vmatprep.subr.bf16.mxu0 0
  %1344 = vmatpush1.bf16.msra.mxu0 0
  %1345 = vmatprep.subr.bf16.mxu0 0
  %1346 = vmatpush1.bf16.msra.mxu0 0
  %1347 = vmatprep.subr.bf16.mxu0 0
  %1348 = vmatpush1.bf16.msra.mxu0 0
  %1349 = vmatprep.mubr.bf16.mxu0 0
  %1350 = vmatmul.mubr.bf16.gmra.mrb[0].mxu0 %v1315
  %v1351 = vpop.f32.mrb[0].mxu0
  %v1352 = vadd.f32 0.0, %v1351
  %v1353 = vpop.f32.mrb[0].mxu0
  %v1354 = vpop.f32.mrb[0].mxu0
  %v1355 = vpop.f32.mrb[0].mxu0
  %1356 = vdwg.mxu0
  %v1358 = vsel %vm131, %v1312, 0
  %1360 = vmatprep.subr.bf16.mxu0 0
  %1361 = vmatpush1.bf16.msra.mxu0 %v183
  %1362 = vmatprep.subr.bf16.mxu0 0
  %1363 = vmatpush1.bf16.msra.mxu0 %v184
  %1364 = vmatprep.subr.bf16.mxu0 0
  %1365 = vmatpush1.bf16.msra.mxu0 0
  %1366 = vmatprep.subr.bf16.mxu0 0
  %1367 = vmatpush1.bf16.msra.mxu0 0
  %1368 = vmatprep.subr.bf16.mxu0 0
  %1369 = vmatpush1.bf16.msra.mxu0 0
  %1370 = vmatprep.subr.bf16.mxu0 0
  %1371 = vmatpush1.bf16.msra.mxu0 0
  %1372 = vmatprep.subr.bf16.mxu0 0
  %1373 = vmatpush1.bf16.msra.mxu0 0
  %1374 = vmatprep.subr.bf16.mxu0 0
  %1375 = vmatpush1.bf16.msra.mxu0 0
  %1376 = vmatprep.subr.bf16.mxu0 0
  %1377 = vmatpush1.bf16.msra.mxu0 0
  %1378 = vmatprep.subr.bf16.mxu0 0
  %1379 = vmatpush1.bf16.msra.mxu0 0
  %1380 = vmatprep.subr.bf16.mxu0 0
  %1381 = vmatpush1.bf16.msra.mxu0 0
  %1382 = vmatprep.subr.bf16.mxu0 0
  %1383 = vmatpush1.bf16.msra.mxu0 0
  %1384 = vmatprep.subr.bf16.mxu0 0
  %1385 = vmatpush1.bf16.msra.mxu0 0
  %1386 = vmatprep.subr.bf16.mxu0 0
  %1387 = vmatpush1.bf16.msra.mxu0 0
  %1388 = vmatprep.subr.bf16.mxu0 0
  %1389 = vmatpush1.bf16.msra.mxu0 0
  %1390 = vmatprep.subr.bf16.mxu0 0
  %1391 = vmatpush1.bf16.msra.mxu0 0
  %1392 = vmatprep.mubr.bf16.mxu0 0
  %1393 = vmatmul.mubr.bf16.gmra.mrb[0].mxu0 %v1358
  %v1394 = vpop.f32.mrb[0].mxu0
  %v1395 = vadd.f32 %v1352, %v1394
  %v1396 = vpop.f32.mrb[0].mxu0
  %v1397 = vpop.f32.mrb[0].mxu0
  %v1398 = vpop.f32.mrb[0].mxu0
  %1399 = vdwg.mxu0
  %v1400 = vadd.f32 %v1395, %v234
  %1401 = vmatprep.subr.bf16.mxu0 0
  %1402 = vmatpush1.bf16.msra.mxu0 %v245
  %1403 = vmatprep.subr.bf16.mxu0 0
  %1404 = vmatpush1.bf16.msra.mxu0 %v246
  %1405 = vmatprep.subr.bf16.mxu0 0
  %1406 = vmatpush1.bf16.msra.mxu0 0
  %1407 = vmatprep.subr.bf16.mxu0 0
  %1408 = vmatpush1.bf16.msra.mxu0 0
  %1409 = vmatprep.subr.bf16.mxu0 0
  %1410 = vmatpush1.bf16.msra.mxu0 0
  %1411 = vmatprep.subr.bf16.mxu0 0
  %1412 = vmatpush1.bf16.msra.mxu0 0
  %1413 = vmatprep.subr.bf16.mxu0 0
  %1414 = vmatpush1.bf16.msra.mxu0 0
  %1415 = vmatprep.subr.bf16.mxu0 0
  %1416 = vmatpush1.bf16.msra.mxu0 0
  %1417 = vmatprep.subr.bf16.mxu0 0
  %1418 = vmatpush1.bf16.msra.mxu0 0
  %1419 = vmatprep.subr.bf16.mxu0 0
  %1420 = vmatpush1.bf16.msra.mxu0 0
  %1421 = vmatprep.subr.bf16.mxu0 0
  %1422 = vmatpush1.bf16.msra.mxu0 0
  %1423 = vmatprep.subr.bf16.mxu0 0
  %1424 = vmatpush1.bf16.msra.mxu0 0
  %1425 = vmatprep.subr.bf16.mxu0 0
  %1426 = vmatpush1.bf16.msra.mxu0 0
  %1427 = vmatprep.subr.bf16.mxu0 0
  %1428 = vmatpush1.bf16.msra.mxu0 0
  %1429 = vmatprep.subr.bf16.mxu0 0
  %1430 = vmatpush1.bf16.msra.mxu0 0
  %1431 = vmatprep.subr.bf16.mxu0 0
  %1432 = vmatpush1.bf16.msra.mxu0 0
  %1433 = vmatprep.mubr.bf16.mxu0 0
  %1434 = vmatmul.mubr.bf16.gmra.mrb[0].mxu0 %v1315
  %v1435 = vpop.f32.mrb[0].mxu0
  %v1436 = vadd.f32 0.0, %v1435
  %v1437 = vpop.f32.mrb[0].mxu0
  %v1438 = vpop.f32.mrb[0].mxu0
  %v1439 = vpop.f32.mrb[0].mxu0
  %1440 = vdwg.mxu0
  %1441 = vmatprep.subr.bf16.mxu0 0
  %1442 = vmatpush1.bf16.msra.mxu0 %v297
  %1443 = vmatprep.subr.bf16.mxu0 0
  %1444 = vmatpush1.bf16.msra.mxu0 %v298
  %1445 = vmatprep.subr.bf16.mxu0 0
  %1446 = vmatpush1.bf16.msra.mxu0 0
  %1447 = vmatprep.subr.bf16.mxu0 0
  %1448 = vmatpush1.bf16.msra.mxu0 0
  %1449 = vmatprep.subr.bf16.mxu0 0
  %1450 = vmatpush1.bf16.msra.mxu0 0
  %1451 = vmatprep.subr.bf16.mxu0 0
  %1452 = vmatpush1.bf16.msra.mxu0 0
  %1453 = vmatprep.subr.bf16.mxu0 0
  %1454 = vmatpush1.bf16.msra.mxu0 0
  %1455 = vmatprep.subr.bf16.mxu0 0
  %1456 = vmatpush1.bf16.msra.mxu0 0
  %1457 = vmatprep.subr.bf16.mxu0 0
  %1458 = vmatpush1.bf16.msra.mxu0 0
  %1459 = vmatprep.subr.bf16.mxu0 0
  %1460 = vmatpush1.bf16.msra.mxu0 0
  %1461 = vmatprep.subr.bf16.mxu0 0
  %1462 = vmatpush1.bf16.msra.mxu0 0
  %1463 = vmatprep.subr.bf16.mxu0 0
  %1464 = vmatpush1.bf16.msra.mxu0 0
  %1465 = vmatprep.subr.bf16.mxu0 0
  %1466 = vmatpush1.bf16.msra.mxu0 0
  %1467 = vmatprep.subr.bf16.mxu0 0
  %1468 = vmatpush1.bf16.msra.mxu0 0
  %1469 = vmatprep.subr.bf16.mxu0 0
  %1470 = vmatpush1.bf16.msra.mxu0 0
  %1471 = vmatprep.subr.bf16.mxu0 0
  %1472 = vmatpush1.bf16.msra.mxu0 0
  %1473 = vmatprep.mubr.bf16.mxu0 0
  %1474 = vmatmul.mubr.bf16.gmra.mrb[0].mxu0 %v1358
  %v1475 = vpop.f32.mrb[0].mxu0
  %v1476 = vadd.f32 %v1436, %v1475
  %v1477 = vpop.f32.mrb[0].mxu0
  %v1478 = vpop.f32.mrb[0].mxu0
  %v1479 = vpop.f32.mrb[0].mxu0
  %1480 = vdwg.mxu0
  %v1481 = vadd.f32 %v1476, %v345
  %1482 = vmatprep.subr.bf16.mxu0 0
  %1483 = vmatpush1.bf16.msra.mxu0 %v356
  %1484 = vmatprep.subr.bf16.mxu0 0
  %1485 = vmatpush1.bf16.msra.mxu0 %v357
  %1486 = vmatprep.subr.bf16.mxu0 0
  %1487 = vmatpush1.bf16.msra.mxu0 0
  %1488 = vmatprep.subr.bf16.mxu0 0
  %1489 = vmatpush1.bf16.msra.mxu0 0
  %1490 = vmatprep.subr.bf16.mxu0 0
  %1491 = vmatpush1.bf16.msra.mxu0 0
  %1492 = vmatprep.subr.bf16.mxu0 0
  %1493 = vmatpush1.bf16.msra.mxu0 0
  %1494 = vmatprep.subr.bf16.mxu0 0
  %1495 = vmatpush1.bf16.msra.mxu0 0
  %1496 = vmatprep.subr.bf16.mxu0 0
  %1497 = vmatpush1.bf16.msra.mxu0 0
  %1498 = vmatprep.subr.bf16.mxu0 0
  %1499 = vmatpush1.bf16.msra.mxu0 0
  %1500 = vmatprep.subr.bf16.mxu0 0
  %1501 = vmatpush1.bf16.msra.mxu0 0
  %1502 = vmatprep.subr.bf16.mxu0 0
  %1503 = vmatpush1.bf16.msra.mxu0 0
  %1504 = vmatprep.subr.bf16.mxu0 0
  %1505 = vmatpush1.bf16.msra.mxu0 0
  %1506 = vmatprep.subr.bf16.mxu0 0
  %1507 = vmatpush1.bf16.msra.mxu0 0
  %1508 = vmatprep.subr.bf16.mxu0 0
  %1509 = vmatpush1.bf16.msra.mxu0 0
  %1510 = vmatprep.subr.bf16.mxu0 0
  %1511 = vmatpush1.bf16.msra.mxu0 0
  %1512 = vmatprep.subr.bf16.mxu0 0
  %1513 = vmatpush1.bf16.msra.mxu0 0
  %1514 = vmatprep.mubr.bf16.mxu0 0
  %1515 = vmatmul.mubr.bf16.gmra.mrb[0].mxu0 %v1315
  %v1516 = vpop.f32.mrb[0].mxu0
  %v1517 = vadd.f32 0.0, %v1516
  %v1518 = vpop.f32.mrb[0].mxu0
  %v1519 = vpop.f32.mrb[0].mxu0
  %v1520 = vpop.f32.mrb[0].mxu0
  %1521 = vdwg.mxu0
  %1522 = vmatprep.subr.bf16.mxu0 0
  %1523 = vmatpush1.bf16.msra.mxu0 %v408
  %1524 = vmatprep.subr.bf16.mxu0 0
  %1525 = vmatpush1.bf16.msra.mxu0 %v409
  %1526 = vmatprep.subr.bf16.mxu0 0
  %1527 = vmatpush1.bf16.msra.mxu0 0
  %1528 = vmatprep.subr.bf16.mxu0 0
  %1529 = vmatpush1.bf16.msra.mxu0 0
  %1530 = vmatprep.subr.bf16.mxu0 0
  %1531 = vmatpush1.bf16.msra.mxu0 0
  %1532 = vmatprep.subr.bf16.mxu0 0
  %1533 = vmatpush1.bf16.msra.mxu0 0
  %1534 = vmatprep.subr.bf16.mxu0 0
  %1535 = vmatpush1.bf16.msra.mxu0 0
  %1536 = vmatprep.subr.bf16.mxu0 0
  %1537 = vmatpush1.bf16.msra.mxu0 0
  %1538 = vmatprep.subr.bf16.mxu0 0
  %1539 = vmatpush1.bf16.msra.mxu0 0
  %1540 = vmatprep.subr.bf16.mxu0 0
  %1541 = vmatpush1.bf16.msra.mxu0 0
  %1542 = vmatprep.subr.bf16.mxu0 0
  %1543 = vmatpush1.bf16.msra.mxu0 0
  %1544 = vmatprep.subr.bf16.mxu0 0
  %1545 = vmatpush1.bf16.msra.mxu0 0
  %1546 = vmatprep.subr.bf16.mxu0 0
  %1547 = vmatpush1.bf16.msra.mxu0 0
  %1548 = vmatprep.subr.bf16.mxu0 0
  %1549 = vmatpush1.bf16.msra.mxu0 0
  %1550 = vmatprep.subr.bf16.mxu0 0
  %1551 = vmatpush1.bf16.msra.mxu0 0
  %1552 = vmatprep.subr.bf16.mxu0 0
  %1553 = vmatpush1.bf16.msra.mxu0 0
  %1554 = vmatprep.mubr.bf16.mxu0 0
  %1555 = vmatmul.mubr.bf16.gmra.mrb[0].mxu0 %v1358
  %v1556 = vpop.f32.mrb[0].mxu0
  %v1557 = vadd.f32 %v1517, %v1556
  %v1558 = vpop.f32.mrb[0].mxu0
  %v1559 = vpop.f32.mrb[0].mxu0
  %v1560 = vpop.f32.mrb[0].mxu0
  %1561 = vdwg.mxu0
  %v1562 = vadd.f32 %v1557, %v456
  %1563 = vmatprep.subr.bf16.mxu0 0
  %1564 = vmatpush1.bf16.msra.mxu0 %v467
  %1565 = vmatprep.subr.bf16.mxu0 0
  %1566 = vmatpush1.bf16.msra.mxu0 %v468
  %1567 = vmatprep.subr.bf16.mxu0 0
  %1568 = vmatpush1.bf16.msra.mxu0 0
  %1569 = vmatprep.subr.bf16.mxu0 0
  %1570 = vmatpush1.bf16.msra.mxu0 0
  %1571 = vmatprep.subr.bf16.mxu0 0
  %1572 = vmatpush1.bf16.msra.mxu0 0
  %1573 = vmatprep.subr.bf16.mxu0 0
  %1574 = vmatpush1.bf16.msra.mxu0 0
  %1575 = vmatprep.subr.bf16.mxu0 0
  %1576 = vmatpush1.bf16.msra.mxu0 0
  %1577 = vmatprep.subr.bf16.mxu0 0
  %1578 = vmatpush1.bf16.msra.mxu0 0
  %1579 = vmatprep.subr.bf16.mxu0 0
  %1580 = vmatpush1.bf16.msra.mxu0 0
  %1581 = vmatprep.subr.bf16.mxu0 0
  %1582 = vmatpush1.bf16.msra.mxu0 0
  %1583 = vmatprep.subr.bf16.mxu0 0
  %1584 = vmatpush1.bf16.msra.mxu0 0
  %1585 = vmatprep.subr.bf16.mxu0 0
  %1586 = vmatpush1.bf16.msra.mxu0 0
  %1587 = vmatprep.subr.bf16.mxu0 0
  %1588 = vmatpush1.bf16.msra.mxu0 0
  %1589 = vmatprep.subr.bf16.mxu0 0
  %1590 = vmatpush1.bf16.msra.mxu0 0
  %1591 = vmatprep.subr.bf16.mxu0 0
  %1592 = vmatpush1.bf16.msra.mxu0 0
  %1593 = vmatprep.subr.bf16.mxu0 0
  %1594 = vmatpush1.bf16.msra.mxu0 0
  %1595 = vmatprep.mubr.bf16.mxu0 0
  %1596 = vmatmul.mubr.bf16.gmra.mrb[0].mxu0 %v1315
  %v1597 = vpop.f32.mrb[0].mxu0
  %v1598 = vadd.f32 0.0, %v1597
  %v1599 = vpop.f32.mrb[0].mxu0
  %v1600 = vpop.f32.mrb[0].mxu0
  %v1601 = vpop.f32.mrb[0].mxu0
  %1602 = vdwg.mxu0
  %1603 = vmatprep.subr.bf16.mxu0 0
  %1604 = vmatpush1.bf16.msra.mxu0 %v519
  %1605 = vmatprep.subr.bf16.mxu0 0
  %1606 = vmatpush1.bf16.msra.mxu0 %v520
  %1607 = vmatprep.subr.bf16.mxu0 0
  %1608 = vmatpush1.bf16.msra.mxu0 0
  %1609 = vmatprep.subr.bf16.mxu0 0
  %1610 = vmatpush1.bf16.msra.mxu0 0
  %1611 = vmatprep.subr.bf16.mxu0 0
  %1612 = vmatpush1.bf16.msra.mxu0 0
  %1613 = vmatprep.subr.bf16.mxu0 0
  %1614 = vmatpush1.bf16.msra.mxu0 0
  %1615 = vmatprep.subr.bf16.mxu0 0
  %1616 = vmatpush1.bf16.msra.mxu0 0
  %1617 = vmatprep.subr.bf16.mxu0 0
  %1618 = vmatpush1.bf16.msra.mxu0 0
  %1619 = vmatprep.subr.bf16.mxu0 0
  %1620 = vmatpush1.bf16.msra.mxu0 0
  %1621 = vmatprep.subr.bf16.mxu0 0
  %1622 = vmatpush1.bf16.msra.mxu0 0
  %1623 = vmatprep.subr.bf16.mxu0 0
  %1624 = vmatpush1.bf16.msra.mxu0 0
  %1625 = vmatprep.subr.bf16.mxu0 0
  %1626 = vmatpush1.bf16.msra.mxu0 0
  %1627 = vmatprep.subr.bf16.mxu0 0
  %1628 = vmatpush1.bf16.msra.mxu0 0
  %1629 = vmatprep.subr.bf16.mxu0 0
  %1630 = vmatpush1.bf16.msra.mxu0 0
  %1631 = vmatprep.subr.bf16.mxu0 0
  %1632 = vmatpush1.bf16.msra.mxu0 0
  %1633 = vmatprep.subr.bf16.mxu0 0
  %1634 = vmatpush1.bf16.msra.mxu0 0
  %1635 = vmatprep.mubr.bf16.mxu0 0
  %1636 = vmatmul.mubr.bf16.gmra.mrb[0].mxu0 %v1358
  %v1637 = vpop.f32.mrb[0].mxu0
  %v1638 = vadd.f32 %v1598, %v1637
  %v1639 = vpop.f32.mrb[0].mxu0
  %v1640 = vpop.f32.mrb[0].mxu0
  %v1641 = vpop.f32.mrb[0].mxu0
  %1642 = vdwg.mxu0
  %v1643 = vadd.f32 %v1638, %v567
  %v1644 = vxor.u32 %v1400, 2147483648
  %v1645 = vmul.f32 %v1644, 1.442695
  %v1646 = vpow.pop %v1645
  %v1647 = vadd.f32 %v1646, 1.0
  %v1648 = vrcp.pop %v1647
  %v1649 = vmul.f32 1.0, %v1648
  %v1650 = vxor.u32 %v1481, 2147483648
  %v1651 = vmul.f32 %v1650, 1.442695
  %v1652 = vpow.pop %v1651
  %v1653 = vadd.f32 %v1652, 1.0
  %v1654 = vrcp.pop %v1653
  %v1655 = vmul.f32 1.0, %v1654
  %v1656 = vtanh.pop %v1562
  %v1657 = vxor.u32 %v1643, 2147483648
  %v1658 = vmul.f32 %v1657, 1.442695
  %v1659 = vpow.pop %v1658
  %v1660 = vadd.f32 %v1659, 1.0
  %v1661 = vrcp.pop %v1660
  %v1662 = vmul.f32 1.0, %v1661
  %v1663 = vmul.f32 %v1655, %v1307
  %v1664 = vmul.f32 %v1649, %v1656
  %v1665 = vadd.f32 %v1663, %v1664
  %v1666 = vtanh.pop %v1665
  %v1667 = vmul.f32 %v1662, %v1666
  %s1668 = scalar_lea.vmem %s0, 32
  %v1669 = vld [vmem:[%s1668] sm:$0xff]
  %v1670 = vpack.c.bf16 %v1669, %v1669
  %v1671 = vpack.c.bf16 %v1667, %v1667
  %v1673 = vsel %vm131, %v1671, 0
  %1675 = vmatprep.subr.bf16.mxu0 0
  %1676 = vmatpush1.bf16.msra.mxu0 %v127
  %1677 = vmatprep.subr.bf16.mxu0 0
  %1678 = vmatpush1.bf16.msra.mxu0 %v128
  %1679 = vmatprep.subr.bf16.mxu0 0
  %1680 = vmatpush1.bf16.msra.mxu0 0
  %1681 = vmatprep.subr.bf16.mxu0 0
  %1682 = vmatpush1.bf16.msra.mxu0 0
  %1683 = vmatprep.subr.bf16.mxu0 0
  %1684 = vmatpush1.bf16.msra.mxu0 0
  %1685 = vmatprep.subr.bf16.mxu0 0
  %1686 = vmatpush1.bf16.msra.mxu0 0
  %1687 = vmatprep.subr.bf16.mxu0 0
  %1688 = vmatpush1.bf16.msra.mxu0 0
  %1689 = vmatprep.subr.bf16.mxu0 0
  %1690 = vmatpush1.bf16.msra.mxu0 0
  %1691 = vmatprep.subr.bf16.mxu0 0
  %1692 = vmatpush1.bf16.msra.mxu0 0
  %1693 = vmatprep.subr.bf16.mxu0 0
  %1694 = vmatpush1.bf16.msra.mxu0 0
  %1695 = vmatprep.subr.bf16.mxu0 0
  %1696 = vmatpush1.bf16.msra.mxu0 0
  %1697 = vmatprep.subr.bf16.mxu0 0
  %1698 = vmatpush1.bf16.msra.mxu0 0
  %1699 = vmatprep.subr.bf16.mxu0 0
  %1700 = vmatpush1.bf16.msra.mxu0 0
  %1701 = vmatprep.subr.bf16.mxu0 0
  %1702 = vmatpush1.bf16.msra.mxu0 0
  %1703 = vmatprep.subr.bf16.mxu0 0
  %1704 = vmatpush1.bf16.msra.mxu0 0
  %1705 = vmatprep.subr.bf16.mxu0 0
  %1706 = vmatpush1.bf16.msra.mxu0 0
  %1707 = vmatprep.mubr.bf16.mxu0 0
  %1708 = vmatmul.mubr.bf16.gmra.mrb[0].mxu0 %v1673
  %v1709 = vpop.f32.mrb[0].mxu0
  %v1710 = vadd.f32 0.0, %v1709
  %v1711 = vpop.f32.mrb[0].mxu0
  %v1712 = vpop.f32.mrb[0].mxu0
  %v1713 = vpop.f32.mrb[0].mxu0
  %1714 = vdwg.mxu0
  %v1716 = vsel %vm131, %v1670, 0
  %1718 = vmatprep.subr.bf16.mxu0 0
  %1719 = vmatpush1.bf16.msra.mxu0 %v183
  %1720 = vmatprep.subr.bf16.mxu0 0
  %1721 = vmatpush1.bf16.msra.mxu0 %v184
  %1722 = vmatprep.subr.bf16.mxu0 0
  %1723 = vmatpush1.bf16.msra.mxu0 0
  %1724 = vmatprep.subr.bf16.mxu0 0
  %1725 = vmatpush1.bf16.msra.mxu0 0
  %1726 = vmatprep.subr.bf16.mxu0 0
  %1727 = vmatpush1.bf16.msra.mxu0 0
  %1728 = vmatprep.subr.bf16.mxu0 0
  %1729 = vmatpush1.bf16.msra.mxu0 0
  %1730 = vmatprep.subr.bf16.mxu0 0
  %1731 = vmatpush1.bf16.msra.mxu0 0
  %1732 = vmatprep.subr.bf16.mxu0 0
  %1733 = vmatpush1.bf16.msra.mxu0 0
  %1734 = vmatprep.subr.bf16.mxu0 0
  %1735 = vmatpush1.bf16.msra.mxu0 0
  %1736 = vmatprep.subr.bf16.mxu0 0
  %1737 = vmatpush1.bf16.msra.mxu0 0
  %1738 = vmatprep.subr.bf16.mxu0 0
  %1739 = vmatpush1.bf16.msra.mxu0 0
  %1740 = vmatprep.subr.bf16.mxu0 0
  %1741 = vmatpush1.bf16.msra.mxu0 0
  %1742 = vmatprep.subr.bf16.mxu0 0
  %1743 = vmatpush1.bf16.msra.mxu0 0
  %1744 = vmatprep.subr.bf16.mxu0 0
  %1745 = vmatpush1.bf16.msra.mxu0 0
  %1746 = vmatprep.subr.bf16.mxu0 0
  %1747 = vmatpush1.bf16.msra.mxu0 0
  %1748 = vmatprep.subr.bf16.mxu0 0
  %1749 = vmatpush1.bf16.msra.mxu0 0
  %1750 = vmatprep.mubr.bf16.mxu0 0
  %1751 = vmatmul.mubr.bf16.gmra.mrb[0].mxu0 %v1716
  %v1752 = vpop.f32.mrb[0].mxu0
  %v1753 = vadd.f32 %v1710, %v1752
  %v1754 = vpop.f32.mrb[0].mxu0
  %v1755 = vpop.f32.mrb[0].mxu0
  %v1756 = vpop.f32.mrb[0].mxu0
  %1757 = vdwg.mxu0
  %v1758 = vadd.f32 %v1753, %v234
  %1759 = vmatprep.subr.bf16.mxu0 0
  %1760 = vmatpush1.bf16.msra.mxu0 %v245
  %1761 = vmatprep.subr.bf16.mxu0 0
  %1762 = vmatpush1.bf16.msra.mxu0 %v246
  %1763 = vmatprep.subr.bf16.mxu0 0
  %1764 = vmatpush1.bf16.msra.mxu0 0
  %1765 = vmatprep.subr.bf16.mxu0 0
  %1766 = vmatpush1.bf16.msra.mxu0 0
  %1767 = vmatprep.subr.bf16.mxu0 0
  %1768 = vmatpush1.bf16.msra.mxu0 0
  %1769 = vmatprep.subr.bf16.mxu0 0
  %1770 = vmatpush1.bf16.msra.mxu0 0
  %1771 = vmatprep.subr.bf16.mxu0 0
  %1772 = vmatpush1.bf16.msra.mxu0 0
  %1773 = vmatprep.subr.bf16.mxu0 0
  %1774 = vmatpush1.bf16.msra.mxu0 0
  %1775 = vmatprep.subr.bf16.mxu0 0
  %1776 = vmatpush1.bf16.msra.mxu0 0
  %1777 = vmatprep.subr.bf16.mxu0 0
  %1778 = vmatpush1.bf16.msra.mxu0 0
  %1779 = vmatprep.subr.bf16.mxu0 0
  %1780 = vmatpush1.bf16.msra.mxu0 0
  %1781 = vmatprep.subr.bf16.mxu0 0
  %1782 = vmatpush1.bf16.msra.mxu0 0
  %1783 = vmatprep.subr.bf16.mxu0 0
  %1784 = vmatpush1.bf16.msra.mxu0 0
  %1785 = vmatprep.subr.bf16.mxu0 0
  %1786 = vmatpush1.bf16.msra.mxu0 0
  %1787 = vmatprep.subr.bf16.mxu0 0
  %1788 = vmatpush1.bf16.msra.mxu0 0
  %1789 = vmatprep.subr.bf16.mxu0 0
  %1790 = vmatpush1.bf16.msra.mxu0 0
  %1791 = vmatprep.mubr.bf16.mxu0 0
  %1792 = vmatmul.mubr.bf16.gmra.mrb[0].mxu0 %v1673
  %v1793 = vpop.f32.mrb[0].mxu0
  %v1794 = vadd.f32 0.0, %v1793
  %v1795 = vpop.f32.mrb[0].mxu0
  %v1796 = vpop.f32.mrb[0].mxu0
  %v1797 = vpop.f32.mrb[0].mxu0
  %1798 = vdwg.mxu0
  %1799 = vmatprep.subr.bf16.mxu0 0
  %1800 = vmatpush1.bf16.msra.mxu0 %v297
  %1801 = vmatprep.subr.bf16.mxu0 0
  %1802 = vmatpush1.bf16.msra.mxu0 %v298
  %1803 = vmatprep.subr.bf16.mxu0 0
  %1804 = vmatpush1.bf16.msra.mxu0 0
  %1805 = vmatprep.subr.bf16.mxu0 0
  %1806 = vmatpush1.bf16.msra.mxu0 0
  %1807 = vmatprep.subr.bf16.mxu0 0
  %1808 = vmatpush1.bf16.msra.mxu0 0
  %1809 = vmatprep.subr.bf16.mxu0 0
  %1810 = vmatpush1.bf16.msra.mxu0 0
  %1811 = vmatprep.subr.bf16.mxu0 0
  %1812 = vmatpush1.bf16.msra.mxu0 0
  %1813 = vmatprep.subr.bf16.mxu0 0
  %1814 = vmatpush1.bf16.msra.mxu0 0
  %1815 = vmatprep.subr.bf16.mxu0 0
  %1816 = vmatpush1.bf16.msra.mxu0 0
  %1817 = vmatprep.subr.bf16.mxu0 0
  %1818 = vmatpush1.bf16.msra.mxu0 0
  %1819 = vmatprep.subr.bf16.mxu0 0
  %1820 = vmatpush1.bf16.msra.mxu0 0
  %1821 = vmatprep.subr.bf16.mxu0 0
  %1822 = vmatpush1.bf16.msra.mxu0 0
  %1823 = vmatprep.subr.bf16.mxu0 0
  %1824 = vmatpush1.bf16.msra.mxu0 0
  %1825 = vmatprep.subr.bf16.mxu0 0
  %1826 = vmatpush1.bf16.msra.mxu0 0
  %1827 = vmatprep.subr.bf16.mxu0 0
  %1828 = vmatpush1.bf16.msra.mxu0 0
  %1829 = vmatprep.subr.bf16.mxu0 0
  %1830 = vmatpush1.bf16.msra.mxu0 0
  %1831 = vmatprep.mubr.bf16.mxu0 0
  %1832 = vmatmul.mubr.bf16.gmra.mrb[0].mxu0 %v1716
  %v1833 = vpop.f32.mrb[0].mxu0
  %v1834 = vadd.f32 %v1794, %v1833
  %v1835 = vpop.f32.mrb[0].mxu0
  %v1836 = vpop.f32.mrb[0].mxu0
  %v1837 = vpop.f32.mrb[0].mxu0
  %1838 = vdwg.mxu0
  %v1839 = vadd.f32 %v1834, %v345
  %1840 = vmatprep.subr.bf16.mxu0 0
  %1841 = vmatpush1.bf16.msra.mxu0 %v356
  %1842 = vmatprep.subr.bf16.mxu0 0
  %1843 = vmatpush1.bf16.msra.mxu0 %v357
  %1844 = vmatprep.subr.bf16.mxu0 0
  %1845 = vmatpush1.bf16.msra.mxu0 0
  %1846 = vmatprep.subr.bf16.mxu0 0
  %1847 = vmatpush1.bf16.msra.mxu0 0
  %1848 = vmatprep.subr.bf16.mxu0 0
  %1849 = vmatpush1.bf16.msra.mxu0 0
  %1850 = vmatprep.subr.bf16.mxu0 0
  %1851 = vmatpush1.bf16.msra.mxu0 0
  %1852 = vmatprep.subr.bf16.mxu0 0
  %1853 = vmatpush1.bf16.msra.mxu0 0
  %1854 = vmatprep.subr.bf16.mxu0 0
  %1855 = vmatpush1.bf16.msra.mxu0 0
  %1856 = vmatprep.subr.bf16.mxu0 0
  %1857 = vmatpush1.bf16.msra.mxu0 0
  %1858 = vmatprep.subr.bf16.mxu0 0
  %1859 = vmatpush1.bf16.msra.mxu0 0
  %1860 = vmatprep.subr.bf16.mxu0 0
  %1861 = vmatpush1.bf16.msra.mxu0 0
  %1862 = vmatprep.subr.bf16.mxu0 0
  %1863 = vmatpush1.bf16.msra.mxu0 0
  %1864 = vmatprep.subr.bf16.mxu0 0
  %1865 = vmatpush1.bf16.msra.mxu0 0
  %1866 = vmatprep.subr.bf16.mxu0 0
  %1867 = vmatpush1.bf16.msra.mxu0 0
  %1868 = vmatprep.subr.bf16.mxu0 0
  %1869 = vmatpush1.bf16.msra.mxu0 0
  %1870 = vmatprep.subr.bf16.mxu0 0
  %1871 = vmatpush1.bf16.msra.mxu0 0
  %1872 = vmatprep.mubr.bf16.mxu0 0
  %1873 = vmatmul.mubr.bf16.gmra.mrb[0].mxu0 %v1673
  %v1874 = vpop.f32.mrb[0].mxu0
  %v1875 = vadd.f32 0.0, %v1874
  %v1876 = vpop.f32.mrb[0].mxu0
  %v1877 = vpop.f32.mrb[0].mxu0
  %v1878 = vpop.f32.mrb[0].mxu0
  %1879 = vdwg.mxu0
  %1880 = vmatprep.subr.bf16.mxu0 0
  %1881 = vmatpush1.bf16.msra.mxu0 %v408
  %1882 = vmatprep.subr.bf16.mxu0 0
  %1883 = vmatpush1.bf16.msra.mxu0 %v409
  %1884 = vmatprep.subr.bf16.mxu0 0
  %1885 = vmatpush1.bf16.msra.mxu0 0
  %1886 = vmatprep.subr.bf16.mxu0 0
  %1887 = vmatpush1.bf16.msra.mxu0 0
  %1888 = vmatprep.subr.bf16.mxu0 0
  %1889 = vmatpush1.bf16.msra.mxu0 0
  %1890 = vmatprep.subr.bf16.mxu0 0
  %1891 = vmatpush1.bf16.msra.mxu0 0
  %1892 = vmatprep.subr.bf16.mxu0 0
  %1893 = vmatpush1.bf16.msra.mxu0 0
  %1894 = vmatprep.subr.bf16.mxu0 0
  %1895 = vmatpush1.bf16.msra.mxu0 0
  %1896 = vmatprep.subr.bf16.mxu0 0
  %1897 = vmatpush1.bf16.msra.mxu0 0
  %1898 = vmatprep.subr.bf16.mxu0 0
  %1899 = vmatpush1.bf16.msra.mxu0 0
  %1900 = vmatprep.subr.bf16.mxu0 0
  %1901 = vmatpush1.bf16.msra.mxu0 0
  %1902 = vmatprep.subr.bf16.mxu0 0
  %1903 = vmatpush1.bf16.msra.mxu0 0
  %1904 = vmatprep.subr.bf16.mxu0 0
  %1905 = vmatpush1.bf16.msra.mxu0 0
  %1906 = vmatprep.subr.bf16.mxu0 0
  %1907 = vmatpush1.bf16.msra.mxu0 0
  %1908 = vmatprep.subr.bf16.mxu0 0
  %1909 = vmatpush1.bf16.msra.mxu0 0
  %1910 = vmatprep.subr.bf16.mxu0 0
  %1911 = vmatpush1.bf16.msra.mxu0 0
  %1912 = vmatprep.mubr.bf16.mxu0 0
  %1913 = vmatmul.mubr.bf16.gmra.mrb[0].mxu0 %v1716
  %v1914 = vpop.f32.mrb[0].mxu0
  %v1915 = vadd.f32 %v1875, %v1914
  %v1916 = vpop.f32.mrb[0].mxu0
  %v1917 = vpop.f32.mrb[0].mxu0
  %v1918 = vpop.f32.mrb[0].mxu0
  %1919 = vdwg.mxu0
  %v1920 = vadd.f32 %v1915, %v456
  %1921 = vmatprep.subr.bf16.mxu0 0
  %1922 = vmatpush1.bf16.msra.mxu0 %v467
  %1923 = vmatprep.subr.bf16.mxu0 0
  %1924 = vmatpush1.bf16.msra.mxu0 %v468
  %1925 = vmatprep.subr.bf16.mxu0 0
  %1926 = vmatpush1.bf16.msra.mxu0 0
  %1927 = vmatprep.subr.bf16.mxu0 0
  %1928 = vmatpush1.bf16.msra.mxu0 0
  %1929 = vmatprep.subr.bf16.mxu0 0
  %1930 = vmatpush1.bf16.msra.mxu0 0
  %1931 = vmatprep.subr.bf16.mxu0 0
  %1932 = vmatpush1.bf16.msra.mxu0 0
  %1933 = vmatprep.subr.bf16.mxu0 0
  %1934 = vmatpush1.bf16.msra.mxu0 0
  %1935 = vmatprep.subr.bf16.mxu0 0
  %1936 = vmatpush1.bf16.msra.mxu0 0
  %1937 = vmatprep.subr.bf16.mxu0 0
  %1938 = vmatpush1.bf16.msra.mxu0 0
  %1939 = vmatprep.subr.bf16.mxu0 0
  %1940 = vmatpush1.bf16.msra.mxu0 0
  %1941 = vmatprep.subr.bf16.mxu0 0
  %1942 = vmatpush1.bf16.msra.mxu0 0
  %1943 = vmatprep.subr.bf16.mxu0 0
  %1944 = vmatpush1.bf16.msra.mxu0 0
  %1945 = vmatprep.subr.bf16.mxu0 0
  %1946 = vmatpush1.bf16.msra.mxu0 0
  %1947 = vmatprep.subr.bf16.mxu0 0
  %1948 = vmatpush1.bf16.msra.mxu0 0
  %1949 = vmatprep.subr.bf16.mxu0 0
  %1950 = vmatpush1.bf16.msra.mxu0 0
  %1951 = vmatprep.subr.bf16.mxu0 0
  %1952 = vmatpush1.bf16.msra.mxu0 0
  %1953 = vmatprep.mubr.bf16.mxu0 0
  %1954 = vmatmul.mubr.bf16.gmra.mrb[0].mxu0 %v1673
  %v1955 = vpop.f32.mrb[0].mxu0
  %v1956 = vadd.f32 0.0, %v1955
  %v1957 = vpop.f32.mrb[0].mxu0
  %v1958 = vpop.f32.mrb[0].mxu0
  %v1959 = vpop.f32.mrb[0].mxu0
  %1960 = vdwg.mxu0
  %1961 = vmatprep.subr.bf16.mxu0 0
  %1962 = vmatpush1.bf16.msra.mxu0 %v519
  %1963 = vmatprep.subr.bf16.mxu0 0
  %1964 = vmatpush1.bf16.msra.mxu0 %v520
  %1965 = vmatprep.subr.bf16.mxu0 0
  %1966 = vmatpush1.bf16.msra.mxu0 0
  %1967 = vmatprep.subr.bf16.mxu0 0
  %1968 = vmatpush1.bf16.msra.mxu0 0
  %1969 = vmatprep.subr.bf16.mxu0 0
  %1970 = vmatpush1.bf16.msra.mxu0 0
  %1971 = vmatprep.subr.bf16.mxu0 0
  %1972 = vmatpush1.bf16.msra.mxu0 0
  %1973 = vmatprep.subr.bf16.mxu0 0
  %1974 = vmatpush1.bf16.msra.mxu0 0
  %1975 = vmatprep.subr.bf16.mxu0 0
  %1976 = vmatpush1.bf16.msra.mxu0 0
  %1977 = vmatprep.subr.bf16.mxu0 0
  %1978 = vmatpush1.bf16.msra.mxu0 0
  %1979 = vmatprep.subr.bf16.mxu0 0
  %1980 = vmatpush1.bf16.msra.mxu0 0
  %1981 = vmatprep.subr.bf16.mxu0 0
  %1982 = vmatpush1.bf16.msra.mxu0 0
  %1983 = vmatprep.subr.bf16.mxu0 0
  %1984 = vmatpush1.bf16.msra.mxu0 0
  %1985 = vmatprep.subr.bf16.mxu0 0
  %1986 = vmatpush1.bf16.msra.mxu0 0
  %1987 = vmatprep.subr.bf16.mxu0 0
  %1988 = vmatpush1.bf16.msra.mxu0 0
  %1989 = vmatprep.subr.bf16.mxu0 0
  %1990 = vmatpush1.bf16.msra.mxu0 0
  %1991 = vmatprep.subr.bf16.mxu0 0
  %1992 = vmatpush1.bf16.msra.mxu0 0
  %1993 = vmatprep.mubr.bf16.mxu0 0
  %1994 = vmatmul.mubr.bf16.gmra.mrb[0].mxu0 %v1716
  %v1995 = vpop.f32.mrb[0].mxu0
  %v1996 = vadd.f32 %v1956, %v1995
  %v1997 = vpop.f32.mrb[0].mxu0
  %v1998 = vpop.f32.mrb[0].mxu0
  %v1999 = vpop.f32.mrb[0].mxu0
  %2000 = vdwg.mxu0
  %v2001 = vadd.f32 %v1996, %v567
  %v2002 = vxor.u32 %v1758, 2147483648
  %v2003 = vmul.f32 %v2002, 1.442695
  %v2004 = vpow.pop %v2003
  %v2005 = vadd.f32 %v2004, 1.0
  %v2006 = vrcp.pop %v2005
  %v2007 = vmul.f32 1.0, %v2006
  %v2008 = vxor.u32 %v1839, 2147483648
  %v2009 = vmul.f32 %v2008, 1.442695
  %v2010 = vpow.pop %v2009
  %v2011 = vadd.f32 %v2010, 1.0
  %v2012 = vrcp.pop %v2011
  %v2013 = vmul.f32 1.0, %v2012
  %v2014 = vtanh.pop %v1920
  %v2015 = vxor.u32 %v2001, 2147483648
  %v2016 = vmul.f32 %v2015, 1.442695
  %v2017 = vpow.pop %v2016
  %v2018 = vadd.f32 %v2017, 1.0
  %v2019 = vrcp.pop %v2018
  %v2020 = vmul.f32 1.0, %v2019
  %v2021 = vmul.f32 %v2013, %v1665
  %v2022 = vmul.f32 %v2007, %v2014
  %v2023 = vadd.f32 %v2021, %v2022
  %v2024 = vtanh.pop %v2023
  %v2025 = vmul.f32 %v2020, %v2024
  %s2026 = scalar_lea.vmem %s0, 40
  %v2027 = vld [vmem:[%s2026] sm:$0xff]
  %v2028 = vpack.c.bf16 %v2027, %v2027
  %v2029 = vpack.c.bf16 %v2025, %v2025
  %v2031 = vsel %vm131, %v2029, 0
  %2033 = vmatprep.subr.bf16.mxu0 0
  %2034 = vmatpush1.bf16.msra.mxu0 %v127
  %2035 = vmatprep.subr.bf16.mxu0 0
  %2036 = vmatpush1.bf16.msra.mxu0 %v128
  %2037 = vmatprep.subr.bf16.mxu0 0
  %2038 = vmatpush1.bf16.msra.mxu0 0
  %2039 = vmatprep.subr.bf16.mxu0 0
  %2040 = vmatpush1.bf16.msra.mxu0 0
  %2041 = vmatprep.subr.bf16.mxu0 0
  %2042 = vmatpush1.bf16.msra.mxu0 0
  %2043 = vmatprep.subr.bf16.mxu0 0
  %2044 = vmatpush1.bf16.msra.mxu0 0
  %2045 = vmatprep.subr.bf16.mxu0 0
  %2046 = vmatpush1.bf16.msra.mxu0 0
  %2047 = vmatprep.subr.bf16.mxu0 0
  %2048 = vmatpush1.bf16.msra.mxu0 0
  %2049 = vmatprep.subr.bf16.mxu0 0
  %2050 = vmatpush1.bf16.msra.mxu0 0
  %2051 = vmatprep.subr.bf16.mxu0 0
  %2052 = vmatpush1.bf16.msra.mxu0 0
  %2053 = vmatprep.subr.bf16.mxu0 0
  %2054 = vmatpush1.bf16.msra.mxu0 0
  %2055 = vmatprep.subr.bf16.mxu0 0
  %2056 = vmatpush1.bf16.msra.mxu0 0
  %2057 = vmatprep.subr.bf16.mxu0 0
  %2058 = vmatpush1.bf16.msra.mxu0 0
  %2059 = vmatprep.subr.bf16.mxu0 0
  %2060 = vmatpush1.bf16.msra.mxu0 0
  %2061 = vmatprep.subr.bf16.mxu0 0
  %2062 = vmatpush1.bf16.msra.mxu0 0
  %2063 = vmatprep.subr.bf16.mxu0 0
  %2064 = vmatpush1.bf16.msra.mxu0 0
  %2065 = vmatprep.mubr.bf16.mxu0 0
  %2066 = vmatmul.mubr.bf16.gmra.mrb[0].mxu0 %v2031
  %v2067 = vpop.f32.mrb[0].mxu0
  %v2068 = vadd.f32 0.0, %v2067
  %v2069 = vpop.f32.mrb[0].mxu0
  %v2070 = vpop.f32.mrb[0].mxu0
  %v2071 = vpop.f32.mrb[0].mxu0
  %2072 = vdwg.mxu0
  %v2074 = vsel %vm131, %v2028, 0
  %2076 = vmatprep.subr.bf16.mxu0 0
  %2077 = vmatpush1.bf16.msra.mxu0 %v183
  %2078 = vmatprep.subr.bf16.mxu0 0
  %2079 = vmatpush1.bf16.msra.mxu0 %v184
  %2080 = vmatprep.subr.bf16.mxu0 0
  %2081 = vmatpush1.bf16.msra.mxu0 0
  %2082 = vmatprep.subr.bf16.mxu0 0
  %2083 = vmatpush1.bf16.msra.mxu0 0
  %2084 = vmatprep.subr.bf16.mxu0 0
  %2085 = vmatpush1.bf16.msra.mxu0 0
  %2086 = vmatprep.subr.bf16.mxu0 0
  %2087 = vmatpush1.bf16.msra.mxu0 0
  %2088 = vmatprep.subr.bf16.mxu0 0
  %2089 = vmatpush1.bf16.msra.mxu0 0
  %2090 = vmatprep.subr.bf16.mxu0 0
  %2091 = vmatpush1.bf16.msra.mxu0 0
  %2092 = vmatprep.subr.bf16.mxu0 0
  %2093 = vmatpush1.bf16.msra.mxu0 0
  %2094 = vmatprep.subr.bf16.mxu0 0
  %2095 = vmatpush1.bf16.msra.mxu0 0
  %2096 = vmatprep.subr.bf16.mxu0 0
  %2097 = vmatpush1.bf16.msra.mxu0 0
  %2098 = vmatprep.subr.bf16.mxu0 0
  %2099 = vmatpush1.bf16.msra.mxu0 0
  %2100 = vmatprep.subr.bf16.mxu0 0
  %2101 = vmatpush1.bf16.msra.mxu0 0
  %2102 = vmatprep.subr.bf16.mxu0 0
  %2103 = vmatpush1.bf16.msra.mxu0 0
  %2104 = vmatprep.subr.bf16.mxu0 0
  %2105 = vmatpush1.bf16.msra.mxu0 0
  %2106 = vmatprep.subr.bf16.mxu0 0
  %2107 = vmatpush1.bf16.msra.mxu0 0
  %2108 = vmatprep.mubr.bf16.mxu0 0
  %2109 = vmatmul.mubr.bf16.gmra.mrb[0].mxu0 %v2074
  %v2110 = vpop.f32.mrb[0].mxu0
  %v2111 = vadd.f32 %v2068, %v2110
  %v2112 = vpop.f32.mrb[0].mxu0
  %v2113 = vpop.f32.mrb[0].mxu0
  %v2114 = vpop.f32.mrb[0].mxu0
  %2115 = vdwg.mxu0
  %v2116 = vadd.f32 %v2111, %v234
  %2117 = vmatprep.subr.bf16.mxu0 0
  %2118 = vmatpush1.bf16.msra.mxu0 %v245
  %2119 = vmatprep.subr.bf16.mxu0 0
  %2120 = vmatpush1.bf16.msra.mxu0 %v246
  %2121 = vmatprep.subr.bf16.mxu0 0
  %2122 = vmatpush1.bf16.msra.mxu0 0
  %2123 = vmatprep.subr.bf16.mxu0 0
  %2124 = vmatpush1.bf16.msra.mxu0 0
  %2125 = vmatprep.subr.bf16.mxu0 0
  %2126 = vmatpush1.bf16.msra.mxu0 0
  %2127 = vmatprep.subr.bf16.mxu0 0
  %2128 = vmatpush1.bf16.msra.mxu0 0
  %2129 = vmatprep.subr.bf16.mxu0 0
  %2130 = vmatpush1.bf16.msra.mxu0 0
  %2131 = vmatprep.subr.bf16.mxu0 0
  %2132 = vmatpush1.bf16.msra.mxu0 0
  %2133 = vmatprep.subr.bf16.mxu0 0
  %2134 = vmatpush1.bf16.msra.mxu0 0
  %2135 = vmatprep.subr.bf16.mxu0 0
  %2136 = vmatpush1.bf16.msra.mxu0 0
  %2137 = vmatprep.subr.bf16.mxu0 0
  %2138 = vmatpush1.bf16.msra.mxu0 0
  %2139 = vmatprep.subr.bf16.mxu0 0
  %2140 = vmatpush1.bf16.msra.mxu0 0
  %2141 = vmatprep.subr.bf16.mxu0 0
  %2142 = vmatpush1.bf16.msra.mxu0 0
  %2143 = vmatprep.subr.bf16.mxu0 0
  %2144 = vmatpush1.bf16.msra.mxu0 0
  %2145 = vmatprep.subr.bf16.mxu0 0
  %2146 = vmatpush1.bf16.msra.mxu0 0
  %2147 = vmatprep.subr.bf16.mxu0 0
  %2148 = vmatpush1.bf16.msra.mxu0 0
  %2149 = vmatprep.mubr.bf16.mxu0 0
  %2150 = vmatmul.mubr.bf16.gmra.mrb[0].mxu0 %v2031
  %v2151 = vpop.f32.mrb[0].mxu0
  %v2152 = vadd.f32 0.0, %v2151
  %v2153 = vpop.f32.mrb[0].mxu0
  %v2154 = vpop.f32.mrb[0].mxu0
  %v2155 = vpop.f32.mrb[0].mxu0
  %2156 = vdwg.mxu0
  %2157 = vmatprep.subr.bf16.mxu0 0
  %2158 = vmatpush1.bf16.msra.mxu0 %v297
  %2159 = vmatprep.subr.bf16.mxu0 0
  %2160 = vmatpush1.bf16.msra.mxu0 %v298
  %2161 = vmatprep.subr.bf16.mxu0 0
  %2162 = vmatpush1.bf16.msra.mxu0 0
  %2163 = vmatprep.subr.bf16.mxu0 0
  %2164 = vmatpush1.bf16.msra.mxu0 0
  %2165 = vmatprep.subr.bf16.mxu0 0
  %2166 = vmatpush1.bf16.msra.mxu0 0
  %2167 = vmatprep.subr.bf16.mxu0 0
  %2168 = vmatpush1.bf16.msra.mxu0 0
  %2169 = vmatprep.subr.bf16.mxu0 0
  %2170 = vmatpush1.bf16.msra.mxu0 0
  %2171 = vmatprep.subr.bf16.mxu0 0
  %2172 = vmatpush1.bf16.msra.mxu0 0
  %2173 = vmatprep.subr.bf16.mxu0 0
  %2174 = vmatpush1.bf16.msra.mxu0 0
  %2175 = vmatprep.subr.bf16.mxu0 0
  %2176 = vmatpush1.bf16.msra.mxu0 0
  %2177 = vmatprep.subr.bf16.mxu0 0
  %2178 = vmatpush1.bf16.msra.mxu0 0
  %2179 = vmatprep.subr.bf16.mxu0 0
  %2180 = vmatpush1.bf16.msra.mxu0 0
  %2181 = vmatprep.subr.bf16.mxu0 0
  %2182 = vmatpush1.bf16.msra.mxu0 0
  %2183 = vmatprep.subr.bf16.mxu0 0
  %2184 = vmatpush1.bf16.msra.mxu0 0
  %2185 = vmatprep.subr.bf16.mxu0 0
  %2186 = vmatpush1.bf16.msra.mxu0 0
  %2187 = vmatprep.subr.bf16.mxu0 0
  %2188 = vmatpush1.bf16.msra.mxu0 0
  %2189 = vmatprep.mubr.bf16.mxu0 0
  %2190 = vmatmul.mubr.bf16.gmra.mrb[0].mxu0 %v2074
  %v2191 = vpop.f32.mrb[0].mxu0
  %v2192 = vadd.f32 %v2152, %v2191
  %v2193 = vpop.f32.mrb[0].mxu0
  %v2194 = vpop.f32.mrb[0].mxu0
  %v2195 = vpop.f32.mrb[0].mxu0
  %2196 = vdwg.mxu0
  %v2197 = vadd.f32 %v2192, %v345
  %2198 = vmatprep.subr.bf16.mxu0 0
  %2199 = vmatpush1.bf16.msra.mxu0 %v356
  %2200 = vmatprep.subr.bf16.mxu0 0
  %2201 = vmatpush1.bf16.msra.mxu0 %v357
  %2202 = vmatprep.subr.bf16.mxu0 0
  %2203 = vmatpush1.bf16.msra.mxu0 0
  %2204 = vmatprep.subr.bf16.mxu0 0
  %2205 = vmatpush1.bf16.msra.mxu0 0
  %2206 = vmatprep.subr.bf16.mxu0 0
  %2207 = vmatpush1.bf16.msra.mxu0 0
  %2208 = vmatprep.subr.bf16.mxu0 0
  %2209 = vmatpush1.bf16.msra.mxu0 0
  %2210 = vmatprep.subr.bf16.mxu0 0
  %2211 = vmatpush1.bf16.msra.mxu0 0
  %2212 = vmatprep.subr.bf16.mxu0 0
  %2213 = vmatpush1.bf16.msra.mxu0 0
  %2214 = vmatprep.subr.bf16.mxu0 0
  %2215 = vmatpush1.bf16.msra.mxu0 0
  %2216 = vmatprep.subr.bf16.mxu0 0
  %2217 = vmatpush1.bf16.msra.mxu0 0
  %2218 = vmatprep.subr.bf16.mxu0 0
  %2219 = vmatpush1.bf16.msra.mxu0 0
  %2220 = vmatprep.subr.bf16.mxu0 0
  %2221 = vmatpush1.bf16.msra.mxu0 0
  %2222 = vmatprep.subr.bf16.mxu0 0
  %2223 = vmatpush1.bf16.msra.mxu0 0
  %2224 = vmatprep.subr.bf16.mxu0 0
  %2225 = vmatpush1.bf16.msra.mxu0 0
  %2226 = vmatprep.subr.bf16.mxu0 0
  %2227 = vmatpush1.bf16.msra.mxu0 0
  %2228 = vmatprep.subr.bf16.mxu0 0
  %2229 = vmatpush1.bf16.msra.mxu0 0
  %2230 = vmatprep.mubr.bf16.mxu0 0
  %2231 = vmatmul.mubr.bf16.gmra.mrb[0].mxu0 %v2031
  %v2232 = vpop.f32.mrb[0].mxu0
  %v2233 = vadd.f32 0.0, %v2232
  %v2234 = vpop.f32.mrb[0].mxu0
  %v2235 = vpop.f32.mrb[0].mxu0
  %v2236 = vpop.f32.mrb[0].mxu0
  %2237 = vdwg.mxu0
  %2238 = vmatprep.subr.bf16.mxu0 0
  %2239 = vmatpush1.bf16.msra.mxu0 %v408
  %2240 = vmatprep.subr.bf16.mxu0 0
  %2241 = vmatpush1.bf16.msra.mxu0 %v409
  %2242 = vmatprep.subr.bf16.mxu0 0
  %2243 = vmatpush1.bf16.msra.mxu0 0
  %2244 = vmatprep.subr.bf16.mxu0 0
  %2245 = vmatpush1.bf16.msra.mxu0 0
  %2246 = vmatprep.subr.bf16.mxu0 0
  %2247 = vmatpush1.bf16.msra.mxu0 0
  %2248 = vmatprep.subr.bf16.mxu0 0
  %2249 = vmatpush1.bf16.msra.mxu0 0
  %2250 = vmatprep.subr.bf16.mxu0 0
  %2251 = vmatpush1.bf16.msra.mxu0 0
  %2252 = vmatprep.subr.bf16.mxu0 0
  %2253 = vmatpush1.bf16.msra.mxu0 0
  %2254 = vmatprep.subr.bf16.mxu0 0
  %2255 = vmatpush1.bf16.msra.mxu0 0
  %2256 = vmatprep.subr.bf16.mxu0 0
  %2257 = vmatpush1.bf16.msra.mxu0 0
  %2258 = vmatprep.subr.bf16.mxu0 0
  %2259 = vmatpush1.bf16.msra.mxu0 0
  %2260 = vmatprep.subr.bf16.mxu0 0
  %2261 = vmatpush1.bf16.msra.mxu0 0
  %2262 = vmatprep.subr.bf16.mxu0 0
  %2263 = vmatpush1.bf16.msra.mxu0 0
  %2264 = vmatprep.subr.bf16.mxu0 0
  %2265 = vmatpush1.bf16.msra.mxu0 0
  %2266 = vmatprep.subr.bf16.mxu0 0
  %2267 = vmatpush1.bf16.msra.mxu0 0
  %2268 = vmatprep.subr.bf16.mxu0 0
  %2269 = vmatpush1.bf16.msra.mxu0 0
  %2270 = vmatprep.mubr.bf16.mxu0 0
  %2271 = vmatmul.mubr.bf16.gmra.mrb[0].mxu0 %v2074
  %v2272 = vpop.f32.mrb[0].mxu0
  %v2273 = vadd.f32 %v2233, %v2272
  %v2274 = vpop.f32.mrb[0].mxu0
  %v2275 = vpop.f32.mrb[0].mxu0
  %v2276 = vpop.f32.mrb[0].mxu0
  %2277 = vdwg.mxu0
  %v2278 = vadd.f32 %v2273, %v456
  %2279 = vmatprep.subr.bf16.mxu0 0
  %2280 = vmatpush1.bf16.msra.mxu0 %v467
  %2281 = vmatprep.subr.bf16.mxu0 0
  %2282 = vmatpush1.bf16.msra.mxu0 %v468
  %2283 = vmatprep.subr.bf16.mxu0 0
  %2284 = vmatpush1.bf16.msra.mxu0 0
  %2285 = vmatprep.subr.bf16.mxu0 0
  %2286 = vmatpush1.bf16.msra.mxu0 0
  %2287 = vmatprep.subr.bf16.mxu0 0
  %2288 = vmatpush1.bf16.msra.mxu0 0
  %2289 = vmatprep.subr.bf16.mxu0 0
  %2290 = vmatpush1.bf16.msra.mxu0 0
  %2291 = vmatprep.subr.bf16.mxu0 0
  %2292 = vmatpush1.bf16.msra.mxu0 0
  %2293 = vmatprep.subr.bf16.mxu0 0
  %2294 = vmatpush1.bf16.msra.mxu0 0
  %2295 = vmatprep.subr.bf16.mxu0 0
  %2296 = vmatpush1.bf16.msra.mxu0 0
  %2297 = vmatprep.subr.bf16.mxu0 0
  %2298 = vmatpush1.bf16.msra.mxu0 0
  %2299 = vmatprep.subr.bf16.mxu0 0
  %2300 = vmatpush1.bf16.msra.mxu0 0
  %2301 = vmatprep.subr.bf16.mxu0 0
  %2302 = vmatpush1.bf16.msra.mxu0 0
  %2303 = vmatprep.subr.bf16.mxu0 0
  %2304 = vmatpush1.bf16.msra.mxu0 0
  %2305 = vmatprep.subr.bf16.mxu0 0
  %2306 = vmatpush1.bf16.msra.mxu0 0
  %2307 = vmatprep.subr.bf16.mxu0 0
  %2308 = vmatpush1.bf16.msra.mxu0 0
  %2309 = vmatprep.subr.bf16.mxu0 0
  %2310 = vmatpush1.bf16.msra.mxu0 0
  %2311 = vmatprep.mubr.bf16.mxu0 0
  %2312 = vmatmul.mubr.bf16.gmra.mrb[0].mxu0 %v2031
  %v2313 = vpop.f32.mrb[0].mxu0
  %v2314 = vadd.f32 0.0, %v2313
  %v2315 = vpop.f32.mrb[0].mxu0
  %v2316 = vpop.f32.mrb[0].mxu0
  %v2317 = vpop.f32.mrb[0].mxu0
  %2318 = vdwg.mxu0
  %2319 = vmatprep.subr.bf16.mxu0 0
  %2320 = vmatpush1.bf16.msra.mxu0 %v519
  %2321 = vmatprep.subr.bf16.mxu0 0
  %2322 = vmatpush1.bf16.msra.mxu0 %v520
  %2323 = vmatprep.subr.bf16.mxu0 0
  %2324 = vmatpush1.bf16.msra.mxu0 0
  %2325 = vmatprep.subr.bf16.mxu0 0
  %2326 = vmatpush1.bf16.msra.mxu0 0
  %2327 = vmatprep.subr.bf16.mxu0 0
  %2328 = vmatpush1.bf16.msra.mxu0 0
  %2329 = vmatprep.subr.bf16.mxu0 0
  %2330 = vmatpush1.bf16.msra.mxu0 0
  %2331 = vmatprep.subr.bf16.mxu0 0
  %2332 = vmatpush1.bf16.msra.mxu0 0
  %2333 = vmatprep.subr.bf16.mxu0 0
  %2334 = vmatpush1.bf16.msra.mxu0 0
  %2335 = vmatprep.subr.bf16.mxu0 0
  %2336 = vmatpush1.bf16.msra.mxu0 0
  %2337 = vmatprep.subr.bf16.mxu0 0
  %2338 = vmatpush1.bf16.msra.mxu0 0
  %2339 = vmatprep.subr.bf16.mxu0 0
  %2340 = vmatpush1.bf16.msra.mxu0 0
  %2341 = vmatprep.subr.bf16.mxu0 0
  %2342 = vmatpush1.bf16.msra.mxu0 0
  %2343 = vmatprep.subr.bf16.mxu0 0
  %2344 = vmatpush1.bf16.msra.mxu0 0
  %2345 = vmatprep.subr.bf16.mxu0 0
  %2346 = vmatpush1.bf16.msra.mxu0 0
  %2347 = vmatprep.subr.bf16.mxu0 0
  %2348 = vmatpush1.bf16.msra.mxu0 0
  %2349 = vmatprep.subr.bf16.mxu0 0
  %2350 = vmatpush1.bf16.msra.mxu0 0
  %2351 = vmatprep.mubr.bf16.mxu0 0
  %2352 = vmatmul.mubr.bf16.gmra.mrb[0].mxu0 %v2074
  %v2353 = vpop.f32.mrb[0].mxu0
  %v2354 = vadd.f32 %v2314, %v2353
  %v2355 = vpop.f32.mrb[0].mxu0
  %v2356 = vpop.f32.mrb[0].mxu0
  %v2357 = vpop.f32.mrb[0].mxu0
  %2358 = vdwg.mxu0
  %v2359 = vadd.f32 %v2354, %v567
  %v2360 = vxor.u32 %v2116, 2147483648
  %v2361 = vmul.f32 %v2360, 1.442695
  %v2362 = vpow.pop %v2361
  %v2363 = vadd.f32 %v2362, 1.0
  %v2364 = vrcp.pop %v2363
  %v2365 = vmul.f32 1.0, %v2364
  %v2366 = vxor.u32 %v2197, 2147483648
  %v2367 = vmul.f32 %v2366, 1.442695
  %v2368 = vpow.pop %v2367
  %v2369 = vadd.f32 %v2368, 1.0
  %v2370 = vrcp.pop %v2369
  %v2371 = vmul.f32 1.0, %v2370
  %v2372 = vtanh.pop %v2278
  %v2373 = vxor.u32 %v2359, 2147483648
  %v2374 = vmul.f32 %v2373, 1.442695
  %v2375 = vpow.pop %v2374
  %v2376 = vadd.f32 %v2375, 1.0
  %v2377 = vrcp.pop %v2376
  %v2378 = vmul.f32 1.0, %v2377
  %v2379 = vmul.f32 %v2371, %v2023
  %v2380 = vmul.f32 %v2365, %v2372
  %v2381 = vadd.f32 %v2379, %v2380
  %v2382 = vtanh.pop %v2381
  %v2383 = vmul.f32 %v2378, %v2382
  %s2384 = scalar_lea.vmem %s0, 48
  %v2385 = vld [vmem:[%s2384] sm:$0xff]
  %v2386 = vpack.c.bf16 %v2385, %v2385
  %v2387 = vpack.c.bf16 %v2383, %v2383
  %v2389 = vsel %vm131, %v2387, 0
  %2391 = vmatprep.subr.bf16.mxu0 0
  %2392 = vmatpush1.bf16.msra.mxu0 %v127
  %2393 = vmatprep.subr.bf16.mxu0 0
  %2394 = vmatpush1.bf16.msra.mxu0 %v128
  %2395 = vmatprep.subr.bf16.mxu0 0
  %2396 = vmatpush1.bf16.msra.mxu0 0
  %2397 = vmatprep.subr.bf16.mxu0 0
  %2398 = vmatpush1.bf16.msra.mxu0 0
  %2399 = vmatprep.subr.bf16.mxu0 0
  %2400 = vmatpush1.bf16.msra.mxu0 0
  %2401 = vmatprep.subr.bf16.mxu0 0
  %2402 = vmatpush1.bf16.msra.mxu0 0
  %2403 = vmatprep.subr.bf16.mxu0 0
  %2404 = vmatpush1.bf16.msra.mxu0 0
  %2405 = vmatprep.subr.bf16.mxu0 0
  %2406 = vmatpush1.bf16.msra.mxu0 0
  %2407 = vmatprep.subr.bf16.mxu0 0
  %2408 = vmatpush1.bf16.msra.mxu0 0
  %2409 = vmatprep.subr.bf16.mxu0 0
  %2410 = vmatpush1.bf16.msra.mxu0 0
  %2411 = vmatprep.subr.bf16.mxu0 0
  %2412 = vmatpush1.bf16.msra.mxu0 0
  %2413 = vmatprep.subr.bf16.mxu0 0
  %2414 = vmatpush1.bf16.msra.mxu0 0
  %2415 = vmatprep.subr.bf16.mxu0 0
  %2416 = vmatpush1.bf16.msra.mxu0 0
  %2417 = vmatprep.subr.bf16.mxu0 0
  %2418 = vmatpush1.bf16.msra.mxu0 0
  %2419 = vmatprep.subr.bf16.mxu0 0
  %2420 = vmatpush1.bf16.msra.mxu0 0
  %2421 = vmatprep.subr.bf16.mxu0 0
  %2422 = vmatpush1.bf16.msra.mxu0 0
  %2423 = vmatprep.mubr.bf16.mxu0 0
  %2424 = vmatmul.mubr.bf16.gmra.mrb[0].mxu0 %v2389
  %v2425 = vpop.f32.mrb[0].mxu0
  %v2426 = vadd.f32 0.0, %v2425
  %v2427 = vpop.f32.mrb[0].mxu0
  %v2428 = vpop.f32.mrb[0].mxu0
  %v2429 = vpop.f32.mrb[0].mxu0
  %2430 = vdwg.mxu0
  %v2432 = vsel %vm131, %v2386, 0
  %2434 = vmatprep.subr.bf16.mxu0 0
  %2435 = vmatpush1.bf16.msra.mxu0 %v183
  %2436 = vmatprep.subr.bf16.mxu0 0
  %2437 = vmatpush1.bf16.msra.mxu0 %v184
  %2438 = vmatprep.subr.bf16.mxu0 0
  %2439 = vmatpush1.bf16.msra.mxu0 0
  %2440 = vmatprep.subr.bf16.mxu0 0
  %2441 = vmatpush1.bf16.msra.mxu0 0
  %2442 = vmatprep.subr.bf16.mxu0 0
  %2443 = vmatpush1.bf16.msra.mxu0 0
  %2444 = vmatprep.subr.bf16.mxu0 0
  %2445 = vmatpush1.bf16.msra.mxu0 0
  %2446 = vmatprep.subr.bf16.mxu0 0
  %2447 = vmatpush1.bf16.msra.mxu0 0
  %2448 = vmatprep.subr.bf16.mxu0 0
  %2449 = vmatpush1.bf16.msra.mxu0 0
  %2450 = vmatprep.subr.bf16.mxu0 0
  %2451 = vmatpush1.bf16.msra.mxu0 0
  %2452 = vmatprep.subr.bf16.mxu0 0
  %2453 = vmatpush1.bf16.msra.mxu0 0
  %2454 = vmatprep.subr.bf16.mxu0 0
  %2455 = vmatpush1.bf16.msra.mxu0 0
  %2456 = vmatprep.subr.bf16.mxu0 0
  %2457 = vmatpush1.bf16.msra.mxu0 0
  %2458 = vmatprep.subr.bf16.mxu0 0
  %2459 = vmatpush1.bf16.msra.mxu0 0
  %2460 = vmatprep.subr.bf16.mxu0 0
  %2461 = vmatpush1.bf16.msra.mxu0 0
  %2462 = vmatprep.subr.bf16.mxu0 0
  %2463 = vmatpush1.bf16.msra.mxu0 0
  %2464 = vmatprep.subr.bf16.mxu0 0
  %2465 = vmatpush1.bf16.msra.mxu0 0
  %2466 = vmatprep.mubr.bf16.mxu0 0
  %2467 = vmatmul.mubr.bf16.gmra.mrb[0].mxu0 %v2432
  %v2468 = vpop.f32.mrb[0].mxu0
  %v2469 = vadd.f32 %v2426, %v2468
  %v2470 = vpop.f32.mrb[0].mxu0
  %v2471 = vpop.f32.mrb[0].mxu0
  %v2472 = vpop.f32.mrb[0].mxu0
  %2473 = vdwg.mxu0
  %v2474 = vadd.f32 %v2469, %v234
  %2475 = vmatprep.subr.bf16.mxu0 0
  %2476 = vmatpush1.bf16.msra.mxu0 %v245
  %2477 = vmatprep.subr.bf16.mxu0 0
  %2478 = vmatpush1.bf16.msra.mxu0 %v246
  %2479 = vmatprep.subr.bf16.mxu0 0
  %2480 = vmatpush1.bf16.msra.mxu0 0
  %2481 = vmatprep.subr.bf16.mxu0 0
  %2482 = vmatpush1.bf16.msra.mxu0 0
  %2483 = vmatprep.subr.bf16.mxu0 0
  %2484 = vmatpush1.bf16.msra.mxu0 0
  %2485 = vmatprep.subr.bf16.mxu0 0
  %2486 = vmatpush1.bf16.msra.mxu0 0
  %2487 = vmatprep.subr.bf16.mxu0 0
  %2488 = vmatpush1.bf16.msra.mxu0 0
  %2489 = vmatprep.subr.bf16.mxu0 0
  %2490 = vmatpush1.bf16.msra.mxu0 0
  %2491 = vmatprep.subr.bf16.mxu0 0
  %2492 = vmatpush1.bf16.msra.mxu0 0
  %2493 = vmatprep.subr.bf16.mxu0 0
  %2494 = vmatpush1.bf16.msra.mxu0 0
  %2495 = vmatprep.subr.bf16.mxu0 0
  %2496 = vmatpush1.bf16.msra.mxu0 0
  %2497 = vmatprep.subr.bf16.mxu0 0
  %2498 = vmatpush1.bf16.msra.mxu0 0
  %2499 = vmatprep.subr.bf16.mxu0 0
  %2500 = vmatpush1.bf16.msra.mxu0 0
  %2501 = vmatprep.subr.bf16.mxu0 0
  %2502 = vmatpush1.bf16.msra.mxu0 0
  %2503 = vmatprep.subr.bf16.mxu0 0
  %2504 = vmatpush1.bf16.msra.mxu0 0
  %2505 = vmatprep.subr.bf16.mxu0 0
  %2506 = vmatpush1.bf16.msra.mxu0 0
  %2507 = vmatprep.mubr.bf16.mxu0 0
  %2508 = vmatmul.mubr.bf16.gmra.mrb[0].mxu0 %v2389
  %v2509 = vpop.f32.mrb[0].mxu0
  %v2510 = vadd.f32 0.0, %v2509
  %v2511 = vpop.f32.mrb[0].mxu0
  %v2512 = vpop.f32.mrb[0].mxu0
  %v2513 = vpop.f32.mrb[0].mxu0
  %2514 = vdwg.mxu0
  %2515 = vmatprep.subr.bf16.mxu0 0
  %2516 = vmatpush1.bf16.msra.mxu0 %v297
  %2517 = vmatprep.subr.bf16.mxu0 0
  %2518 = vmatpush1.bf16.msra.mxu0 %v298
  %2519 = vmatprep.subr.bf16.mxu0 0
  %2520 = vmatpush1.bf16.msra.mxu0 0
  %2521 = vmatprep.subr.bf16.mxu0 0
  %2522 = vmatpush1.bf16.msra.mxu0 0
  %2523 = vmatprep.subr.bf16.mxu0 0
  %2524 = vmatpush1.bf16.msra.mxu0 0
  %2525 = vmatprep.subr.bf16.mxu0 0
  %2526 = vmatpush1.bf16.msra.mxu0 0
  %2527 = vmatprep.subr.bf16.mxu0 0
  %2528 = vmatpush1.bf16.msra.mxu0 0
  %2529 = vmatprep.subr.bf16.mxu0 0
  %2530 = vmatpush1.bf16.msra.mxu0 0
  %2531 = vmatprep.subr.bf16.mxu0 0
  %2532 = vmatpush1.bf16.msra.mxu0 0
  %2533 = vmatprep.subr.bf16.mxu0 0
  %2534 = vmatpush1.bf16.msra.mxu0 0
  %2535 = vmatprep.subr.bf16.mxu0 0
  %2536 = vmatpush1.bf16.msra.mxu0 0
  %2537 = vmatprep.subr.bf16.mxu0 0
  %2538 = vmatpush1.bf16.msra.mxu0 0
  %2539 = vmatprep.subr.bf16.mxu0 0
  %2540 = vmatpush1.bf16.msra.mxu0 0
  %2541 = vmatprep.subr.bf16.mxu0 0
  %2542 = vmatpush1.bf16.msra.mxu0 0
  %2543 = vmatprep.subr.bf16.mxu0 0
  %2544 = vmatpush1.bf16.msra.mxu0 0
  %2545 = vmatprep.subr.bf16.mxu0 0
  %2546 = vmatpush1.bf16.msra.mxu0 0
  %2547 = vmatprep.mubr.bf16.mxu0 0
  %2548 = vmatmul.mubr.bf16.gmra.mrb[0].mxu0 %v2432
  %v2549 = vpop.f32.mrb[0].mxu0
  %v2550 = vadd.f32 %v2510, %v2549
  %v2551 = vpop.f32.mrb[0].mxu0
  %v2552 = vpop.f32.mrb[0].mxu0
  %v2553 = vpop.f32.mrb[0].mxu0
  %2554 = vdwg.mxu0
  %v2555 = vadd.f32 %v2550, %v345
  %2556 = vmatprep.subr.bf16.mxu0 0
  %2557 = vmatpush1.bf16.msra.mxu0 %v356
  %2558 = vmatprep.subr.bf16.mxu0 0
  %2559 = vmatpush1.bf16.msra.mxu0 %v357
  %2560 = vmatprep.subr.bf16.mxu0 0
  %2561 = vmatpush1.bf16.msra.mxu0 0
  %2562 = vmatprep.subr.bf16.mxu0 0
  %2563 = vmatpush1.bf16.msra.mxu0 0
  %2564 = vmatprep.subr.bf16.mxu0 0
  %2565 = vmatpush1.bf16.msra.mxu0 0
  %2566 = vmatprep.subr.bf16.mxu0 0
  %2567 = vmatpush1.bf16.msra.mxu0 0
  %2568 = vmatprep.subr.bf16.mxu0 0
  %2569 = vmatpush1.bf16.msra.mxu0 0
  %2570 = vmatprep.subr.bf16.mxu0 0
  %2571 = vmatpush1.bf16.msra.mxu0 0
  %2572 = vmatprep.subr.bf16.mxu0 0
  %2573 = vmatpush1.bf16.msra.mxu0 0
  %2574 = vmatprep.subr.bf16.mxu0 0
  %2575 = vmatpush1.bf16.msra.mxu0 0
  %2576 = vmatprep.subr.bf16.mxu0 0
  %2577 = vmatpush1.bf16.msra.mxu0 0
  %2578 = vmatprep.subr.bf16.mxu0 0
  %2579 = vmatpush1.bf16.msra.mxu0 0
  %2580 = vmatprep.subr.bf16.mxu0 0
  %2581 = vmatpush1.bf16.msra.mxu0 0
  %2582 = vmatprep.subr.bf16.mxu0 0
  %2583 = vmatpush1.bf16.msra.mxu0 0
  %2584 = vmatprep.subr.bf16.mxu0 0
  %2585 = vmatpush1.bf16.msra.mxu0 0
  %2586 = vmatprep.subr.bf16.mxu0 0
  %2587 = vmatpush1.bf16.msra.mxu0 0
  %2588 = vmatprep.mubr.bf16.mxu0 0
  %2589 = vmatmul.mubr.bf16.gmra.mrb[0].mxu0 %v2389
  %v2590 = vpop.f32.mrb[0].mxu0
  %v2591 = vadd.f32 0.0, %v2590
  %v2592 = vpop.f32.mrb[0].mxu0
  %v2593 = vpop.f32.mrb[0].mxu0
  %v2594 = vpop.f32.mrb[0].mxu0
  %2595 = vdwg.mxu0
  %2596 = vmatprep.subr.bf16.mxu0 0
  %2597 = vmatpush1.bf16.msra.mxu0 %v408
  %2598 = vmatprep.subr.bf16.mxu0 0
  %2599 = vmatpush1.bf16.msra.mxu0 %v409
  %2600 = vmatprep.subr.bf16.mxu0 0
  %2601 = vmatpush1.bf16.msra.mxu0 0
  %2602 = vmatprep.subr.bf16.mxu0 0
  %2603 = vmatpush1.bf16.msra.mxu0 0
  %2604 = vmatprep.subr.bf16.mxu0 0
  %2605 = vmatpush1.bf16.msra.mxu0 0
  %2606 = vmatprep.subr.bf16.mxu0 0
  %2607 = vmatpush1.bf16.msra.mxu0 0
  %2608 = vmatprep.subr.bf16.mxu0 0
  %2609 = vmatpush1.bf16.msra.mxu0 0
  %2610 = vmatprep.subr.bf16.mxu0 0
  %2611 = vmatpush1.bf16.msra.mxu0 0
  %2612 = vmatprep.subr.bf16.mxu0 0
  %2613 = vmatpush1.bf16.msra.mxu0 0
  %2614 = vmatprep.subr.bf16.mxu0 0
  %2615 = vmatpush1.bf16.msra.mxu0 0
  %2616 = vmatprep.subr.bf16.mxu0 0
  %2617 = vmatpush1.bf16.msra.mxu0 0
  %2618 = vmatprep.subr.bf16.mxu0 0
  %2619 = vmatpush1.bf16.msra.mxu0 0
  %2620 = vmatprep.subr.bf16.mxu0 0
  %2621 = vmatpush1.bf16.msra.mxu0 0
  %2622 = vmatprep.subr.bf16.mxu0 0
  %2623 = vmatpush1.bf16.msra.mxu0 0
  %2624 = vmatprep.subr.bf16.mxu0 0
  %2625 = vmatpush1.bf16.msra.mxu0 0
  %2626 = vmatprep.subr.bf16.mxu0 0
  %2627 = vmatpush1.bf16.msra.mxu0 0
  %2628 = vmatprep.mubr.bf16.mxu0 0
  %2629 = vmatmul.mubr.bf16.gmra.mrb[0].mxu0 %v2432
  %v2630 = vpop.f32.mrb[0].mxu0
  %v2631 = vadd.f32 %v2591, %v2630
  %v2632 = vpop.f32.mrb[0].mxu0
  %v2633 = vpop.f32.mrb[0].mxu0
  %v2634 = vpop.f32.mrb[0].mxu0
  %2635 = vdwg.mxu0
  %v2636 = vadd.f32 %v2631, %v456
  %2637 = vmatprep.subr.bf16.mxu0 0
  %2638 = vmatpush1.bf16.msra.mxu0 %v467
  %2639 = vmatprep.subr.bf16.mxu0 0
  %2640 = vmatpush1.bf16.msra.mxu0 %v468
  %2641 = vmatprep.subr.bf16.mxu0 0
  %2642 = vmatpush1.bf16.msra.mxu0 0
  %2643 = vmatprep.subr.bf16.mxu0 0
  %2644 = vmatpush1.bf16.msra.mxu0 0
  %2645 = vmatprep.subr.bf16.mxu0 0
  %2646 = vmatpush1.bf16.msra.mxu0 0
  %2647 = vmatprep.subr.bf16.mxu0 0
  %2648 = vmatpush1.bf16.msra.mxu0 0
  %2649 = vmatprep.subr.bf16.mxu0 0
  %2650 = vmatpush1.bf16.msra.mxu0 0
  %2651 = vmatprep.subr.bf16.mxu0 0
  %2652 = vmatpush1.bf16.msra.mxu0 0
  %2653 = vmatprep.subr.bf16.mxu0 0
  %2654 = vmatpush1.bf16.msra.mxu0 0
  %2655 = vmatprep.subr.bf16.mxu0 0
  %2656 = vmatpush1.bf16.msra.mxu0 0
  %2657 = vmatprep.subr.bf16.mxu0 0
  %2658 = vmatpush1.bf16.msra.mxu0 0
  %2659 = vmatprep.subr.bf16.mxu0 0
  %2660 = vmatpush1.bf16.msra.mxu0 0
  %2661 = vmatprep.subr.bf16.mxu0 0
  %2662 = vmatpush1.bf16.msra.mxu0 0
  %2663 = vmatprep.subr.bf16.mxu0 0
  %2664 = vmatpush1.bf16.msra.mxu0 0
  %2665 = vmatprep.subr.bf16.mxu0 0
  %2666 = vmatpush1.bf16.msra.mxu0 0
  %2667 = vmatprep.subr.bf16.mxu0 0
  %2668 = vmatpush1.bf16.msra.mxu0 0
  %2669 = vmatprep.mubr.bf16.mxu0 0
  %2670 = vmatmul.mubr.bf16.gmra.mrb[0].mxu0 %v2389
  %v2671 = vpop.f32.mrb[0].mxu0
  %v2672 = vadd.f32 0.0, %v2671
  %v2673 = vpop.f32.mrb[0].mxu0
  %v2674 = vpop.f32.mrb[0].mxu0
  %v2675 = vpop.f32.mrb[0].mxu0
  %2676 = vdwg.mxu0
  %2677 = vmatprep.subr.bf16.mxu0 0
  %2678 = vmatpush1.bf16.msra.mxu0 %v519
  %2679 = vmatprep.subr.bf16.mxu0 0
  %2680 = vmatpush1.bf16.msra.mxu0 %v520
  %2681 = vmatprep.subr.bf16.mxu0 0
  %2682 = vmatpush1.bf16.msra.mxu0 0
  %2683 = vmatprep.subr.bf16.mxu0 0
  %2684 = vmatpush1.bf16.msra.mxu0 0
  %2685 = vmatprep.subr.bf16.mxu0 0
  %2686 = vmatpush1.bf16.msra.mxu0 0
  %2687 = vmatprep.subr.bf16.mxu0 0
  %2688 = vmatpush1.bf16.msra.mxu0 0
  %2689 = vmatprep.subr.bf16.mxu0 0
  %2690 = vmatpush1.bf16.msra.mxu0 0
  %2691 = vmatprep.subr.bf16.mxu0 0
  %2692 = vmatpush1.bf16.msra.mxu0 0
  %2693 = vmatprep.subr.bf16.mxu0 0
  %2694 = vmatpush1.bf16.msra.mxu0 0
  %2695 = vmatprep.subr.bf16.mxu0 0
  %2696 = vmatpush1.bf16.msra.mxu0 0
  %2697 = vmatprep.subr.bf16.mxu0 0
  %2698 = vmatpush1.bf16.msra.mxu0 0
  %2699 = vmatprep.subr.bf16.mxu0 0
  %2700 = vmatpush1.bf16.msra.mxu0 0
  %2701 = vmatprep.subr.bf16.mxu0 0
  %2702 = vmatpush1.bf16.msra.mxu0 0
  %2703 = vmatprep.subr.bf16.mxu0 0
  %2704 = vmatpush1.bf16.msra.mxu0 0
  %2705 = vmatprep.subr.bf16.mxu0 0
  %2706 = vmatpush1.bf16.msra.mxu0 0
  %2707 = vmatprep.subr.bf16.mxu0 0
  %2708 = vmatpush1.bf16.msra.mxu0 0
  %2709 = vmatprep.mubr.bf16.mxu0 0
  %2710 = vmatmul.mubr.bf16.gmra.mrb[0].mxu0 %v2432
  %v2711 = vpop.f32.mrb[0].mxu0
  %v2712 = vadd.f32 %v2672, %v2711
  %v2713 = vpop.f32.mrb[0].mxu0
  %v2714 = vpop.f32.mrb[0].mxu0
  %v2715 = vpop.f32.mrb[0].mxu0
  %2716 = vdwg.mxu0
  %v2717 = vadd.f32 %v2712, %v567
  %v2718 = vxor.u32 %v2474, 2147483648
  %v2719 = vmul.f32 %v2718, 1.442695
  %v2720 = vpow.pop %v2719
  %v2721 = vadd.f32 %v2720, 1.0
  %v2722 = vrcp.pop %v2721
  %v2723 = vmul.f32 1.0, %v2722
  %v2724 = vxor.u32 %v2555, 2147483648
  %v2725 = vmul.f32 %v2724, 1.442695
  %v2726 = vpow.pop %v2725
  %v2727 = vadd.f32 %v2726, 1.0
  %v2728 = vrcp.pop %v2727
  %v2729 = vmul.f32 1.0, %v2728
  %v2730 = vtanh.pop %v2636
  %v2731 = vxor.u32 %v2717, 2147483648
  %v2732 = vmul.f32 %v2731, 1.442695
  %v2733 = vpow.pop %v2732
  %v2734 = vadd.f32 %v2733, 1.0
  %v2735 = vrcp.pop %v2734
  %v2736 = vmul.f32 1.0, %v2735
  %v2737 = vmul.f32 %v2729, %v2381
  %v2738 = vmul.f32 %v2723, %v2730
  %v2739 = vadd.f32 %v2737, %v2738
  %v2740 = vtanh.pop %v2739
  %v2741 = vmul.f32 %v2736, %v2740
  %s2742 = scalar_lea.vmem %s0, 56
  %v2743 = vld [vmem:[%s2742] sm:$0xff]
  %v2744 = vpack.c.bf16 %v2743, %v2743
  %v2745 = vpack.c.bf16 %v2741, %v2741
  %v2747 = vsel %vm131, %v2745, 0
  %2749 = vmatprep.subr.bf16.mxu0 0
  %2750 = vmatpush1.bf16.msra.mxu0 %v127
  %2751 = vmatprep.subr.bf16.mxu0 0
  %2752 = vmatpush1.bf16.msra.mxu0 %v128
  %2753 = vmatprep.subr.bf16.mxu0 0
  %2754 = vmatpush1.bf16.msra.mxu0 0
  %2755 = vmatprep.subr.bf16.mxu0 0
  %2756 = vmatpush1.bf16.msra.mxu0 0
  %2757 = vmatprep.subr.bf16.mxu0 0
  %2758 = vmatpush1.bf16.msra.mxu0 0
  %2759 = vmatprep.subr.bf16.mxu0 0
  %2760 = vmatpush1.bf16.msra.mxu0 0
  %2761 = vmatprep.subr.bf16.mxu0 0
  %2762 = vmatpush1.bf16.msra.mxu0 0
  %2763 = vmatprep.subr.bf16.mxu0 0
  %2764 = vmatpush1.bf16.msra.mxu0 0
  %2765 = vmatprep.subr.bf16.mxu0 0
  %2766 = vmatpush1.bf16.msra.mxu0 0
  %2767 = vmatprep.subr.bf16.mxu0 0
  %2768 = vmatpush1.bf16.msra.mxu0 0
  %2769 = vmatprep.subr.bf16.mxu0 0
  %2770 = vmatpush1.bf16.msra.mxu0 0
  %2771 = vmatprep.subr.bf16.mxu0 0
  %2772 = vmatpush1.bf16.msra.mxu0 0
  %2773 = vmatprep.subr.bf16.mxu0 0
  %2774 = vmatpush1.bf16.msra.mxu0 0
  %2775 = vmatprep.subr.bf16.mxu0 0
  %2776 = vmatpush1.bf16.msra.mxu0 0
  %2777 = vmatprep.subr.bf16.mxu0 0
  %2778 = vmatpush1.bf16.msra.mxu0 0
  %2779 = vmatprep.subr.bf16.mxu0 0
  %2780 = vmatpush1.bf16.msra.mxu0 0
  %2781 = vmatprep.mubr.bf16.mxu0 0
  %2782 = vmatmul.mubr.bf16.gmra.mrb[0].mxu0 %v2747
  %v2783 = vpop.f32.mrb[0].mxu0
  %v2784 = vadd.f32 0.0, %v2783
  %v2785 = vpop.f32.mrb[0].mxu0
  %v2786 = vpop.f32.mrb[0].mxu0
  %v2787 = vpop.f32.mrb[0].mxu0
  %2788 = vdwg.mxu0
  %v2790 = vsel %vm131, %v2744, 0
  %2792 = vmatprep.subr.bf16.mxu0 0
  %2793 = vmatpush1.bf16.msra.mxu0 %v183
  %2794 = vmatprep.subr.bf16.mxu0 0
  %2795 = vmatpush1.bf16.msra.mxu0 %v184
  %2796 = vmatprep.subr.bf16.mxu0 0
  %2797 = vmatpush1.bf16.msra.mxu0 0
  %2798 = vmatprep.subr.bf16.mxu0 0
  %2799 = vmatpush1.bf16.msra.mxu0 0
  %2800 = vmatprep.subr.bf16.mxu0 0
  %2801 = vmatpush1.bf16.msra.mxu0 0
  %2802 = vmatprep.subr.bf16.mxu0 0
  %2803 = vmatpush1.bf16.msra.mxu0 0
  %2804 = vmatprep.subr.bf16.mxu0 0
  %2805 = vmatpush1.bf16.msra.mxu0 0
  %2806 = vmatprep.subr.bf16.mxu0 0
  %2807 = vmatpush1.bf16.msra.mxu0 0
  %2808 = vmatprep.subr.bf16.mxu0 0
  %2809 = vmatpush1.bf16.msra.mxu0 0
  %2810 = vmatprep.subr.bf16.mxu0 0
  %2811 = vmatpush1.bf16.msra.mxu0 0
  %2812 = vmatprep.subr.bf16.mxu0 0
  %2813 = vmatpush1.bf16.msra.mxu0 0
  %2814 = vmatprep.subr.bf16.mxu0 0
  %2815 = vmatpush1.bf16.msra.mxu0 0
  %2816 = vmatprep.subr.bf16.mxu0 0
  %2817 = vmatpush1.bf16.msra.mxu0 0
  %2818 = vmatprep.subr.bf16.mxu0 0
  %2819 = vmatpush1.bf16.msra.mxu0 0
  %2820 = vmatprep.subr.bf16.mxu0 0
  %2821 = vmatpush1.bf16.msra.mxu0 0
  %2822 = vmatprep.subr.bf16.mxu0 0
  %2823 = vmatpush1.bf16.msra.mxu0 0
  %2824 = vmatprep.mubr.bf16.mxu0 0
  %2825 = vmatmul.mubr.bf16.gmra.mrb[0].mxu0 %v2790
  %v2826 = vpop.f32.mrb[0].mxu0
  %v2827 = vadd.f32 %v2784, %v2826
  %v2828 = vpop.f32.mrb[0].mxu0
  %v2829 = vpop.f32.mrb[0].mxu0
  %v2830 = vpop.f32.mrb[0].mxu0
  %2831 = vdwg.mxu0
  %v2832 = vadd.f32 %v2827, %v234
  %2833 = vmatprep.subr.bf16.mxu0 0
  %2834 = vmatpush1.bf16.msra.mxu0 %v245
  %2835 = vmatprep.subr.bf16.mxu0 0
  %2836 = vmatpush1.bf16.msra.mxu0 %v246
  %2837 = vmatprep.subr.bf16.mxu0 0
  %2838 = vmatpush1.bf16.msra.mxu0 0
  %2839 = vmatprep.subr.bf16.mxu0 0
  %2840 = vmatpush1.bf16.msra.mxu0 0
  %2841 = vmatprep.subr.bf16.mxu0 0
  %2842 = vmatpush1.bf16.msra.mxu0 0
  %2843 = vmatprep.subr.bf16.mxu0 0
  %2844 = vmatpush1.bf16.msra.mxu0 0
  %2845 = vmatprep.subr.bf16.mxu0 0
  %2846 = vmatpush1.bf16.msra.mxu0 0
  %2847 = vmatprep.subr.bf16.mxu0 0
  %2848 = vmatpush1.bf16.msra.mxu0 0
  %2849 = vmatprep.subr.bf16.mxu0 0
  %2850 = vmatpush1.bf16.msra.mxu0 0
  %2851 = vmatprep.subr.bf16.mxu0 0
  %2852 = vmatpush1.bf16.msra.mxu0 0
  %2853 = vmatprep.subr.bf16.mxu0 0
  %2854 = vmatpush1.bf16.msra.mxu0 0
  %2855 = vmatprep.subr.bf16.mxu0 0
  %2856 = vmatpush1.bf16.msra.mxu0 0
  %2857 = vmatprep.subr.bf16.mxu0 0
  %2858 = vmatpush1.bf16.msra.mxu0 0
  %2859 = vmatprep.subr.bf16.mxu0 0
  %2860 = vmatpush1.bf16.msra.mxu0 0
  %2861 = vmatprep.subr.bf16.mxu0 0
  %2862 = vmatpush1.bf16.msra.mxu0 0
  %2863 = vmatprep.subr.bf16.mxu0 0
  %2864 = vmatpush1.bf16.msra.mxu0 0
  %2865 = vmatprep.mubr.bf16.mxu0 0
  %2866 = vmatmul.mubr.bf16.gmra.mrb[0].mxu0 %v2747
  %v2867 = vpop.f32.mrb[0].mxu0
  %v2868 = vadd.f32 0.0, %v2867
  %v2869 = vpop.f32.mrb[0].mxu0
  %v2870 = vpop.f32.mrb[0].mxu0
  %v2871 = vpop.f32.mrb[0].mxu0
  %2872 = vdwg.mxu0
  %2873 = vmatprep.subr.bf16.mxu0 0
  %2874 = vmatpush1.bf16.msra.mxu0 %v297
  %2875 = vmatprep.subr.bf16.mxu0 0
  %2876 = vmatpush1.bf16.msra.mxu0 %v298
  %2877 = vmatprep.subr.bf16.mxu0 0
  %2878 = vmatpush1.bf16.msra.mxu0 0
  %2879 = vmatprep.subr.bf16.mxu0 0
  %2880 = vmatpush1.bf16.msra.mxu0 0
  %2881 = vmatprep.subr.bf16.mxu0 0
  %2882 = vmatpush1.bf16.msra.mxu0 0
  %2883 = vmatprep.subr.bf16.mxu0 0
  %2884 = vmatpush1.bf16.msra.mxu0 0
  %2885 = vmatprep.subr.bf16.mxu0 0
  %2886 = vmatpush1.bf16.msra.mxu0 0
  %2887 = vmatprep.subr.bf16.mxu0 0
  %2888 = vmatpush1.bf16.msra.mxu0 0
  %2889 = vmatprep.subr.bf16.mxu0 0
  %2890 = vmatpush1.bf16.msra.mxu0 0
  %2891 = vmatprep.subr.bf16.mxu0 0
  %2892 = vmatpush1.bf16.msra.mxu0 0
  %2893 = vmatprep.subr.bf16.mxu0 0
  %2894 = vmatpush1.bf16.msra.mxu0 0
  %2895 = vmatprep.subr.bf16.mxu0 0
  %2896 = vmatpush1.bf16.msra.mxu0 0
  %2897 = vmatprep.subr.bf16.mxu0 0
  %2898 = vmatpush1.bf16.msra.mxu0 0
  %2899 = vmatprep.subr.bf16.mxu0 0
  %2900 = vmatpush1.bf16.msra.mxu0 0
  %2901 = vmatprep.subr.bf16.mxu0 0
  %2902 = vmatpush1.bf16.msra.mxu0 0
  %2903 = vmatprep.subr.bf16.mxu0 0
  %2904 = vmatpush1.bf16.msra.mxu0 0
  %2905 = vmatprep.mubr.bf16.mxu0 0
  %2906 = vmatmul.mubr.bf16.gmra.mrb[0].mxu0 %v2790
  %v2907 = vpop.f32.mrb[0].mxu0
  %v2908 = vadd.f32 %v2868, %v2907
  %v2909 = vpop.f32.mrb[0].mxu0
  %v2910 = vpop.f32.mrb[0].mxu0
  %v2911 = vpop.f32.mrb[0].mxu0
  %2912 = vdwg.mxu0
  %v2913 = vadd.f32 %v2908, %v345
  %2914 = vmatprep.subr.bf16.mxu0 0
  %2915 = vmatpush1.bf16.msra.mxu0 %v356
  %2916 = vmatprep.subr.bf16.mxu0 0
  %2917 = vmatpush1.bf16.msra.mxu0 %v357
  %2918 = vmatprep.subr.bf16.mxu0 0
  %2919 = vmatpush1.bf16.msra.mxu0 0
  %2920 = vmatprep.subr.bf16.mxu0 0
  %2921 = vmatpush1.bf16.msra.mxu0 0
  %2922 = vmatprep.subr.bf16.mxu0 0
  %2923 = vmatpush1.bf16.msra.mxu0 0
  %2924 = vmatprep.subr.bf16.mxu0 0
  %2925 = vmatpush1.bf16.msra.mxu0 0
  %2926 = vmatprep.subr.bf16.mxu0 0
  %2927 = vmatpush1.bf16.msra.mxu0 0
  %2928 = vmatprep.subr.bf16.mxu0 0
  %2929 = vmatpush1.bf16.msra.mxu0 0
  %2930 = vmatprep.subr.bf16.mxu0 0
  %2931 = vmatpush1.bf16.msra.mxu0 0
  %2932 = vmatprep.subr.bf16.mxu0 0
  %2933 = vmatpush1.bf16.msra.mxu0 0
  %2934 = vmatprep.subr.bf16.mxu0 0
  %2935 = vmatpush1.bf16.msra.mxu0 0
  %2936 = vmatprep.subr.bf16.mxu0 0
  %2937 = vmatpush1.bf16.msra.mxu0 0
  %2938 = vmatprep.subr.bf16.mxu0 0
  %2939 = vmatpush1.bf16.msra.mxu0 0
  %2940 = vmatprep.subr.bf16.mxu0 0
  %2941 = vmatpush1.bf16.msra.mxu0 0
  %2942 = vmatprep.subr.bf16.mxu0 0
  %2943 = vmatpush1.bf16.msra.mxu0 0
  %2944 = vmatprep.subr.bf16.mxu0 0
  %2945 = vmatpush1.bf16.msra.mxu0 0
  %2946 = vmatprep.mubr.bf16.mxu0 0
  %2947 = vmatmul.mubr.bf16.gmra.mrb[0].mxu0 %v2747
  %v2948 = vpop.f32.mrb[0].mxu0
  %v2949 = vadd.f32 0.0, %v2948
  %v2950 = vpop.f32.mrb[0].mxu0
  %v2951 = vpop.f32.mrb[0].mxu0
  %v2952 = vpop.f32.mrb[0].mxu0
  %2953 = vdwg.mxu0
  %2954 = vmatprep.subr.bf16.mxu0 0
  %2955 = vmatpush1.bf16.msra.mxu0 %v408
  %2956 = vmatprep.subr.bf16.mxu0 0
  %2957 = vmatpush1.bf16.msra.mxu0 %v409
  %2958 = vmatprep.subr.bf16.mxu0 0
  %2959 = vmatpush1.bf16.msra.mxu0 0
  %2960 = vmatprep.subr.bf16.mxu0 0
  %2961 = vmatpush1.bf16.msra.mxu0 0
  %2962 = vmatprep.subr.bf16.mxu0 0
  %2963 = vmatpush1.bf16.msra.mxu0 0
  %2964 = vmatprep.subr.bf16.mxu0 0
  %2965 = vmatpush1.bf16.msra.mxu0 0
  %2966 = vmatprep.subr.bf16.mxu0 0
  %2967 = vmatpush1.bf16.msra.mxu0 0
  %2968 = vmatprep.subr.bf16.mxu0 0
  %2969 = vmatpush1.bf16.msra.mxu0 0
  %2970 = vmatprep.subr.bf16.mxu0 0
  %2971 = vmatpush1.bf16.msra.mxu0 0
  %2972 = vmatprep.subr.bf16.mxu0 0
  %2973 = vmatpush1.bf16.msra.mxu0 0
  %2974 = vmatprep.subr.bf16.mxu0 0
  %2975 = vmatpush1.bf16.msra.mxu0 0
  %2976 = vmatprep.subr.bf16.mxu0 0
  %2977 = vmatpush1.bf16.msra.mxu0 0
  %2978 = vmatprep.subr.bf16.mxu0 0
  %2979 = vmatpush1.bf16.msra.mxu0 0
  %2980 = vmatprep.subr.bf16.mxu0 0
  %2981 = vmatpush1.bf16.msra.mxu0 0
  %2982 = vmatprep.subr.bf16.mxu0 0
  %2983 = vmatpush1.bf16.msra.mxu0 0
  %2984 = vmatprep.subr.bf16.mxu0 0
  %2985 = vmatpush1.bf16.msra.mxu0 0
  %2986 = vmatprep.mubr.bf16.mxu0 0
  %2987 = vmatmul.mubr.bf16.gmra.mrb[0].mxu0 %v2790
  %v2988 = vpop.f32.mrb[0].mxu0
  %v2989 = vadd.f32 %v2949, %v2988
  %v2990 = vpop.f32.mrb[0].mxu0
  %v2991 = vpop.f32.mrb[0].mxu0
  %v2992 = vpop.f32.mrb[0].mxu0
  %2993 = vdwg.mxu0
  %v2994 = vadd.f32 %v2989, %v456
  %2995 = vmatprep.subr.bf16.mxu0 0
  %2996 = vmatpush1.bf16.msra.mxu0 %v467
  %2997 = vmatprep.subr.bf16.mxu0 0
  %2998 = vmatpush1.bf16.msra.mxu0 %v468
  %2999 = vmatprep.subr.bf16.mxu0 0
  %3000 = vmatpush1.bf16.msra.mxu0 0
  %3001 = vmatprep.subr.bf16.mxu0 0
  %3002 = vmatpush1.bf16.msra.mxu0 0
  %3003 = vmatprep.subr.bf16.mxu0 0
  %3004 = vmatpush1.bf16.msra.mxu0 0
  %3005 = vmatprep.subr.bf16.mxu0 0
  %3006 = vmatpush1.bf16.msra.mxu0 0
  %3007 = vmatprep.subr.bf16.mxu0 0
  %3008 = vmatpush1.bf16.msra.mxu0 0
  %3009 = vmatprep.subr.bf16.mxu0 0
  %3010 = vmatpush1.bf16.msra.mxu0 0
  %3011 = vmatprep.subr.bf16.mxu0 0
  %3012 = vmatpush1.bf16.msra.mxu0 0
  %3013 = vmatprep.subr.bf16.mxu0 0
  %3014 = vmatpush1.bf16.msra.mxu0 0
  %3015 = vmatprep.subr.bf16.mxu0 0
  %3016 = vmatpush1.bf16.msra.mxu0 0
  %3017 = vmatprep.subr.bf16.mxu0 0
  %3018 = vmatpush1.bf16.msra.mxu0 0
  %3019 = vmatprep.subr.bf16.mxu0 0
  %3020 = vmatpush1.bf16.msra.mxu0 0
  %3021 = vmatprep.subr.bf16.mxu0 0
  %3022 = vmatpush1.bf16.msra.mxu0 0
  %3023 = vmatprep.subr.bf16.mxu0 0
  %3024 = vmatpush1.bf16.msra.mxu0 0
  %3025 = vmatprep.subr.bf16.mxu0 0
  %3026 = vmatpush1.bf16.msra.mxu0 0
  %3027 = vmatprep.mubr.bf16.mxu0 0
  %3028 = vmatmul.mubr.bf16.gmra.mrb[0].mxu0 %v2747
  %v3029 = vpop.f32.mrb[0].mxu0
  %v3030 = vadd.f32 0.0, %v3029
  %v3031 = vpop.f32.mrb[0].mxu0
  %v3032 = vpop.f32.mrb[0].mxu0
  %v3033 = vpop.f32.mrb[0].mxu0
  %3034 = vdwg.mxu0
  %3035 = vmatprep.subr.bf16.mxu0 0
  %3036 = vmatpush1.bf16.msra.mxu0 %v519
  %3037 = vmatprep.subr.bf16.mxu0 0
  %3038 = vmatpush1.bf16.msra.mxu0 %v520
  %3039 = vmatprep.subr.bf16.mxu0 0
  %3040 = vmatpush1.bf16.msra.mxu0 0
  %3041 = vmatprep.subr.bf16.mxu0 0
  %3042 = vmatpush1.bf16.msra.mxu0 0
  %3043 = vmatprep.subr.bf16.mxu0 0
  %3044 = vmatpush1.bf16.msra.mxu0 0
  %3045 = vmatprep.subr.bf16.mxu0 0
  %3046 = vmatpush1.bf16.msra.mxu0 0
  %3047 = vmatprep.subr.bf16.mxu0 0
  %3048 = vmatpush1.bf16.msra.mxu0 0
  %3049 = vmatprep.subr.bf16.mxu0 0
  %3050 = vmatpush1.bf16.msra.mxu0 0
  %3051 = vmatprep.subr.bf16.mxu0 0
  %3052 = vmatpush1.bf16.msra.mxu0 0
  %3053 = vmatprep.subr.bf16.mxu0 0
  %3054 = vmatpush1.bf16.msra.mxu0 0
  %3055 = vmatprep.subr.bf16.mxu0 0
  %3056 = vmatpush1.bf16.msra.mxu0 0
  %3057 = vmatprep.subr.bf16.mxu0 0
  %3058 = vmatpush1.bf16.msra.mxu0 0
  %3059 = vmatprep.subr.bf16.mxu0 0
  %3060 = vmatpush1.bf16.msra.mxu0 0
  %3061 = vmatprep.subr.bf16.mxu0 0
  %3062 = vmatpush1.bf16.msra.mxu0 0
  %3063 = vmatprep.subr.bf16.mxu0 0
  %3064 = vmatpush1.bf16.msra.mxu0 0
  %3065 = vmatprep.subr.bf16.mxu0 0
  %3066 = vmatpush1.bf16.msra.mxu0 0
  %3067 = vmatprep.mubr.bf16.mxu0 0
  %3068 = vmatmul.mubr.bf16.gmra.mrb[0].mxu0 %v2790
  %v3069 = vpop.f32.mrb[0].mxu0
  %v3070 = vadd.f32 %v3030, %v3069
  %v3071 = vpop.f32.mrb[0].mxu0
  %v3072 = vpop.f32.mrb[0].mxu0
  %v3073 = vpop.f32.mrb[0].mxu0
  %3074 = vdwg.mxu0
  %v3075 = vadd.f32 %v3070, %v567
  %v3076 = vxor.u32 %v2832, 2147483648
  %v3077 = vmul.f32 %v3076, 1.442695
  %v3078 = vpow.pop %v3077
  %v3079 = vadd.f32 %v3078, 1.0
  %v3080 = vrcp.pop %v3079
  %v3081 = vmul.f32 1.0, %v3080
  %v3082 = vxor.u32 %v2913, 2147483648
  %v3083 = vmul.f32 %v3082, 1.442695
  %v3084 = vpow.pop %v3083
  %v3085 = vadd.f32 %v3084, 1.0
  %v3086 = vrcp.pop %v3085
  %v3087 = vmul.f32 1.0, %v3086
  %v3088 = vtanh.pop %v2994
  %v3089 = vxor.u32 %v3075, 2147483648
  %v3090 = vmul.f32 %v3089, 1.442695
  %v3091 = vpow.pop %v3090
  %v3092 = vadd.f32 %v3091, 1.0
  %v3093 = vrcp.pop %v3092
  %v3094 = vmul.f32 1.0, %v3093
  %v3095 = vmul.f32 %v3087, %v2739
  %v3096 = vmul.f32 %v3081, %v3088
  %v3097 = vadd.f32 %v3095, %v3096
  %v3098 = vtanh.pop %v3097
  %v3099 = vmul.f32 %v3094, %v3098
  %v3100 = vld [vmem:[%s1] sm:$0xff]
  %v3101 = vpack.c.bf16 %v3100, %v3100
  %v3106 = vunpack.c.l.b16 %v97
  %v3107 = vunpack.c.l.b16 %v98
  %v3108 = vunpack.c.l.b16 %v99
  %v3109 = vunpack.c.l.b16 %v100
  %v3110 = vpack.c.b16 %v3107, %v3106
  %v3111 = vpack.c.b16 %v3109, %v3108
  %3114 = vmatprep.subr.bf16.mxu0 0
  %3115 = vmatpush1.bf16.msra.mxu0 %v3110
  %3116 = vmatprep.subr.bf16.mxu0 0
  %3117 = vmatpush1.bf16.msra.mxu0 %v3111
  %3118 = vmatprep.subr.bf16.mxu0 0
  %3119 = vmatpush1.bf16.msra.mxu0 0
  %3120 = vmatprep.subr.bf16.mxu0 0
  %3121 = vmatpush1.bf16.msra.mxu0 0
  %3122 = vmatprep.subr.bf16.mxu0 0
  %3123 = vmatpush1.bf16.msra.mxu0 0
  %3124 = vmatprep.subr.bf16.mxu0 0
  %3125 = vmatpush1.bf16.msra.mxu0 0
  %3126 = vmatprep.subr.bf16.mxu0 0
  %3127 = vmatpush1.bf16.msra.mxu0 0
  %3128 = vmatprep.subr.bf16.mxu0 0
  %3129 = vmatpush1.bf16.msra.mxu0 0
  %3130 = vmatprep.subr.bf16.mxu0 0
  %3131 = vmatpush1.bf16.msra.mxu0 0
  %3132 = vmatprep.subr.bf16.mxu0 0
  %3133 = vmatpush1.bf16.msra.mxu0 0
  %3134 = vmatprep.subr.bf16.mxu0 0
  %3135 = vmatpush1.bf16.msra.mxu0 0
  %3136 = vmatprep.subr.bf16.mxu0 0
  %3137 = vmatpush1.bf16.msra.mxu0 0
  %3138 = vmatprep.subr.bf16.mxu0 0
  %3139 = vmatpush1.bf16.msra.mxu0 0
  %3140 = vmatprep.subr.bf16.mxu0 0
  %3141 = vmatpush1.bf16.msra.mxu0 0
  %3142 = vmatprep.subr.bf16.mxu0 0
  %3143 = vmatpush1.bf16.msra.mxu0 0
  %3144 = vmatprep.subr.bf16.mxu0 0
  %3145 = vmatpush1.bf16.msra.mxu0 0
  %3146 = vmatprep.mubr.bf16.mxu0 0
  %3147 = vmatmul.mubr.bf16.gmra.mrb[0].mxu0 %v133
  %v3148 = vpop.f32.mrb[0].mxu0
  %v3149 = vadd.f32 0.0, %v3148
  %v3150 = vpop.f32.mrb[0].mxu0
  %v3151 = vpop.f32.mrb[0].mxu0
  %v3152 = vpop.f32.mrb[0].mxu0
  %3153 = vdwg.mxu0
  %v3158 = vunpack.c.l.b16 %v81
  %v3159 = vunpack.c.l.b16 %v82
  %v3160 = vunpack.c.l.b16 %v83
  %v3161 = vunpack.c.l.b16 %v84
  %v3162 = vpack.c.b16 %v3159, %v3158
  %v3163 = vpack.c.b16 %v3161, %v3160
  %v3167 = vsel %vm131, %v3101, 0
  %3169 = vmatprep.subr.bf16.mxu0 0
  %3170 = vmatpush1.bf16.msra.mxu0 %v3162
  %3171 = vmatprep.subr.bf16.mxu0 0
  %3172 = vmatpush1.bf16.msra.mxu0 %v3163
  %3173 = vmatprep.subr.bf16.mxu0 0
  %3174 = vmatpush1.bf16.msra.mxu0 0
  %3175 = vmatprep.subr.bf16.mxu0 0
  %3176 = vmatpush1.bf16.msra.mxu0 0
  %3177 = vmatprep.subr.bf16.mxu0 0
  %3178 = vmatpush1.bf16.msra.mxu0 0
  %3179 = vmatprep.subr.bf16.mxu0 0
  %3180 = vmatpush1.bf16.msra.mxu0 0
  %3181 = vmatprep.subr.bf16.mxu0 0
  %3182 = vmatpush1.bf16.msra.mxu0 0
  %3183 = vmatprep.subr.bf16.mxu0 0
  %3184 = vmatpush1.bf16.msra.mxu0 0
  %3185 = vmatprep.subr.bf16.mxu0 0
  %3186 = vmatpush1.bf16.msra.mxu0 0
  %3187 = vmatprep.subr.bf16.mxu0 0
  %3188 = vmatpush1.bf16.msra.mxu0 0
  %3189 = vmatprep.subr.bf16.mxu0 0
  %3190 = vmatpush1.bf16.msra.mxu0 0
  %3191 = vmatprep.subr.bf16.mxu0 0
  %3192 = vmatpush1.bf16.msra.mxu0 0
  %3193 = vmatprep.subr.bf16.mxu0 0
  %3194 = vmatpush1.bf16.msra.mxu0 0
  %3195 = vmatprep.subr.bf16.mxu0 0
  %3196 = vmatpush1.bf16.msra.mxu0 0
  %3197 = vmatprep.subr.bf16.mxu0 0
  %3198 = vmatpush1.bf16.msra.mxu0 0
  %3199 = vmatprep.subr.bf16.mxu0 0
  %3200 = vmatpush1.bf16.msra.mxu0 0
  %3201 = vmatprep.mubr.bf16.mxu0 0
  %3202 = vmatmul.mubr.bf16.gmra.mrb[0].mxu0 %v3167
  %v3203 = vpop.f32.mrb[0].mxu0
  %v3204 = vadd.f32 %v3149, %v3203
  %v3205 = vpop.f32.mrb[0].mxu0
  %v3206 = vpop.f32.mrb[0].mxu0
  %v3207 = vpop.f32.mrb[0].mxu0
  %3208 = vdwg.mxu0
  %v3210 = vlaneseq
  %v3211 = vshrl.u32 %v3210, 7
  %v3212 = vsub.s32 0, %v3211
  %v3213 = vrot.slane %v113, %v3212
  %v3215 = vadd.f32 %v3204, %v3213
  %v3220 = vunpack.c.l.b16 %v101
  %v3221 = vunpack.c.l.b16 %v102
  %v3222 = vunpack.c.l.b16 %v103
  %v3223 = vunpack.c.l.b16 %v104
  %v3224 = vpack.c.b16 %v3221, %v3220
  %v3225 = vpack.c.b16 %v3223, %v3222
  %3228 = vmatprep.subr.bf16.mxu0 0
  %3229 = vmatpush1.bf16.msra.mxu0 %v3224
  %3230 = vmatprep.subr.bf16.mxu0 0
  %3231 = vmatpush1.bf16.msra.mxu0 %v3225
  %3232 = vmatprep.subr.bf16.mxu0 0
  %3233 = vmatpush1.bf16.msra.mxu0 0
  %3234 = vmatprep.subr.bf16.mxu0 0
  %3235 = vmatpush1.bf16.msra.mxu0 0
  %3236 = vmatprep.subr.bf16.mxu0 0
  %3237 = vmatpush1.bf16.msra.mxu0 0
  %3238 = vmatprep.subr.bf16.mxu0 0
  %3239 = vmatpush1.bf16.msra.mxu0 0
  %3240 = vmatprep.subr.bf16.mxu0 0
  %3241 = vmatpush1.bf16.msra.mxu0 0
  %3242 = vmatprep.subr.bf16.mxu0 0
  %3243 = vmatpush1.bf16.msra.mxu0 0
  %3244 = vmatprep.subr.bf16.mxu0 0
  %3245 = vmatpush1.bf16.msra.mxu0 0
  %3246 = vmatprep.subr.bf16.mxu0 0
  %3247 = vmatpush1.bf16.msra.mxu0 0
  %3248 = vmatprep.subr.bf16.mxu0 0
  %3249 = vmatpush1.bf16.msra.mxu0 0
  %3250 = vmatprep.subr.bf16.mxu0 0
  %3251 = vmatpush1.bf16.msra.mxu0 0
  %3252 = vmatprep.subr.bf16.mxu0 0
  %3253 = vmatpush1.bf16.msra.mxu0 0
  %3254 = vmatprep.subr.bf16.mxu0 0
  %3255 = vmatpush1.bf16.msra.mxu0 0
  %3256 = vmatprep.subr.bf16.mxu0 0
  %3257 = vmatpush1.bf16.msra.mxu0 0
  %3258 = vmatprep.subr.bf16.mxu0 0
  %3259 = vmatpush1.bf16.msra.mxu0 0
  %3260 = vmatprep.mubr.bf16.mxu0 0
  %3261 = vmatmul.mubr.bf16.gmra.mrb[0].mxu0 %v133
  %v3262 = vpop.f32.mrb[0].mxu0
  %v3263 = vadd.f32 0.0, %v3262
  %v3264 = vpop.f32.mrb[0].mxu0
  %v3265 = vpop.f32.mrb[0].mxu0
  %v3266 = vpop.f32.mrb[0].mxu0
  %3267 = vdwg.mxu0
  %v3272 = vunpack.c.l.b16 %v85
  %v3273 = vunpack.c.l.b16 %v86
  %v3274 = vunpack.c.l.b16 %v87
  %v3275 = vunpack.c.l.b16 %v88
  %v3276 = vpack.c.b16 %v3273, %v3272
  %v3277 = vpack.c.b16 %v3275, %v3274
  %3280 = vmatprep.subr.bf16.mxu0 0
  %3281 = vmatpush1.bf16.msra.mxu0 %v3276
  %3282 = vmatprep.subr.bf16.mxu0 0
  %3283 = vmatpush1.bf16.msra.mxu0 %v3277
  %3284 = vmatprep.subr.bf16.mxu0 0
  %3285 = vmatpush1.bf16.msra.mxu0 0
  %3286 = vmatprep.subr.bf16.mxu0 0
  %3287 = vmatpush1.bf16.msra.mxu0 0
  %3288 = vmatprep.subr.bf16.mxu0 0
  %3289 = vmatpush1.bf16.msra.mxu0 0
  %3290 = vmatprep.subr.bf16.mxu0 0
  %3291 = vmatpush1.bf16.msra.mxu0 0
  %3292 = vmatprep.subr.bf16.mxu0 0
  %3293 = vmatpush1.bf16.msra.mxu0 0
  %3294 = vmatprep.subr.bf16.mxu0 0
  %3295 = vmatpush1.bf16.msra.mxu0 0
  %3296 = vmatprep.subr.bf16.mxu0 0
  %3297 = vmatpush1.bf16.msra.mxu0 0
  %3298 = vmatprep.subr.bf16.mxu0 0
  %3299 = vmatpush1.bf16.msra.mxu0 0
  %3300 = vmatprep.subr.bf16.mxu0 0
  %3301 = vmatpush1.bf16.msra.mxu0 0
  %3302 = vmatprep.subr.bf16.mxu0 0
  %3303 = vmatpush1.bf16.msra.mxu0 0
  %3304 = vmatprep.subr.bf16.mxu0 0
  %3305 = vmatpush1.bf16.msra.mxu0 0
  %3306 = vmatprep.subr.bf16.mxu0 0
  %3307 = vmatpush1.bf16.msra.mxu0 0
  %3308 = vmatprep.subr.bf16.mxu0 0
  %3309 = vmatpush1.bf16.msra.mxu0 0
  %3310 = vmatprep.subr.bf16.mxu0 0
  %3311 = vmatpush1.bf16.msra.mxu0 0
  %3312 = vmatprep.mubr.bf16.mxu0 0
  %3313 = vmatmul.mubr.bf16.gmra.mrb[0].mxu0 %v3167
  %v3314 = vpop.f32.mrb[0].mxu0
  %v3315 = vadd.f32 %v3263, %v3314
  %v3316 = vpop.f32.mrb[0].mxu0
  %v3317 = vpop.f32.mrb[0].mxu0
  %v3318 = vpop.f32.mrb[0].mxu0
  %3319 = vdwg.mxu0
  %v3321 = vlaneseq
  %v3322 = vshrl.u32 %v3321, 7
  %v3323 = vsub.s32 0, %v3322
  %v3324 = vrot.slane %v114, %v3323
  %v3326 = vadd.f32 %v3315, %v3324
  %v3331 = vunpack.c.l.b16 %v105
  %v3332 = vunpack.c.l.b16 %v106
  %v3333 = vunpack.c.l.b16 %v107
  %v3334 = vunpack.c.l.b16 %v108
  %v3335 = vpack.c.b16 %v3332, %v3331
  %v3336 = vpack.c.b16 %v3334, %v3333
  %3339 = vmatprep.subr.bf16.mxu0 0
  %3340 = vmatpush1.bf16.msra.mxu0 %v3335
  %3341 = vmatprep.subr.bf16.mxu0 0
  %3342 = vmatpush1.bf16.msra.mxu0 %v3336
  %3343 = vmatprep.subr.bf16.mxu0 0
  %3344 = vmatpush1.bf16.msra.mxu0 0
  %3345 = vmatprep.subr.bf16.mxu0 0
  %3346 = vmatpush1.bf16.msra.mxu0 0
  %3347 = vmatprep.subr.bf16.mxu0 0
  %3348 = vmatpush1.bf16.msra.mxu0 0
  %3349 = vmatprep.subr.bf16.mxu0 0
  %3350 = vmatpush1.bf16.msra.mxu0 0
  %3351 = vmatprep.subr.bf16.mxu0 0
  %3352 = vmatpush1.bf16.msra.mxu0 0
  %3353 = vmatprep.subr.bf16.mxu0 0
  %3354 = vmatpush1.bf16.msra.mxu0 0
  %3355 = vmatprep.subr.bf16.mxu0 0
  %3356 = vmatpush1.bf16.msra.mxu0 0
  %3357 = vmatprep.subr.bf16.mxu0 0
  %3358 = vmatpush1.bf16.msra.mxu0 0
  %3359 = vmatprep.subr.bf16.mxu0 0
  %3360 = vmatpush1.bf16.msra.mxu0 0
  %3361 = vmatprep.subr.bf16.mxu0 0
  %3362 = vmatpush1.bf16.msra.mxu0 0
  %3363 = vmatprep.subr.bf16.mxu0 0
  %3364 = vmatpush1.bf16.msra.mxu0 0
  %3365 = vmatprep.subr.bf16.mxu0 0
  %3366 = vmatpush1.bf16.msra.mxu0 0
  %3367 = vmatprep.subr.bf16.mxu0 0
  %3368 = vmatpush1.bf16.msra.mxu0 0
  %3369 = vmatprep.subr.bf16.mxu0 0
  %3370 = vmatpush1.bf16.msra.mxu0 0
  %3371 = vmatprep.mubr.bf16.mxu0 0
  %3372 = vmatmul.mubr.bf16.gmra.mrb[0].mxu0 %v133
  %v3373 = vpop.f32.mrb[0].mxu0
  %v3374 = vadd.f32 0.0, %v3373
  %v3375 = vpop.f32.mrb[0].mxu0
  %v3376 = vpop.f32.mrb[0].mxu0
  %v3377 = vpop.f32.mrb[0].mxu0
  %3378 = vdwg.mxu0
  %v3383 = vunpack.c.l.b16 %v89
  %v3384 = vunpack.c.l.b16 %v90
  %v3385 = vunpack.c.l.b16 %v91
  %v3386 = vunpack.c.l.b16 %v92
  %v3387 = vpack.c.b16 %v3384, %v3383
  %v3388 = vpack.c.b16 %v3386, %v3385
  %3391 = vmatprep.subr.bf16.mxu0 0
  %3392 = vmatpush1.bf16.msra.mxu0 %v3387
  %3393 = vmatprep.subr.bf16.mxu0 0
  %3394 = vmatpush1.bf16.msra.mxu0 %v3388
  %3395 = vmatprep.subr.bf16.mxu0 0
  %3396 = vmatpush1.bf16.msra.mxu0 0
  %3397 = vmatprep.subr.bf16.mxu0 0
  %3398 = vmatpush1.bf16.msra.mxu0 0
  %3399 = vmatprep.subr.bf16.mxu0 0
  %3400 = vmatpush1.bf16.msra.mxu0 0
  %3401 = vmatprep.subr.bf16.mxu0 0
  %3402 = vmatpush1.bf16.msra.mxu0 0
  %3403 = vmatprep.subr.bf16.mxu0 0
  %3404 = vmatpush1.bf16.msra.mxu0 0
  %3405 = vmatprep.subr.bf16.mxu0 0
  %3406 = vmatpush1.bf16.msra.mxu0 0
  %3407 = vmatprep.subr.bf16.mxu0 0
  %3408 = vmatpush1.bf16.msra.mxu0 0
  %3409 = vmatprep.subr.bf16.mxu0 0
  %3410 = vmatpush1.bf16.msra.mxu0 0
  %3411 = vmatprep.subr.bf16.mxu0 0
  %3412 = vmatpush1.bf16.msra.mxu0 0
  %3413 = vmatprep.subr.bf16.mxu0 0
  %3414 = vmatpush1.bf16.msra.mxu0 0
  %3415 = vmatprep.subr.bf16.mxu0 0
  %3416 = vmatpush1.bf16.msra.mxu0 0
  %3417 = vmatprep.subr.bf16.mxu0 0
  %3418 = vmatpush1.bf16.msra.mxu0 0
  %3419 = vmatprep.subr.bf16.mxu0 0
  %3420 = vmatpush1.bf16.msra.mxu0 0
  %3421 = vmatprep.subr.bf16.mxu0 0
  %3422 = vmatpush1.bf16.msra.mxu0 0
  %3423 = vmatprep.mubr.bf16.mxu0 0
  %3424 = vmatmul.mubr.bf16.gmra.mrb[0].mxu0 %v3167
  %v3425 = vpop.f32.mrb[0].mxu0
  %v3426 = vadd.f32 %v3374, %v3425
  %v3427 = vpop.f32.mrb[0].mxu0
  %v3428 = vpop.f32.mrb[0].mxu0
  %v3429 = vpop.f32.mrb[0].mxu0
  %3430 = vdwg.mxu0
  %v3432 = vlaneseq
  %v3433 = vshrl.u32 %v3432, 7
  %v3434 = vsub.s32 0, %v3433
  %v3435 = vrot.slane %v115, %v3434
  %v3437 = vadd.f32 %v3426, %v3435
  %v3442 = vunpack.c.l.b16 %v109
  %v3443 = vunpack.c.l.b16 %v110
  %v3444 = vunpack.c.l.b16 %v111
  %v3445 = vunpack.c.l.b16 %v112
  %v3446 = vpack.c.b16 %v3443, %v3442
  %v3447 = vpack.c.b16 %v3445, %v3444
  %3450 = vmatprep.subr.bf16.mxu0 0
  %3451 = vmatpush1.bf16.msra.mxu0 %v3446
  %3452 = vmatprep.subr.bf16.mxu0 0
  %3453 = vmatpush1.bf16.msra.mxu0 %v3447
  %3454 = vmatprep.subr.bf16.mxu0 0
  %3455 = vmatpush1.bf16.msra.mxu0 0
  %3456 = vmatprep.subr.bf16.mxu0 0
  %3457 = vmatpush1.bf16.msra.mxu0 0
  %3458 = vmatprep.subr.bf16.mxu0 0
  %3459 = vmatpush1.bf16.msra.mxu0 0
  %3460 = vmatprep.subr.bf16.mxu0 0
  %3461 = vmatpush1.bf16.msra.mxu0 0
  %3462 = vmatprep.subr.bf16.mxu0 0
  %3463 = vmatpush1.bf16.msra.mxu0 0
  %3464 = vmatprep.subr.bf16.mxu0 0
  %3465 = vmatpush1.bf16.msra.mxu0 0
  %3466 = vmatprep.subr.bf16.mxu0 0
  %3467 = vmatpush1.bf16.msra.mxu0 0
  %3468 = vmatprep.subr.bf16.mxu0 0
  %3469 = vmatpush1.bf16.msra.mxu0 0
  %3470 = vmatprep.subr.bf16.mxu0 0
  %3471 = vmatpush1.bf16.msra.mxu0 0
  %3472 = vmatprep.subr.bf16.mxu0 0
  %3473 = vmatpush1.bf16.msra.mxu0 0
  %3474 = vmatprep.subr.bf16.mxu0 0
  %3475 = vmatpush1.bf16.msra.mxu0 0
  %3476 = vmatprep.subr.bf16.mxu0 0
  %3477 = vmatpush1.bf16.msra.mxu0 0
  %3478 = vmatprep.subr.bf16.mxu0 0
  %3479 = vmatpush1.bf16.msra.mxu0 0
  %3480 = vmatprep.subr.bf16.mxu0 0
  %3481 = vmatpush1.bf16.msra.mxu0 0
  %3482 = vmatprep.mubr.bf16.mxu0 0
  %3483 = vmatmul.mubr.bf16.gmra.mrb[0].mxu0 %v133
  %v3484 = vpop.f32.mrb[0].mxu0
  %v3485 = vadd.f32 0.0, %v3484
  %v3486 = vpop.f32.mrb[0].mxu0
  %v3487 = vpop.f32.mrb[0].mxu0
  %v3488 = vpop.f32.mrb[0].mxu0
  %3489 = vdwg.mxu0
  %v3494 = vunpack.c.l.b16 %v93
  %v3495 = vunpack.c.l.b16 %v94
  %v3496 = vunpack.c.l.b16 %v95
  %v3497 = vunpack.c.l.b16 %v96
  %v3498 = vpack.c.b16 %v3495, %v3494
  %v3499 = vpack.c.b16 %v3497, %v3496
  %3502 = vmatprep.subr.bf16.mxu0 0
  %3503 = vmatpush1.bf16.msra.mxu0 %v3498
  %3504 = vmatprep.subr.bf16.mxu0 0
  %3505 = vmatpush1.bf16.msra.mxu0 %v3499
  %3506 = vmatprep.subr.bf16.mxu0 0
  %3507 = vmatpush1.bf16.msra.mxu0 0
  %3508 = vmatprep.subr.bf16.mxu0 0
  %3509 = vmatpush1.bf16.msra.mxu0 0
  %3510 = vmatprep.subr.bf16.mxu0 0
  %3511 = vmatpush1.bf16.msra.mxu0 0
  %3512 = vmatprep.subr.bf16.mxu0 0
  %3513 = vmatpush1.bf16.msra.mxu0 0
  %3514 = vmatprep.subr.bf16.mxu0 0
  %3515 = vmatpush1.bf16.msra.mxu0 0
  %3516 = vmatprep.subr.bf16.mxu0 0
  %3517 = vmatpush1.bf16.msra.mxu0 0
  %3518 = vmatprep.subr.bf16.mxu0 0
  %3519 = vmatpush1.bf16.msra.mxu0 0
  %3520 = vmatprep.subr.bf16.mxu0 0
  %3521 = vmatpush1.bf16.msra.mxu0 0
  %3522 = vmatprep.subr.bf16.mxu0 0
  %3523 = vmatpush1.bf16.msra.mxu0 0
  %3524 = vmatprep.subr.bf16.mxu0 0
  %3525 = vmatpush1.bf16.msra.mxu0 0
  %3526 = vmatprep.subr.bf16.mxu0 0
  %3527 = vmatpush1.bf16.msra.mxu0 0
  %3528 = vmatprep.subr.bf16.mxu0 0
  %3529 = vmatpush1.bf16.msra.mxu0 0
  %3530 = vmatprep.subr.bf16.mxu0 0
  %3531 = vmatpush1.bf16.msra.mxu0 0
  %3532 = vmatprep.subr.bf16.mxu0 0
  %3533 = vmatpush1.bf16.msra.mxu0 0
  %3534 = vmatprep.mubr.bf16.mxu0 0
  %3535 = vmatmul.mubr.bf16.gmra.mrb[0].mxu0 %v3167
  %v3536 = vpop.f32.mrb[0].mxu0
  %v3537 = vadd.f32 %v3485, %v3536
  %v3538 = vpop.f32.mrb[0].mxu0
  %v3539 = vpop.f32.mrb[0].mxu0
  %v3540 = vpop.f32.mrb[0].mxu0
  %3541 = vdwg.mxu0
  %v3543 = vlaneseq
  %v3544 = vshrl.u32 %v3543, 7
  %v3545 = vsub.s32 0, %v3544
  %v3546 = vrot.slane %v116, %v3545
  %v3548 = vadd.f32 %v3537, %v3546
  %v3549 = vxor.u32 %v3215, 2147483648
  %v3550 = vmul.f32 %v3549, 1.442695
  %v3551 = vpow.pop %v3550
  %v3552 = vadd.f32 %v3551, 1.0
  %v3553 = vrcp.pop %v3552
  %v3554 = vmul.f32 1.0, %v3553
  %v3555 = vxor.u32 %v3326, 2147483648
  %v3556 = vmul.f32 %v3555, 1.442695
  %v3557 = vpow.pop %v3556
  %v3558 = vadd.f32 %v3557, 1.0
  %v3559 = vrcp.pop %v3558
  %v3560 = vmul.f32 1.0, %v3559
  %v3561 = vtanh.pop %v3437
  %v3562 = vxor.u32 %v3548, 2147483648
  %v3563 = vmul.f32 %v3562, 1.442695
  %v3564 = vpow.pop %v3563
  %v3565 = vadd.f32 %v3564, 1.0
  %v3566 = vrcp.pop %v3565
  %v3567 = vmul.f32 1.0, %v3566
  %v3568 = vmul.f32 %v3560, 0.0
  %v3569 = vmul.f32 %v3554, %v3561
  %v3570 = vadd.f32 %v3568, %v3569
  %v3571 = vtanh.pop %v3570
  %v3572 = vmul.f32 %v3567, %v3571
  %s3573 = scalar_lea.vmem %s1, 8
  %v3574 = vld [vmem:[%s3573] sm:$0xff]
  %v3575 = vpack.c.bf16 %v3574, %v3574
  %v3576 = vpack.c.bf16 %v3572, %v3572
  %v3578 = vsel %vm131, %v3576, 0
  %3580 = vmatprep.subr.bf16.mxu0 0
  %3581 = vmatpush1.bf16.msra.mxu0 %v3110
  %3582 = vmatprep.subr.bf16.mxu0 0
  %3583 = vmatpush1.bf16.msra.mxu0 %v3111
  %3584 = vmatprep.subr.bf16.mxu0 0
  %3585 = vmatpush1.bf16.msra.mxu0 0
  %3586 = vmatprep.subr.bf16.mxu0 0
  %3587 = vmatpush1.bf16.msra.mxu0 0
  %3588 = vmatprep.subr.bf16.mxu0 0
  %3589 = vmatpush1.bf16.msra.mxu0 0
  %3590 = vmatprep.subr.bf16.mxu0 0
  %3591 = vmatpush1.bf16.msra.mxu0 0
  %3592 = vmatprep.subr.bf16.mxu0 0
  %3593 = vmatpush1.bf16.msra.mxu0 0
  %3594 = vmatprep.subr.bf16.mxu0 0
  %3595 = vmatpush1.bf16.msra.mxu0 0
  %3596 = vmatprep.subr.bf16.mxu0 0
  %3597 = vmatpush1.bf16.msra.mxu0 0
  %3598 = vmatprep.subr.bf16.mxu0 0
  %3599 = vmatpush1.bf16.msra.mxu0 0
  %3600 = vmatprep.subr.bf16.mxu0 0
  %3601 = vmatpush1.bf16.msra.mxu0 0
  %3602 = vmatprep.subr.bf16.mxu0 0
  %3603 = vmatpush1.bf16.msra.mxu0 0
  %3604 = vmatprep.subr.bf16.mxu0 0
  %3605 = vmatpush1.bf16.msra.mxu0 0
  %3606 = vmatprep.subr.bf16.mxu0 0
  %3607 = vmatpush1.bf16.msra.mxu0 0
  %3608 = vmatprep.subr.bf16.mxu0 0
  %3609 = vmatpush1.bf16.msra.mxu0 0
  %3610 = vmatprep.subr.bf16.mxu0 0
  %3611 = vmatpush1.bf16.msra.mxu0 0
  %3612 = vmatprep.mubr.bf16.mxu0 0
  %3613 = vmatmul.mubr.bf16.gmra.mrb[0].mxu0 %v3578
  %v3614 = vpop.f32.mrb[0].mxu0
  %v3615 = vadd.f32 0.0, %v3614
  %v3616 = vpop.f32.mrb[0].mxu0
  %v3617 = vpop.f32.mrb[0].mxu0
  %v3618 = vpop.f32.mrb[0].mxu0
  %3619 = vdwg.mxu0
  %v3621 = vsel %vm131, %v3575, 0
  %3623 = vmatprep.subr.bf16.mxu0 0
  %3624 = vmatpush1.bf16.msra.mxu0 %v3162
  %3625 = vmatprep.subr.bf16.mxu0 0
  %3626 = vmatpush1.bf16.msra.mxu0 %v3163
  %3627 = vmatprep.subr.bf16.mxu0 0
  %3628 = vmatpush1.bf16.msra.mxu0 0
  %3629 = vmatprep.subr.bf16.mxu0 0
  %3630 = vmatpush1.bf16.msra.mxu0 0
  %3631 = vmatprep.subr.bf16.mxu0 0
  %3632 = vmatpush1.bf16.msra.mxu0 0
  %3633 = vmatprep.subr.bf16.mxu0 0
  %3634 = vmatpush1.bf16.msra.mxu0 0
  %3635 = vmatprep.subr.bf16.mxu0 0
  %3636 = vmatpush1.bf16.msra.mxu0 0
  %3637 = vmatprep.subr.bf16.mxu0 0
  %3638 = vmatpush1.bf16.msra.mxu0 0
  %3639 = vmatprep.subr.bf16.mxu0 0
  %3640 = vmatpush1.bf16.msra.mxu0 0
  %3641 = vmatprep.subr.bf16.mxu0 0
  %3642 = vmatpush1.bf16.msra.mxu0 0
  %3643 = vmatprep.subr.bf16.mxu0 0
  %3644 = vmatpush1.bf16.msra.mxu0 0
  %3645 = vmatprep.subr.bf16.mxu0 0
  %3646 = vmatpush1.bf16.msra.mxu0 0
  %3647 = vmatprep.subr.bf16.mxu0 0
  %3648 = vmatpush1.bf16.msra.mxu0 0
  %3649 = vmatprep.subr.bf16.mxu0 0
  %3650 = vmatpush1.bf16.msra.mxu0 0
  %3651 = vmatprep.subr.bf16.mxu0 0
  %3652 = vmatpush1.bf16.msra.mxu0 0
  %3653 = vmatprep.subr.bf16.mxu0 0
  %3654 = vmatpush1.bf16.msra.mxu0 0
  %3655 = vmatprep.mubr.bf16.mxu0 0
  %3656 = vmatmul.mubr.bf16.gmra.mrb[0].mxu0 %v3621
  %v3657 = vpop.f32.mrb[0].mxu0
  %v3658 = vadd.f32 %v3615, %v3657
  %v3659 = vpop.f32.mrb[0].mxu0
  %v3660 = vpop.f32.mrb[0].mxu0
  %v3661 = vpop.f32.mrb[0].mxu0
  %3662 = vdwg.mxu0
  %v3663 = vadd.f32 %v3658, %v3213
  %3664 = vmatprep.subr.bf16.mxu0 0
  %3665 = vmatpush1.bf16.msra.mxu0 %v3224
  %3666 = vmatprep.subr.bf16.mxu0 0
  %3667 = vmatpush1.bf16.msra.mxu0 %v3225
  %3668 = vmatprep.subr.bf16.mxu0 0
  %3669 = vmatpush1.bf16.msra.mxu0 0
  %3670 = vmatprep.subr.bf16.mxu0 0
  %3671 = vmatpush1.bf16.msra.mxu0 0
  %3672 = vmatprep.subr.bf16.mxu0 0
  %3673 = vmatpush1.bf16.msra.mxu0 0
  %3674 = vmatprep.subr.bf16.mxu0 0
  %3675 = vmatpush1.bf16.msra.mxu0 0
  %3676 = vmatprep.subr.bf16.mxu0 0
  %3677 = vmatpush1.bf16.msra.mxu0 0
  %3678 = vmatprep.subr.bf16.mxu0 0
  %3679 = vmatpush1.bf16.msra.mxu0 0
  %3680 = vmatprep.subr.bf16.mxu0 0
  %3681 = vmatpush1.bf16.msra.mxu0 0
  %3682 = vmatprep.subr.bf16.mxu0 0
  %3683 = vmatpush1.bf16.msra.mxu0 0
  %3684 = vmatprep.subr.bf16.mxu0 0
  %3685 = vmatpush1.bf16.msra.mxu0 0
  %3686 = vmatprep.subr.bf16.mxu0 0
  %3687 = vmatpush1.bf16.msra.mxu0 0
  %3688 = vmatprep.subr.bf16.mxu0 0
  %3689 = vmatpush1.bf16.msra.mxu0 0
  %3690 = vmatprep.subr.bf16.mxu0 0
  %3691 = vmatpush1.bf16.msra.mxu0 0
  %3692 = vmatprep.subr.bf16.mxu0 0
  %3693 = vmatpush1.bf16.msra.mxu0 0
  %3694 = vmatprep.subr.bf16.mxu0 0
  %3695 = vmatpush1.bf16.msra.mxu0 0
  %3696 = vmatprep.mubr.bf16.mxu0 0
  %3697 = vmatmul.mubr.bf16.gmra.mrb[0].mxu0 %v3578
  %v3698 = vpop.f32.mrb[0].mxu0
  %v3699 = vadd.f32 0.0, %v3698
  %v3700 = vpop.f32.mrb[0].mxu0
  %v3701 = vpop.f32.mrb[0].mxu0
  %v3702 = vpop.f32.mrb[0].mxu0
  %3703 = vdwg.mxu0
  %3704 = vmatprep.subr.bf16.mxu0 0
  %3705 = vmatpush1.bf16.msra.mxu0 %v3276
  %3706 = vmatprep.subr.bf16.mxu0 0
  %3707 = vmatpush1.bf16.msra.mxu0 %v3277
  %3708 = vmatprep.subr.bf16.mxu0 0
  %3709 = vmatpush1.bf16.msra.mxu0 0
  %3710 = vmatprep.subr.bf16.mxu0 0
  %3711 = vmatpush1.bf16.msra.mxu0 0
  %3712 = vmatprep.subr.bf16.mxu0 0
  %3713 = vmatpush1.bf16.msra.mxu0 0
  %3714 = vmatprep.subr.bf16.mxu0 0
  %3715 = vmatpush1.bf16.msra.mxu0 0
  %3716 = vmatprep.subr.bf16.mxu0 0
  %3717 = vmatpush1.bf16.msra.mxu0 0
  %3718 = vmatprep.subr.bf16.mxu0 0
  %3719 = vmatpush1.bf16.msra.mxu0 0
  %3720 = vmatprep.subr.bf16.mxu0 0
  %3721 = vmatpush1.bf16.msra.mxu0 0
  %3722 = vmatprep.subr.bf16.mxu0 0
  %3723 = vmatpush1.bf16.msra.mxu0 0
  %3724 = vmatprep.subr.bf16.mxu0 0
  %3725 = vmatpush1.bf16.msra.mxu0 0
  %3726 = vmatprep.subr.bf16.mxu0 0
  %3727 = vmatpush1.bf16.msra.mxu0 0
  %3728 = vmatprep.subr.bf16.mxu0 0
  %3729 = vmatpush1.bf16.msra.mxu0 0
  %3730 = vmatprep.subr.bf16.mxu0 0
  %3731 = vmatpush1.bf16.msra.mxu0 0
  %3732 = vmatprep.subr.bf16.mxu0 0
  %3733 = vmatpush1.bf16.msra.mxu0 0
  %3734 = vmatprep.subr.bf16.mxu0 0
  %3735 = vmatpush1.bf16.msra.mxu0 0
  %3736 = vmatprep.mubr.bf16.mxu0 0
  %3737 = vmatmul.mubr.bf16.gmra.mrb[0].mxu0 %v3621
  %v3738 = vpop.f32.mrb[0].mxu0
  %v3739 = vadd.f32 %v3699, %v3738
  %v3740 = vpop.f32.mrb[0].mxu0
  %v3741 = vpop.f32.mrb[0].mxu0
  %v3742 = vpop.f32.mrb[0].mxu0
  %3743 = vdwg.mxu0
  %v3744 = vadd.f32 %v3739, %v3324
  %3745 = vmatprep.subr.bf16.mxu0 0
  %3746 = vmatpush1.bf16.msra.mxu0 %v3335
  %3747 = vmatprep.subr.bf16.mxu0 0
  %3748 = vmatpush1.bf16.msra.mxu0 %v3336
  %3749 = vmatprep.subr.bf16.mxu0 0
  %3750 = vmatpush1.bf16.msra.mxu0 0
  %3751 = vmatprep.subr.bf16.mxu0 0
  %3752 = vmatpush1.bf16.msra.mxu0 0
  %3753 = vmatprep.subr.bf16.mxu0 0
  %3754 = vmatpush1.bf16.msra.mxu0 0
  %3755 = vmatprep.subr.bf16.mxu0 0
  %3756 = vmatpush1.bf16.msra.mxu0 0
  %3757 = vmatprep.subr.bf16.mxu0 0
  %3758 = vmatpush1.bf16.msra.mxu0 0
  %3759 = vmatprep.subr.bf16.mxu0 0
  %3760 = vmatpush1.bf16.msra.mxu0 0
  %3761 = vmatprep.subr.bf16.mxu0 0
  %3762 = vmatpush1.bf16.msra.mxu0 0
  %3763 = vmatprep.subr.bf16.mxu0 0
  %3764 = vmatpush1.bf16.msra.mxu0 0
  %3765 = vmatprep.subr.bf16.mxu0 0
  %3766 = vmatpush1.bf16.msra.mxu0 0
  %3767 = vmatprep.subr.bf16.mxu0 0
  %3768 = vmatpush1.bf16.msra.mxu0 0
  %3769 = vmatprep.subr.bf16.mxu0 0
  %3770 = vmatpush1.bf16.msra.mxu0 0
  %3771 = vmatprep.subr.bf16.mxu0 0
  %3772 = vmatpush1.bf16.msra.mxu0 0
  %3773 = vmatprep.subr.bf16.mxu0 0
  %3774 = vmatpush1.bf16.msra.mxu0 0
  %3775 = vmatprep.subr.bf16.mxu0 0
  %3776 = vmatpush1.bf16.msra.mxu0 0
  %3777 = vmatprep.mubr.bf16.mxu0 0
  %3778 = vmatmul.mubr.bf16.gmra.mrb[0].mxu0 %v3578
  %v3779 = vpop.f32.mrb[0].mxu0
  %v3780 = vadd.f32 0.0, %v3779
  %v3781 = vpop.f32.mrb[0].mxu0
  %v3782 = vpop.f32.mrb[0].mxu0
  %v3783 = vpop.f32.mrb[0].mxu0
  %3784 = vdwg.mxu0
  %3785 = vmatprep.subr.bf16.mxu0 0
  %3786 = vmatpush1.bf16.msra.mxu0 %v3387
  %3787 = vmatprep.subr.bf16.mxu0 0
  %3788 = vmatpush1.bf16.msra.mxu0 %v3388
  %3789 = vmatprep.subr.bf16.mxu0 0
  %3790 = vmatpush1.bf16.msra.mxu0 0
  %3791 = vmatprep.subr.bf16.mxu0 0
  %3792 = vmatpush1.bf16.msra.mxu0 0
  %3793 = vmatprep.subr.bf16.mxu0 0
  %3794 = vmatpush1.bf16.msra.mxu0 0
  %3795 = vmatprep.subr.bf16.mxu0 0
  %3796 = vmatpush1.bf16.msra.mxu0 0
  %3797 = vmatprep.subr.bf16.mxu0 0
  %3798 = vmatpush1.bf16.msra.mxu0 0
  %3799 = vmatprep.subr.bf16.mxu0 0
  %3800 = vmatpush1.bf16.msra.mxu0 0
  %3801 = vmatprep.subr.bf16.mxu0 0
  %3802 = vmatpush1.bf16.msra.mxu0 0
  %3803 = vmatprep.subr.bf16.mxu0 0
  %3804 = vmatpush1.bf16.msra.mxu0 0
  %3805 = vmatprep.subr.bf16.mxu0 0
  %3806 = vmatpush1.bf16.msra.mxu0 0
  %3807 = vmatprep.subr.bf16.mxu0 0
  %3808 = vmatpush1.bf16.msra.mxu0 0
  %3809 = vmatprep.subr.bf16.mxu0 0
  %3810 = vmatpush1.bf16.msra.mxu0 0
  %3811 = vmatprep.subr.bf16.mxu0 0
  %3812 = vmatpush1.bf16.msra.mxu0 0
  %3813 = vmatprep.subr.bf16.mxu0 0
  %3814 = vmatpush1.bf16.msra.mxu0 0
  %3815 = vmatprep.subr.bf16.mxu0 0
  %3816 = vmatpush1.bf16.msra.mxu0 0
  %3817 = vmatprep.mubr.bf16.mxu0 0
  %3818 = vmatmul.mubr.bf16.gmra.mrb[0].mxu0 %v3621
  %v3819 = vpop.f32.mrb[0].mxu0
  %v3820 = vadd.f32 %v3780, %v3819
  %v3821 = vpop.f32.mrb[0].mxu0
  %v3822 = vpop.f32.mrb[0].mxu0
  %v3823 = vpop.f32.mrb[0].mxu0
  %3824 = vdwg.mxu0
  %v3825 = vadd.f32 %v3820, %v3435
  %3826 = vmatprep.subr.bf16.mxu0 0
  %3827 = vmatpush1.bf16.msra.mxu0 %v3446
  %3828 = vmatprep.subr.bf16.mxu0 0
  %3829 = vmatpush1.bf16.msra.mxu0 %v3447
  %3830 = vmatprep.subr.bf16.mxu0 0
  %3831 = vmatpush1.bf16.msra.mxu0 0
  %3832 = vmatprep.subr.bf16.mxu0 0
  %3833 = vmatpush1.bf16.msra.mxu0 0
  %3834 = vmatprep.subr.bf16.mxu0 0
  %3835 = vmatpush1.bf16.msra.mxu0 0
  %3836 = vmatprep.subr.bf16.mxu0 0
  %3837 = vmatpush1.bf16.msra.mxu0 0
  %3838 = vmatprep.subr.bf16.mxu0 0
  %3839 = vmatpush1.bf16.msra.mxu0 0
  %3840 = vmatprep.subr.bf16.mxu0 0
  %3841 = vmatpush1.bf16.msra.mxu0 0
  %3842 = vmatprep.subr.bf16.mxu0 0
  %3843 = vmatpush1.bf16.msra.mxu0 0
  %3844 = vmatprep.subr.bf16.mxu0 0
  %3845 = vmatpush1.bf16.msra.mxu0 0
  %3846 = vmatprep.subr.bf16.mxu0 0
  %3847 = vmatpush1.bf16.msra.mxu0 0
  %3848 = vmatprep.subr.bf16.mxu0 0
  %3849 = vmatpush1.bf16.msra.mxu0 0
  %3850 = vmatprep.subr.bf16.mxu0 0
  %3851 = vmatpush1.bf16.msra.mxu0 0
  %3852 = vmatprep.subr.bf16.mxu0 0
  %3853 = vmatpush1.bf16.msra.mxu0 0
  %3854 = vmatprep.subr.bf16.mxu0 0
  %3855 = vmatpush1.bf16.msra.mxu0 0
  %3856 = vmatprep.subr.bf16.mxu0 0
  %3857 = vmatpush1.bf16.msra.mxu0 0
  %3858 = vmatprep.mubr.bf16.mxu0 0
  %3859 = vmatmul.mubr.bf16.gmra.mrb[0].mxu0 %v3578
  %v3860 = vpop.f32.mrb[0].mxu0
  %v3861 = vadd.f32 0.0, %v3860
  %v3862 = vpop.f32.mrb[0].mxu0
  %v3863 = vpop.f32.mrb[0].mxu0
  %v3864 = vpop.f32.mrb[0].mxu0
  %3865 = vdwg.mxu0
  %3866 = vmatprep.subr.bf16.mxu0 0
  %3867 = vmatpush1.bf16.msra.mxu0 %v3498
  %3868 = vmatprep.subr.bf16.mxu0 0
  %3869 = vmatpush1.bf16.msra.mxu0 %v3499
  %3870 = vmatprep.subr.bf16.mxu0 0
  %3871 = vmatpush1.bf16.msra.mxu0 0
  %3872 = vmatprep.subr.bf16.mxu0 0
  %3873 = vmatpush1.bf16.msra.mxu0 0
  %3874 = vmatprep.subr.bf16.mxu0 0
  %3875 = vmatpush1.bf16.msra.mxu0 0
  %3876 = vmatprep.subr.bf16.mxu0 0
  %3877 = vmatpush1.bf16.msra.mxu0 0
  %3878 = vmatprep.subr.bf16.mxu0 0
  %3879 = vmatpush1.bf16.msra.mxu0 0
  %3880 = vmatprep.subr.bf16.mxu0 0
  %3881 = vmatpush1.bf16.msra.mxu0 0
  %3882 = vmatprep.subr.bf16.mxu0 0
  %3883 = vmatpush1.bf16.msra.mxu0 0
  %3884 = vmatprep.subr.bf16.mxu0 0
  %3885 = vmatpush1.bf16.msra.mxu0 0
  %3886 = vmatprep.subr.bf16.mxu0 0
  %3887 = vmatpush1.bf16.msra.mxu0 0
  %3888 = vmatprep.subr.bf16.mxu0 0
  %3889 = vmatpush1.bf16.msra.mxu0 0
  %3890 = vmatprep.subr.bf16.mxu0 0
  %3891 = vmatpush1.bf16.msra.mxu0 0
  %3892 = vmatprep.subr.bf16.mxu0 0
  %3893 = vmatpush1.bf16.msra.mxu0 0
  %3894 = vmatprep.subr.bf16.mxu0 0
  %3895 = vmatpush1.bf16.msra.mxu0 0
  %3896 = vmatprep.subr.bf16.mxu0 0
  %3897 = vmatpush1.bf16.msra.mxu0 0
  %3898 = vmatprep.mubr.bf16.mxu0 0
  %3899 = vmatmul.mubr.bf16.gmra.mrb[0].mxu0 %v3621
  %v3900 = vpop.f32.mrb[0].mxu0
  %v3901 = vadd.f32 %v3861, %v3900
  %v3902 = vpop.f32.mrb[0].mxu0
  %v3903 = vpop.f32.mrb[0].mxu0
  %v3904 = vpop.f32.mrb[0].mxu0
  %3905 = vdwg.mxu0
  %v3906 = vadd.f32 %v3901, %v3546
  %v3907 = vxor.u32 %v3663, 2147483648
  %v3908 = vmul.f32 %v3907, 1.442695
  %v3909 = vpow.pop %v3908
  %v3910 = vadd.f32 %v3909, 1.0
  %v3911 = vrcp.pop %v3910
  %v3912 = vmul.f32 1.0, %v3911
  %v3913 = vxor.u32 %v3744, 2147483648
  %v3914 = vmul.f32 %v3913, 1.442695
  %v3915 = vpow.pop %v3914
  %v3916 = vadd.f32 %v3915, 1.0
  %v3917 = vrcp.pop %v3916
  %v3918 = vmul.f32 1.0, %v3917
  %v3919 = vtanh.pop %v3825
  %v3920 = vxor.u32 %v3906, 2147483648
  %v3921 = vmul.f32 %v3920, 1.442695
  %v3922 = vpow.pop %v3921
  %v3923 = vadd.f32 %v3922, 1.0
  %v3924 = vrcp.pop %v3923
  %v3925 = vmul.f32 1.0, %v3924
  %v3926 = vmul.f32 %v3918, %v3570
  %v3927 = vmul.f32 %v3912, %v3919
  %v3928 = vadd.f32 %v3926, %v3927
  %v3929 = vtanh.pop %v3928
  %v3930 = vmul.f32 %v3925, %v3929
  %s3931 = scalar_lea.vmem %s1, 16
  %v3932 = vld [vmem:[%s3931] sm:$0xff]
  %v3933 = vpack.c.bf16 %v3932, %v3932
  %v3934 = vpack.c.bf16 %v3930, %v3930
  %v3936 = vsel %vm131, %v3934, 0
  %3938 = vmatprep.subr.bf16.mxu0 0
  %3939 = vmatpush1.bf16.msra.mxu0 %v3110
  %3940 = vmatprep.subr.bf16.mxu0 0
  %3941 = vmatpush1.bf16.msra.mxu0 %v3111
  %3942 = vmatprep.subr.bf16.mxu0 0
  %3943 = vmatpush1.bf16.msra.mxu0 0
  %3944 = vmatprep.subr.bf16.mxu0 0
  %3945 = vmatpush1.bf16.msra.mxu0 0
  %3946 = vmatprep.subr.bf16.mxu0 0
  %3947 = vmatpush1.bf16.msra.mxu0 0
  %3948 = vmatprep.subr.bf16.mxu0 0
  %3949 = vmatpush1.bf16.msra.mxu0 0
  %3950 = vmatprep.subr.bf16.mxu0 0
  %3951 = vmatpush1.bf16.msra.mxu0 0
  %3952 = vmatprep.subr.bf16.mxu0 0
  %3953 = vmatpush1.bf16.msra.mxu0 0
  %3954 = vmatprep.subr.bf16.mxu0 0
  %3955 = vmatpush1.bf16.msra.mxu0 0
  %3956 = vmatprep.subr.bf16.mxu0 0
  %3957 = vmatpush1.bf16.msra.mxu0 0
  %3958 = vmatprep.subr.bf16.mxu0 0
  %3959 = vmatpush1.bf16.msra.mxu0 0
  %3960 = vmatprep.subr.bf16.mxu0 0
  %3961 = vmatpush1.bf16.msra.mxu0 0
  %3962 = vmatprep.subr.bf16.mxu0 0
  %3963 = vmatpush1.bf16.msra.mxu0 0
  %3964 = vmatprep.subr.bf16.mxu0 0
  %3965 = vmatpush1.bf16.msra.mxu0 0
  %3966 = vmatprep.subr.bf16.mxu0 0
  %3967 = vmatpush1.bf16.msra.mxu0 0
  %3968 = vmatprep.subr.bf16.mxu0 0
  %3969 = vmatpush1.bf16.msra.mxu0 0
  %3970 = vmatprep.mubr.bf16.mxu0 0
  %3971 = vmatmul.mubr.bf16.gmra.mrb[0].mxu0 %v3936
  %v3972 = vpop.f32.mrb[0].mxu0
  %v3973 = vadd.f32 0.0, %v3972
  %v3974 = vpop.f32.mrb[0].mxu0
  %v3975 = vpop.f32.mrb[0].mxu0
  %v3976 = vpop.f32.mrb[0].mxu0
  %3977 = vdwg.mxu0
  %v3979 = vsel %vm131, %v3933, 0
  %3981 = vmatprep.subr.bf16.mxu0 0
  %3982 = vmatpush1.bf16.msra.mxu0 %v3162
  %3983 = vmatprep.subr.bf16.mxu0 0
  %3984 = vmatpush1.bf16.msra.mxu0 %v3163
  %3985 = vmatprep.subr.bf16.mxu0 0
  %3986 = vmatpush1.bf16.msra.mxu0 0
  %3987 = vmatprep.subr.bf16.mxu0 0
  %3988 = vmatpush1.bf16.msra.mxu0 0
  %3989 = vmatprep.subr.bf16.mxu0 0
  %3990 = vmatpush1.bf16.msra.mxu0 0
  %3991 = vmatprep.subr.bf16.mxu0 0
  %3992 = vmatpush1.bf16.msra.mxu0 0
  %3993 = vmatprep.subr.bf16.mxu0 0
  %3994 = vmatpush1.bf16.msra.mxu0 0
  %3995 = vmatprep.subr.bf16.mxu0 0
  %3996 = vmatpush1.bf16.msra.mxu0 0
  %3997 = vmatprep.subr.bf16.mxu0 0
  %3998 = vmatpush1.bf16.msra.mxu0 0
  %3999 = vmatprep.subr.bf16.mxu0 0
  %4000 = vmatpush1.bf16.msra.mxu0 0
  %4001 = vmatprep.subr.bf16.mxu0 0
  %4002 = vmatpush1.bf16.msra.mxu0 0
  %4003 = vmatprep.subr.bf16.mxu0 0
  %4004 = vmatpush1.bf16.msra.mxu0 0
  %4005 = vmatprep.subr.bf16.mxu0 0
  %4006 = vmatpush1.bf16.msra.mxu0 0
  %4007 = vmatprep.subr.bf16.mxu0 0
  %4008 = vmatpush1.bf16.msra.mxu0 0
  %4009 = vmatprep.subr.bf16.mxu0 0
  %4010 = vmatpush1.bf16.msra.mxu0 0
  %4011 = vmatprep.subr.bf16.mxu0 0
  %4012 = vmatpush1.bf16.msra.mxu0 0
  %4013 = vmatprep.mubr.bf16.mxu0 0
  %4014 = vmatmul.mubr.bf16.gmra.mrb[0].mxu0 %v3979
  %v4015 = vpop.f32.mrb[0].mxu0
  %v4016 = vadd.f32 %v3973, %v4015
  %v4017 = vpop.f32.mrb[0].mxu0
  %v4018 = vpop.f32.mrb[0].mxu0
  %v4019 = vpop.f32.mrb[0].mxu0
  %4020 = vdwg.mxu0
  %v4021 = vadd.f32 %v4016, %v3213
  %4022 = vmatprep.subr.bf16.mxu0 0
  %4023 = vmatpush1.bf16.msra.mxu0 %v3224
  %4024 = vmatprep.subr.bf16.mxu0 0
  %4025 = vmatpush1.bf16.msra.mxu0 %v3225
  %4026 = vmatprep.subr.bf16.mxu0 0
  %4027 = vmatpush1.bf16.msra.mxu0 0
  %4028 = vmatprep.subr.bf16.mxu0 0
  %4029 = vmatpush1.bf16.msra.mxu0 0
  %4030 = vmatprep.subr.bf16.mxu0 0
  %4031 = vmatpush1.bf16.msra.mxu0 0
  %4032 = vmatprep.subr.bf16.mxu0 0
  %4033 = vmatpush1.bf16.msra.mxu0 0
  %4034 = vmatprep.subr.bf16.mxu0 0
  %4035 = vmatpush1.bf16.msra.mxu0 0
  %4036 = vmatprep.subr.bf16.mxu0 0
  %4037 = vmatpush1.bf16.msra.mxu0 0
  %4038 = vmatprep.subr.bf16.mxu0 0
  %4039 = vmatpush1.bf16.msra.mxu0 0
  %4040 = vmatprep.subr.bf16.mxu0 0
  %4041 = vmatpush1.bf16.msra.mxu0 0
  %4042 = vmatprep.subr.bf16.mxu0 0
  %4043 = vmatpush1.bf16.msra.mxu0 0
  %4044 = vmatprep.subr.bf16.mxu0 0
  %4045 = vmatpush1.bf16.msra.mxu0 0
  %4046 = vmatprep.subr.bf16.mxu0 0
  %4047 = vmatpush1.bf16.msra.mxu0 0
  %4048 = vmatprep.subr.bf16.mxu0 0
  %4049 = vmatpush1.bf16.msra.mxu0 0
  %4050 = vmatprep.subr.bf16.mxu0 0
  %4051 = vmatpush1.bf16.msra.mxu0 0
  %4052 = vmatprep.subr.bf16.mxu0 0
  %4053 = vmatpush1.bf16.msra.mxu0 0
  %4054 = vmatprep.mubr.bf16.mxu0 0
  %4055 = vmatmul.mubr.bf16.gmra.mrb[0].mxu0 %v3936
  %v4056 = vpop.f32.mrb[0].mxu0
  %v4057 = vadd.f32 0.0, %v4056
  %v4058 = vpop.f32.mrb[0].mxu0
  %v4059 = vpop.f32.mrb[0].mxu0
  %v4060 = vpop.f32.mrb[0].mxu0
  %4061 = vdwg.mxu0
  %4062 = vmatprep.subr.bf16.mxu0 0
  %4063 = vmatpush1.bf16.msra.mxu0 %v3276
  %4064 = vmatprep.subr.bf16.mxu0 0
  %4065 = vmatpush1.bf16.msra.mxu0 %v3277
  %4066 = vmatprep.subr.bf16.mxu0 0
  %4067 = vmatpush1.bf16.msra.mxu0 0
  %4068 = vmatprep.subr.bf16.mxu0 0
  %4069 = vmatpush1.bf16.msra.mxu0 0
  %4070 = vmatprep.subr.bf16.mxu0 0
  %4071 = vmatpush1.bf16.msra.mxu0 0
  %4072 = vmatprep.subr.bf16.mxu0 0
  %4073 = vmatpush1.bf16.msra.mxu0 0
  %4074 = vmatprep.subr.bf16.mxu0 0
  %4075 = vmatpush1.bf16.msra.mxu0 0
  %4076 = vmatprep.subr.bf16.mxu0 0
  %4077 = vmatpush1.bf16.msra.mxu0 0
  %4078 = vmatprep.subr.bf16.mxu0 0
  %4079 = vmatpush1.bf16.msra.mxu0 0
  %4080 = vmatprep.subr.bf16.mxu0 0
  %4081 = vmatpush1.bf16.msra.mxu0 0
  %4082 = vmatprep.subr.bf16.mxu0 0
  %4083 = vmatpush1.bf16.msra.mxu0 0
  %4084 = vmatprep.subr.bf16.mxu0 0
  %4085 = vmatpush1.bf16.msra.mxu0 0
  %4086 = vmatprep.subr.bf16.mxu0 0
  %4087 = vmatpush1.bf16.msra.mxu0 0
  %4088 = vmatprep.subr.bf16.mxu0 0
  %4089 = vmatpush1.bf16.msra.mxu0 0
  %4090 = vmatprep.subr.bf16.mxu0 0
  %4091 = vmatpush1.bf16.msra.mxu0 0
  %4092 = vmatprep.subr.bf16.mxu0 0
  %4093 = vmatpush1.bf16.msra.mxu0 0
  %4094 = vmatprep.mubr.bf16.mxu0 0
  %4095 = vmatmul.mubr.bf16.gmra.mrb[0].mxu0 %v3979
  %v4096 = vpop.f32.mrb[0].mxu0
  %v4097 = vadd.f32 %v4057, %v4096
  %v4098 = vpop.f32.mrb[0].mxu0
  %v4099 = vpop.f32.mrb[0].mxu0
  %v4100 = vpop.f32.mrb[0].mxu0
  %4101 = vdwg.mxu0
  %v4102 = vadd.f32 %v4097, %v3324
  %4103 = vmatprep.subr.bf16.mxu0 0
  %4104 = vmatpush1.bf16.msra.mxu0 %v3335
  %4105 = vmatprep.subr.bf16.mxu0 0
  %4106 = vmatpush1.bf16.msra.mxu0 %v3336
  %4107 = vmatprep.subr.bf16.mxu0 0
  %4108 = vmatpush1.bf16.msra.mxu0 0
  %4109 = vmatprep.subr.bf16.mxu0 0
  %4110 = vmatpush1.bf16.msra.mxu0 0
  %4111 = vmatprep.subr.bf16.mxu0 0
  %4112 = vmatpush1.bf16.msra.mxu0 0
  %4113 = vmatprep.subr.bf16.mxu0 0
  %4114 = vmatpush1.bf16.msra.mxu0 0
  %4115 = vmatprep.subr.bf16.mxu0 0
  %4116 = vmatpush1.bf16.msra.mxu0 0
  %4117 = vmatprep.subr.bf16.mxu0 0
  %4118 = vmatpush1.bf16.msra.mxu0 0
  %4119 = vmatprep.subr.bf16.mxu0 0
  %4120 = vmatpush1.bf16.msra.mxu0 0
  %4121 = vmatprep.subr.bf16.mxu0 0
  %4122 = vmatpush1.bf16.msra.mxu0 0
  %4123 = vmatprep.subr.bf16.mxu0 0
  %4124 = vmatpush1.bf16.msra.mxu0 0
  %4125 = vmatprep.subr.bf16.mxu0 0
  %4126 = vmatpush1.bf16.msra.mxu0 0
  %4127 = vmatprep.subr.bf16.mxu0 0
  %4128 = vmatpush1.bf16.msra.mxu0 0
  %4129 = vmatprep.subr.bf16.mxu0 0
  %4130 = vmatpush1.bf16.msra.mxu0 0
  %4131 = vmatprep.subr.bf16.mxu0 0
  %4132 = vmatpush1.bf16.msra.mxu0 0
  %4133 = vmatprep.subr.bf16.mxu0 0
  %4134 = vmatpush1.bf16.msra.mxu0 0
  %4135 = vmatprep.mubr.bf16.mxu0 0
  %4136 = vmatmul.mubr.bf16.gmra.mrb[0].mxu0 %v3936
  %v4137 = vpop.f32.mrb[0].mxu0
  %v4138 = vadd.f32 0.0, %v4137
  %v4139 = vpop.f32.mrb[0].mxu0
  %v4140 = vpop.f32.mrb[0].mxu0
  %v4141 = vpop.f32.mrb[0].mxu0
  %4142 = vdwg.mxu0
  %4143 = vmatprep.subr.bf16.mxu0 0
  %4144 = vmatpush1.bf16.msra.mxu0 %v3387
  %4145 = vmatprep.subr.bf16.mxu0 0
  %4146 = vmatpush1.bf16.msra.mxu0 %v3388
  %4147 = vmatprep.subr.bf16.mxu0 0
  %4148 = vmatpush1.bf16.msra.mxu0 0
  %4149 = vmatprep.subr.bf16.mxu0 0
  %4150 = vmatpush1.bf16.msra.mxu0 0
  %4151 = vmatprep.subr.bf16.mxu0 0
  %4152 = vmatpush1.bf16.msra.mxu0 0
  %4153 = vmatprep.subr.bf16.mxu0 0
  %4154 = vmatpush1.bf16.msra.mxu0 0
  %4155 = vmatprep.subr.bf16.mxu0 0
  %4156 = vmatpush1.bf16.msra.mxu0 0
  %4157 = vmatprep.subr.bf16.mxu0 0
  %4158 = vmatpush1.bf16.msra.mxu0 0
  %4159 = vmatprep.subr.bf16.mxu0 0
  %4160 = vmatpush1.bf16.msra.mxu0 0
  %4161 = vmatprep.subr.bf16.mxu0 0
  %4162 = vmatpush1.bf16.msra.mxu0 0
  %4163 = vmatprep.subr.bf16.mxu0 0
  %4164 = vmatpush1.bf16.msra.mxu0 0
  %4165 = vmatprep.subr.bf16.mxu0 0
  %4166 = vmatpush1.bf16.msra.mxu0 0
  %4167 = vmatprep.subr.bf16.mxu0 0
  %4168 = vmatpush1.bf16.msra.mxu0 0
  %4169 = vmatprep.subr.bf16.mxu0 0
  %4170 = vmatpush1.bf16.msra.mxu0 0
  %4171 = vmatprep.subr.bf16.mxu0 0
  %4172 = vmatpush1.bf16.msra.mxu0 0
  %4173 = vmatprep.subr.bf16.mxu0 0
  %4174 = vmatpush1.bf16.msra.mxu0 0
  %4175 = vmatprep.mubr.bf16.mxu0 0
  %4176 = vmatmul.mubr.bf16.gmra.mrb[0].mxu0 %v3979
  %v4177 = vpop.f32.mrb[0].mxu0
  %v4178 = vadd.f32 %v4138, %v4177
  %v4179 = vpop.f32.mrb[0].mxu0
  %v4180 = vpop.f32.mrb[0].mxu0
  %v4181 = vpop.f32.mrb[0].mxu0
  %4182 = vdwg.mxu0
  %v4183 = vadd.f32 %v4178, %v3435
  %4184 = vmatprep.subr.bf16.mxu0 0
  %4185 = vmatpush1.bf16.msra.mxu0 %v3446
  %4186 = vmatprep.subr.bf16.mxu0 0
  %4187 = vmatpush1.bf16.msra.mxu0 %v3447
  %4188 = vmatprep.subr.bf16.mxu0 0
  %4189 = vmatpush1.bf16.msra.mxu0 0
  %4190 = vmatprep.subr.bf16.mxu0 0
  %4191 = vmatpush1.bf16.msra.mxu0 0
  %4192 = vmatprep.subr.bf16.mxu0 0
  %4193 = vmatpush1.bf16.msra.mxu0 0
  %4194 = vmatprep.subr.bf16.mxu0 0
  %4195 = vmatpush1.bf16.msra.mxu0 0
  %4196 = vmatprep.subr.bf16.mxu0 0
  %4197 = vmatpush1.bf16.msra.mxu0 0
  %4198 = vmatprep.subr.bf16.mxu0 0
  %4199 = vmatpush1.bf16.msra.mxu0 0
  %4200 = vmatprep.subr.bf16.mxu0 0
  %4201 = vmatpush1.bf16.msra.mxu0 0
  %4202 = vmatprep.subr.bf16.mxu0 0
  %4203 = vmatpush1.bf16.msra.mxu0 0
  %4204 = vmatprep.subr.bf16.mxu0 0
  %4205 = vmatpush1.bf16.msra.mxu0 0
  %4206 = vmatprep.subr.bf16.mxu0 0
  %4207 = vmatpush1.bf16.msra.mxu0 0
  %4208 = vmatprep.subr.bf16.mxu0 0
  %4209 = vmatpush1.bf16.msra.mxu0 0
  %4210 = vmatprep.subr.bf16.mxu0 0
  %4211 = vmatpush1.bf16.msra.mxu0 0
  %4212 = vmatprep.subr.bf16.mxu0 0
  %4213 = vmatpush1.bf16.msra.mxu0 0
  %4214 = vmatprep.subr.bf16.mxu0 0
  %4215 = vmatpush1.bf16.msra.mxu0 0
  %4216 = vmatprep.mubr.bf16.mxu0 0
  %4217 = vmatmul.mubr.bf16.gmra.mrb[0].mxu0 %v3936
  %v4218 = vpop.f32.mrb[0].mxu0
  %v4219 = vadd.f32 0.0, %v4218
  %v4220 = vpop.f32.mrb[0].mxu0
  %v4221 = vpop.f32.mrb[0].mxu0
  %v4222 = vpop.f32.mrb[0].mxu0
  %4223 = vdwg.mxu0
  %4224 = vmatprep.subr.bf16.mxu0 0
  %4225 = vmatpush1.bf16.msra.mxu0 %v3498
  %4226 = vmatprep.subr.bf16.mxu0 0
  %4227 = vmatpush1.bf16.msra.mxu0 %v3499
  %4228 = vmatprep.subr.bf16.mxu0 0
  %4229 = vmatpush1.bf16.msra.mxu0 0
  %4230 = vmatprep.subr.bf16.mxu0 0
  %4231 = vmatpush1.bf16.msra.mxu0 0
  %4232 = vmatprep.subr.bf16.mxu0 0
  %4233 = vmatpush1.bf16.msra.mxu0 0
  %4234 = vmatprep.subr.bf16.mxu0 0
  %4235 = vmatpush1.bf16.msra.mxu0 0
  %4236 = vmatprep.subr.bf16.mxu0 0
  %4237 = vmatpush1.bf16.msra.mxu0 0
  %4238 = vmatprep.subr.bf16.mxu0 0
  %4239 = vmatpush1.bf16.msra.mxu0 0
  %4240 = vmatprep.subr.bf16.mxu0 0
  %4241 = vmatpush1.bf16.msra.mxu0 0
  %4242 = vmatprep.subr.bf16.mxu0 0
  %4243 = vmatpush1.bf16.msra.mxu0 0
  %4244 = vmatprep.subr.bf16.mxu0 0
  %4245 = vmatpush1.bf16.msra.mxu0 0
  %4246 = vmatprep.subr.bf16.mxu0 0
  %4247 = vmatpush1.bf16.msra.mxu0 0
  %4248 = vmatprep.subr.bf16.mxu0 0
  %4249 = vmatpush1.bf16.msra.mxu0 0
  %4250 = vmatprep.subr.bf16.mxu0 0
  %4251 = vmatpush1.bf16.msra.mxu0 0
  %4252 = vmatprep.subr.bf16.mxu0 0
  %4253 = vmatpush1.bf16.msra.mxu0 0
  %4254 = vmatprep.subr.bf16.mxu0 0
  %4255 = vmatpush1.bf16.msra.mxu0 0
  %4256 = vmatprep.mubr.bf16.mxu0 0
  %4257 = vmatmul.mubr.bf16.gmra.mrb[0].mxu0 %v3979
  %v4258 = vpop.f32.mrb[0].mxu0
  %v4259 = vadd.f32 %v4219, %v4258
  %v4260 = vpop.f32.mrb[0].mxu0
  %v4261 = vpop.f32.mrb[0].mxu0
  %v4262 = vpop.f32.mrb[0].mxu0
  %4263 = vdwg.mxu0
  %v4264 = vadd.f32 %v4259, %v3546
  %v4265 = vxor.u32 %v4021, 2147483648
  %v4266 = vmul.f32 %v4265, 1.442695
  %v4267 = vpow.pop %v4266
  %v4268 = vadd.f32 %v4267, 1.0
  %v4269 = vrcp.pop %v4268
  %v4270 = vmul.f32 1.0, %v4269
  %v4271 = vxor.u32 %v4102, 2147483648
  %v4272 = vmul.f32 %v4271, 1.442695
  %v4273 = vpow.pop %v4272
  %v4274 = vadd.f32 %v4273, 1.0
  %v4275 = vrcp.pop %v4274
  %v4276 = vmul.f32 1.0, %v4275
  %v4277 = vtanh.pop %v4183
  %v4278 = vxor.u32 %v4264, 2147483648
  %v4279 = vmul.f32 %v4278, 1.442695
  %v4280 = vpow.pop %v4279
  %v4281 = vadd.f32 %v4280, 1.0
  %v4282 = vrcp.pop %v4281
  %v4283 = vmul.f32 1.0, %v4282
  %v4284 = vmul.f32 %v4276, %v3928
  %v4285 = vmul.f32 %v4270, %v4277
  %v4286 = vadd.f32 %v4284, %v4285
  %v4287 = vtanh.pop %v4286
  %v4288 = vmul.f32 %v4283, %v4287
  %s4289 = scalar_lea.vmem %s1, 24
  %v4290 = vld [vmem:[%s4289] sm:$0xff]
  %v4291 = vpack.c.bf16 %v4290, %v4290
  %v4292 = vpack.c.bf16 %v4288, %v4288
  %v4294 = vsel %vm131, %v4292, 0
  %4296 = vmatprep.subr.bf16.mxu0 0
  %4297 = vmatpush1.bf16.msra.mxu0 %v3110
  %4298 = vmatprep.subr.bf16.mxu0 0
  %4299 = vmatpush1.bf16.msra.mxu0 %v3111
  %4300 = vmatprep.subr.bf16.mxu0 0
  %4301 = vmatpush1.bf16.msra.mxu0 0
  %4302 = vmatprep.subr.bf16.mxu0 0
  %4303 = vmatpush1.bf16.msra.mxu0 0
  %4304 = vmatprep.subr.bf16.mxu0 0
  %4305 = vmatpush1.bf16.msra.mxu0 0
  %4306 = vmatprep.subr.bf16.mxu0 0
  %4307 = vmatpush1.bf16.msra.mxu0 0
  %4308 = vmatprep.subr.bf16.mxu0 0
  %4309 = vmatpush1.bf16.msra.mxu0 0
  %4310 = vmatprep.subr.bf16.mxu0 0
  %4311 = vmatpush1.bf16.msra.mxu0 0
  %4312 = vmatprep.subr.bf16.mxu0 0
  %4313 = vmatpush1.bf16.msra.mxu0 0
  %4314 = vmatprep.subr.bf16.mxu0 0
  %4315 = vmatpush1.bf16.msra.mxu0 0
  %4316 = vmatprep.subr.bf16.mxu0 0
  %4317 = vmatpush1.bf16.msra.mxu0 0
  %4318 = vmatprep.subr.bf16.mxu0 0
  %4319 = vmatpush1.bf16.msra.mxu0 0
  %4320 = vmatprep.subr.bf16.mxu0 0
  %4321 = vmatpush1.bf16.msra.mxu0 0
  %4322 = vmatprep.subr.bf16.mxu0 0
  %4323 = vmatpush1.bf16.msra.mxu0 0
  %4324 = vmatprep.subr.bf16.mxu0 0
  %4325 = vmatpush1.bf16.msra.mxu0 0
  %4326 = vmatprep.subr.bf16.mxu0 0
  %4327 = vmatpush1.bf16.msra.mxu0 0
  %4328 = vmatprep.mubr.bf16.mxu0 0
  %4329 = vmatmul.mubr.bf16.gmra.mrb[0].mxu0 %v4294
  %v4330 = vpop.f32.mrb[0].mxu0
  %v4331 = vadd.f32 0.0, %v4330
  %v4332 = vpop.f32.mrb[0].mxu0
  %v4333 = vpop.f32.mrb[0].mxu0
  %v4334 = vpop.f32.mrb[0].mxu0
  %4335 = vdwg.mxu0
  %v4337 = vsel %vm131, %v4291, 0
  %4339 = vmatprep.subr.bf16.mxu0 0
  %4340 = vmatpush1.bf16.msra.mxu0 %v3162
  %4341 = vmatprep.subr.bf16.mxu0 0
  %4342 = vmatpush1.bf16.msra.mxu0 %v3163
  %4343 = vmatprep.subr.bf16.mxu0 0
  %4344 = vmatpush1.bf16.msra.mxu0 0
  %4345 = vmatprep.subr.bf16.mxu0 0
  %4346 = vmatpush1.bf16.msra.mxu0 0
  %4347 = vmatprep.subr.bf16.mxu0 0
  %4348 = vmatpush1.bf16.msra.mxu0 0
  %4349 = vmatprep.subr.bf16.mxu0 0
  %4350 = vmatpush1.bf16.msra.mxu0 0
  %4351 = vmatprep.subr.bf16.mxu0 0
  %4352 = vmatpush1.bf16.msra.mxu0 0
  %4353 = vmatprep.subr.bf16.mxu0 0
  %4354 = vmatpush1.bf16.msra.mxu0 0
  %4355 = vmatprep.subr.bf16.mxu0 0
  %4356 = vmatpush1.bf16.msra.mxu0 0
  %4357 = vmatprep.subr.bf16.mxu0 0
  %4358 = vmatpush1.bf16.msra.mxu0 0
  %4359 = vmatprep.subr.bf16.mxu0 0
  %4360 = vmatpush1.bf16.msra.mxu0 0
  %4361 = vmatprep.subr.bf16.mxu0 0
  %4362 = vmatpush1.bf16.msra.mxu0 0
  %4363 = vmatprep.subr.bf16.mxu0 0
  %4364 = vmatpush1.bf16.msra.mxu0 0
  %4365 = vmatprep.subr.bf16.mxu0 0
  %4366 = vmatpush1.bf16.msra.mxu0 0
  %4367 = vmatprep.subr.bf16.mxu0 0
  %4368 = vmatpush1.bf16.msra.mxu0 0
  %4369 = vmatprep.subr.bf16.mxu0 0
  %4370 = vmatpush1.bf16.msra.mxu0 0
  %4371 = vmatprep.mubr.bf16.mxu0 0
  %4372 = vmatmul.mubr.bf16.gmra.mrb[0].mxu0 %v4337
  %v4373 = vpop.f32.mrb[0].mxu0
  %v4374 = vadd.f32 %v4331, %v4373
  %v4375 = vpop.f32.mrb[0].mxu0
  %v4376 = vpop.f32.mrb[0].mxu0
  %v4377 = vpop.f32.mrb[0].mxu0
  %4378 = vdwg.mxu0
  %v4379 = vadd.f32 %v4374, %v3213
  %4380 = vmatprep.subr.bf16.mxu0 0
  %4381 = vmatpush1.bf16.msra.mxu0 %v3224
  %4382 = vmatprep.subr.bf16.mxu0 0
  %4383 = vmatpush1.bf16.msra.mxu0 %v3225
  %4384 = vmatprep.subr.bf16.mxu0 0
  %4385 = vmatpush1.bf16.msra.mxu0 0
  %4386 = vmatprep.subr.bf16.mxu0 0
  %4387 = vmatpush1.bf16.msra.mxu0 0
  %4388 = vmatprep.subr.bf16.mxu0 0
  %4389 = vmatpush1.bf16.msra.mxu0 0
  %4390 = vmatprep.subr.bf16.mxu0 0
  %4391 = vmatpush1.bf16.msra.mxu0 0
  %4392 = vmatprep.subr.bf16.mxu0 0
  %4393 = vmatpush1.bf16.msra.mxu0 0
  %4394 = vmatprep.subr.bf16.mxu0 0
  %4395 = vmatpush1.bf16.msra.mxu0 0
  %4396 = vmatprep.subr.bf16.mxu0 0
  %4397 = vmatpush1.bf16.msra.mxu0 0
  %4398 = vmatprep.subr.bf16.mxu0 0
  %4399 = vmatpush1.bf16.msra.mxu0 0
  %4400 = vmatprep.subr.bf16.mxu0 0
  %4401 = vmatpush1.bf16.msra.mxu0 0
  %4402 = vmatprep.subr.bf16.mxu0 0
  %4403 = vmatpush1.bf16.msra.mxu0 0
  %4404 = vmatprep.subr.bf16.mxu0 0
  %4405 = vmatpush1.bf16.msra.mxu0 0
  %4406 = vmatprep.subr.bf16.mxu0 0
  %4407 = vmatpush1.bf16.msra.mxu0 0
  %4408 = vmatprep.subr.bf16.mxu0 0
  %4409 = vmatpush1.bf16.msra.mxu0 0
  %4410 = vmatprep.subr.bf16.mxu0 0
  %4411 = vmatpush1.bf16.msra.mxu0 0
  %4412 = vmatprep.mubr.bf16.mxu0 0
  %4413 = vmatmul.mubr.bf16.gmra.mrb[0].mxu0 %v4294
  %v4414 = vpop.f32.mrb[0].mxu0
  %v4415 = vadd.f32 0.0, %v4414
  %v4416 = vpop.f32.mrb[0].mxu0
  %v4417 = vpop.f32.mrb[0].mxu0
  %v4418 = vpop.f32.mrb[0].mxu0
  %4419 = vdwg.mxu0
  %4420 = vmatprep.subr.bf16.mxu0 0
  %4421 = vmatpush1.bf16.msra.mxu0 %v3276
  %4422 = vmatprep.subr.bf16.mxu0 0
  %4423 = vmatpush1.bf16.msra.mxu0 %v3277
  %4424 = vmatprep.subr.bf16.mxu0 0
  %4425 = vmatpush1.bf16.msra.mxu0 0
  %4426 = vmatprep.subr.bf16.mxu0 0
  %4427 = vmatpush1.bf16.msra.mxu0 0
  %4428 = vmatprep.subr.bf16.mxu0 0
  %4429 = vmatpush1.bf16.msra.mxu0 0
  %4430 = vmatprep.subr.bf16.mxu0 0
  %4431 = vmatpush1.bf16.msra.mxu0 0
  %4432 = vmatprep.subr.bf16.mxu0 0
  %4433 = vmatpush1.bf16.msra.mxu0 0
  %4434 = vmatprep.subr.bf16.mxu0 0
  %4435 = vmatpush1.bf16.msra.mxu0 0
  %4436 = vmatprep.subr.bf16.mxu0 0
  %4437 = vmatpush1.bf16.msra.mxu0 0
  %4438 = vmatprep.subr.bf16.mxu0 0
  %4439 = vmatpush1.bf16.msra.mxu0 0
  %4440 = vmatprep.subr.bf16.mxu0 0
  %4441 = vmatpush1.bf16.msra.mxu0 0
  %4442 = vmatprep.subr.bf16.mxu0 0
  %4443 = vmatpush1.bf16.msra.mxu0 0
  %4444 = vmatprep.subr.bf16.mxu0 0
  %4445 = vmatpush1.bf16.msra.mxu0 0
  %4446 = vmatprep.subr.bf16.mxu0 0
  %4447 = vmatpush1.bf16.msra.mxu0 0
  %4448 = vmatprep.subr.bf16.mxu0 0
  %4449 = vmatpush1.bf16.msra.mxu0 0
  %4450 = vmatprep.subr.bf16.mxu0 0
  %4451 = vmatpush1.bf16.msra.mxu0 0
  %4452 = vmatprep.mubr.bf16.mxu0 0
  %4453 = vmatmul.mubr.bf16.gmra.mrb[0].mxu0 %v4337
  %v4454 = vpop.f32.mrb[0].mxu0
  %v4455 = vadd.f32 %v4415, %v4454
  %v4456 = vpop.f32.mrb[0].mxu0
  %v4457 = vpop.f32.mrb[0].mxu0
  %v4458 = vpop.f32.mrb[0].mxu0
  %4459 = vdwg.mxu0
  %v4460 = vadd.f32 %v4455, %v3324
  %4461 = vmatprep.subr.bf16.mxu0 0
  %4462 = vmatpush1.bf16.msra.mxu0 %v3335
  %4463 = vmatprep.subr.bf16.mxu0 0
  %4464 = vmatpush1.bf16.msra.mxu0 %v3336
  %4465 = vmatprep.subr.bf16.mxu0 0
  %4466 = vmatpush1.bf16.msra.mxu0 0
  %4467 = vmatprep.subr.bf16.mxu0 0
  %4468 = vmatpush1.bf16.msra.mxu0 0
  %4469 = vmatprep.subr.bf16.mxu0 0
  %4470 = vmatpush1.bf16.msra.mxu0 0
  %4471 = vmatprep.subr.bf16.mxu0 0
  %4472 = vmatpush1.bf16.msra.mxu0 0
  %4473 = vmatprep.subr.bf16.mxu0 0
  %4474 = vmatpush1.bf16.msra.mxu0 0
  %4475 = vmatprep.subr.bf16.mxu0 0
  %4476 = vmatpush1.bf16.msra.mxu0 0
  %4477 = vmatprep.subr.bf16.mxu0 0
  %4478 = vmatpush1.bf16.msra.mxu0 0
  %4479 = vmatprep.subr.bf16.mxu0 0
  %4480 = vmatpush1.bf16.msra.mxu0 0
  %4481 = vmatprep.subr.bf16.mxu0 0
  %4482 = vmatpush1.bf16.msra.mxu0 0
  %4483 = vmatprep.subr.bf16.mxu0 0
  %4484 = vmatpush1.bf16.msra.mxu0 0
  %4485 = vmatprep.subr.bf16.mxu0 0
  %4486 = vmatpush1.bf16.msra.mxu0 0
  %4487 = vmatprep.subr.bf16.mxu0 0
  %4488 = vmatpush1.bf16.msra.mxu0 0
  %4489 = vmatprep.subr.bf16.mxu0 0
  %4490 = vmatpush1.bf16.msra.mxu0 0
  %4491 = vmatprep.subr.bf16.mxu0 0
  %4492 = vmatpush1.bf16.msra.mxu0 0
  %4493 = vmatprep.mubr.bf16.mxu0 0
  %4494 = vmatmul.mubr.bf16.gmra.mrb[0].mxu0 %v4294
  %v4495 = vpop.f32.mrb[0].mxu0
  %v4496 = vadd.f32 0.0, %v4495
  %v4497 = vpop.f32.mrb[0].mxu0
  %v4498 = vpop.f32.mrb[0].mxu0
  %v4499 = vpop.f32.mrb[0].mxu0
  %4500 = vdwg.mxu0
  %4501 = vmatprep.subr.bf16.mxu0 0
  %4502 = vmatpush1.bf16.msra.mxu0 %v3387
  %4503 = vmatprep.subr.bf16.mxu0 0
  %4504 = vmatpush1.bf16.msra.mxu0 %v3388
  %4505 = vmatprep.subr.bf16.mxu0 0
  %4506 = vmatpush1.bf16.msra.mxu0 0
  %4507 = vmatprep.subr.bf16.mxu0 0
  %4508 = vmatpush1.bf16.msra.mxu0 0
  %4509 = vmatprep.subr.bf16.mxu0 0
  %4510 = vmatpush1.bf16.msra.mxu0 0
  %4511 = vmatprep.subr.bf16.mxu0 0
  %4512 = vmatpush1.bf16.msra.mxu0 0
  %4513 = vmatprep.subr.bf16.mxu0 0
  %4514 = vmatpush1.bf16.msra.mxu0 0
  %4515 = vmatprep.subr.bf16.mxu0 0
  %4516 = vmatpush1.bf16.msra.mxu0 0
  %4517 = vmatprep.subr.bf16.mxu0 0
  %4518 = vmatpush1.bf16.msra.mxu0 0
  %4519 = vmatprep.subr.bf16.mxu0 0
  %4520 = vmatpush1.bf16.msra.mxu0 0
  %4521 = vmatprep.subr.bf16.mxu0 0
  %4522 = vmatpush1.bf16.msra.mxu0 0
  %4523 = vmatprep.subr.bf16.mxu0 0
  %4524 = vmatpush1.bf16.msra.mxu0 0
  %4525 = vmatprep.subr.bf16.mxu0 0
  %4526 = vmatpush1.bf16.msra.mxu0 0
  %4527 = vmatprep.subr.bf16.mxu0 0
  %4528 = vmatpush1.bf16.msra.mxu0 0
  %4529 = vmatprep.subr.bf16.mxu0 0
  %4530 = vmatpush1.bf16.msra.mxu0 0
  %4531 = vmatprep.subr.bf16.mxu0 0
  %4532 = vmatpush1.bf16.msra.mxu0 0
  %4533 = vmatprep.mubr.bf16.mxu0 0
  %4534 = vmatmul.mubr.bf16.gmra.mrb[0].mxu0 %v4337
  %v4535 = vpop.f32.mrb[0].mxu0
  %v4536 = vadd.f32 %v4496, %v4535
  %v4537 = vpop.f32.mrb[0].mxu0
  %v4538 = vpop.f32.mrb[0].mxu0
  %v4539 = vpop.f32.mrb[0].mxu0
  %4540 = vdwg.mxu0
  %v4541 = vadd.f32 %v4536, %v3435
  %4542 = vmatprep.subr.bf16.mxu0 0
  %4543 = vmatpush1.bf16.msra.mxu0 %v3446
  %4544 = vmatprep.subr.bf16.mxu0 0
  %4545 = vmatpush1.bf16.msra.mxu0 %v3447
  %4546 = vmatprep.subr.bf16.mxu0 0
  %4547 = vmatpush1.bf16.msra.mxu0 0
  %4548 = vmatprep.subr.bf16.mxu0 0
  %4549 = vmatpush1.bf16.msra.mxu0 0
  %4550 = vmatprep.subr.bf16.mxu0 0
  %4551 = vmatpush1.bf16.msra.mxu0 0
  %4552 = vmatprep.subr.bf16.mxu0 0
  %4553 = vmatpush1.bf16.msra.mxu0 0
  %4554 = vmatprep.subr.bf16.mxu0 0
  %4555 = vmatpush1.bf16.msra.mxu0 0
  %4556 = vmatprep.subr.bf16.mxu0 0
  %4557 = vmatpush1.bf16.msra.mxu0 0
  %4558 = vmatprep.subr.bf16.mxu0 0
  %4559 = vmatpush1.bf16.msra.mxu0 0
  %4560 = vmatprep.subr.bf16.mxu0 0
  %4561 = vmatpush1.bf16.msra.mxu0 0
  %4562 = vmatprep.subr.bf16.mxu0 0
  %4563 = vmatpush1.bf16.msra.mxu0 0
  %4564 = vmatprep.subr.bf16.mxu0 0
  %4565 = vmatpush1.bf16.msra.mxu0 0
  %4566 = vmatprep.subr.bf16.mxu0 0
  %4567 = vmatpush1.bf16.msra.mxu0 0
  %4568 = vmatprep.subr.bf16.mxu0 0
  %4569 = vmatpush1.bf16.msra.mxu0 0
  %4570 = vmatprep.subr.bf16.mxu0 0
  %4571 = vmatpush1.bf16.msra.mxu0 0
  %4572 = vmatprep.subr.bf16.mxu0 0
  %4573 = vmatpush1.bf16.msra.mxu0 0
  %4574 = vmatprep.mubr.bf16.mxu0 0
  %4575 = vmatmul.mubr.bf16.gmra.mrb[0].mxu0 %v4294
  %v4576 = vpop.f32.mrb[0].mxu0
  %v4577 = vadd.f32 0.0, %v4576
  %v4578 = vpop.f32.mrb[0].mxu0
  %v4579 = vpop.f32.mrb[0].mxu0
  %v4580 = vpop.f32.mrb[0].mxu0
  %4581 = vdwg.mxu0
  %4582 = vmatprep.subr.bf16.mxu0 0
  %4583 = vmatpush1.bf16.msra.mxu0 %v3498
  %4584 = vmatprep.subr.bf16.mxu0 0
  %4585 = vmatpush1.bf16.msra.mxu0 %v3499
  %4586 = vmatprep.subr.bf16.mxu0 0
  %4587 = vmatpush1.bf16.msra.mxu0 0
  %4588 = vmatprep.subr.bf16.mxu0 0
  %4589 = vmatpush1.bf16.msra.mxu0 0
  %4590 = vmatprep.subr.bf16.mxu0 0
  %4591 = vmatpush1.bf16.msra.mxu0 0
  %4592 = vmatprep.subr.bf16.mxu0 0
  %4593 = vmatpush1.bf16.msra.mxu0 0
  %4594 = vmatprep.subr.bf16.mxu0 0
  %4595 = vmatpush1.bf16.msra.mxu0 0
  %4596 = vmatprep.subr.bf16.mxu0 0
  %4597 = vmatpush1.bf16.msra.mxu0 0
  %4598 = vmatprep.subr.bf16.mxu0 0
  %4599 = vmatpush1.bf16.msra.mxu0 0
  %4600 = vmatprep.subr.bf16.mxu0 0
  %4601 = vmatpush1.bf16.msra.mxu0 0
  %4602 = vmatprep.subr.bf16.mxu0 0
  %4603 = vmatpush1.bf16.msra.mxu0 0
  %4604 = vmatprep.subr.bf16.mxu0 0
  %4605 = vmatpush1.bf16.msra.mxu0 0
  %4606 = vmatprep.subr.bf16.mxu0 0
  %4607 = vmatpush1.bf16.msra.mxu0 0
  %4608 = vmatprep.subr.bf16.mxu0 0
  %4609 = vmatpush1.bf16.msra.mxu0 0
  %4610 = vmatprep.subr.bf16.mxu0 0
  %4611 = vmatpush1.bf16.msra.mxu0 0
  %4612 = vmatprep.subr.bf16.mxu0 0
  %4613 = vmatpush1.bf16.msra.mxu0 0
  %4614 = vmatprep.mubr.bf16.mxu0 0
  %4615 = vmatmul.mubr.bf16.gmra.mrb[0].mxu0 %v4337
  %v4616 = vpop.f32.mrb[0].mxu0
  %v4617 = vadd.f32 %v4577, %v4616
  %v4618 = vpop.f32.mrb[0].mxu0
  %v4619 = vpop.f32.mrb[0].mxu0
  %v4620 = vpop.f32.mrb[0].mxu0
  %4621 = vdwg.mxu0
  %v4622 = vadd.f32 %v4617, %v3546
  %v4623 = vxor.u32 %v4379, 2147483648
  %v4624 = vmul.f32 %v4623, 1.442695
  %v4625 = vpow.pop %v4624
  %v4626 = vadd.f32 %v4625, 1.0
  %v4627 = vrcp.pop %v4626
  %v4628 = vmul.f32 1.0, %v4627
  %v4629 = vxor.u32 %v4460, 2147483648
  %v4630 = vmul.f32 %v4629, 1.442695
  %v4631 = vpow.pop %v4630
  %v4632 = vadd.f32 %v4631, 1.0
  %v4633 = vrcp.pop %v4632
  %v4634 = vmul.f32 1.0, %v4633
  %v4635 = vtanh.pop %v4541
  %v4636 = vxor.u32 %v4622, 2147483648
  %v4637 = vmul.f32 %v4636, 1.442695
  %v4638 = vpow.pop %v4637
  %v4639 = vadd.f32 %v4638, 1.0
  %v4640 = vrcp.pop %v4639
  %v4641 = vmul.f32 1.0, %v4640
  %v4642 = vmul.f32 %v4634, %v4286
  %v4643 = vmul.f32 %v4628, %v4635
  %v4644 = vadd.f32 %v4642, %v4643
  %v4645 = vtanh.pop %v4644
  %v4646 = vmul.f32 %v4641, %v4645
  %s4647 = scalar_lea.vmem %s1, 32
  %v4648 = vld [vmem:[%s4647] sm:$0xff]
  %v4649 = vpack.c.bf16 %v4648, %v4648
  %v4650 = vpack.c.bf16 %v4646, %v4646
  %v4652 = vsel %vm131, %v4650, 0
  %4654 = vmatprep.subr.bf16.mxu0 0
  %4655 = vmatpush1.bf16.msra.mxu0 %v3110
  %4656 = vmatprep.subr.bf16.mxu0 0
  %4657 = vmatpush1.bf16.msra.mxu0 %v3111
  %4658 = vmatprep.subr.bf16.mxu0 0
  %4659 = vmatpush1.bf16.msra.mxu0 0
  %4660 = vmatprep.subr.bf16.mxu0 0
  %4661 = vmatpush1.bf16.msra.mxu0 0
  %4662 = vmatprep.subr.bf16.mxu0 0
  %4663 = vmatpush1.bf16.msra.mxu0 0
  %4664 = vmatprep.subr.bf16.mxu0 0
  %4665 = vmatpush1.bf16.msra.mxu0 0
  %4666 = vmatprep.subr.bf16.mxu0 0
  %4667 = vmatpush1.bf16.msra.mxu0 0
  %4668 = vmatprep.subr.bf16.mxu0 0
  %4669 = vmatpush1.bf16.msra.mxu0 0
  %4670 = vmatprep.subr.bf16.mxu0 0
  %4671 = vmatpush1.bf16.msra.mxu0 0
  %4672 = vmatprep.subr.bf16.mxu0 0
  %4673 = vmatpush1.bf16.msra.mxu0 0
  %4674 = vmatprep.subr.bf16.mxu0 0
  %4675 = vmatpush1.bf16.msra.mxu0 0
  %4676 = vmatprep.subr.bf16.mxu0 0
  %4677 = vmatpush1.bf16.msra.mxu0 0
  %4678 = vmatprep.subr.bf16.mxu0 0
  %4679 = vmatpush1.bf16.msra.mxu0 0
  %4680 = vmatprep.subr.bf16.mxu0 0
  %4681 = vmatpush1.bf16.msra.mxu0 0
  %4682 = vmatprep.subr.bf16.mxu0 0
  %4683 = vmatpush1.bf16.msra.mxu0 0
  %4684 = vmatprep.subr.bf16.mxu0 0
  %4685 = vmatpush1.bf16.msra.mxu0 0
  %4686 = vmatprep.mubr.bf16.mxu0 0
  %4687 = vmatmul.mubr.bf16.gmra.mrb[0].mxu0 %v4652
  %v4688 = vpop.f32.mrb[0].mxu0
  %v4689 = vadd.f32 0.0, %v4688
  %v4690 = vpop.f32.mrb[0].mxu0
  %v4691 = vpop.f32.mrb[0].mxu0
  %v4692 = vpop.f32.mrb[0].mxu0
  %4693 = vdwg.mxu0
  %v4695 = vsel %vm131, %v4649, 0
  %4697 = vmatprep.subr.bf16.mxu0 0
  %4698 = vmatpush1.bf16.msra.mxu0 %v3162
  %4699 = vmatprep.subr.bf16.mxu0 0
  %4700 = vmatpush1.bf16.msra.mxu0 %v3163
  %4701 = vmatprep.subr.bf16.mxu0 0
  %4702 = vmatpush1.bf16.msra.mxu0 0
  %4703 = vmatprep.subr.bf16.mxu0 0
  %4704 = vmatpush1.bf16.msra.mxu0 0
  %4705 = vmatprep.subr.bf16.mxu0 0
  %4706 = vmatpush1.bf16.msra.mxu0 0
  %4707 = vmatprep.subr.bf16.mxu0 0
  %4708 = vmatpush1.bf16.msra.mxu0 0
  %4709 = vmatprep.subr.bf16.mxu0 0
  %4710 = vmatpush1.bf16.msra.mxu0 0
  %4711 = vmatprep.subr.bf16.mxu0 0
  %4712 = vmatpush1.bf16.msra.mxu0 0
  %4713 = vmatprep.subr.bf16.mxu0 0
  %4714 = vmatpush1.bf16.msra.mxu0 0
  %4715 = vmatprep.subr.bf16.mxu0 0
  %4716 = vmatpush1.bf16.msra.mxu0 0
  %4717 = vmatprep.subr.bf16.mxu0 0
  %4718 = vmatpush1.bf16.msra.mxu0 0
  %4719 = vmatprep.subr.bf16.mxu0 0
  %4720 = vmatpush1.bf16.msra.mxu0 0
  %4721 = vmatprep.subr.bf16.mxu0 0
  %4722 = vmatpush1.bf16.msra.mxu0 0
  %4723 = vmatprep.subr.bf16.mxu0 0
  %4724 = vmatpush1.bf16.msra.mxu0 0
  %4725 = vmatprep.subr.bf16.mxu0 0
  %4726 = vmatpush1.bf16.msra.mxu0 0
  %4727 = vmatprep.subr.bf16.mxu0 0
  %4728 = vmatpush1.bf16.msra.mxu0 0
  %4729 = vmatprep.mubr.bf16.mxu0 0
  %4730 = vmatmul.mubr.bf16.gmra.mrb[0].mxu0 %v4695
  %v4731 = vpop.f32.mrb[0].mxu0
  %v4732 = vadd.f32 %v4689, %v4731
  %v4733 = vpop.f32.mrb[0].mxu0
  %v4734 = vpop.f32.mrb[0].mxu0
  %v4735 = vpop.f32.mrb[0].mxu0
  %4736 = vdwg.mxu0
  %v4737 = vadd.f32 %v4732, %v3213
  %4738 = vmatprep.subr.bf16.mxu0 0
  %4739 = vmatpush1.bf16.msra.mxu0 %v3224
  %4740 = vmatprep.subr.bf16.mxu0 0
  %4741 = vmatpush1.bf16.msra.mxu0 %v3225
  %4742 = vmatprep.subr.bf16.mxu0 0
  %4743 = vmatpush1.bf16.msra.mxu0 0
  %4744 = vmatprep.subr.bf16.mxu0 0
  %4745 = vmatpush1.bf16.msra.mxu0 0
  %4746 = vmatprep.subr.bf16.mxu0 0
  %4747 = vmatpush1.bf16.msra.mxu0 0
  %4748 = vmatprep.subr.bf16.mxu0 0
  %4749 = vmatpush1.bf16.msra.mxu0 0
  %4750 = vmatprep.subr.bf16.mxu0 0
  %4751 = vmatpush1.bf16.msra.mxu0 0
  %4752 = vmatprep.subr.bf16.mxu0 0
  %4753 = vmatpush1.bf16.msra.mxu0 0
  %4754 = vmatprep.subr.bf16.mxu0 0
  %4755 = vmatpush1.bf16.msra.mxu0 0
  %4756 = vmatprep.subr.bf16.mxu0 0
  %4757 = vmatpush1.bf16.msra.mxu0 0
  %4758 = vmatprep.subr.bf16.mxu0 0
  %4759 = vmatpush1.bf16.msra.mxu0 0
  %4760 = vmatprep.subr.bf16.mxu0 0
  %4761 = vmatpush1.bf16.msra.mxu0 0
  %4762 = vmatprep.subr.bf16.mxu0 0
  %4763 = vmatpush1.bf16.msra.mxu0 0
  %4764 = vmatprep.subr.bf16.mxu0 0
  %4765 = vmatpush1.bf16.msra.mxu0 0
  %4766 = vmatprep.subr.bf16.mxu0 0
  %4767 = vmatpush1.bf16.msra.mxu0 0
  %4768 = vmatprep.subr.bf16.mxu0 0
  %4769 = vmatpush1.bf16.msra.mxu0 0
  %4770 = vmatprep.mubr.bf16.mxu0 0
  %4771 = vmatmul.mubr.bf16.gmra.mrb[0].mxu0 %v4652
  %v4772 = vpop.f32.mrb[0].mxu0
  %v4773 = vadd.f32 0.0, %v4772
  %v4774 = vpop.f32.mrb[0].mxu0
  %v4775 = vpop.f32.mrb[0].mxu0
  %v4776 = vpop.f32.mrb[0].mxu0
  %4777 = vdwg.mxu0
  %4778 = vmatprep.subr.bf16.mxu0 0
  %4779 = vmatpush1.bf16.msra.mxu0 %v3276
  %4780 = vmatprep.subr.bf16.mxu0 0
  %4781 = vmatpush1.bf16.msra.mxu0 %v3277
  %4782 = vmatprep.subr.bf16.mxu0 0
  %4783 = vmatpush1.bf16.msra.mxu0 0
  %4784 = vmatprep.subr.bf16.mxu0 0
  %4785 = vmatpush1.bf16.msra.mxu0 0
  %4786 = vmatprep.subr.bf16.mxu0 0
  %4787 = vmatpush1.bf16.msra.mxu0 0
  %4788 = vmatprep.subr.bf16.mxu0 0
  %4789 = vmatpush1.bf16.msra.mxu0 0
  %4790 = vmatprep.subr.bf16.mxu0 0
  %4791 = vmatpush1.bf16.msra.mxu0 0
  %4792 = vmatprep.subr.bf16.mxu0 0
  %4793 = vmatpush1.bf16.msra.mxu0 0
  %4794 = vmatprep.subr.bf16.mxu0 0
  %4795 = vmatpush1.bf16.msra.mxu0 0
  %4796 = vmatprep.subr.bf16.mxu0 0
  %4797 = vmatpush1.bf16.msra.mxu0 0
  %4798 = vmatprep.subr.bf16.mxu0 0
  %4799 = vmatpush1.bf16.msra.mxu0 0
  %4800 = vmatprep.subr.bf16.mxu0 0
  %4801 = vmatpush1.bf16.msra.mxu0 0
  %4802 = vmatprep.subr.bf16.mxu0 0
  %4803 = vmatpush1.bf16.msra.mxu0 0
  %4804 = vmatprep.subr.bf16.mxu0 0
  %4805 = vmatpush1.bf16.msra.mxu0 0
  %4806 = vmatprep.subr.bf16.mxu0 0
  %4807 = vmatpush1.bf16.msra.mxu0 0
  %4808 = vmatprep.subr.bf16.mxu0 0
  %4809 = vmatpush1.bf16.msra.mxu0 0
  %4810 = vmatprep.mubr.bf16.mxu0 0
  %4811 = vmatmul.mubr.bf16.gmra.mrb[0].mxu0 %v4695
  %v4812 = vpop.f32.mrb[0].mxu0
  %v4813 = vadd.f32 %v4773, %v4812
  %v4814 = vpop.f32.mrb[0].mxu0
  %v4815 = vpop.f32.mrb[0].mxu0
  %v4816 = vpop.f32.mrb[0].mxu0
  %4817 = vdwg.mxu0
  %v4818 = vadd.f32 %v4813, %v3324
  %4819 = vmatprep.subr.bf16.mxu0 0
  %4820 = vmatpush1.bf16.msra.mxu0 %v3335
  %4821 = vmatprep.subr.bf16.mxu0 0
  %4822 = vmatpush1.bf16.msra.mxu0 %v3336
  %4823 = vmatprep.subr.bf16.mxu0 0
  %4824 = vmatpush1.bf16.msra.mxu0 0
  %4825 = vmatprep.subr.bf16.mxu0 0
  %4826 = vmatpush1.bf16.msra.mxu0 0
  %4827 = vmatprep.subr.bf16.mxu0 0
  %4828 = vmatpush1.bf16.msra.mxu0 0
  %4829 = vmatprep.subr.bf16.mxu0 0
  %4830 = vmatpush1.bf16.msra.mxu0 0
  %4831 = vmatprep.subr.bf16.mxu0 0
  %4832 = vmatpush1.bf16.msra.mxu0 0
  %4833 = vmatprep.subr.bf16.mxu0 0
  %4834 = vmatpush1.bf16.msra.mxu0 0
  %4835 = vmatprep.subr.bf16.mxu0 0
  %4836 = vmatpush1.bf16.msra.mxu0 0
  %4837 = vmatprep.subr.bf16.mxu0 0
  %4838 = vmatpush1.bf16.msra.mxu0 0
  %4839 = vmatprep.subr.bf16.mxu0 0
  %4840 = vmatpush1.bf16.msra.mxu0 0
  %4841 = vmatprep.subr.bf16.mxu0 0
  %4842 = vmatpush1.bf16.msra.mxu0 0
  %4843 = vmatprep.subr.bf16.mxu0 0
  %4844 = vmatpush1.bf16.msra.mxu0 0
  %4845 = vmatprep.subr.bf16.mxu0 0
  %4846 = vmatpush1.bf16.msra.mxu0 0
  %4847 = vmatprep.subr.bf16.mxu0 0
  %4848 = vmatpush1.bf16.msra.mxu0 0
  %4849 = vmatprep.subr.bf16.mxu0 0
  %4850 = vmatpush1.bf16.msra.mxu0 0
  %4851 = vmatprep.mubr.bf16.mxu0 0
  %4852 = vmatmul.mubr.bf16.gmra.mrb[0].mxu0 %v4652
  %v4853 = vpop.f32.mrb[0].mxu0
  %v4854 = vadd.f32 0.0, %v4853
  %v4855 = vpop.f32.mrb[0].mxu0
  %v4856 = vpop.f32.mrb[0].mxu0
  %v4857 = vpop.f32.mrb[0].mxu0
  %4858 = vdwg.mxu0
  %4859 = vmatprep.subr.bf16.mxu0 0
  %4860 = vmatpush1.bf16.msra.mxu0 %v3387
  %4861 = vmatprep.subr.bf16.mxu0 0
  %4862 = vmatpush1.bf16.msra.mxu0 %v3388
  %4863 = vmatprep.subr.bf16.mxu0 0
  %4864 = vmatpush1.bf16.msra.mxu0 0
  %4865 = vmatprep.subr.bf16.mxu0 0
  %4866 = vmatpush1.bf16.msra.mxu0 0
  %4867 = vmatprep.subr.bf16.mxu0 0
  %4868 = vmatpush1.bf16.msra.mxu0 0
  %4869 = vmatprep.subr.bf16.mxu0 0
  %4870 = vmatpush1.bf16.msra.mxu0 0
  %4871 = vmatprep.subr.bf16.mxu0 0
  %4872 = vmatpush1.bf16.msra.mxu0 0
  %4873 = vmatprep.subr.bf16.mxu0 0
  %4874 = vmatpush1.bf16.msra.mxu0 0
  %4875 = vmatprep.subr.bf16.mxu0 0
  %4876 = vmatpush1.bf16.msra.mxu0 0
  %4877 = vmatprep.subr.bf16.mxu0 0
  %4878 = vmatpush1.bf16.msra.mxu0 0
  %4879 = vmatprep.subr.bf16.mxu0 0
  %4880 = vmatpush1.bf16.msra.mxu0 0
  %4881 = vmatprep.subr.bf16.mxu0 0
  %4882 = vmatpush1.bf16.msra.mxu0 0
  %4883 = vmatprep.subr.bf16.mxu0 0
  %4884 = vmatpush1.bf16.msra.mxu0 0
  %4885 = vmatprep.subr.bf16.mxu0 0
  %4886 = vmatpush1.bf16.msra.mxu0 0
  %4887 = vmatprep.subr.bf16.mxu0 0
  %4888 = vmatpush1.bf16.msra.mxu0 0
  %4889 = vmatprep.subr.bf16.mxu0 0
  %4890 = vmatpush1.bf16.msra.mxu0 0
  %4891 = vmatprep.mubr.bf16.mxu0 0
  %4892 = vmatmul.mubr.bf16.gmra.mrb[0].mxu0 %v4695
  %v4893 = vpop.f32.mrb[0].mxu0
  %v4894 = vadd.f32 %v4854, %v4893
  %v4895 = vpop.f32.mrb[0].mxu0
  %v4896 = vpop.f32.mrb[0].mxu0
  %v4897 = vpop.f32.mrb[0].mxu0
  %4898 = vdwg.mxu0
  %v4899 = vadd.f32 %v4894, %v3435
  %4900 = vmatprep.subr.bf16.mxu0 0
  %4901 = vmatpush1.bf16.msra.mxu0 %v3446
  %4902 = vmatprep.subr.bf16.mxu0 0
  %4903 = vmatpush1.bf16.msra.mxu0 %v3447
  %4904 = vmatprep.subr.bf16.mxu0 0
  %4905 = vmatpush1.bf16.msra.mxu0 0
  %4906 = vmatprep.subr.bf16.mxu0 0
  %4907 = vmatpush1.bf16.msra.mxu0 0
  %4908 = vmatprep.subr.bf16.mxu0 0
  %4909 = vmatpush1.bf16.msra.mxu0 0
  %4910 = vmatprep.subr.bf16.mxu0 0
  %4911 = vmatpush1.bf16.msra.mxu0 0
  %4912 = vmatprep.subr.bf16.mxu0 0
  %4913 = vmatpush1.bf16.msra.mxu0 0
  %4914 = vmatprep.subr.bf16.mxu0 0
  %4915 = vmatpush1.bf16.msra.mxu0 0
  %4916 = vmatprep.subr.bf16.mxu0 0
  %4917 = vmatpush1.bf16.msra.mxu0 0
  %4918 = vmatprep.subr.bf16.mxu0 0
  %4919 = vmatpush1.bf16.msra.mxu0 0
  %4920 = vmatprep.subr.bf16.mxu0 0
  %4921 = vmatpush1.bf16.msra.mxu0 0
  %4922 = vmatprep.subr.bf16.mxu0 0
  %4923 = vmatpush1.bf16.msra.mxu0 0
  %4924 = vmatprep.subr.bf16.mxu0 0
  %4925 = vmatpush1.bf16.msra.mxu0 0
  %4926 = vmatprep.subr.bf16.mxu0 0
  %4927 = vmatpush1.bf16.msra.mxu0 0
  %4928 = vmatprep.subr.bf16.mxu0 0
  %4929 = vmatpush1.bf16.msra.mxu0 0
  %4930 = vmatprep.subr.bf16.mxu0 0
  %4931 = vmatpush1.bf16.msra.mxu0 0
  %4932 = vmatprep.mubr.bf16.mxu0 0
  %4933 = vmatmul.mubr.bf16.gmra.mrb[0].mxu0 %v4652
  %v4934 = vpop.f32.mrb[0].mxu0
  %v4935 = vadd.f32 0.0, %v4934
  %v4936 = vpop.f32.mrb[0].mxu0
  %v4937 = vpop.f32.mrb[0].mxu0
  %v4938 = vpop.f32.mrb[0].mxu0
  %4939 = vdwg.mxu0
  %4940 = vmatprep.subr.bf16.mxu0 0
  %4941 = vmatpush1.bf16.msra.mxu0 %v3498
  %4942 = vmatprep.subr.bf16.mxu0 0
  %4943 = vmatpush1.bf16.msra.mxu0 %v3499
  %4944 = vmatprep.subr.bf16.mxu0 0
  %4945 = vmatpush1.bf16.msra.mxu0 0
  %4946 = vmatprep.subr.bf16.mxu0 0
  %4947 = vmatpush1.bf16.msra.mxu0 0
  %4948 = vmatprep.subr.bf16.mxu0 0
  %4949 = vmatpush1.bf16.msra.mxu0 0
  %4950 = vmatprep.subr.bf16.mxu0 0
  %4951 = vmatpush1.bf16.msra.mxu0 0
  %4952 = vmatprep.subr.bf16.mxu0 0
  %4953 = vmatpush1.bf16.msra.mxu0 0
  %4954 = vmatprep.subr.bf16.mxu0 0
  %4955 = vmatpush1.bf16.msra.mxu0 0
  %4956 = vmatprep.subr.bf16.mxu0 0
  %4957 = vmatpush1.bf16.msra.mxu0 0
  %4958 = vmatprep.subr.bf16.mxu0 0
  %4959 = vmatpush1.bf16.msra.mxu0 0
  %4960 = vmatprep.subr.bf16.mxu0 0
  %4961 = vmatpush1.bf16.msra.mxu0 0
  %4962 = vmatprep.subr.bf16.mxu0 0
  %4963 = vmatpush1.bf16.msra.mxu0 0
  %4964 = vmatprep.subr.bf16.mxu0 0
  %4965 = vmatpush1.bf16.msra.mxu0 0
  %4966 = vmatprep.subr.bf16.mxu0 0
  %4967 = vmatpush1.bf16.msra.mxu0 0
  %4968 = vmatprep.subr.bf16.mxu0 0
  %4969 = vmatpush1.bf16.msra.mxu0 0
  %4970 = vmatprep.subr.bf16.mxu0 0
  %4971 = vmatpush1.bf16.msra.mxu0 0
  %4972 = vmatprep.mubr.bf16.mxu0 0
  %4973 = vmatmul.mubr.bf16.gmra.mrb[0].mxu0 %v4695
  %v4974 = vpop.f32.mrb[0].mxu0
  %v4975 = vadd.f32 %v4935, %v4974
  %v4976 = vpop.f32.mrb[0].mxu0
  %v4977 = vpop.f32.mrb[0].mxu0
  %v4978 = vpop.f32.mrb[0].mxu0
  %4979 = vdwg.mxu0
  %v4980 = vadd.f32 %v4975, %v3546
  %v4981 = vxor.u32 %v4737, 2147483648
  %v4982 = vmul.f32 %v4981, 1.442695
  %v4983 = vpow.pop %v4982
  %v4984 = vadd.f32 %v4983, 1.0
  %v4985 = vrcp.pop %v4984
  %v4986 = vmul.f32 1.0, %v4985
  %v4987 = vxor.u32 %v4818, 2147483648
  %v4988 = vmul.f32 %v4987, 1.442695
  %v4989 = vpow.pop %v4988
  %v4990 = vadd.f32 %v4989, 1.0
  %v4991 = vrcp.pop %v4990
  %v4992 = vmul.f32 1.0, %v4991
  %v4993 = vtanh.pop %v4899
  %v4994 = vxor.u32 %v4980, 2147483648
  %v4995 = vmul.f32 %v4994, 1.442695
  %v4996 = vpow.pop %v4995
  %v4997 = vadd.f32 %v4996, 1.0
  %v4998 = vrcp.pop %v4997
  %v4999 = vmul.f32 1.0, %v4998
  %v5000 = vmul.f32 %v4992, %v4644
  %v5001 = vmul.f32 %v4986, %v4993
  %v5002 = vadd.f32 %v5000, %v5001
  %v5003 = vtanh.pop %v5002
  %v5004 = vmul.f32 %v4999, %v5003
  %s5005 = scalar_lea.vmem %s1, 40
  %v5006 = vld [vmem:[%s5005] sm:$0xff]
  %v5007 = vpack.c.bf16 %v5006, %v5006
  %v5008 = vpack.c.bf16 %v5004, %v5004
  %v5010 = vsel %vm131, %v5008, 0
  %5012 = vmatprep.subr.bf16.mxu0 0
  %5013 = vmatpush1.bf16.msra.mxu0 %v3110
  %5014 = vmatprep.subr.bf16.mxu0 0
  %5015 = vmatpush1.bf16.msra.mxu0 %v3111
  %5016 = vmatprep.subr.bf16.mxu0 0
  %5017 = vmatpush1.bf16.msra.mxu0 0
  %5018 = vmatprep.subr.bf16.mxu0 0
  %5019 = vmatpush1.bf16.msra.mxu0 0
  %5020 = vmatprep.subr.bf16.mxu0 0
  %5021 = vmatpush1.bf16.msra.mxu0 0
  %5022 = vmatprep.subr.bf16.mxu0 0
  %5023 = vmatpush1.bf16.msra.mxu0 0
  %5024 = vmatprep.subr.bf16.mxu0 0
  %5025 = vmatpush1.bf16.msra.mxu0 0
  %5026 = vmatprep.subr.bf16.mxu0 0
  %5027 = vmatpush1.bf16.msra.mxu0 0
  %5028 = vmatprep.subr.bf16.mxu0 0
  %5029 = vmatpush1.bf16.msra.mxu0 0
  %5030 = vmatprep.subr.bf16.mxu0 0
  %5031 = vmatpush1.bf16.msra.mxu0 0
  %5032 = vmatprep.subr.bf16.mxu0 0
  %5033 = vmatpush1.bf16.msra.mxu0 0
  %5034 = vmatprep.subr.bf16.mxu0 0
  %5035 = vmatpush1.bf16.msra.mxu0 0
  %5036 = vmatprep.subr.bf16.mxu0 0
  %5037 = vmatpush1.bf16.msra.mxu0 0
  %5038 = vmatprep.subr.bf16.mxu0 0
  %5039 = vmatpush1.bf16.msra.mxu0 0
  %5040 = vmatprep.subr.bf16.mxu0 0
  %5041 = vmatpush1.bf16.msra.mxu0 0
  %5042 = vmatprep.subr.bf16.mxu0 0
  %5043 = vmatpush1.bf16.msra.mxu0 0
  %5044 = vmatprep.mubr.bf16.mxu0 0
  %5045 = vmatmul.mubr.bf16.gmra.mrb[0].mxu0 %v5010
  %v5046 = vpop.f32.mrb[0].mxu0
  %v5047 = vadd.f32 0.0, %v5046
  %v5048 = vpop.f32.mrb[0].mxu0
  %v5049 = vpop.f32.mrb[0].mxu0
  %v5050 = vpop.f32.mrb[0].mxu0
  %5051 = vdwg.mxu0
  %v5053 = vsel %vm131, %v5007, 0
  %5055 = vmatprep.subr.bf16.mxu0 0
  %5056 = vmatpush1.bf16.msra.mxu0 %v3162
  %5057 = vmatprep.subr.bf16.mxu0 0
  %5058 = vmatpush1.bf16.msra.mxu0 %v3163
  %5059 = vmatprep.subr.bf16.mxu0 0
  %5060 = vmatpush1.bf16.msra.mxu0 0
  %5061 = vmatprep.subr.bf16.mxu0 0
  %5062 = vmatpush1.bf16.msra.mxu0 0
  %5063 = vmatprep.subr.bf16.mxu0 0
  %5064 = vmatpush1.bf16.msra.mxu0 0
  %5065 = vmatprep.subr.bf16.mxu0 0
  %5066 = vmatpush1.bf16.msra.mxu0 0
  %5067 = vmatprep.subr.bf16.mxu0 0
  %5068 = vmatpush1.bf16.msra.mxu0 0
  %5069 = vmatprep.subr.bf16.mxu0 0
  %5070 = vmatpush1.bf16.msra.mxu0 0
  %5071 = vmatprep.subr.bf16.mxu0 0
  %5072 = vmatpush1.bf16.msra.mxu0 0
  %5073 = vmatprep.subr.bf16.mxu0 0
  %5074 = vmatpush1.bf16.msra.mxu0 0
  %5075 = vmatprep.subr.bf16.mxu0 0
  %5076 = vmatpush1.bf16.msra.mxu0 0
  %5077 = vmatprep.subr.bf16.mxu0 0
  %5078 = vmatpush1.bf16.msra.mxu0 0
  %5079 = vmatprep.subr.bf16.mxu0 0
  %5080 = vmatpush1.bf16.msra.mxu0 0
  %5081 = vmatprep.subr.bf16.mxu0 0
  %5082 = vmatpush1.bf16.msra.mxu0 0
  %5083 = vmatprep.subr.bf16.mxu0 0
  %5084 = vmatpush1.bf16.msra.mxu0 0
  %5085 = vmatprep.subr.bf16.mxu0 0
  %5086 = vmatpush1.bf16.msra.mxu0 0
  %5087 = vmatprep.mubr.bf16.mxu0 0
  %5088 = vmatmul.mubr.bf16.gmra.mrb[0].mxu0 %v5053
  %v5089 = vpop.f32.mrb[0].mxu0
  %v5090 = vadd.f32 %v5047, %v5089
  %v5091 = vpop.f32.mrb[0].mxu0
  %v5092 = vpop.f32.mrb[0].mxu0
  %v5093 = vpop.f32.mrb[0].mxu0
  %5094 = vdwg.mxu0
  %v5095 = vadd.f32 %v5090, %v3213
  %5096 = vmatprep.subr.bf16.mxu0 0
  %5097 = vmatpush1.bf16.msra.mxu0 %v3224
  %5098 = vmatprep.subr.bf16.mxu0 0
  %5099 = vmatpush1.bf16.msra.mxu0 %v3225
  %5100 = vmatprep.subr.bf16.mxu0 0
  %5101 = vmatpush1.bf16.msra.mxu0 0
  %5102 = vmatprep.subr.bf16.mxu0 0
  %5103 = vmatpush1.bf16.msra.mxu0 0
  %5104 = vmatprep.subr.bf16.mxu0 0
  %5105 = vmatpush1.bf16.msra.mxu0 0
  %5106 = vmatprep.subr.bf16.mxu0 0
  %5107 = vmatpush1.bf16.msra.mxu0 0
  %5108 = vmatprep.subr.bf16.mxu0 0
  %5109 = vmatpush1.bf16.msra.mxu0 0
  %5110 = vmatprep.subr.bf16.mxu0 0
  %5111 = vmatpush1.bf16.msra.mxu0 0
  %5112 = vmatprep.subr.bf16.mxu0 0
  %5113 = vmatpush1.bf16.msra.mxu0 0
  %5114 = vmatprep.subr.bf16.mxu0 0
  %5115 = vmatpush1.bf16.msra.mxu0 0
  %5116 = vmatprep.subr.bf16.mxu0 0
  %5117 = vmatpush1.bf16.msra.mxu0 0
  %5118 = vmatprep.subr.bf16.mxu0 0
  %5119 = vmatpush1.bf16.msra.mxu0 0
  %5120 = vmatprep.subr.bf16.mxu0 0
  %5121 = vmatpush1.bf16.msra.mxu0 0
  %5122 = vmatprep.subr.bf16.mxu0 0
  %5123 = vmatpush1.bf16.msra.mxu0 0
  %5124 = vmatprep.subr.bf16.mxu0 0
  %5125 = vmatpush1.bf16.msra.mxu0 0
  %5126 = vmatprep.subr.bf16.mxu0 0
  %5127 = vmatpush1.bf16.msra.mxu0 0
  %5128 = vmatprep.mubr.bf16.mxu0 0
  %5129 = vmatmul.mubr.bf16.gmra.mrb[0].mxu0 %v5010
  %v5130 = vpop.f32.mrb[0].mxu0
  %v5131 = vadd.f32 0.0, %v5130
  %v5132 = vpop.f32.mrb[0].mxu0
  %v5133 = vpop.f32.mrb[0].mxu0
  %v5134 = vpop.f32.mrb[0].mxu0
  %5135 = vdwg.mxu0
  %5136 = vmatprep.subr.bf16.mxu0 0
  %5137 = vmatpush1.bf16.msra.mxu0 %v3276
  %5138 = vmatprep.subr.bf16.mxu0 0
  %5139 = vmatpush1.bf16.msra.mxu0 %v3277
  %5140 = vmatprep.subr.bf16.mxu0 0
  %5141 = vmatpush1.bf16.msra.mxu0 0
  %5142 = vmatprep.subr.bf16.mxu0 0
  %5143 = vmatpush1.bf16.msra.mxu0 0
  %5144 = vmatprep.subr.bf16.mxu0 0
  %5145 = vmatpush1.bf16.msra.mxu0 0
  %5146 = vmatprep.subr.bf16.mxu0 0
  %5147 = vmatpush1.bf16.msra.mxu0 0
  %5148 = vmatprep.subr.bf16.mxu0 0
  %5149 = vmatpush1.bf16.msra.mxu0 0
  %5150 = vmatprep.subr.bf16.mxu0 0
  %5151 = vmatpush1.bf16.msra.mxu0 0
  %5152 = vmatprep.subr.bf16.mxu0 0
  %5153 = vmatpush1.bf16.msra.mxu0 0
  %5154 = vmatprep.subr.bf16.mxu0 0
  %5155 = vmatpush1.bf16.msra.mxu0 0
  %5156 = vmatprep.subr.bf16.mxu0 0
  %5157 = vmatpush1.bf16.msra.mxu0 0
  %5158 = vmatprep.subr.bf16.mxu0 0
  %5159 = vmatpush1.bf16.msra.mxu0 0
  %5160 = vmatprep.subr.bf16.mxu0 0
  %5161 = vmatpush1.bf16.msra.mxu0 0
  %5162 = vmatprep.subr.bf16.mxu0 0
  %5163 = vmatpush1.bf16.msra.mxu0 0
  %5164 = vmatprep.subr.bf16.mxu0 0
  %5165 = vmatpush1.bf16.msra.mxu0 0
  %5166 = vmatprep.subr.bf16.mxu0 0
  %5167 = vmatpush1.bf16.msra.mxu0 0
  %5168 = vmatprep.mubr.bf16.mxu0 0
  %5169 = vmatmul.mubr.bf16.gmra.mrb[0].mxu0 %v5053
  %v5170 = vpop.f32.mrb[0].mxu0
  %v5171 = vadd.f32 %v5131, %v5170
  %v5172 = vpop.f32.mrb[0].mxu0
  %v5173 = vpop.f32.mrb[0].mxu0
  %v5174 = vpop.f32.mrb[0].mxu0
  %5175 = vdwg.mxu0
  %v5176 = vadd.f32 %v5171, %v3324
  %5177 = vmatprep.subr.bf16.mxu0 0
  %5178 = vmatpush1.bf16.msra.mxu0 %v3335
  %5179 = vmatprep.subr.bf16.mxu0 0
  %5180 = vmatpush1.bf16.msra.mxu0 %v3336
  %5181 = vmatprep.subr.bf16.mxu0 0
  %5182 = vmatpush1.bf16.msra.mxu0 0
  %5183 = vmatprep.subr.bf16.mxu0 0
  %5184 = vmatpush1.bf16.msra.mxu0 0
  %5185 = vmatprep.subr.bf16.mxu0 0
  %5186 = vmatpush1.bf16.msra.mxu0 0
  %5187 = vmatprep.subr.bf16.mxu0 0
  %5188 = vmatpush1.bf16.msra.mxu0 0
  %5189 = vmatprep.subr.bf16.mxu0 0
  %5190 = vmatpush1.bf16.msra.mxu0 0
  %5191 = vmatprep.subr.bf16.mxu0 0
  %5192 = vmatpush1.bf16.msra.mxu0 0
  %5193 = vmatprep.subr.bf16.mxu0 0
  %5194 = vmatpush1.bf16.msra.mxu0 0
  %5195 = vmatprep.subr.bf16.mxu0 0
  %5196 = vmatpush1.bf16.msra.mxu0 0
  %5197 = vmatprep.subr.bf16.mxu0 0
  %5198 = vmatpush1.bf16.msra.mxu0 0
  %5199 = vmatprep.subr.bf16.mxu0 0
  %5200 = vmatpush1.bf16.msra.mxu0 0
  %5201 = vmatprep.subr.bf16.mxu0 0
  %5202 = vmatpush1.bf16.msra.mxu0 0
  %5203 = vmatprep.subr.bf16.mxu0 0
  %5204 = vmatpush1.bf16.msra.mxu0 0
  %5205 = vmatprep.subr.bf16.mxu0 0
  %5206 = vmatpush1.bf16.msra.mxu0 0
  %5207 = vmatprep.subr.bf16.mxu0 0
  %5208 = vmatpush1.bf16.msra.mxu0 0
  %5209 = vmatprep.mubr.bf16.mxu0 0
  %5210 = vmatmul.mubr.bf16.gmra.mrb[0].mxu0 %v5010
  %v5211 = vpop.f32.mrb[0].mxu0
  %v5212 = vadd.f32 0.0, %v5211
  %v5213 = vpop.f32.mrb[0].mxu0
  %v5214 = vpop.f32.mrb[0].mxu0
  %v5215 = vpop.f32.mrb[0].mxu0
  %5216 = vdwg.mxu0
  %5217 = vmatprep.subr.bf16.mxu0 0
  %5218 = vmatpush1.bf16.msra.mxu0 %v3387
  %5219 = vmatprep.subr.bf16.mxu0 0
  %5220 = vmatpush1.bf16.msra.mxu0 %v3388
  %5221 = vmatprep.subr.bf16.mxu0 0
  %5222 = vmatpush1.bf16.msra.mxu0 0
  %5223 = vmatprep.subr.bf16.mxu0 0
  %5224 = vmatpush1.bf16.msra.mxu0 0
  %5225 = vmatprep.subr.bf16.mxu0 0
  %5226 = vmatpush1.bf16.msra.mxu0 0
  %5227 = vmatprep.subr.bf16.mxu0 0
  %5228 = vmatpush1.bf16.msra.mxu0 0
  %5229 = vmatprep.subr.bf16.mxu0 0
  %5230 = vmatpush1.bf16.msra.mxu0 0
  %5231 = vmatprep.subr.bf16.mxu0 0
  %5232 = vmatpush1.bf16.msra.mxu0 0
  %5233 = vmatprep.subr.bf16.mxu0 0
  %5234 = vmatpush1.bf16.msra.mxu0 0
  %5235 = vmatprep.subr.bf16.mxu0 0
  %5236 = vmatpush1.bf16.msra.mxu0 0
  %5237 = vmatprep.subr.bf16.mxu0 0
  %5238 = vmatpush1.bf16.msra.mxu0 0
  %5239 = vmatprep.subr.bf16.mxu0 0
  %5240 = vmatpush1.bf16.msra.mxu0 0
  %5241 = vmatprep.subr.bf16.mxu0 0
  %5242 = vmatpush1.bf16.msra.mxu0 0
  %5243 = vmatprep.subr.bf16.mxu0 0
  %5244 = vmatpush1.bf16.msra.mxu0 0
  %5245 = vmatprep.subr.bf16.mxu0 0
  %5246 = vmatpush1.bf16.msra.mxu0 0
  %5247 = vmatprep.subr.bf16.mxu0 0
  %5248 = vmatpush1.bf16.msra.mxu0 0
  %5249 = vmatprep.mubr.bf16.mxu0 0
  %5250 = vmatmul.mubr.bf16.gmra.mrb[0].mxu0 %v5053
  %v5251 = vpop.f32.mrb[0].mxu0
  %v5252 = vadd.f32 %v5212, %v5251
  %v5253 = vpop.f32.mrb[0].mxu0
  %v5254 = vpop.f32.mrb[0].mxu0
  %v5255 = vpop.f32.mrb[0].mxu0
  %5256 = vdwg.mxu0
  %v5257 = vadd.f32 %v5252, %v3435
  %5258 = vmatprep.subr.bf16.mxu0 0
  %5259 = vmatpush1.bf16.msra.mxu0 %v3446
  %5260 = vmatprep.subr.bf16.mxu0 0
  %5261 = vmatpush1.bf16.msra.mxu0 %v3447
  %5262 = vmatprep.subr.bf16.mxu0 0
  %5263 = vmatpush1.bf16.msra.mxu0 0
  %5264 = vmatprep.subr.bf16.mxu0 0
  %5265 = vmatpush1.bf16.msra.mxu0 0
  %5266 = vmatprep.subr.bf16.mxu0 0
  %5267 = vmatpush1.bf16.msra.mxu0 0
  %5268 = vmatprep.subr.bf16.mxu0 0
  %5269 = vmatpush1.bf16.msra.mxu0 0
  %5270 = vmatprep.subr.bf16.mxu0 0
  %5271 = vmatpush1.bf16.msra.mxu0 0
  %5272 = vmatprep.subr.bf16.mxu0 0
  %5273 = vmatpush1.bf16.msra.mxu0 0
  %5274 = vmatprep.subr.bf16.mxu0 0
  %5275 = vmatpush1.bf16.msra.mxu0 0
  %5276 = vmatprep.subr.bf16.mxu0 0
  %5277 = vmatpush1.bf16.msra.mxu0 0
  %5278 = vmatprep.subr.bf16.mxu0 0
  %5279 = vmatpush1.bf16.msra.mxu0 0
  %5280 = vmatprep.subr.bf16.mxu0 0
  %5281 = vmatpush1.bf16.msra.mxu0 0
  %5282 = vmatprep.subr.bf16.mxu0 0
  %5283 = vmatpush1.bf16.msra.mxu0 0
  %5284 = vmatprep.subr.bf16.mxu0 0
  %5285 = vmatpush1.bf16.msra.mxu0 0
  %5286 = vmatprep.subr.bf16.mxu0 0
  %5287 = vmatpush1.bf16.msra.mxu0 0
  %5288 = vmatprep.subr.bf16.mxu0 0
  %5289 = vmatpush1.bf16.msra.mxu0 0
  %5290 = vmatprep.mubr.bf16.mxu0 0
  %5291 = vmatmul.mubr.bf16.gmra.mrb[0].mxu0 %v5010
  %v5292 = vpop.f32.mrb[0].mxu0
  %v5293 = vadd.f32 0.0, %v5292
  %v5294 = vpop.f32.mrb[0].mxu0
  %v5295 = vpop.f32.mrb[0].mxu0
  %v5296 = vpop.f32.mrb[0].mxu0
  %5297 = vdwg.mxu0
  %5298 = vmatprep.subr.bf16.mxu0 0
  %5299 = vmatpush1.bf16.msra.mxu0 %v3498
  %5300 = vmatprep.subr.bf16.mxu0 0
  %5301 = vmatpush1.bf16.msra.mxu0 %v3499
  %5302 = vmatprep.subr.bf16.mxu0 0
  %5303 = vmatpush1.bf16.msra.mxu0 0
  %5304 = vmatprep.subr.bf16.mxu0 0
  %5305 = vmatpush1.bf16.msra.mxu0 0
  %5306 = vmatprep.subr.bf16.mxu0 0
  %5307 = vmatpush1.bf16.msra.mxu0 0
  %5308 = vmatprep.subr.bf16.mxu0 0
  %5309 = vmatpush1.bf16.msra.mxu0 0
  %5310 = vmatprep.subr.bf16.mxu0 0
  %5311 = vmatpush1.bf16.msra.mxu0 0
  %5312 = vmatprep.subr.bf16.mxu0 0
  %5313 = vmatpush1.bf16.msra.mxu0 0
  %5314 = vmatprep.subr.bf16.mxu0 0
  %5315 = vmatpush1.bf16.msra.mxu0 0
  %5316 = vmatprep.subr.bf16.mxu0 0
  %5317 = vmatpush1.bf16.msra.mxu0 0
  %5318 = vmatprep.subr.bf16.mxu0 0
  %5319 = vmatpush1.bf16.msra.mxu0 0
  %5320 = vmatprep.subr.bf16.mxu0 0
  %5321 = vmatpush1.bf16.msra.mxu0 0
  %5322 = vmatprep.subr.bf16.mxu0 0
  %5323 = vmatpush1.bf16.msra.mxu0 0
  %5324 = vmatprep.subr.bf16.mxu0 0
  %5325 = vmatpush1.bf16.msra.mxu0 0
  %5326 = vmatprep.subr.bf16.mxu0 0
  %5327 = vmatpush1.bf16.msra.mxu0 0
  %5328 = vmatprep.subr.bf16.mxu0 0
  %5329 = vmatpush1.bf16.msra.mxu0 0
  %5330 = vmatprep.mubr.bf16.mxu0 0
  %5331 = vmatmul.mubr.bf16.gmra.mrb[0].mxu0 %v5053
  %v5332 = vpop.f32.mrb[0].mxu0
  %v5333 = vadd.f32 %v5293, %v5332
  %v5334 = vpop.f32.mrb[0].mxu0
  %v5335 = vpop.f32.mrb[0].mxu0
  %v5336 = vpop.f32.mrb[0].mxu0
  %5337 = vdwg.mxu0
  %v5338 = vadd.f32 %v5333, %v3546
  %v5339 = vxor.u32 %v5095, 2147483648
  %v5340 = vmul.f32 %v5339, 1.442695
  %v5341 = vpow.pop %v5340
  %v5342 = vadd.f32 %v5341, 1.0
  %v5343 = vrcp.pop %v5342
  %v5344 = vmul.f32 1.0, %v5343
  %v5345 = vxor.u32 %v5176, 2147483648
  %v5346 = vmul.f32 %v5345, 1.442695
  %v5347 = vpow.pop %v5346
  %v5348 = vadd.f32 %v5347, 1.0
  %v5349 = vrcp.pop %v5348
  %v5350 = vmul.f32 1.0, %v5349
  %v5351 = vtanh.pop %v5257
  %v5352 = vxor.u32 %v5338, 2147483648
  %v5353 = vmul.f32 %v5352, 1.442695
  %v5354 = vpow.pop %v5353
  %v5355 = vadd.f32 %v5354, 1.0
  %v5356 = vrcp.pop %v5355
  %v5357 = vmul.f32 1.0, %v5356
  %v5358 = vmul.f32 %v5350, %v5002
  %v5359 = vmul.f32 %v5344, %v5351
  %v5360 = vadd.f32 %v5358, %v5359
  %v5361 = vtanh.pop %v5360
  %v5362 = vmul.f32 %v5357, %v5361
  %v5363 = vpack.c.bf16 %v3099, %v3099
  %v5364 = vld [vmem:[%s8] sm:$0xf]
  %v5365 = vld [vmem:[%s8 + $0x4] sm:$0xf]
  %v5366 = vld [vmem:[%s8 + $0x8] sm:$0xf]
  %v5367 = vld [vmem:[%s8 + $0xc] sm:$0xf]
  %v5368 = vpack.c.bf16 %v5362, %v5362
  %v5369 = vld [vmem:[%s9] sm:$0xf]
  %v5370 = vld [vmem:[%s9 + $0x4] sm:$0xf]
  %v5371 = vld [vmem:[%s9 + $0x8] sm:$0xf]
  %v5372 = vld [vmem:[%s9 + $0xc] sm:$0xf]
  %v5377 = vunpack.c.l.b16 %v5369
  %v5378 = vunpack.c.l.b16 %v5370
  %v5379 = vunpack.c.l.b16 %v5371
  %v5380 = vunpack.c.l.b16 %v5372
  %v5381 = vpack.c.b16 %v5378, %v5377
  %v5382 = vpack.c.b16 %v5380, %v5379
  %v5386 = vsel %vm131, %v5368, 0
  %5388 = vmatprep.subr.bf16.mxu0 0
  %5389 = vmatpush1.bf16.msra.mxu0 %v5381
  %5390 = vmatprep.subr.bf16.mxu0 0
  %5391 = vmatpush1.bf16.msra.mxu0 %v5382
  %5392 = vmatprep.subr.bf16.mxu0 0
  %5393 = vmatpush1.bf16.msra.mxu0 0
  %5394 = vmatprep.subr.bf16.mxu0 0
  %5395 = vmatpush1.bf16.msra.mxu0 0
  %5396 = vmatprep.subr.bf16.mxu0 0
  %5397 = vmatpush1.bf16.msra.mxu0 0
  %5398 = vmatprep.subr.bf16.mxu0 0
  %5399 = vmatpush1.bf16.msra.mxu0 0
  %5400 = vmatprep.subr.bf16.mxu0 0
  %5401 = vmatpush1.bf16.msra.mxu0 0
  %5402 = vmatprep.subr.bf16.mxu0 0
  %5403 = vmatpush1.bf16.msra.mxu0 0
  %5404 = vmatprep.subr.bf16.mxu0 0
  %5405 = vmatpush1.bf16.msra.mxu0 0
  %5406 = vmatprep.subr.bf16.mxu0 0
  %5407 = vmatpush1.bf16.msra.mxu0 0
  %5408 = vmatprep.subr.bf16.mxu0 0
  %5409 = vmatpush1.bf16.msra.mxu0 0
  %5410 = vmatprep.subr.bf16.mxu0 0
  %5411 = vmatpush1.bf16.msra.mxu0 0
  %5412 = vmatprep.subr.bf16.mxu0 0
  %5413 = vmatpush1.bf16.msra.mxu0 0
  %5414 = vmatprep.subr.bf16.mxu0 0
  %5415 = vmatpush1.bf16.msra.mxu0 0
  %5416 = vmatprep.subr.bf16.mxu0 0
  %5417 = vmatpush1.bf16.msra.mxu0 0
  %5418 = vmatprep.subr.bf16.mxu0 0
  %5419 = vmatpush1.bf16.msra.mxu0 0
  %5420 = vmatprep.mubr.bf16.mxu0 0
  %5421 = vmatmul.mubr.bf16.gmra.mrb[0].mxu0 %v5386
  %v5422 = vpop.f32.mrb[0].mxu0
  %v5423 = vadd.f32 0.0, %v5422
  %v5424 = vpop.f32.mrb[0].mxu0
  %v5425 = vpop.f32.mrb[0].mxu0
  %v5426 = vpop.f32.mrb[0].mxu0
  %5427 = vdwg.mxu0
  %v5432 = vunpack.c.l.b16 %v5364
  %v5433 = vunpack.c.l.b16 %v5365
  %v5434 = vunpack.c.l.b16 %v5366
  %v5435 = vunpack.c.l.b16 %v5367
  %v5436 = vpack.c.b16 %v5433, %v5432
  %v5437 = vpack.c.b16 %v5435, %v5434
  %v5441 = vsel %vm131, %v5363, 0
  %5443 = vmatprep.subr.bf16.mxu0 0
  %5444 = vmatpush1.bf16.msra.mxu0 %v5436
  %5445 = vmatprep.subr.bf16.mxu0 0
  %5446 = vmatpush1.bf16.msra.mxu0 %v5437
  %5447 = vmatprep.subr.bf16.mxu0 0
  %5448 = vmatpush1.bf16.msra.mxu0 0
  %5449 = vmatprep.subr.bf16.mxu0 0
  %5450 = vmatpush1.bf16.msra.mxu0 0
  %5451 = vmatprep.subr.bf16.mxu0 0
  %5452 = vmatpush1.bf16.msra.mxu0 0
  %5453 = vmatprep.subr.bf16.mxu0 0
  %5454 = vmatpush1.bf16.msra.mxu0 0
  %5455 = vmatprep.subr.bf16.mxu0 0
  %5456 = vmatpush1.bf16.msra.mxu0 0
  %5457 = vmatprep.subr.bf16.mxu0 0
  %5458 = vmatpush1.bf16.msra.mxu0 0
  %5459 = vmatprep.subr.bf16.mxu0 0
  %5460 = vmatpush1.bf16.msra.mxu0 0
  %5461 = vmatprep.subr.bf16.mxu0 0
  %5462 = vmatpush1.bf16.msra.mxu0 0
  %5463 = vmatprep.subr.bf16.mxu0 0
  %5464 = vmatpush1.bf16.msra.mxu0 0
  %5465 = vmatprep.subr.bf16.mxu0 0
  %5466 = vmatpush1.bf16.msra.mxu0 0
  %5467 = vmatprep.subr.bf16.mxu0 0
  %5468 = vmatpush1.bf16.msra.mxu0 0
  %5469 = vmatprep.subr.bf16.mxu0 0
  %5470 = vmatpush1.bf16.msra.mxu0 0
  %5471 = vmatprep.subr.bf16.mxu0 0
  %5472 = vmatpush1.bf16.msra.mxu0 0
  %5473 = vmatprep.subr.bf16.mxu0 0
  %5474 = vmatpush1.bf16.msra.mxu0 0
  %5475 = vmatprep.mubr.bf16.mxu0 0
  %5476 = vmatmul.mubr.bf16.gmra.mrb[0].mxu0 %v5441
  %v5477 = vpop.f32.mrb[0].mxu0
  %v5478 = vadd.f32 %v5423, %v5477
  %v5479 = vpop.f32.mrb[0].mxu0
  %v5480 = vpop.f32.mrb[0].mxu0
  %v5481 = vpop.f32.mrb[0].mxu0
  %5482 = vdwg.mxu0
  %v5483 = vld [vmem:[%s10] sm:$0x1]
  %v5485 = vlaneseq
  %v5486 = vshrl.u32 %v5485, 7
  %v5487 = vsub.s32 0, %v5486
  %v5488 = vrot.slane %v5483, %v5487
  %v5490 = vadd.f32 %v5478, %v5488
  %v5491 = vmax.f32 %v5490, 0.0
  %v5492 = vpack.c.bf16 %v5491, %v5491
  %v5493 = vld [vmem:[%s11] sm:$0xf]
  %v5494 = vld [vmem:[%s11 + $0x4] sm:$0xf]
  %v5495 = vld [vmem:[%s11 + $0x8] sm:$0xf]
  %v5496 = vld [vmem:[%s11 + $0xc] sm:$0xf]
  %v5497 = vld [vmem:[%s11 + $0x10] sm:$0xf]
  %v5498 = vld [vmem:[%s11 + $0x14] sm:$0xf]
  %v5499 = vld [vmem:[%s11 + $0x18] sm:$0xf]
  %v5500 = vld [vmem:[%s11 + $0x1c] sm:$0xf]
  %v5501 = vld [vmem:[%s12] sm:$0x1]
  %v5503 = vlaneseq
  %v5504 = vshrl.u32 %v5503, 7
  %v5505 = vsub.s32 0, %v5504
  %v5506 = vrot.slane %v5501, %v5505
  %v5516 = vunpack.c.l.b16 %v5493
  %v5517 = vunpack.c.l.b16 %v5494
  %v5518 = vunpack.c.l.b16 %v5495
  %v5519 = vunpack.c.l.b16 %v5496
  %v5520 = vunpack.c.l.b16 %v5497
  %v5521 = vunpack.c.l.b16 %v5498
  %v5522 = vunpack.c.l.b16 %v5499
  %v5523 = vunpack.c.l.b16 %v5500
  %v5524 = vpack.c.b16 %v5517, %v5516
  %v5525 = vpack.c.b16 %v5519, %v5518
  %v5526 = vpack.c.b16 %v5521, %v5520
  %v5527 = vpack.c.b16 %v5523, %v5522
  %vm5532 = vcmask 523264
  %v5534 = vsel %vm5532, %v5492, 0
  %5536 = vmatprep.subr.bf16.mxu0 0
  %5537 = vmatpush1.bf16.msra.mxu0 %v5524
  %5538 = vmatprep.subr.bf16.mxu0 0
  %5539 = vmatpush1.bf16.msra.mxu0 %v5525
  %5540 = vmatprep.subr.bf16.mxu0 0
  %5541 = vmatpush1.bf16.msra.mxu0 %v5526
  %5542 = vmatprep.subr.bf16.mxu0 0
  %5543 = vmatpush1.bf16.msra.mxu0 %v5527
  %5544 = vmatprep.subr.bf16.mxu0 0
  %5545 = vmatpush1.bf16.msra.mxu0 0
  %5546 = vmatprep.subr.bf16.mxu0 0
  %5547 = vmatpush1.bf16.msra.mxu0 0
  %5548 = vmatprep.subr.bf16.mxu0 0
  %5549 = vmatpush1.bf16.msra.mxu0 0
  %5550 = vmatprep.subr.bf16.mxu0 0
  %5551 = vmatpush1.bf16.msra.mxu0 0
  %5552 = vmatprep.subr.bf16.mxu0 0
  %5553 = vmatpush1.bf16.msra.mxu0 0
  %5554 = vmatprep.subr.bf16.mxu0 0
  %5555 = vmatpush1.bf16.msra.mxu0 0
  %5556 = vmatprep.subr.bf16.mxu0 0
  %5557 = vmatpush1.bf16.msra.mxu0 0
  %5558 = vmatprep.subr.bf16.mxu0 0
  %5559 = vmatpush1.bf16.msra.mxu0 0
  %5560 = vmatprep.subr.bf16.mxu0 0
  %5561 = vmatpush1.bf16.msra.mxu0 0
  %5562 = vmatprep.subr.bf16.mxu0 0
  %5563 = vmatpush1.bf16.msra.mxu0 0
  %5564 = vmatprep.subr.bf16.mxu0 0
  %5565 = vmatpush1.bf16.msra.mxu0 0
  %5566 = vmatprep.subr.bf16.mxu0 0
  %5567 = vmatpush1.bf16.msra.mxu0 0
  %5568 = vmatprep.mubr.bf16.mxu0 0
  %5569 = vmatmul.mubr.bf16.gmra.mrb[0].mxu0 %v5534
  %v5570 = vpop.f32.mrb[0].mxu0
  %v5571 = vadd.f32 %v5506, %v5570
  %v5572 = vpop.f32.mrb[0].mxu0
  %v5573 = vpop.f32.mrb[0].mxu0
  %v5574 = vpop.f32.mrb[0].mxu0
  %5575 = vdwg.mxu0
  %vm5576 = vcmask 31744
  %5577 = vst.msk [vmem:[%s13] sm:$0xff] %vm5576, %v5571
  // Predicated region
  $region54: #{lrcn_forward.3} parent=0 // pred_check
    _
  $region55: #{lrcn_forward.3} parent=0 // pred_check_branch
    %5579 = sbr.rel (0) target = $region57
  $region56: #{lrcn_forward.3} parent=0 // pred_region
    _
  $region57: #{lrcn_forward.3} parent=0 // pred_fallthru
    _
  // Predicated region
  $region58: #{lrcn_forward.3} parent=0 // pred_check
    _
  $region59: #{lrcn_forward.3} parent=0 // pred_check_branch
    %5581 = sbr.rel (0) target = $region61
  $region60: #{lrcn_forward.3} parent=0 // pred_region
    _
  $region61: #{lrcn_forward.3} parent=0 // pred_fallthru
    _

</llo_original>
